<compile_context>
chip_gen: v7x
topology: tpu7x:2x2x1
jax: 0.10.0
libtpu: 0.0.40
codegen_flags: <defaults>
</compile_context>

<pallas_src>
import functools

import jax
import jax.numpy as jnp
from jax.experimental import pallas as pl
from jax.experimental.pallas import tpu as pltpu

F32 = jnp.float32
BF16 = jnp.bfloat16
HIDDEN = 128            # LSTM hidden size
TK = 2048               # K-tile for the head's flatten-axis streaming matmul
CONV_CHUNK = 256        # lane-chunk bounding the f32 matmul results in-kernel


def _dims(samples):
    w1p = (samples + 1) // 4          # width after conv1 + pool1
    w2p = (w1p + 1) // 4              # width after conv2 + pool2
    return w1p, w2p


def _elu(x):
    return jnp.where(x > 0, x, jnp.exp(jnp.minimum(x, 0.0)) - 1.0)


# --------------------- fused conv1 -> pool1 -> conv2 -> pool2 ----------------
# One grid step = one batch row, all EEG channels (channel strips along lanes).
#   x_ref   : (16, N)  fold-16 padded input, x[s, h*U+u] = xpad[h, 16u+s]
#   mask_ref: (4, N)   1.0 where the conv1 pooled position 4t+r2 < w1_pool
#   w1_ref  : (256, 80)  conv1 weights, rows (r2, d, cin), BN1 scale folded
#   s1_ref  : (256, 1)   BN1 shift (replicated per row)
#   w2_ref  : (128, 576) conv2 weights, rows (d2, c2), cols (q2, r2, cin)
#   s2_ref  : (128, 1)   BN2 shift
#   o_ref   : (32, N)    conv2+BN2+ELU+pool2 output, bf16 (cols (h, i2), i2<w2p valid)
def fused_conv_kernel(x_ref, mask_ref, w1_ref, s1_ref, w2_ref, s2_ref,
                      o_ref, c1_scr, z_scr, c2_scr, *, chunk):
    n_lanes = o_ref.shape[-1]
    xv = x_ref[...]                                         # (16, N) f32

    # conv1 strided im2col: C1[16*dlt + s, l] = x[s, l + dlt]   (dlt = 0..4)
    c1_scr[0:16, :] = xv.astype(BF16)
    for dlt in range(1, 5):
        c1_scr[16 * dlt:16 * (dlt + 1), :] = pltpu.roll(
            xv, n_lanes - dlt, axis=1).astype(BF16)

    w1 = w1_ref[...]
    s1 = s1_ref[...]
    mv = mask_ref[...]
    starts = list(range(0, n_lanes, chunk))

    # conv1 + BN1 + ELU + AvgPool(1,4), result already in conv2 fold-4 layout
    for st in starts:
        en = min(st + chunk, n_lanes)
        y = jnp.dot(w1, c1_scr[:, st:en], preferred_element_type=F32)  # (256,w)
        y = _elu(y + s1)
        for r in range(4):                      # sum the 4 pool1 phases per r2
            zr = (y[r * 64:r * 64 + 16] + y[r * 64 + 16:r * 64 + 32] +
                  y[r * 64 + 32:r * 64 + 48] + y[r * 64 + 48:r * 64 + 64])
            z_scr[r * 16:(r + 1) * 16, st:en] = (0.25 * zr) * mv[r:r + 1, st:en]

    # conv2 strided im2col: C2[q2-block, l] = z[l + q2 - 4] (zeros roll in from
    # the masked strip tails and supply conv2's 16-sample zero padding)
    zv = z_scr[...]                                         # (64, N) f32
    for q2 in range(9):
        sh = (4 - q2) % n_lanes
        src = pltpu.roll(zv, sh, axis=1) if sh else zv
        c2_scr[64 * q2:64 * (q2 + 1), :] = src.astype(BF16)

    w2 = w2_ref[...]
    s2 = s2_ref[...]
    for st in starts:
        en = min(st + chunk, n_lanes)
        y = jnp.dot(w2, c2_scr[:, st:en], preferred_element_type=F32)  # (128,w)
        y = _elu(y + s2)
        o_ref[:, st:en] = (0.25 * (y[0:32] + y[32:64] +
                                   y[64:96] + y[96:128])).astype(BF16)


# -------------- biLSTM layer-0 input matmul (K-streamed, N-split) ------------
# grid = (2, nk): axis 0 = fwd/bwd 512-column half ("parallel", gives both v7x
# TensorCores work), axis 1 = K tiles of the flatten axis ("arbitrary").
def lstm0_kernel(x_ref, w_ref, b_ref, o_ref, acc_ref):
    k = pl.program_id(1)

    @pl.when(k == 0)
    def _():
        acc_ref[...] = jnp.zeros_like(acc_ref)

    acc_ref[...] += jnp.dot(x_ref[...], w_ref[...], preferred_element_type=F32)

    @pl.when(k == pl.num_programs(1) - 1)
    def _():
        o_ref[...] = acc_ref[...] + b_ref[...]


# ---------- layer-0 cells + layer-1 biLSTM + fc1 + fc2 + log_softmax ---------
def head_finalize_kernel(g0_ref, w1_ref, b1_ref, wf1_ref, bf1_ref,
                         wf2_ref, bf2_ref, o_ref):
    H = HIDDEN

    def cell(g):                                 # h0 = c0 = 0, seq_len = 1
        i = jax.nn.sigmoid(g[:, 0 * H:1 * H])
        # forget gate unused: c_prev = 0
        gg = jnp.tanh(g[:, 2 * H:3 * H])
        o = jax.nn.sigmoid(g[:, 3 * H:4 * H])
        return o * jnp.tanh(i * gg)

    g0 = g0_ref[...]                                                  # (B, 8H)
    h0 = jnp.concatenate([cell(g0[:, :4 * H]), cell(g0[:, 4 * H:])], axis=1)
    g1 = jnp.dot(h0.astype(BF16), w1_ref[...],
                 preferred_element_type=F32) + b1_ref[...]            # (B, 8H)
    h1 = jnp.concatenate([cell(g1[:, :4 * H]), cell(g1[:, 4 * H:])], axis=1)
    y = jnp.dot(h1, wf1_ref[...], preferred_element_type=F32) + bf1_ref[...]
    # dropout: identity (inference)
    y = jnp.dot(y, wf2_ref[...], preferred_element_type=F32) + bf2_ref[...]
    m = jnp.max(y, axis=1, keepdims=True)
    o_ref[...] = y - (m + jnp.log(jnp.sum(jnp.exp(y - m), axis=1,
                                          keepdims=True)))


# ----------------------------- parameters ------------------------------------
def init_params(key, chans, samples, nb_classes=6):
    ks = jax.random.split(key, 48)
    it = iter(ks)

    def nrm(shape, scale=0.1):
        return scale * jax.random.normal(next(it), shape, F32)

    eps = 1e-5
    w1p_w, w2p_w = _dims(samples)
    flatten = 32 * chans * w2p_w
    assert flatten == chans * (samples // 16) * 32      # matches the nn.Module

    # ---- conv1 (16,1,1,64) + BN1 (eval stats, scale folded into weights) ----
    w1 = nrm((16, 64))
    b1 = nrm((16,))
    g1 = 1.0 + nrm((16,), 0.05)
    be1 = nrm((16,), 0.05)
    m1 = nrm((16,), 0.05)
    v1 = jax.random.uniform(next(it), (16,), F32, 0.5, 1.5)
    a1 = g1 / jnp.sqrt(v1 + eps)
    shift1 = a1 * (b1 - m1) + be1

    # packed rows = r2*64 + d*16 + cin, cols a in [0,80), tap k = a - 4*r2 - d
    a_idx = jnp.arange(80)
    r2d = 4 * jnp.arange(4)[:, None, None] + jnp.arange(4)[None, :, None]
    k1 = a_idx[None, None, :] - r2d                                   # (4,4,80)
    valid1 = (k1 >= 0) & (k1 < 64)
    taps1 = jnp.where(valid1[None], (w1 * a1[:, None])[:, jnp.clip(k1, 0, 63)],
                      0.0)                                            # (16,4,4,80)
    cw1 = taps1.transpose(1, 2, 0, 3).reshape(256, 80).astype(BF16)
    cs1 = jnp.tile(shift1, 16).reshape(256, 1)

    # ---- conv2 (32,16,1,32) + BN2 -------------------------------------------
    w2 = nrm((32, 16, 32))
    b2 = nrm((32,))
    g2 = 1.0 + nrm((32,), 0.05)
    be2 = nrm((32,), 0.05)
    m2 = nrm((32,), 0.05)
    v2 = jax.random.uniform(next(it), (32,), F32, 0.5, 1.5)
    a2 = g2 / jnp.sqrt(v2 + eps)
    shift2 = a2 * (b2 - m2) + be2

    # packed rows = d2*32 + c2, cols = q2*64 + r2*16 + cin, tap k2 = 4q2+r2-d2
    k2 = (4 * jnp.arange(9)[None, :, None] + jnp.arange(4)[None, None, :]
          - jnp.arange(4)[:, None, None])                             # (4,9,4)
    valid2 = (k2 >= 0) & (k2 < 32)
    taps2 = jnp.where(valid2[None, None],
                      (w2 * a2[:, None, None])[:, :, jnp.clip(k2, 0, 31)],
                      0.0)                                            # (32,16,4,9,4)
    cw2 = taps2.transpose(2, 0, 3, 4, 1).reshape(128, 576).astype(BF16)
    cs2 = jnp.tile(shift2, 4).reshape(128, 1)

    # ---- biLSTM (seq_len=1, h0=c0=0 => only W_ih and b_ih+b_hh matter) ------
    def lstm_dir(in_size):
        wih = nrm((4 * HIDDEN, in_size), 0.05)
        return wih, nrm((4 * HIDDEN,), 0.05) + nrm((4 * HIDDEN,), 0.05)

    w0f, b0f = lstm_dir(flatten)
    w0b, b0b = lstm_dir(flatten)
    w1f, b1f = lstm_dir(2 * HIDDEN)
    w1b, b1b = lstm_dir(2 * HIDDEN)

    flat_pad = -(-flatten // TK) * TK
    # TODO(synk): int8/fp8 quantization of w_l0 (dominant HBM stream) pending
    # accuracy validation; kept in bf16.
    w_l0 = jnp.concatenate([w0f.T, w0b.T], axis=1)            # (flatten, 1024)
    w_l0 = jnp.pad(w_l0, ((0, flat_pad - flatten), (0, 0))).astype(BF16)
    b_l0 = jnp.concatenate([b0f, b0b]).reshape(1, 8 * HIDDEN)
    w_l1 = jnp.concatenate([w1f.T, w1b.T], axis=1).astype(BF16)   # (256, 1024)
    b_l1 = jnp.concatenate([b1f, b1b]).reshape(1, 8 * HIDDEN)

    wfc1 = nrm((64, 2 * HIDDEN), 0.05)
    bfc1 = nrm((64,), 0.05)
    wfc2 = nrm((nb_classes, 64), 0.05)
    bfc2 = nrm((nb_classes,), 0.05)

    return dict(
        cw1=cw1, cs1=cs1, cw2=cw2, cs2=cs2,
        w_l0=w_l0, b_l0=b_l0, w_l1=w_l1, b_l1=b_l1,
        wfc1=wfc1.T, bfc1=bfc1.reshape(1, 64),
        wfc2=wfc2.T, bfc2=bfc2.reshape(1, nb_classes),
    )


# ------------------------------- forward -------------------------------------
def eeg_forward(x, params):
    B, cin, chans, samples = x.shape
    assert cin == 1
    w1p, w2p = _dims(samples)
    U = w2p + 8                        # folded strip width per EEG channel
    NL = chans * U
    NLP = -(-NL // 128) * 128          # lane-pad to a vreg-lane multiple
    nc = params["bfc2"].shape[1]

    # fold the padded Samples axis by 16: x16[b, s, h*U+u] = xpad[b, h, 16u+s]
    xp = jnp.pad(x[:, 0].astype(F32),
                 ((0, 0), (0, 0), (32, 16 * U - 32 - samples)))
    x16 = (xp.reshape(B, chans, U, 16).transpose(0, 3, 1, 2)
             .reshape(B, 16, NL))
    x16 = jnp.pad(x16, ((0, 0), (0, 0), (0, NLP - NL)))

    # 0/1 mask: conv1 pooled position 4t+r2 must lie inside [0, w1_pool)
    mask = (4 * jnp.arange(U)[None, :] + jnp.arange(4)[:, None] < w1p)
    mask = jnp.pad(jnp.tile(mask.astype(F32), (1, chans)),
                   ((0, 0), (0, NLP - NL)))

    out2 = pl.pallas_call(
        functools.partial(fused_conv_kernel, chunk=CONV_CHUNK),
        grid=(B,),
        in_specs=[
            pl.BlockSpec((None, 16, NLP), lambda b: (b, 0, 0)),
            pl.BlockSpec((4, NLP), lambda b: (0, 0)),
            pl.BlockSpec((256, 80), lambda b: (0, 0)),
            pl.BlockSpec((256, 1), lambda b: (0, 0)),
            pl.BlockSpec((128, 576), lambda b: (0, 0)),
            pl.BlockSpec((128, 1), lambda b: (0, 0)),
        ],
        out_specs=pl.BlockSpec((None, 32, NLP), lambda b: (b, 0, 0)),
        out_shape=jax.ShapeDtypeStruct((B, 32, NLP), BF16),
        scratch_shapes=[
            pltpu.VMEM((80, NLP), BF16),    # conv1 strided-im2col slab
            pltpu.VMEM((64, NLP), F32),     # pooled conv1 output (fold-4 layout)
            pltpu.VMEM((576, NLP), BF16),   # conv2 strided-im2col slab
        ],
        compiler_params=pltpu.CompilerParams(
            dimension_semantics=("parallel",),
            vmem_limit_bytes=48 * 1024 * 1024),
    )(x16, mask, params["cw1"], params["cs1"], params["cw2"], params["cs2"])

    # flatten in the PyTorch order (c_out, chan, w); stays bf16 for the head
    flatten = 32 * chans * w2p
    xf = (out2[:, :, :NL].reshape(B, 32, chans, U)[:, :, :, :w2p]
          .reshape(B, flatten))
    flat_pad = params["w_l0"].shape[0]
    xf = jnp.pad(xf, ((0, 0), (0, flat_pad - flatten)))

    # biLSTM layer-0 gates: HBM-bound K-streamed matmul, fwd/bwd N-split
    nk = flat_pad // TK
    g0 = pl.pallas_call(
        lstm0_kernel,
        grid=(2, nk),
        in_specs=[
            pl.BlockSpec((B, TK), lambda j, k: (0, k)),
            pl.BlockSpec((TK, 4 * HIDDEN), lambda j, k: (k, j)),
            pl.BlockSpec((1, 4 * HIDDEN), lambda j, k: (0, j)),
        ],
        out_specs=pl.BlockSpec((B, 4 * HIDDEN), lambda j, k: (0, j)),
        out_shape=jax.ShapeDtypeStruct((B, 8 * HIDDEN), F32),
        scratch_shapes=[pltpu.VMEM((B, 4 * HIDDEN), F32)],
        compiler_params=pltpu.CompilerParams(
            dimension_semantics=("parallel", "arbitrary"),
            vmem_limit_bytes=48 * 1024 * 1024),
    )(xf, params["w_l0"], params["b_l0"])

    # layer-0 cells, layer-1 biLSTM, fc1, fc2, log_softmax (tiny, one step)
    logp = pl.pallas_call(
        head_finalize_kernel,
        grid=(1,),
        in_specs=[
            pl.BlockSpec((B, 8 * HIDDEN), lambda i: (0, 0)),
            pl.BlockSpec((2 * HIDDEN, 8 * HIDDEN), lambda i: (0, 0)),
            pl.BlockSpec((1, 8 * HIDDEN), lambda i: (0, 0)),
            pl.BlockSpec((2 * HIDDEN, 64), lambda i: (0, 0)),
            pl.BlockSpec((1, 64), lambda i: (0, 0)),
            pl.BlockSpec((64, nc), lambda i: (0, 0)),
            pl.BlockSpec((1, nc), lambda i: (0, 0)),
        ],
        out_specs=pl.BlockSpec((B, nc), lambda i: (0, 0)),
        out_shape=jax.ShapeDtypeStruct((B, nc), F32),
    )(g0, params["w_l1"], params["b_l1"], params["wfc1"], params["bfc1"],
      params["wfc2"], params["bfc2"])
    return logp


if __name__ == "__main__":
    # Small shapes consistent with the module: Samples must satisfy
    # floor((floor((S+1)/4)+1)/4) == S//16 (true for S=128 and the default 3000).
    B, Chans, Samples, NB_CLASSES = 2, 4, 128, 6
    key = jax.random.PRNGKey(0)
    kx, kp = jax.random.split(key)
    x = jax.random.normal(kx, (B, 1, Chans, Samples), F32)
    params = init_params(kp, Chans, Samples, nb_classes=NB_CLASSES)

    out = jax.jit(eeg_forward)(x, params)
    out = jax.block_until_ready(out)

    assert out.shape == (B, NB_CLASSES)
    assert bool(jnp.all(jnp.isfinite(out)))
    # log_softmax rows should (approximately) exponentiate-sum to 1
    assert bool(jnp.all(jnp.abs(jnp.sum(jnp.exp(out), axis=1) - 1.0) < 1e-3))
    print("KERNEL_OK")
</pallas_src>

<mosaic_0001>
module attributes {stable_mosaic.version = 11 : i64} {
  func.func @fused_conv_kernel(%arg0: i32, %arg1: memref<1x16x128xf32, #tpu.memory_space<vmem>>, %arg2: memref<4x128xf32, #tpu.memory_space<vmem>>, %arg3: memref<256x80xbf16, #tpu.memory_space<vmem>>, %arg4: memref<256x1xf32, #tpu.memory_space<vmem>>, %arg5: memref<128x576xbf16, #tpu.memory_space<vmem>>, %arg6: memref<128x1xf32, #tpu.memory_space<vmem>>, %arg7: memref<1x32x128xbf16, #tpu.memory_space<vmem>>, %arg8: memref<80x128xbf16, #tpu.memory_space<vmem>>, %arg9: memref<64x128xf32, #tpu.memory_space<vmem>>, %arg10: memref<576x128xbf16, #tpu.memory_space<vmem>>) attributes {dimension_semantics = [#tpu.dimension_semantics<parallel>], iteration_bounds = array<i64: 2>, scalar_prefetch = 0 : i64, scratch_operands = 3 : i64, tpu.core_type = #tpu.core_type<tc>, window_params = [{transform_indices = @transform_0, window_bounds = array<i64: 1, 16, 128>}, {pipeline_mode = #tpu.pipeline_mode<synchronous>, transform_indices = @transform_1, window_bounds = array<i64: 4, 128>}, {pipeline_mode = #tpu.pipeline_mode<synchronous>, transform_indices = @transform_2, window_bounds = array<i64: 256, 80>}, {pipeline_mode = #tpu.pipeline_mode<synchronous>, transform_indices = @transform_3, window_bounds = array<i64: 256, 1>}, {pipeline_mode = #tpu.pipeline_mode<synchronous>, transform_indices = @transform_4, window_bounds = array<i64: 128, 576>}, {pipeline_mode = #tpu.pipeline_mode<synchronous>, transform_indices = @transform_5, window_bounds = array<i64: 128, 1>}, {transform_indices = @transform_6, window_bounds = array<i64: 1, 32, 128>}]} {
    %c0 = arith.constant 0 : index
    %c0_0 = arith.constant 0 : index
    %c0_1 = arith.constant 0 : index
    %0 = vector.load %arg1[%c0, %c0_0, %c0_1] : memref<1x16x128xf32, #tpu.memory_space<vmem>>, vector<1x16x128xf32>
    %1 = vector.shape_cast %0 : vector<1x16x128xf32> to vector<16x128xf32>
    %2 = arith.truncf %1 : vector<16x128xf32> to vector<16x128xbf16>
    %c0_2 = arith.constant 0 : index
    %c0_3 = arith.constant 0 : index
    %3 = vector.load %arg8[%c0_2, %c0_3] : memref<80x128xbf16, #tpu.memory_space<vmem>>, vector<16x128xbf16>
    tpu.vector_store %arg8[%c0_2, %c0_3], %2 {strides = array<i32>} : memref<80x128xbf16, #tpu.memory_space<vmem>>, vector<16x128xbf16>,
    %c127_i32 = arith.constant 127 : i32
    %4 = tpu.dynamic_rotate %1 by %c127_i32 dim 1 : vector<16x128xf32>, i32 -> vector<16x128xf32>
    %5 = arith.truncf %4 : vector<16x128xf32> to vector<16x128xbf16>
    %c16 = arith.constant 16 : index
    %c0_4 = arith.constant 0 : index
    %6 = vector.load %arg8[%c16, %c0_4] : memref<80x128xbf16, #tpu.memory_space<vmem>>, vector<16x128xbf16>
    tpu.vector_store %arg8[%c16, %c0_4], %5 {strides = array<i32>} : memref<80x128xbf16, #tpu.memory_space<vmem>>, vector<16x128xbf16>,
    %c126_i32 = arith.constant 126 : i32
    %7 = tpu.dynamic_rotate %1 by %c126_i32 dim 1 : vector<16x128xf32>, i32 -> vector<16x128xf32>
    %8 = arith.truncf %7 : vector<16x128xf32> to vector<16x128xbf16>
    %c32 = arith.constant 32 : index
    %c0_5 = arith.constant 0 : index
    %9 = vector.load %arg8[%c32, %c0_5] : memref<80x128xbf16, #tpu.memory_space<vmem>>, vector<16x128xbf16>
    tpu.vector_store %arg8[%c32, %c0_5], %8 {strides = array<i32>} : memref<80x128xbf16, #tpu.memory_space<vmem>>, vector<16x128xbf16>,
    %c125_i32 = arith.constant 125 : i32
    %10 = tpu.dynamic_rotate %1 by %c125_i32 dim 1 : vector<16x128xf32>, i32 -> vector<16x128xf32>
    %11 = arith.truncf %10 : vector<16x128xf32> to vector<16x128xbf16>
    %c48 = arith.constant 48 : index
    %c0_6 = arith.constant 0 : index
    %12 = vector.load %arg8[%c48, %c0_6] : memref<80x128xbf16, #tpu.memory_space<vmem>>, vector<16x128xbf16>
    tpu.vector_store %arg8[%c48, %c0_6], %11 {strides = array<i32>} : memref<80x128xbf16, #tpu.memory_space<vmem>>, vector<16x128xbf16>,
    %c124_i32 = arith.constant 124 : i32
    %13 = tpu.dynamic_rotate %1 by %c124_i32 dim 1 : vector<16x128xf32>, i32 -> vector<16x128xf32>
    %14 = arith.truncf %13 : vector<16x128xf32> to vector<16x128xbf16>
    %c64 = arith.constant 64 : index
    %c0_7 = arith.constant 0 : index
    %15 = vector.load %arg8[%c64, %c0_7] : memref<80x128xbf16, #tpu.memory_space<vmem>>, vector<16x128xbf16>
    tpu.vector_store %arg8[%c64, %c0_7], %14 {strides = array<i32>} : memref<80x128xbf16, #tpu.memory_space<vmem>>, vector<16x128xbf16>,
    %c0_8 = arith.constant 0 : index
    %c0_9 = arith.constant 0 : index
    %16 = vector.load %arg3[%c0_8, %c0_9] : memref<256x80xbf16, #tpu.memory_space<vmem>>, vector<256x80xbf16>
    %c0_10 = arith.constant 0 : index
    %c0_11 = arith.constant 0 : index
    %17 = vector.load %arg4[%c0_10, %c0_11] : memref<256x1xf32, #tpu.memory_space<vmem>>, vector<256x1xf32>
    %c0_12 = arith.constant 0 : index
    %c0_13 = arith.constant 0 : index
    %18 = vector.load %arg2[%c0_12, %c0_13] : memref<4x128xf32, #tpu.memory_space<vmem>>, vector<4x128xf32>
    %c0_14 = arith.constant 0 : index
    %c0_15 = arith.constant 0 : index
    %19 = vector.load %arg8[%c0_14, %c0_15] : memref<80x128xbf16, #tpu.memory_space<vmem>>, vector<80x128xbf16>
    %cst = arith.constant dense<0.000000e+00> : vector<256x128xf32>
    %20 = tpu.matmul %16, %19, %cst {dimension_numbers = #tpu.dot_dimension_numbers<[1], [0], [0], [1], [0, 0, 1, 1], [], []>} : vector<256x80xbf16>, vector<80x128xbf16>, vector<256x128xf32> -> vector<256x128xf32>
    %21 = vector.broadcast %17 : vector<256x1xf32> to vector<256x128xf32>
    %22 = arith.addf %20, %21 : vector<256x128xf32>
    %cst_16 = arith.constant 0.000000e+00 : f32
    %23 = vector.broadcast %cst_16 : f32 to vector<256x128xf32>
    %24 = arith.cmpf ogt, %22, %23 : vector<256x128xf32>
    %cst_17 = arith.constant 0.000000e+00 : f32
    %25 = vector.broadcast %cst_17 : f32 to vector<256x128xf32>
    %26 = arith.minimumf %22, %25 : vector<256x128xf32>
    %27 = math.exp %26 : vector<256x128xf32>
    %cst_18 = arith.constant 1.000000e+00 : f32
    %28 = vector.broadcast %cst_18 : f32 to vector<256x128xf32>
    %29 = arith.subf %27, %28 : vector<256x128xf32>
    %30 = arith.select %24, %22, %29 : vector<256x128xi1>, vector<256x128xf32>
    %31 = vector.extract_strided_slice %30 {offsets = [0, 0], sizes = [16, 128], strides = [1, 1]} : vector<256x128xf32> to vector<16x128xf32>
    %32 = vector.extract_strided_slice %30 {offsets = [16, 0], sizes = [16, 128], strides = [1, 1]} : vector<256x128xf32> to vector<16x128xf32>
    %33 = arith.addf %31, %32 : vector<16x128xf32>
    %34 = vector.extract_strided_slice %30 {offsets = [32, 0], sizes = [16, 128], strides = [1, 1]} : vector<256x128xf32> to vector<16x128xf32>
    %35 = arith.addf %33, %34 : vector<16x128xf32>
    %36 = vector.extract_strided_slice %30 {offsets = [48, 0], sizes = [16, 128], strides = [1, 1]} : vector<256x128xf32> to vector<16x128xf32>
    %37 = arith.addf %35, %36 : vector<16x128xf32>
    %cst_19 = arith.constant 2.500000e-01 : f32
    %38 = vector.broadcast %cst_19 : f32 to vector<16x128xf32>
    %39 = arith.mulf %38, %37 : vector<16x128xf32>
    %40 = vector.extract_strided_slice %18 {offsets = [0, 0], sizes = [1, 128], strides = [1, 1]} : vector<4x128xf32> to vector<1x128xf32>
    %41 = vector.broadcast %40 : vector<1x128xf32> to vector<16x128xf32>
    %42 = arith.mulf %39, %41 : vector<16x128xf32>
    %c0_20 = arith.constant 0 : index
    %c0_21 = arith.constant 0 : index
    %43 = vector.load %arg9[%c0_20, %c0_21] : memref<64x128xf32, #tpu.memory_space<vmem>>, vector<16x128xf32>
    tpu.vector_store %arg9[%c0_20, %c0_21], %42 {strides = array<i32>} : memref<64x128xf32, #tpu.memory_space<vmem>>, vector<16x128xf32>,
    %44 = vector.extract_strided_slice %30 {offsets = [64, 0], sizes = [16, 128], strides = [1, 1]} : vector<256x128xf32> to vector<16x128xf32>
    %45 = vector.extract_strided_slice %30 {offsets = [80, 0], sizes = [16, 128], strides = [1, 1]} : vector<256x128xf32> to vector<16x128xf32>
    %46 = arith.addf %44, %45 : vector<16x128xf32>
    %47 = vector.extract_strided_slice %30 {offsets = [96, 0], sizes = [16, 128], strides = [1, 1]} : vector<256x128xf32> to vector<16x128xf32>
    %48 = arith.addf %46, %47 : vector<16x128xf32>
    %49 = vector.extract_strided_slice %30 {offsets = [112, 0], sizes = [16, 128], strides = [1, 1]} : vector<256x128xf32> to vector<16x128xf32>
    %50 = arith.addf %48, %49 : vector<16x128xf32>
    %cst_22 = arith.constant 2.500000e-01 : f32
    %51 = vector.broadcast %cst_22 : f32 to vector<16x128xf32>
    %52 = arith.mulf %51, %50 : vector<16x128xf32>
    %53 = vector.extract_strided_slice %18 {offsets = [1, 0], sizes = [1, 128], strides = [1, 1]} : vector<4x128xf32> to vector<1x128xf32>
    %54 = vector.broadcast %53 : vector<1x128xf32> to vector<16x128xf32>
    %55 = arith.mulf %52, %54 : vector<16x128xf32>
    %c16_23 = arith.constant 16 : index
    %c0_24 = arith.constant 0 : index
    %56 = vector.load %arg9[%c16_23, %c0_24] : memref<64x128xf32, #tpu.memory_space<vmem>>, vector<16x128xf32>
    tpu.vector_store %arg9[%c16_23, %c0_24], %55 {strides = array<i32>} : memref<64x128xf32, #tpu.memory_space<vmem>>, vector<16x128xf32>,
    %57 = vector.extract_strided_slice %30 {offsets = [128, 0], sizes = [16, 128], strides = [1, 1]} : vector<256x128xf32> to vector<16x128xf32>
    %58 = vector.extract_strided_slice %30 {offsets = [144, 0], sizes = [16, 128], strides = [1, 1]} : vector<256x128xf32> to vector<16x128xf32>
    %59 = arith.addf %57, %58 : vector<16x128xf32>
    %60 = vector.extract_strided_slice %30 {offsets = [160, 0], sizes = [16, 128], strides = [1, 1]} : vector<256x128xf32> to vector<16x128xf32>
    %61 = arith.addf %59, %60 : vector<16x128xf32>
    %62 = vector.extract_strided_slice %30 {offsets = [176, 0], sizes = [16, 128], strides = [1, 1]} : vector<256x128xf32> to vector<16x128xf32>
    %63 = arith.addf %61, %62 : vector<16x128xf32>
    %cst_25 = arith.constant 2.500000e-01 : f32
    %64 = vector.broadcast %cst_25 : f32 to vector<16x128xf32>
    %65 = arith.mulf %64, %63 : vector<16x128xf32>
    %66 = vector.extract_strided_slice %18 {offsets = [2, 0], sizes = [1, 128], strides = [1, 1]} : vector<4x128xf32> to vector<1x128xf32>
    %67 = vector.broadcast %66 : vector<1x128xf32> to vector<16x128xf32>
    %68 = arith.mulf %65, %67 : vector<16x128xf32>
    %c32_26 = arith.constant 32 : index
    %c0_27 = arith.constant 0 : index
    %69 = vector.load %arg9[%c32_26, %c0_27] : memref<64x128xf32, #tpu.memory_space<vmem>>, vector<16x128xf32>
    tpu.vector_store %arg9[%c32_26, %c0_27], %68 {strides = array<i32>} : memref<64x128xf32, #tpu.memory_space<vmem>>, vector<16x128xf32>,
    %70 = vector.extract_strided_slice %30 {offsets = [192, 0], sizes = [16, 128], strides = [1, 1]} : vector<256x128xf32> to vector<16x128xf32>
    %71 = vector.extract_strided_slice %30 {offsets = [208, 0], sizes = [16, 128], strides = [1, 1]} : vector<256x128xf32> to vector<16x128xf32>
    %72 = arith.addf %70, %71 : vector<16x128xf32>
    %73 = vector.extract_strided_slice %30 {offsets = [224, 0], sizes = [16, 128], strides = [1, 1]} : vector<256x128xf32> to vector<16x128xf32>
    %74 = arith.addf %72, %73 : vector<16x128xf32>
    %75 = vector.extract_strided_slice %30 {offsets = [240, 0], sizes = [16, 128], strides = [1, 1]} : vector<256x128xf32> to vector<16x128xf32>
    %76 = arith.addf %74, %75 : vector<16x128xf32>
    %cst_28 = arith.constant 2.500000e-01 : f32
    %77 = vector.broadcast %cst_28 : f32 to vector<16x128xf32>
    %78 = arith.mulf %77, %76 : vector<16x128xf32>
    %79 = vector.extract_strided_slice %18 {offsets = [3, 0], sizes = [1, 128], strides = [1, 1]} : vector<4x128xf32> to vector<1x128xf32>
    %80 = vector.broadcast %79 : vector<1x128xf32> to vector<16x128xf32>
    %81 = arith.mulf %78, %80 : vector<16x128xf32>
    %c48_29 = arith.constant 48 : index
    %c0_30 = arith.constant 0 : index
    %82 = vector.load %arg9[%c48_29, %c0_30] : memref<64x128xf32, #tpu.memory_space<vmem>>, vector<16x128xf32>
    tpu.vector_store %arg9[%c48_29, %c0_30], %81 {strides = array<i32>} : memref<64x128xf32, #tpu.memory_space<vmem>>, vector<16x128xf32>,
    %c0_31 = arith.constant 0 : index
    %c0_32 = arith.constant 0 : index
    %83 = vector.load %arg9[%c0_31, %c0_32] : memref<64x128xf32, #tpu.memory_space<vmem>>, vector<64x128xf32>
    %c4_i32 = arith.constant 4 : i32
    %84 = tpu.dynamic_rotate %83 by %c4_i32 dim 1 : vector<64x128xf32>, i32 -> vector<64x128xf32>
    %85 = arith.truncf %84 : vector<64x128xf32> to vector<64x128xbf16>
    %c0_33 = arith.constant 0 : index
    %c0_34 = arith.constant 0 : index
    %86 = vector.load %arg10[%c0_33, %c0_34] : memref<576x128xbf16, #tpu.memory_space<vmem>>, vector<64x128xbf16>
    tpu.vector_store %arg10[%c0_33, %c0_34], %85 {strides = array<i32>} : memref<576x128xbf16, #tpu.memory_space<vmem>>, vector<64x128xbf16>,
    %c3_i32 = arith.constant 3 : i32
    %87 = tpu.dynamic_rotate %83 by %c3_i32 dim 1 : vector<64x128xf32>, i32 -> vector<64x128xf32>
    %88 = arith.truncf %87 : vector<64x128xf32> to vector<64x128xbf16>
    %c64_35 = arith.constant 64 : index
    %c0_36 = arith.constant 0 : index
    %89 = vector.load %arg10[%c64_35, %c0_36] : memref<576x128xbf16, #tpu.memory_space<vmem>>, vector<64x128xbf16>
    tpu.vector_store %arg10[%c64_35, %c0_36], %88 {strides = array<i32>} : memref<576x128xbf16, #tpu.memory_space<vmem>>, vector<64x128xbf16>,
    %c2_i32 = arith.constant 2 : i32
    %90 = tpu.dynamic_rotate %83 by %c2_i32 dim 1 : vector<64x128xf32>, i32 -> vector<64x128xf32>
    %91 = arith.truncf %90 : vector<64x128xf32> to vector<64x128xbf16>
    %c128 = arith.constant 128 : index
    %c0_37 = arith.constant 0 : index
    %92 = vector.load %arg10[%c128, %c0_37] : memref<576x128xbf16, #tpu.memory_space<vmem>>, vector<64x128xbf16>
    tpu.vector_store %arg10[%c128, %c0_37], %91 {strides = array<i32>} : memref<576x128xbf16, #tpu.memory_space<vmem>>, vector<64x128xbf16>,
    %c1_i32 = arith.constant 1 : i32
    %93 = tpu.dynamic_rotate %83 by %c1_i32 dim 1 : vector<64x128xf32>, i32 -> vector<64x128xf32>
    %94 = arith.truncf %93 : vector<64x128xf32> to vector<64x128xbf16>
    %c192 = arith.constant 192 : index
    %c0_38 = arith.constant 0 : index
    %95 = vector.load %arg10[%c192, %c0_38] : memref<576x128xbf16, #tpu.memory_space<vmem>>, vector<64x128xbf16>
    tpu.vector_store %arg10[%c192, %c0_38], %94 {strides = array<i32>} : memref<576x128xbf16, #tpu.memory_space<vmem>>, vector<64x128xbf16>,
    %96 = arith.truncf %83 : vector<64x128xf32> to vector<64x128xbf16>
    %c256 = arith.constant 256 : index
    %c0_39 = arith.constant 0 : index
    %97 = vector.load %arg10[%c256, %c0_39] : memref<576x128xbf16, #tpu.memory_space<vmem>>, vector<64x128xbf16>
    tpu.vector_store %arg10[%c256, %c0_39], %96 {strides = array<i32>} : memref<576x128xbf16, #tpu.memory_space<vmem>>, vector<64x128xbf16>,
    %c127_i32_40 = arith.constant 127 : i32
    %98 = tpu.dynamic_rotate %83 by %c127_i32_40 dim 1 : vector<64x128xf32>, i32 -> vector<64x128xf32>
    %99 = arith.truncf %98 : vector<64x128xf32> to vector<64x128xbf16>
    %c320 = arith.constant 320 : index
    %c0_41 = arith.constant 0 : index
    %100 = vector.load %arg10[%c320, %c0_41] : memref<576x128xbf16, #tpu.memory_space<vmem>>, vector<64x128xbf16>
    tpu.vector_store %arg10[%c320, %c0_41], %99 {strides = array<i32>} : memref<576x128xbf16, #tpu.memory_space<vmem>>, vector<64x128xbf16>,
    %c126_i32_42 = arith.constant 126 : i32
    %101 = tpu.dynamic_rotate %83 by %c126_i32_42 dim 1 : vector<64x128xf32>, i32 -> vector<64x128xf32>
    %102 = arith.truncf %101 : vector<64x128xf32> to vector<64x128xbf16>
    %c384 = arith.constant 384 : index
    %c0_43 = arith.constant 0 : index
    %103 = vector.load %arg10[%c384, %c0_43] : memref<576x128xbf16, #tpu.memory_space<vmem>>, vector<64x128xbf16>
    tpu.vector_store %arg10[%c384, %c0_43], %102 {strides = array<i32>} : memref<576x128xbf16, #tpu.memory_space<vmem>>, vector<64x128xbf16>,
    %c125_i32_44 = arith.constant 125 : i32
    %104 = tpu.dynamic_rotate %83 by %c125_i32_44 dim 1 : vector<64x128xf32>, i32 -> vector<64x128xf32>
    %105 = arith.truncf %104 : vector<64x128xf32> to vector<64x128xbf16>
    %c448 = arith.constant 448 : index
    %c0_45 = arith.constant 0 : index
    %106 = vector.load %arg10[%c448, %c0_45] : memref<576x128xbf16, #tpu.memory_space<vmem>>, vector<64x128xbf16>
    tpu.vector_store %arg10[%c448, %c0_45], %105 {strides = array<i32>} : memref<576x128xbf16, #tpu.memory_space<vmem>>, vector<64x128xbf16>,
    %c124_i32_46 = arith.constant 124 : i32
    %107 = tpu.dynamic_rotate %83 by %c124_i32_46 dim 1 : vector<64x128xf32>, i32 -> vector<64x128xf32>
    %108 = arith.truncf %107 : vector<64x128xf32> to vector<64x128xbf16>
    %c512 = arith.constant 512 : index
    %c0_47 = arith.constant 0 : index
    %109 = vector.load %arg10[%c512, %c0_47] : memref<576x128xbf16, #tpu.memory_space<vmem>>, vector<64x128xbf16>
    tpu.vector_store %arg10[%c512, %c0_47], %108 {strides = array<i32>} : memref<576x128xbf16, #tpu.memory_space<vmem>>, vector<64x128xbf16>,
    %c0_48 = arith.constant 0 : index
    %c0_49 = arith.constant 0 : index
    %110 = vector.load %arg5[%c0_48, %c0_49] : memref<128x576xbf16, #tpu.memory_space<vmem>>, vector<128x576xbf16>
    %c0_50 = arith.constant 0 : index
    %c0_51 = arith.constant 0 : index
    %111 = vector.load %arg6[%c0_50, %c0_51] : memref<128x1xf32, #tpu.memory_space<vmem>>, vector<128x1xf32>
    %c0_52 = arith.constant 0 : index
    %c0_53 = arith.constant 0 : index
    %112 = vector.load %arg10[%c0_52, %c0_53] : memref<576x128xbf16, #tpu.memory_space<vmem>>, vector<576x128xbf16>
    %cst_54 = arith.constant dense<0.000000e+00> : vector<128x128xf32>
    %113 = tpu.matmul %110, %112, %cst_54 {dimension_numbers = #tpu.dot_dimension_numbers<[1], [0], [0], [1], [0, 0, 1, 1], [], []>} : vector<128x576xbf16>, vector<576x128xbf16>, vector<128x128xf32> -> vector<128x128xf32>
    %114 = vector.broadcast %111 : vector<128x1xf32> to vector<128x128xf32>
    %115 = arith.addf %113, %114 : vector<128x128xf32>
    %cst_55 = arith.constant 0.000000e+00 : f32
    %116 = vector.broadcast %cst_55 : f32 to vector<128x128xf32>
    %117 = arith.cmpf ogt, %115, %116 : vector<128x128xf32>
    %cst_56 = arith.constant 0.000000e+00 : f32
    %118 = vector.broadcast %cst_56 : f32 to vector<128x128xf32>
    %119 = arith.minimumf %115, %118 : vector<128x128xf32>
    %120 = math.exp %119 : vector<128x128xf32>
    %cst_57 = arith.constant 1.000000e+00 : f32
    %121 = vector.broadcast %cst_57 : f32 to vector<128x128xf32>
    %122 = arith.subf %120, %121 : vector<128x128xf32>
    %123 = arith.select %117, %115, %122 : vector<128x128xi1>, vector<128x128xf32>
    %124 = vector.extract_strided_slice %123 {offsets = [0, 0], sizes = [32, 128], strides = [1, 1]} : vector<128x128xf32> to vector<32x128xf32>
    %125 = vector.extract_strided_slice %123 {offsets = [32, 0], sizes = [32, 128], strides = [1, 1]} : vector<128x128xf32> to vector<32x128xf32>
    %126 = arith.addf %124, %125 : vector<32x128xf32>
    %127 = vector.extract_strided_slice %123 {offsets = [64, 0], sizes = [32, 128], strides = [1, 1]} : vector<128x128xf32> to vector<32x128xf32>
    %128 = arith.addf %126, %127 : vector<32x128xf32>
    %129 = vector.extract_strided_slice %123 {offsets = [96, 0], sizes = [32, 128], strides = [1, 1]} : vector<128x128xf32> to vector<32x128xf32>
    %130 = arith.addf %128, %129 : vector<32x128xf32>
    %cst_58 = arith.constant 2.500000e-01 : f32
    %131 = vector.broadcast %cst_58 : f32 to vector<32x128xf32>
    %132 = arith.mulf %131, %130 : vector<32x128xf32>
    %133 = arith.truncf %132 : vector<32x128xf32> to vector<32x128xbf16>
    %c0_59 = arith.constant 0 : index
    %c0_60 = arith.constant 0 : index
    %c0_61 = arith.constant 0 : index
    %134 = vector.load %arg7[%c0_59, %c0_60, %c0_61] : memref<1x32x128xbf16, #tpu.memory_space<vmem>>, vector<1x32x128xbf16>
    %135 = vector.shape_cast %134 : vector<1x32x128xbf16> to vector<32x128xbf16>
    %136 = vector.shape_cast %133 : vector<32x128xbf16> to vector<1x32x128xbf16>
    tpu.vector_store %arg7[%c0_59, %c0_60, %c0_61], %136 {strides = array<i32>} : memref<1x32x128xbf16, #tpu.memory_space<vmem>>, vector<1x32x128xbf16>,
    return
  }
  func.func @transform_0(%arg0: i32) -> (i32, i32, i32) {
    %c0_i32 = arith.constant 0 : i32
    %c0_i32_0 = arith.constant 0 : i32
    %c0_i32_1 = arith.constant 0 : i32
    return %arg0, %c0_i32, %c0_i32_0 : i32, i32, i32
  }
  func.func @transform_1(%arg0: i32) -> (i32, i32) {
    %c0_i32 = arith.constant 0 : i32
    %c0_i32_0 = arith.constant 0 : i32
    %c0_i32_1 = arith.constant 0 : i32
    return %c0_i32, %c0_i32_0 : i32, i32
  }
  func.func @transform_2(%arg0: i32) -> (i32, i32) {
    %c0_i32 = arith.constant 0 : i32
    %c0_i32_0 = arith.constant 0 : i32
    %c0_i32_1 = arith.constant 0 : i32
    return %c0_i32, %c0_i32_0 : i32, i32
  }
  func.func @transform_3(%arg0: i32) -> (i32, i32) {
    %c0_i32 = arith.constant 0 : i32
    %c0_i32_0 = arith.constant 0 : i32
    %c0_i32_1 = arith.constant 0 : i32
    return %c0_i32, %c0_i32_0 : i32, i32
  }
  func.func @transform_4(%arg0: i32) -> (i32, i32) {
    %c0_i32 = arith.constant 0 : i32
    %c0_i32_0 = arith.constant 0 : i32
    %c0_i32_1 = arith.constant 0 : i32
    return %c0_i32, %c0_i32_0 : i32, i32
  }
  func.func @transform_5(%arg0: i32) -> (i32, i32) {
    %c0_i32 = arith.constant 0 : i32
    %c0_i32_0 = arith.constant 0 : i32
    %c0_i32_1 = arith.constant 0 : i32
    return %c0_i32, %c0_i32_0 : i32, i32
  }
  func.func @transform_6(%arg0: i32) -> (i32, i32, i32) {
    %c0_i32 = arith.constant 0 : i32
    %c0_i32_0 = arith.constant 0 : i32
    %c0_i32_1 = arith.constant 0 : i32
    return %arg0, %c0_i32, %c0_i32_0 : i32, i32, i32
  }
}

module attributes {stable_mosaic.version = 11 : i64} {
  func.func @lstm0_kernel(%arg0: i32, %arg1: i32, %arg2: memref<2x2048xbf16, #tpu.memory_space<vmem>>, %arg3: memref<2048x512xbf16, #tpu.memory_space<vmem>>, %arg4: memref<1x512xf32, #tpu.memory_space<vmem>>, %arg5: memref<2x512xf32, #tpu.memory_space<vmem>>, %arg6: memref<2x512xf32, #tpu.memory_space<vmem>>) attributes {dimension_semantics = [#tpu.dimension_semantics<parallel>, #tpu.dimension_semantics<arbitrary>], iteration_bounds = array<i64: 2, 1>, scalar_prefetch = 0 : i64, scratch_operands = 1 : i64, tpu.core_type = #tpu.core_type<tc>, window_params = [{transform_indices = @transform_0, window_bounds = array<i64: 2, 2048>}, {transform_indices = @transform_1, window_bounds = array<i64: 2048, 512>}, {transform_indices = @transform_2, window_bounds = array<i64: 1, 512>}, {transform_indices = @transform_3, window_bounds = array<i64: 2, 512>}]} {
    %c0_i32 = arith.constant 0 : i32
    %0 = arith.cmpi eq, %arg1, %c0_i32 : i32
    %1 = arith.extui %0 : i1 to i32
    %c0_i32_0 = arith.constant 0 : i32
    %2 = arith.cmpi ne, %1, %c0_i32_0 : i32
    scf.if %2 {
      %cst_10 = arith.constant 0.000000e+00 : f32
      %12 = vector.broadcast %cst_10 : f32 to vector<2x512xf32>
      %c0_11 = arith.constant 0 : index
      %c0_12 = arith.constant 0 : index
      %13 = vector.load %arg6[%c0_11, %c0_12] : memref<2x512xf32, #tpu.memory_space<vmem>>, vector<2x512xf32>
      tpu.vector_store %arg6[%c0_11, %c0_12], %12 {strides = array<i32>} : memref<2x512xf32, #tpu.memory_space<vmem>>, vector<2x512xf32>,
    } else {
    }
    %c0 = arith.constant 0 : index
    %c0_1 = arith.constant 0 : index
    %3 = vector.load %arg6[%c0, %c0_1] : memref<2x512xf32, #tpu.memory_space<vmem>>, vector<2x512xf32>
    %c0_2 = arith.constant 0 : index
    %c0_3 = arith.constant 0 : index
    %4 = vector.load %arg2[%c0_2, %c0_3] : memref<2x2048xbf16, #tpu.memory_space<vmem>>, vector<2x2048xbf16>
    %c0_4 = arith.constant 0 : index
    %c0_5 = arith.constant 0 : index
    %5 = vector.load %arg3[%c0_4, %c0_5] : memref<2048x512xbf16, #tpu.memory_space<vmem>>, vector<2048x512xbf16>
    %cst = arith.constant dense<0.000000e+00> : vector<2x512xf32>
    %6 = tpu.matmul %4, %5, %cst {dimension_numbers = #tpu.dot_dimension_numbers<[1], [0], [0], [1], [0, 0, 1, 1], [], []>} : vector<2x2048xbf16>, vector<2048x512xbf16>, vector<2x512xf32> -> vector<2x512xf32>
    %7 = arith.addf %3, %6 : vector<2x512xf32>
    %c0_6 = arith.constant 0 : index
    %c0_7 = arith.constant 0 : index
    %8 = vector.load %arg6[%c0_6, %c0_7] : memref<2x512xf32, #tpu.memory_space<vmem>>, vector<2x512xf32>
    tpu.vector_store %arg6[%c0_6, %c0_7], %7 {strides = array<i32>} : memref<2x512xf32, #tpu.memory_space<vmem>>, vector<2x512xf32>,
    %c0_i32_8 = arith.constant 0 : i32
    %9 = arith.cmpi eq, %arg1, %c0_i32_8 : i32
    %10 = arith.extui %9 : i1 to i32
    %c0_i32_9 = arith.constant 0 : i32
    %11 = arith.cmpi ne, %10, %c0_i32_9 : i32
    scf.if %11 {
      %c0_10 = arith.constant 0 : index
      %c0_11 = arith.constant 0 : index
      %12 = vector.load %arg6[%c0_10, %c0_11] : memref<2x512xf32, #tpu.memory_space<vmem>>, vector<2x512xf32>
      %c0_12 = arith.constant 0 : index
      %c0_13 = arith.constant 0 : index
      %13 = vector.load %arg4[%c0_12, %c0_13] : memref<1x512xf32, #tpu.memory_space<vmem>>, vector<1x512xf32>
      %14 = vector.broadcast %13 : vector<1x512xf32> to vector<2x512xf32>
      %15 = arith.addf %12, %14 : vector<2x512xf32>
      %c0_14 = arith.constant 0 : index
      %c0_15 = arith.constant 0 : index
      %16 = vector.load %arg5[%c0_14, %c0_15] : memref<2x512xf32, #tpu.memory_space<vmem>>, vector<2x512xf32>
      tpu.vector_store %arg5[%c0_14, %c0_15], %15 {strides = array<i32>} : memref<2x512xf32, #tpu.memory_space<vmem>>, vector<2x512xf32>,
    } else {
    }
    return
  }
  func.func @transform_0(%arg0: i32, %arg1: i32) -> (i32, i32) {
    %c0_i32 = arith.constant 0 : i32
    %c0_i32_0 = arith.constant 0 : i32
    return %c0_i32, %arg1 : i32, i32
  }
  func.func @transform_1(%arg0: i32, %arg1: i32) -> (i32, i32) {
    %c0_i32 = arith.constant 0 : i32
    return %arg1, %arg0 : i32, i32
  }
  func.func @transform_2(%arg0: i32, %arg1: i32) -> (i32, i32) {
    %c0_i32 = arith.constant 0 : i32
    %c0_i32_0 = arith.constant 0 : i32
    return %c0_i32, %arg0 : i32, i32
  }
  func.func @transform_3(%arg0: i32, %arg1: i32) -> (i32, i32) {
    %c0_i32 = arith.constant 0 : i32
    %c0_i32_0 = arith.constant 0 : i32
    return %c0_i32, %arg0 : i32, i32
  }
}

module attributes {stable_mosaic.version = 11 : i64} {
  func.func @head_finalize_kernel(%arg0: i32, %arg1: memref<2x1024xf32, #tpu.memory_space<vmem>>, %arg2: memref<256x1024xbf16, #tpu.memory_space<vmem>>, %arg3: memref<1x1024xf32, #tpu.memory_space<vmem>>, %arg4: memref<256x64xf32, #tpu.memory_space<vmem>>, %arg5: memref<1x64xf32, #tpu.memory_space<vmem>>, %arg6: memref<64x6xf32, #tpu.memory_space<vmem>>, %arg7: memref<1x6xf32, #tpu.memory_space<vmem>>, %arg8: memref<2x6xf32, #tpu.memory_space<vmem>>) attributes {dimension_semantics = [#tpu.dimension_semantics<arbitrary>], iteration_bounds = array<i64: 1>, scalar_prefetch = 0 : i64, scratch_operands = 0 : i64, tpu.core_type = #tpu.core_type<tc>, window_params = [{pipeline_mode = #tpu.pipeline_mode<synchronous>, transform_indices = @transform_0, window_bounds = array<i64: 2, 1024>}, {pipeline_mode = #tpu.pipeline_mode<synchronous>, transform_indices = @transform_1, window_bounds = array<i64: 256, 1024>}, {pipeline_mode = #tpu.pipeline_mode<synchronous>, transform_indices = @transform_2, window_bounds = array<i64: 1, 1024>}, {pipeline_mode = #tpu.pipeline_mode<synchronous>, transform_indices = @transform_3, window_bounds = array<i64: 256, 64>}, {pipeline_mode = #tpu.pipeline_mode<synchronous>, transform_indices = @transform_4, window_bounds = array<i64: 1, 64>}, {pipeline_mode = #tpu.pipeline_mode<synchronous>, transform_indices = @transform_5, window_bounds = array<i64: 64, 6>}, {pipeline_mode = #tpu.pipeline_mode<synchronous>, transform_indices = @transform_6, window_bounds = array<i64: 1, 6>}, {pipeline_mode = #tpu.pipeline_mode<synchronous>, transform_indices = @transform_7, window_bounds = array<i64: 2, 6>}]} {
    %c0 = arith.constant 0 : index
    %c0_0 = arith.constant 0 : index
    %0 = vector.load %arg1[%c0, %c0_0] : memref<2x1024xf32, #tpu.memory_space<vmem>>, vector<2x1024xf32>
    %1 = vector.extract_strided_slice %0 {offsets = [0, 0], sizes = [2, 512], strides = [1, 1]} : vector<2x1024xf32> to vector<2x512xf32>
    %2 = vector.extract_strided_slice %1 {offsets = [0, 0], sizes = [2, 128], strides = [1, 1]} : vector<2x512xf32> to vector<2x128xf32>
    %3 = arith.negf %2 : vector<2x128xf32>
    %4 = math.exp %3 : vector<2x128xf32>
    %cst = arith.constant 1.000000e+00 : f32
    %5 = vector.broadcast %cst : f32 to vector<2x128xf32>
    %6 = arith.addf %5, %4 : vector<2x128xf32>
    %7 = arith.divf %5, %6 : vector<2x128xf32>
    %8 = vector.extract_strided_slice %1 {offsets = [0, 256], sizes = [2, 128], strides = [1, 1]} : vector<2x512xf32> to vector<2x128xf32>
    %9 = math.tanh %8 : vector<2x128xf32>
    %10 = vector.extract_strided_slice %1 {offsets = [0, 384], sizes = [2, 128], strides = [1, 1]} : vector<2x512xf32> to vector<2x128xf32>
    %11 = arith.negf %10 : vector<2x128xf32>
    %12 = math.exp %11 : vector<2x128xf32>
    %cst_1 = arith.constant 1.000000e+00 : f32
    %13 = vector.broadcast %cst_1 : f32 to vector<2x128xf32>
    %14 = arith.addf %13, %12 : vector<2x128xf32>
    %15 = arith.divf %13, %14 : vector<2x128xf32>
    %16 = arith.mulf %7, %9 : vector<2x128xf32>
    %17 = math.tanh %16 : vector<2x128xf32>
    %18 = arith.mulf %15, %17 : vector<2x128xf32>
    %19 = vector.extract_strided_slice %0 {offsets = [0, 512], sizes = [2, 512], strides = [1, 1]} : vector<2x1024xf32> to vector<2x512xf32>
    %20 = vector.extract_strided_slice %19 {offsets = [0, 0], sizes = [2, 128], strides = [1, 1]} : vector<2x512xf32> to vector<2x128xf32>
    %21 = arith.negf %20 : vector<2x128xf32>
    %22 = math.exp %21 : vector<2x128xf32>
    %cst_2 = arith.constant 1.000000e+00 : f32
    %23 = vector.broadcast %cst_2 : f32 to vector<2x128xf32>
    %24 = arith.addf %23, %22 : vector<2x128xf32>
    %25 = arith.divf %23, %24 : vector<2x128xf32>
    %26 = vector.extract_strided_slice %19 {offsets = [0, 256], sizes = [2, 128], strides = [1, 1]} : vector<2x512xf32> to vector<2x128xf32>
    %27 = math.tanh %26 : vector<2x128xf32>
    %28 = vector.extract_strided_slice %19 {offsets = [0, 384], sizes = [2, 128], strides = [1, 1]} : vector<2x512xf32> to vector<2x128xf32>
    %29 = arith.negf %28 : vector<2x128xf32>
    %30 = math.exp %29 : vector<2x128xf32>
    %cst_3 = arith.constant 1.000000e+00 : f32
    %31 = vector.broadcast %cst_3 : f32 to vector<2x128xf32>
    %32 = arith.addf %31, %30 : vector<2x128xf32>
    %33 = arith.divf %31, %32 : vector<2x128xf32>
    %34 = arith.mulf %25, %27 : vector<2x128xf32>
    %35 = math.tanh %34 : vector<2x128xf32>
    %36 = arith.mulf %33, %35 : vector<2x128xf32>
    %37 = tpu.concatenate %18, %36 in 1 : vector<2x128xf32>, vector<2x128xf32> -> vector<2x256xf32>
    %38 = arith.truncf %37 : vector<2x256xf32> to vector<2x256xbf16>
    %c0_4 = arith.constant 0 : index
    %c0_5 = arith.constant 0 : index
    %39 = vector.load %arg2[%c0_4, %c0_5] : memref<256x1024xbf16, #tpu.memory_space<vmem>>, vector<256x1024xbf16>
    %cst_6 = arith.constant dense<0.000000e+00> : vector<2x1024xf32>
    %40 = tpu.matmul %38, %39, %cst_6 {dimension_numbers = #tpu.dot_dimension_numbers<[1], [0], [0], [1], [0, 0, 1, 1], [], []>} : vector<2x256xbf16>, vector<256x1024xbf16>, vector<2x1024xf32> -> vector<2x1024xf32>
    %c0_7 = arith.constant 0 : index
    %c0_8 = arith.constant 0 : index
    %41 = vector.load %arg3[%c0_7, %c0_8] : memref<1x1024xf32, #tpu.memory_space<vmem>>, vector<1x1024xf32>
    %42 = vector.broadcast %41 : vector<1x1024xf32> to vector<2x1024xf32>
    %43 = arith.addf %40, %42 : vector<2x1024xf32>
    %44 = vector.extract_strided_slice %43 {offsets = [0, 0], sizes = [2, 512], strides = [1, 1]} : vector<2x1024xf32> to vector<2x512xf32>
    %45 = vector.extract_strided_slice %44 {offsets = [0, 0], sizes = [2, 128], strides = [1, 1]} : vector<2x512xf32> to vector<2x128xf32>
    %46 = arith.negf %45 : vector<2x128xf32>
    %47 = math.exp %46 : vector<2x128xf32>
    %cst_9 = arith.constant 1.000000e+00 : f32
    %48 = vector.broadcast %cst_9 : f32 to vector<2x128xf32>
    %49 = arith.addf %48, %47 : vector<2x128xf32>
    %50 = arith.divf %48, %49 : vector<2x128xf32>
    %51 = vector.extract_strided_slice %44 {offsets = [0, 256], sizes = [2, 128], strides = [1, 1]} : vector<2x512xf32> to vector<2x128xf32>
    %52 = math.tanh %51 : vector<2x128xf32>
    %53 = vector.extract_strided_slice %44 {offsets = [0, 384], sizes = [2, 128], strides = [1, 1]} : vector<2x512xf32> to vector<2x128xf32>
    %54 = arith.negf %53 : vector<2x128xf32>
    %55 = math.exp %54 : vector<2x128xf32>
    %cst_10 = arith.constant 1.000000e+00 : f32
    %56 = vector.broadcast %cst_10 : f32 to vector<2x128xf32>
    %57 = arith.addf %56, %55 : vector<2x128xf32>
    %58 = arith.divf %56, %57 : vector<2x128xf32>
    %59 = arith.mulf %50, %52 : vector<2x128xf32>
    %60 = math.tanh %59 : vector<2x128xf32>
    %61 = arith.mulf %58, %60 : vector<2x128xf32>
    %62 = vector.extract_strided_slice %43 {offsets = [0, 512], sizes = [2, 512], strides = [1, 1]} : vector<2x1024xf32> to vector<2x512xf32>
    %63 = vector.extract_strided_slice %62 {offsets = [0, 0], sizes = [2, 128], strides = [1, 1]} : vector<2x512xf32> to vector<2x128xf32>
    %64 = arith.negf %63 : vector<2x128xf32>
    %65 = math.exp %64 : vector<2x128xf32>
    %cst_11 = arith.constant 1.000000e+00 : f32
    %66 = vector.broadcast %cst_11 : f32 to vector<2x128xf32>
    %67 = arith.addf %66, %65 : vector<2x128xf32>
    %68 = arith.divf %66, %67 : vector<2x128xf32>
    %69 = vector.extract_strided_slice %62 {offsets = [0, 256], sizes = [2, 128], strides = [1, 1]} : vector<2x512xf32> to vector<2x128xf32>
    %70 = math.tanh %69 : vector<2x128xf32>
    %71 = vector.extract_strided_slice %62 {offsets = [0, 384], sizes = [2, 128], strides = [1, 1]} : vector<2x512xf32> to vector<2x128xf32>
    %72 = arith.negf %71 : vector<2x128xf32>
    %73 = math.exp %72 : vector<2x128xf32>
    %cst_12 = arith.constant 1.000000e+00 : f32
    %74 = vector.broadcast %cst_12 : f32 to vector<2x128xf32>
    %75 = arith.addf %74, %73 : vector<2x128xf32>
    %76 = arith.divf %74, %75 : vector<2x128xf32>
    %77 = arith.mulf %68, %70 : vector<2x128xf32>
    %78 = math.tanh %77 : vector<2x128xf32>
    %79 = arith.mulf %76, %78 : vector<2x128xf32>
    %80 = tpu.concatenate %61, %79 in 1 : vector<2x128xf32>, vector<2x128xf32> -> vector<2x256xf32>
    %c0_13 = arith.constant 0 : index
    %c0_14 = arith.constant 0 : index
    %81 = vector.load %arg4[%c0_13, %c0_14] : memref<256x64xf32, #tpu.memory_space<vmem>>, vector<256x64xf32>
    %cst_15 = arith.constant dense<0.000000e+00> : vector<2x64xf32>
    %82 = tpu.matmul %80, %81, %cst_15 {dimension_numbers = #tpu.dot_dimension_numbers<[1], [0], [0], [1], [0, 0, 1, 1], [], []>} : vector<2x256xf32>, vector<256x64xf32>, vector<2x64xf32> -> vector<2x64xf32>
    %c0_16 = arith.constant 0 : index
    %c0_17 = arith.constant 0 : index
    %83 = vector.load %arg5[%c0_16, %c0_17] : memref<1x64xf32, #tpu.memory_space<vmem>>, vector<1x64xf32>
    %84 = vector.broadcast %83 : vector<1x64xf32> to vector<2x64xf32>
    %85 = arith.addf %82, %84 : vector<2x64xf32>
    %c0_18 = arith.constant 0 : index
    %c0_19 = arith.constant 0 : index
    %86 = vector.load %arg6[%c0_18, %c0_19] : memref<64x6xf32, #tpu.memory_space<vmem>>, vector<64x6xf32>
    %cst_20 = arith.constant dense<0.000000e+00> : vector<2x6xf32>
    %87 = tpu.matmul %85, %86, %cst_20 {dimension_numbers = #tpu.dot_dimension_numbers<[1], [0], [0], [1], [0, 0, 1, 1], [], []>} : vector<2x64xf32>, vector<64x6xf32>, vector<2x6xf32> -> vector<2x6xf32>
    %c0_21 = arith.constant 0 : index
    %c0_22 = arith.constant 0 : index
    %88 = vector.load %arg7[%c0_21, %c0_22] : memref<1x6xf32, #tpu.memory_space<vmem>>, vector<1x6xf32>
    %89 = vector.broadcast %88 : vector<1x6xf32> to vector<2x6xf32>
    %90 = arith.addf %87, %89 : vector<2x6xf32>
    %cst_23 = arith.constant dense<0xFF800000> : vector<2xf32>
    %91 = vector.multi_reduction <maximumf>, %90, %cst_23 [1] : vector<2x6xf32> to vector<2xf32>
    %92 = vector.shape_cast %91 : vector<2xf32> to vector<2x1xf32>
    %93 = vector.broadcast %92 : vector<2x1xf32> to vector<2x6xf32>
    %94 = arith.subf %90, %93 : vector<2x6xf32>
    %95 = math.exp %94 : vector<2x6xf32>
    %cst_24 = arith.constant dense<0.000000e+00> : vector<2xf32>
    %96 = vector.multi_reduction <add>, %95, %cst_24 [1] : vector<2x6xf32> to vector<2xf32>
    %97 = vector.shape_cast %96 : vector<2xf32> to vector<2x1xf32>
    %98 = math.log %97 : vector<2x1xf32>
    %99 = arith.addf %92, %98 : vector<2x1xf32>
    %100 = vector.broadcast %99 : vector<2x1xf32> to vector<2x6xf32>
    %101 = arith.subf %90, %100 : vector<2x6xf32>
    %c0_25 = arith.constant 0 : index
    %c0_26 = arith.constant 0 : index
    %102 = vector.load %arg8[%c0_25, %c0_26] : memref<2x6xf32, #tpu.memory_space<vmem>>, vector<2x6xf32>
    tpu.vector_store %arg8[%c0_25, %c0_26], %101 {strides = array<i32>} : memref<2x6xf32, #tpu.memory_space<vmem>>, vector<2x6xf32>,
    return
  }
  func.func @transform_0(%arg0: i32) -> (i32, i32) {
    %c0_i32 = arith.constant 0 : i32
    %c0_i32_0 = arith.constant 0 : i32
    %c0_i32_1 = arith.constant 0 : i32
    return %c0_i32, %c0_i32_0 : i32, i32
  }
  func.func @transform_1(%arg0: i32) -> (i32, i32) {
    %c0_i32 = arith.constant 0 : i32
    %c0_i32_0 = arith.constant 0 : i32
    %c0_i32_1 = arith.constant 0 : i32
    return %c0_i32, %c0_i32_0 : i32, i32
  }
  func.func @transform_2(%arg0: i32) -> (i32, i32) {
    %c0_i32 = arith.constant 0 : i32
    %c0_i32_0 = arith.constant 0 : i32
    %c0_i32_1 = arith.constant 0 : i32
    return %c0_i32, %c0_i32_0 : i32, i32
  }
  func.func @transform_3(%arg0: i32) -> (i32, i32) {
    %c0_i32 = arith.constant 0 : i32
    %c0_i32_0 = arith.constant 0 : i32
    %c0_i32_1 = arith.constant 0 : i32
    return %c0_i32, %c0_i32_0 : i32, i32
  }
  func.func @transform_4(%arg0: i32) -> (i32, i32) {
    %c0_i32 = arith.constant 0 : i32
    %c0_i32_0 = arith.constant 0 : i32
    %c0_i32_1 = arith.constant 0 : i32
    return %c0_i32, %c0_i32_0 : i32, i32
  }
  func.func @transform_5(%arg0: i32) -> (i32, i32) {
    %c0_i32 = arith.constant 0 : i32
    %c0_i32_0 = arith.constant 0 : i32
    %c0_i32_1 = arith.constant 0 : i32
    return %c0_i32, %c0_i32_0 : i32, i32
  }
  func.func @transform_6(%arg0: i32) -> (i32, i32) {
    %c0_i32 = arith.constant 0 : i32
    %c0_i32_0 = arith.constant 0 : i32
    %c0_i32_1 = arith.constant 0 : i32
    return %c0_i32, %c0_i32_0 : i32, i32
  }
  func.func @transform_7(%arg0: i32) -> (i32, i32) {
    %c0_i32 = arith.constant 0 : i32
    %c0_i32_0 = arith.constant 0 : i32
    %c0_i32_1 = arith.constant 0 : i32
    return %c0_i32, %c0_i32_0 : i32, i32
  }
}

</mosaic_0001>

<llo_original>
// kernel: tile.9
$region0: #{tile.9}
  %s0 = inlined_call_operand.vmem [shape: f32[4,4,16], index: 0, kind: input, shape index: {}]
  %s1 = inlined_call_operand.vmem [shape: f32[4,64], index: 1, kind: output, shape index: {}]
  $region1: #{tile.9} parent=0
    #allocation0 [shape = 'u8[4096]{0}', space=vmem, size = 0x1000, scoped, tag = 'scoped mem for output reshape']
    #allocation1 [shape = 'u8[16384]{0}', space=vmem, size = 0x4000, scoped, tag = 'scoped mem for input reshape']
    %s3 = sshllo.u32 0, 4
    %s4 = smul.addr 4, 3
    %s5 = scalar_lea.vmem %s0, %s4
    %v6 = vld [vmem:[%s5] sm:%s3]
    %s7 = scalar_lea.vmem [#allocation1], 24
    %8 = vst [vmem:[%s7] sm:%s3] %v6
    %s9 = smul.addr 4, 2
    %s10 = scalar_lea.vmem %s0, %s9
    %v11 = vld [vmem:[%s10] sm:%s3]
    %s12 = scalar_lea.vmem [#allocation1], 16
    %13 = vst [vmem:[%s12] sm:%s3] %v11
    %s14 = scalar_lea.vmem %s0, 4
    %v15 = vld [vmem:[%s14] sm:%s3]
    %s16 = scalar_lea.vmem [#allocation1], 8
    %17 = vst [vmem:[%s16] sm:%s3] %v15
    %v18 = vld [vmem:[%s0] sm:%s3]
    %19 = vst [vmem:[#allocation1] sm:%s3] %v18
    %v20 = vld [vmem:[#allocation1] ss:$8 sm:$0xf]
    %vm21 = vcmask 130048
    %22 = vst.msk [vmem:[#allocation0] sm:$0xf] %vm21, %v20
    %s23 = scalar_lea.vmem [#allocation1], 3
    %v24 = vld [vmem:[%s23] ss:$8 sm:$0xf]
    %25 = vrot.lane.b32.xlu0 %v24, 48
    %v26 = vpop.permute.xlu0 %25
    %vm27 = vcmask 523648
    %28 = vst.msk [vmem:[#allocation0] sm:$0xf] %vm27, %v26
    %s29 = scalar_lea.vmem [#allocation1], 2
    %v30 = vld [vmem:[%s29] ss:$8 sm:$0xf]
    %31 = vrot.lane.b32.xlu0 %v30, 32
    %v32 = vpop.permute.xlu0 %31
    %vm33 = vcmask 392448
    %34 = vst.msk [vmem:[#allocation0] sm:$0xf] %vm33, %v32
    %s35 = scalar_lea.vmem [#allocation1], 1
    %v36 = vld [vmem:[%s35] ss:$8 sm:$0xf]
    %37 = vrot.lane.b32.xlu0 %v36, 16
    %v38 = vpop.permute.xlu0 %37
    %vm39 = vcmask 261248
    %40 = vst.msk [vmem:[#allocation0] sm:$0xf] %vm39, %v38
    %s42 = sshllo.u32 0, 4
    %v44 = vld [vmem:[#allocation0] sm:%s42]
    %s45 = sshllo.u32 0, 4
    %46 = vst [vmem:[%s1] sm:%s45] %v44

// kernel: eeg_forward.5
$region0: #{eeg_forward.5}
  #allocation0 [shape = 'u32[]', space=smem, size = 0x4, offset = 0x4, fixed_abs, tag = 'smem constant byte address 0x4 - core index']
  #allocation1 [shape = 'u32[144,128]{1,0:T(1,128)}', space=vmem, size = 0x12000, scoped, tag = 'internal scratch']
  %s0 = inlined_call_operand.vmem [shape: f32[2,1024], index: 0, kind: input, shape index: {}]
  %s1 = inlined_call_operand.vmem [shape: bf16[256,1024], index: 1, kind: input, shape index: {}]
  %s2 = inlined_call_operand.vmem [shape: f32[1,1024], index: 2, kind: input, shape index: {}]
  %s3 = inlined_call_operand.vmem [shape: f32[256,64], index: 3, kind: input, shape index: {}]
  %s4 = inlined_call_operand.vmem [shape: f32[1,64], index: 4, kind: input, shape index: {}]
  %s5 = inlined_call_operand.vmem [shape: f32[64,6], index: 5, kind: input, shape index: {}]
  %s6 = inlined_call_operand.vmem [shape: f32[1,6], index: 6, kind: input, shape index: {}]
  %s7 = inlined_call_operand.hbm [shape: f32[2,6], index: 7, kind: output, shape index: {}]
  %s8 = sld [smem:[#allocation0]]
  $region38: #{eeg_forward.5} parent=0
    _
  %s10 = ssub.s32 1, %s8
  %s11 = scalar_select 0, %s10, %s8
  $region1: #{eeg_forward.5} parent=0
    #allocation2 [shape = 'u8[1024]{0}', space=vmem, size = 0x400, scoped, tag = 'output window, operand 0, single buffered']
    #allocation3 [shape = 's32[1]{0}', space=sflag, size = 0x4, scoped, tag = 'scoped memory for eeg_forward.5']
    %12 = vsyncpa [#allocation3], 0
    // Predicated region
    $region2: #{eeg_forward.5} parent=1 // pred_check
      _
    $region3: #{eeg_forward.5} parent=1 // pred_check_branch
      %14 = sbr.rel (0) target = $region5
    $region4: #{eeg_forward.5} parent=1 // pred_region
      _
    $region5: #{eeg_forward.5} parent=1 // pred_fallthru
      _
    // Predicated region
    $region6: #{eeg_forward.5} parent=1 // pred_check
      _
    $region7: #{eeg_forward.5} parent=1 // pred_check_branch
      %16 = sbr.rel (0) target = $region9
    $region8: #{eeg_forward.5} parent=1 // pred_region
      _
    $region9: #{eeg_forward.5} parent=1 // pred_fallthru
      _
    // Predicated region
    $region10: #{eeg_forward.5} parent=1 // pred_check
      _
    $region11: #{eeg_forward.5} parent=1 // pred_check_branch
      %18 = sbr.rel (0) target = $region13
    $region12: #{eeg_forward.5} parent=1 // pred_region
      _
    $region13: #{eeg_forward.5} parent=1 // pred_fallthru
      _
    // Predicated region
    $region14: #{eeg_forward.5} parent=1 // pred_check
      _
    $region15: #{eeg_forward.5} parent=1 // pred_check_branch
      %20 = sbr.rel (0) target = $region17
    $region16: #{eeg_forward.5} parent=1 // pred_region
      _
    $region17: #{eeg_forward.5} parent=1 // pred_fallthru
      _
    // Predicated region
    $region18: #{eeg_forward.5} parent=1 // pred_check
      _
    $region19: #{eeg_forward.5} parent=1 // pred_check_branch
      %22 = sbr.rel (0) target = $region21
    $region20: #{eeg_forward.5} parent=1 // pred_region
      _
    $region21: #{eeg_forward.5} parent=1 // pred_fallthru
      _
    // Predicated region
    $region22: #{eeg_forward.5} parent=1 // pred_check
      _
    $region23: #{eeg_forward.5} parent=1 // pred_check_branch
      %24 = sbr.rel (0) target = $region25
    $region24: #{eeg_forward.5} parent=1 // pred_region
      _
    $region25: #{eeg_forward.5} parent=1 // pred_fallthru
      _
    // Predicated region
    $region26: #{eeg_forward.5} parent=1 // pred_check
      _
    $region27: #{eeg_forward.5} parent=1 // pred_check_branch
      %26 = sbr.rel (0) target = $region29
    $region28: #{eeg_forward.5} parent=1 // pred_region
      _
    $region29: #{eeg_forward.5} parent=1 // pred_fallthru
      _
    %v27 = vld [vmem:[%s0] sm:$0xff]
    %v28 = vld [vmem:[%s0 + $0x8] sm:$0xff]
    %v29 = vxor.u32 %v27, 2147483648
    %v30 = vmul.f32 %v29, 1.442695
    %v31 = vpow.pop %v30
    %v32 = vadd.f32 %v31, 1.0
    %v33 = vrcp.pop %v32
    %v34 = vmul.f32 1.0, %v33
    %v36 = vrot.slane %v27, 4
    %v38 = vtanh.pop %v36
    %v39 = vrot.slane %v27, 6
    %v41 = vxor.u32 %v39, 2147483648
    %v42 = vmul.f32 %v41, 1.442695
    %v43 = vpow.pop %v42
    %v44 = vadd.f32 %v43, 1.0
    %v45 = vrcp.pop %v44
    %v46 = vmul.f32 1.0, %v45
    %v47 = vmul.f32 %v34, %v38
    %v48 = vtanh.pop %v47
    %v49 = vmul.f32 %v46, %v48
    %v50 = vxor.u32 %v28, 2147483648
    %v51 = vmul.f32 %v50, 1.442695
    %v52 = vpow.pop %v51
    %v53 = vadd.f32 %v52, 1.0
    %v54 = vrcp.pop %v53
    %v55 = vmul.f32 1.0, %v54
    %v57 = vrot.slane %v28, 4
    %v59 = vtanh.pop %v57
    %v60 = vrot.slane %v28, 6
    %v62 = vxor.u32 %v60, 2147483648
    %v63 = vmul.f32 %v62, 1.442695
    %v64 = vpow.pop %v63
    %v65 = vadd.f32 %v64, 1.0
    %v66 = vrcp.pop %v65
    %v67 = vmul.f32 1.0, %v66
    %v68 = vmul.f32 %v55, %v59
    %v69 = vtanh.pop %v68
    %v70 = vmul.f32 %v67, %v69
    %v71 = vpack.c.bf16 %v49, %v49
    %v72 = vpack.c.bf16 %v70, %v70
    %v73 = vld [vmem:[%s1] sm:$0xff]
    %v74 = vld [vmem:[%s1 + $0x8] sm:$0xff]
    %v75 = vld [vmem:[%s1 + $0x10] sm:$0xff]
    %v76 = vld [vmem:[%s1 + $0x18] sm:$0xff]
    %v77 = vld [vmem:[%s1 + $0x20] sm:$0xff]
    %v78 = vld [vmem:[%s1 + $0x28] sm:$0xff]
    %v79 = vld [vmem:[%s1 + $0x30] sm:$0xff]
    %v80 = vld [vmem:[%s1 + $0x38] sm:$0xff]
    %v81 = vld [vmem:[%s1 + $0x40] sm:$0xff]
    %v82 = vld [vmem:[%s1 + $0x48] sm:$0xff]
    %v83 = vld [vmem:[%s1 + $0x50] sm:$0xff]
    %v84 = vld [vmem:[%s1 + $0x58] sm:$0xff]
    %v85 = vld [vmem:[%s1 + $0x60] sm:$0xff]
    %v86 = vld [vmem:[%s1 + $0x68] sm:$0xff]
    %v87 = vld [vmem:[%s1 + $0x70] sm:$0xff]
    %v88 = vld [vmem:[%s1 + $0x78] sm:$0xff]
    %v89 = vld [vmem:[%s1 + $0x80] sm:$0xff]
    %v90 = vld [vmem:[%s1 + $0x88] sm:$0xff]
    %v91 = vld [vmem:[%s1 + $0x90] sm:$0xff]
    %v92 = vld [vmem:[%s1 + $0x98] sm:$0xff]
    %v93 = vld [vmem:[%s1 + $0xa0] sm:$0xff]
    %v94 = vld [vmem:[%s1 + $0xa8] sm:$0xff]
    %v95 = vld [vmem:[%s1 + $0xb0] sm:$0xff]
    %v96 = vld [vmem:[%s1 + $0xb8] sm:$0xff]
    %v97 = vld [vmem:[%s1 + $0xc0] sm:$0xff]
    %v98 = vld [vmem:[%s1 + $0xc8] sm:$0xff]
    %v99 = vld [vmem:[%s1 + $0xd0] sm:$0xff]
    %v100 = vld [vmem:[%s1 + $0xd8] sm:$0xff]
    %v101 = vld [vmem:[%s1 + $0xe0] sm:$0xff]
    %v102 = vld [vmem:[%s1 + $0xe8] sm:$0xff]
    %v103 = vld [vmem:[%s1 + $0xf0] sm:$0xff]
    %v104 = vld [vmem:[%s1 + $0xf8] sm:$0xff]
    %v105 = vld [vmem:[%s1 + $0x100] sm:$0xff]
    %v106 = vld [vmem:[%s1 + $0x108] sm:$0xff]
    %v107 = vld [vmem:[%s1 + $0x110] sm:$0xff]
    %v108 = vld [vmem:[%s1 + $0x118] sm:$0xff]
    %v109 = vld [vmem:[%s1 + $0x120] sm:$0xff]
    %v110 = vld [vmem:[%s1 + $0x128] sm:$0xff]
    %v111 = vld [vmem:[%s1 + $0x130] sm:$0xff]
    %v112 = vld [vmem:[%s1 + $0x138] sm:$0xff]
    %v113 = vld [vmem:[%s1 + $0x140] sm:$0xff]
    %v114 = vld [vmem:[%s1 + $0x148] sm:$0xff]
    %v115 = vld [vmem:[%s1 + $0x150] sm:$0xff]
    %v116 = vld [vmem:[%s1 + $0x158] sm:$0xff]
    %v117 = vld [vmem:[%s1 + $0x160] sm:$0xff]
    %v118 = vld [vmem:[%s1 + $0x168] sm:$0xff]
    %v119 = vld [vmem:[%s1 + $0x170] sm:$0xff]
    %v120 = vld [vmem:[%s1 + $0x178] sm:$0xff]
    %v121 = vld [vmem:[%s1 + $0x180] sm:$0xff]
    %v122 = vld [vmem:[%s1 + $0x188] sm:$0xff]
    %v123 = vld [vmem:[%s1 + $0x190] sm:$0xff]
    %v124 = vld [vmem:[%s1 + $0x198] sm:$0xff]
    %v125 = vld [vmem:[%s1 + $0x1a0] sm:$0xff]
    %v126 = vld [vmem:[%s1 + $0x1a8] sm:$0xff]
    %v127 = vld [vmem:[%s1 + $0x1b0] sm:$0xff]
    %v128 = vld [vmem:[%s1 + $0x1b8] sm:$0xff]
    %v129 = vld [vmem:[%s1 + $0x1c0] sm:$0xff]
    %v130 = vld [vmem:[%s1 + $0x1c8] sm:$0xff]
    %v131 = vld [vmem:[%s1 + $0x1d0] sm:$0xff]
    %v132 = vld [vmem:[%s1 + $0x1d8] sm:$0xff]
    %v133 = vld [vmem:[%s1 + $0x1e0] sm:$0xff]
    %v134 = vld [vmem:[%s1 + $0x1e8] sm:$0xff]
    %v135 = vld [vmem:[%s1 + $0x1f0] sm:$0xff]
    %v136 = vld [vmem:[%s1 + $0x1f8] sm:$0xff]
    %v137 = vld [vmem:[%s1 + $0x200] sm:$0xff]
    %v138 = vld [vmem:[%s1 + $0x208] sm:$0xff]
    %v139 = vld [vmem:[%s1 + $0x210] sm:$0xff]
    %v140 = vld [vmem:[%s1 + $0x218] sm:$0xff]
    %v141 = vld [vmem:[%s1 + $0x220] sm:$0xff]
    %v142 = vld [vmem:[%s1 + $0x228] sm:$0xff]
    %v143 = vld [vmem:[%s1 + $0x230] sm:$0xff]
    %v144 = vld [vmem:[%s1 + $0x238] sm:$0xff]
    %v145 = vld [vmem:[%s1 + $0x240] sm:$0xff]
    %v146 = vld [vmem:[%s1 + $0x248] sm:$0xff]
    %v147 = vld [vmem:[%s1 + $0x250] sm:$0xff]
    %v148 = vld [vmem:[%s1 + $0x258] sm:$0xff]
    %v149 = vld [vmem:[%s1 + $0x260] sm:$0xff]
    %v150 = vld [vmem:[%s1 + $0x268] sm:$0xff]
    %v151 = vld [vmem:[%s1 + $0x270] sm:$0xff]
    %v152 = vld [vmem:[%s1 + $0x278] sm:$0xff]
    %v153 = vld [vmem:[%s1 + $0x280] sm:$0xff]
    %v154 = vld [vmem:[%s1 + $0x288] sm:$0xff]
    %v155 = vld [vmem:[%s1 + $0x290] sm:$0xff]
    %v156 = vld [vmem:[%s1 + $0x298] sm:$0xff]
    %v157 = vld [vmem:[%s1 + $0x2a0] sm:$0xff]
    %v158 = vld [vmem:[%s1 + $0x2a8] sm:$0xff]
    %v159 = vld [vmem:[%s1 + $0x2b0] sm:$0xff]
    %v160 = vld [vmem:[%s1 + $0x2b8] sm:$0xff]
    %v161 = vld [vmem:[%s1 + $0x2c0] sm:$0xff]
    %v162 = vld [vmem:[%s1 + $0x2c8] sm:$0xff]
    %v163 = vld [vmem:[%s1 + $0x2d0] sm:$0xff]
    %v164 = vld [vmem:[%s1 + $0x2d8] sm:$0xff]
    %v165 = vld [vmem:[%s1 + $0x2e0] sm:$0xff]
    %v166 = vld [vmem:[%s1 + $0x2e8] sm:$0xff]
    %v167 = vld [vmem:[%s1 + $0x2f0] sm:$0xff]
    %v168 = vld [vmem:[%s1 + $0x2f8] sm:$0xff]
    %v169 = vld [vmem:[%s1 + $0x300] sm:$0xff]
    %v170 = vld [vmem:[%s1 + $0x308] sm:$0xff]
    %v171 = vld [vmem:[%s1 + $0x310] sm:$0xff]
    %v172 = vld [vmem:[%s1 + $0x318] sm:$0xff]
    %v173 = vld [vmem:[%s1 + $0x320] sm:$0xff]
    %v174 = vld [vmem:[%s1 + $0x328] sm:$0xff]
    %v175 = vld [vmem:[%s1 + $0x330] sm:$0xff]
    %v176 = vld [vmem:[%s1 + $0x338] sm:$0xff]
    %v177 = vld [vmem:[%s1 + $0x340] sm:$0xff]
    %v178 = vld [vmem:[%s1 + $0x348] sm:$0xff]
    %v179 = vld [vmem:[%s1 + $0x350] sm:$0xff]
    %v180 = vld [vmem:[%s1 + $0x358] sm:$0xff]
    %v181 = vld [vmem:[%s1 + $0x360] sm:$0xff]
    %v182 = vld [vmem:[%s1 + $0x368] sm:$0xff]
    %v183 = vld [vmem:[%s1 + $0x370] sm:$0xff]
    %v184 = vld [vmem:[%s1 + $0x378] sm:$0xff]
    %v185 = vld [vmem:[%s1 + $0x380] sm:$0xff]
    %v186 = vld [vmem:[%s1 + $0x388] sm:$0xff]
    %v187 = vld [vmem:[%s1 + $0x390] sm:$0xff]
    %v188 = vld [vmem:[%s1 + $0x398] sm:$0xff]
    %v189 = vld [vmem:[%s1 + $0x3a0] sm:$0xff]
    %v190 = vld [vmem:[%s1 + $0x3a8] sm:$0xff]
    %v191 = vld [vmem:[%s1 + $0x3b0] sm:$0xff]
    %v192 = vld [vmem:[%s1 + $0x3b8] sm:$0xff]
    %v193 = vld [vmem:[%s1 + $0x3c0] sm:$0xff]
    %v194 = vld [vmem:[%s1 + $0x3c8] sm:$0xff]
    %v195 = vld [vmem:[%s1 + $0x3d0] sm:$0xff]
    %v196 = vld [vmem:[%s1 + $0x3d8] sm:$0xff]
    %v197 = vld [vmem:[%s1 + $0x3e0] sm:$0xff]
    %v198 = vld [vmem:[%s1 + $0x3e8] sm:$0xff]
    %v199 = vld [vmem:[%s1 + $0x3f0] sm:$0xff]
    %v200 = vld [vmem:[%s1 + $0x3f8] sm:$0xff]
    %v201 = vld [vmem:[%s2] sm:$0xff]
    %v203 = vlaneseq
    %v204 = vshrl.u32 %v203, 7
    %v205 = vsub.s32 0, %v204
    %v206 = vrot.slane %v201, %v205
    %v207 = vlaneseq
    %v208 = vshrl.u32 %v207, 7
    %v209 = vsub.s32 2, %v208
    %v210 = vrot.slane %v201, %v209
    %v211 = vlaneseq
    %v212 = vshrl.u32 %v211, 7
    %v213 = vsub.s32 3, %v212
    %v214 = vrot.slane %v201, %v213
    %v215 = vlaneseq
    %v216 = vshrl.u32 %v215, 7
    %v217 = vsub.s32 4, %v216
    %v218 = vrot.slane %v201, %v217
    %v219 = vlaneseq
    %v220 = vshrl.u32 %v219, 7
    %v221 = vsub.s32 6, %v220
    %v222 = vrot.slane %v201, %v221
    %v223 = vlaneseq
    %v224 = vshrl.u32 %v223, 7
    %v225 = vsub.s32 7, %v224
    %v226 = vrot.slane %v201, %v225
    %v361 = vunpack.c.l.b16 %v73
    %v362 = vunpack.c.h.b16 %v73
    %v363 = vunpack.c.l.b16 %v74
    %v364 = vunpack.c.h.b16 %v74
    %v365 = vunpack.c.l.b16 %v75
    %v366 = vunpack.c.h.b16 %v75
    %v367 = vunpack.c.l.b16 %v76
    %v368 = vunpack.c.h.b16 %v76
    %v369 = vunpack.c.l.b16 %v77
    %v370 = vunpack.c.h.b16 %v77
    %v371 = vunpack.c.l.b16 %v78
    %v372 = vunpack.c.h.b16 %v78
    %v373 = vunpack.c.l.b16 %v79
    %v374 = vunpack.c.h.b16 %v79
    %v375 = vunpack.c.l.b16 %v80
    %v376 = vunpack.c.h.b16 %v80
    %v377 = vunpack.c.l.b16 %v81
    %v378 = vunpack.c.h.b16 %v81
    %v379 = vunpack.c.l.b16 %v82
    %v380 = vunpack.c.h.b16 %v82
    %v381 = vunpack.c.l.b16 %v83
    %v382 = vunpack.c.h.b16 %v83
    %v383 = vunpack.c.l.b16 %v84
    %v384 = vunpack.c.h.b16 %v84
    %v385 = vunpack.c.l.b16 %v85
    %v386 = vunpack.c.h.b16 %v85
    %v387 = vunpack.c.l.b16 %v86
    %v388 = vunpack.c.h.b16 %v86
    %v389 = vunpack.c.l.b16 %v87
    %v390 = vunpack.c.h.b16 %v87
    %v391 = vunpack.c.l.b16 %v88
    %v392 = vunpack.c.h.b16 %v88
    %v393 = vunpack.c.l.b16 %v89
    %v394 = vunpack.c.h.b16 %v89
    %v395 = vunpack.c.l.b16 %v90
    %v396 = vunpack.c.h.b16 %v90
    %v397 = vunpack.c.l.b16 %v91
    %v398 = vunpack.c.h.b16 %v91
    %v399 = vunpack.c.l.b16 %v92
    %v400 = vunpack.c.h.b16 %v92
    %v401 = vunpack.c.l.b16 %v93
    %v402 = vunpack.c.h.b16 %v93
    %v403 = vunpack.c.l.b16 %v94
    %v404 = vunpack.c.h.b16 %v94
    %v405 = vunpack.c.l.b16 %v95
    %v406 = vunpack.c.h.b16 %v95
    %v407 = vunpack.c.l.b16 %v96
    %v408 = vunpack.c.h.b16 %v96
    %v409 = vunpack.c.l.b16 %v97
    %v410 = vunpack.c.h.b16 %v97
    %v411 = vunpack.c.l.b16 %v98
    %v412 = vunpack.c.h.b16 %v98
    %v413 = vunpack.c.l.b16 %v99
    %v414 = vunpack.c.h.b16 %v99
    %v415 = vunpack.c.l.b16 %v100
    %v416 = vunpack.c.h.b16 %v100
    %v417 = vunpack.c.l.b16 %v101
    %v418 = vunpack.c.h.b16 %v101
    %v419 = vunpack.c.l.b16 %v102
    %v420 = vunpack.c.h.b16 %v102
    %v421 = vunpack.c.l.b16 %v103
    %v422 = vunpack.c.h.b16 %v103
    %v423 = vunpack.c.l.b16 %v104
    %v424 = vunpack.c.h.b16 %v104
    %v425 = vunpack.c.l.b16 %v105
    %v426 = vunpack.c.h.b16 %v105
    %v427 = vunpack.c.l.b16 %v106
    %v428 = vunpack.c.h.b16 %v106
    %v429 = vunpack.c.l.b16 %v107
    %v430 = vunpack.c.h.b16 %v107
    %v431 = vunpack.c.l.b16 %v108
    %v432 = vunpack.c.h.b16 %v108
    %v433 = vunpack.c.l.b16 %v109
    %v434 = vunpack.c.h.b16 %v109
    %v435 = vunpack.c.l.b16 %v110
    %v436 = vunpack.c.h.b16 %v110
    %v437 = vunpack.c.l.b16 %v111
    %v438 = vunpack.c.h.b16 %v111
    %v439 = vunpack.c.l.b16 %v112
    %v440 = vunpack.c.h.b16 %v112
    %v441 = vunpack.c.l.b16 %v113
    %v442 = vunpack.c.h.b16 %v113
    %v443 = vunpack.c.l.b16 %v114
    %v444 = vunpack.c.h.b16 %v114
    %v445 = vunpack.c.l.b16 %v115
    %v446 = vunpack.c.h.b16 %v115
    %v447 = vunpack.c.l.b16 %v116
    %v448 = vunpack.c.h.b16 %v116
    %v449 = vunpack.c.l.b16 %v117
    %v450 = vunpack.c.h.b16 %v117
    %v451 = vunpack.c.l.b16 %v118
    %v452 = vunpack.c.h.b16 %v118
    %v453 = vunpack.c.l.b16 %v119
    %v454 = vunpack.c.h.b16 %v119
    %v455 = vunpack.c.l.b16 %v120
    %v456 = vunpack.c.h.b16 %v120
    %v457 = vunpack.c.l.b16 %v121
    %v458 = vunpack.c.h.b16 %v121
    %v459 = vunpack.c.l.b16 %v122
    %v460 = vunpack.c.h.b16 %v122
    %v461 = vunpack.c.l.b16 %v123
    %v462 = vunpack.c.h.b16 %v123
    %v463 = vunpack.c.l.b16 %v124
    %v464 = vunpack.c.h.b16 %v124
    %v465 = vunpack.c.l.b16 %v125
    %v466 = vunpack.c.h.b16 %v125
    %v467 = vunpack.c.l.b16 %v126
    %v468 = vunpack.c.h.b16 %v126
    %v469 = vunpack.c.l.b16 %v127
    %v470 = vunpack.c.h.b16 %v127
    %v471 = vunpack.c.l.b16 %v128
    %v472 = vunpack.c.h.b16 %v128
    %v473 = vunpack.c.l.b16 %v129
    %v474 = vunpack.c.h.b16 %v129
    %v475 = vunpack.c.l.b16 %v130
    %v476 = vunpack.c.h.b16 %v130
    %v477 = vunpack.c.l.b16 %v131
    %v478 = vunpack.c.h.b16 %v131
    %v479 = vunpack.c.l.b16 %v132
    %v480 = vunpack.c.h.b16 %v132
    %v481 = vunpack.c.l.b16 %v133
    %v482 = vunpack.c.h.b16 %v133
    %v483 = vunpack.c.l.b16 %v134
    %v484 = vunpack.c.h.b16 %v134
    %v485 = vunpack.c.l.b16 %v135
    %v486 = vunpack.c.h.b16 %v135
    %v487 = vunpack.c.l.b16 %v136
    %v488 = vunpack.c.h.b16 %v136
    %v489 = vunpack.c.l.b16 %v137
    %v490 = vunpack.c.h.b16 %v137
    %v491 = vunpack.c.l.b16 %v138
    %v492 = vunpack.c.h.b16 %v138
    %v493 = vunpack.c.l.b16 %v139
    %v494 = vunpack.c.h.b16 %v139
    %v495 = vunpack.c.l.b16 %v140
    %v496 = vunpack.c.h.b16 %v140
    %v497 = vunpack.c.l.b16 %v141
    %v498 = vunpack.c.h.b16 %v141
    %v499 = vunpack.c.l.b16 %v142
    %v500 = vunpack.c.h.b16 %v142
    %v501 = vunpack.c.l.b16 %v143
    %v502 = vunpack.c.h.b16 %v143
    %v503 = vunpack.c.l.b16 %v144
    %v504 = vunpack.c.h.b16 %v144
    %v505 = vunpack.c.l.b16 %v145
    %v506 = vunpack.c.h.b16 %v145
    %v507 = vunpack.c.l.b16 %v146
    %v508 = vunpack.c.h.b16 %v146
    %v509 = vunpack.c.l.b16 %v147
    %v510 = vunpack.c.h.b16 %v147
    %v511 = vunpack.c.l.b16 %v148
    %v512 = vunpack.c.h.b16 %v148
    %v513 = vunpack.c.l.b16 %v149
    %v514 = vunpack.c.h.b16 %v149
    %v515 = vunpack.c.l.b16 %v150
    %v516 = vunpack.c.h.b16 %v150
    %v517 = vunpack.c.l.b16 %v151
    %v518 = vunpack.c.h.b16 %v151
    %v519 = vunpack.c.l.b16 %v152
    %v520 = vunpack.c.h.b16 %v152
    %v521 = vunpack.c.l.b16 %v153
    %v522 = vunpack.c.h.b16 %v153
    %v523 = vunpack.c.l.b16 %v154
    %v524 = vunpack.c.h.b16 %v154
    %v525 = vunpack.c.l.b16 %v155
    %v526 = vunpack.c.h.b16 %v155
    %v527 = vunpack.c.l.b16 %v156
    %v528 = vunpack.c.h.b16 %v156
    %v529 = vunpack.c.l.b16 %v157
    %v530 = vunpack.c.h.b16 %v157
    %v531 = vunpack.c.l.b16 %v158
    %v532 = vunpack.c.h.b16 %v158
    %v533 = vunpack.c.l.b16 %v159
    %v534 = vunpack.c.h.b16 %v159
    %v535 = vunpack.c.l.b16 %v160
    %v536 = vunpack.c.h.b16 %v160
    %v537 = vunpack.c.l.b16 %v161
    %v538 = vunpack.c.h.b16 %v161
    %v539 = vunpack.c.l.b16 %v162
    %v540 = vunpack.c.h.b16 %v162
    %v541 = vunpack.c.l.b16 %v163
    %v542 = vunpack.c.h.b16 %v163
    %v543 = vunpack.c.l.b16 %v164
    %v544 = vunpack.c.h.b16 %v164
    %v545 = vunpack.c.l.b16 %v165
    %v546 = vunpack.c.h.b16 %v165
    %v547 = vunpack.c.l.b16 %v166
    %v548 = vunpack.c.h.b16 %v166
    %v549 = vunpack.c.l.b16 %v167
    %v550 = vunpack.c.h.b16 %v167
    %v551 = vunpack.c.l.b16 %v168
    %v552 = vunpack.c.h.b16 %v168
    %v553 = vunpack.c.l.b16 %v169
    %v554 = vunpack.c.h.b16 %v169
    %v555 = vunpack.c.l.b16 %v170
    %v556 = vunpack.c.h.b16 %v170
    %v557 = vunpack.c.l.b16 %v171
    %v558 = vunpack.c.h.b16 %v171
    %v559 = vunpack.c.l.b16 %v172
    %v560 = vunpack.c.h.b16 %v172
    %v561 = vunpack.c.l.b16 %v173
    %v562 = vunpack.c.h.b16 %v173
    %v563 = vunpack.c.l.b16 %v174
    %v564 = vunpack.c.h.b16 %v174
    %v565 = vunpack.c.l.b16 %v175
    %v566 = vunpack.c.h.b16 %v175
    %v567 = vunpack.c.l.b16 %v176
    %v568 = vunpack.c.h.b16 %v176
    %v569 = vunpack.c.l.b16 %v177
    %v570 = vunpack.c.h.b16 %v177
    %v571 = vunpack.c.l.b16 %v178
    %v572 = vunpack.c.h.b16 %v178
    %v573 = vunpack.c.l.b16 %v179
    %v574 = vunpack.c.h.b16 %v179
    %v575 = vunpack.c.l.b16 %v180
    %v576 = vunpack.c.h.b16 %v180
    %v577 = vunpack.c.l.b16 %v181
    %v578 = vunpack.c.h.b16 %v181
    %v579 = vunpack.c.l.b16 %v182
    %v580 = vunpack.c.h.b16 %v182
    %v581 = vunpack.c.l.b16 %v183
    %v582 = vunpack.c.h.b16 %v183
    %v583 = vunpack.c.l.b16 %v184
    %v584 = vunpack.c.h.b16 %v184
    %v585 = vunpack.c.l.b16 %v185
    %v586 = vunpack.c.h.b16 %v185
    %v587 = vunpack.c.l.b16 %v186
    %v588 = vunpack.c.h.b16 %v186
    %v589 = vunpack.c.l.b16 %v187
    %v590 = vunpack.c.h.b16 %v187
    %v591 = vunpack.c.l.b16 %v188
    %v592 = vunpack.c.h.b16 %v188
    %v593 = vunpack.c.l.b16 %v189
    %v594 = vunpack.c.h.b16 %v189
    %v595 = vunpack.c.l.b16 %v190
    %v596 = vunpack.c.h.b16 %v190
    %v597 = vunpack.c.l.b16 %v191
    %v598 = vunpack.c.h.b16 %v191
    %v599 = vunpack.c.l.b16 %v192
    %v600 = vunpack.c.h.b16 %v192
    %v601 = vunpack.c.l.b16 %v193
    %v602 = vunpack.c.h.b16 %v193
    %v603 = vunpack.c.l.b16 %v194
    %v604 = vunpack.c.h.b16 %v194
    %v605 = vunpack.c.l.b16 %v195
    %v606 = vunpack.c.h.b16 %v195
    %v607 = vunpack.c.l.b16 %v196
    %v608 = vunpack.c.h.b16 %v196
    %v609 = vunpack.c.l.b16 %v197
    %v610 = vunpack.c.h.b16 %v197
    %v611 = vunpack.c.l.b16 %v198
    %v612 = vunpack.c.h.b16 %v198
    %v613 = vunpack.c.l.b16 %v199
    %v614 = vunpack.c.h.b16 %v199
    %v615 = vunpack.c.l.b16 %v200
    %v616 = vunpack.c.h.b16 %v200
    %v617 = vpack.c.b16 %v369, %v361
    %v618 = vpack.c.b16 %v370, %v362
    %v619 = vpack.c.b16 %v371, %v363
    %v620 = vpack.c.b16 %v372, %v364
    %v621 = vpack.c.b16 %v373, %v365
    %v622 = vpack.c.b16 %v374, %v366
    %v623 = vpack.c.b16 %v375, %v367
    %v624 = vpack.c.b16 %v376, %v368
    %v625 = vpack.c.b16 %v385, %v377
    %v626 = vpack.c.b16 %v386, %v378
    %v627 = vpack.c.b16 %v387, %v379
    %v628 = vpack.c.b16 %v388, %v380
    %v629 = vpack.c.b16 %v389, %v381
    %v630 = vpack.c.b16 %v390, %v382
    %v631 = vpack.c.b16 %v391, %v383
    %v632 = vpack.c.b16 %v392, %v384
    %v633 = vpack.c.b16 %v401, %v393
    %v634 = vpack.c.b16 %v402, %v394
    %v635 = vpack.c.b16 %v403, %v395
    %v636 = vpack.c.b16 %v404, %v396
    %v637 = vpack.c.b16 %v405, %v397
    %v638 = vpack.c.b16 %v406, %v398
    %v639 = vpack.c.b16 %v407, %v399
    %v640 = vpack.c.b16 %v408, %v400
    %v641 = vpack.c.b16 %v417, %v409
    %v642 = vpack.c.b16 %v418, %v410
    %v643 = vpack.c.b16 %v419, %v411
    %v644 = vpack.c.b16 %v420, %v412
    %v645 = vpack.c.b16 %v421, %v413
    %v646 = vpack.c.b16 %v422, %v414
    %v647 = vpack.c.b16 %v423, %v415
    %v648 = vpack.c.b16 %v424, %v416
    %v649 = vpack.c.b16 %v433, %v425
    %v650 = vpack.c.b16 %v434, %v426
    %v651 = vpack.c.b16 %v435, %v427
    %v652 = vpack.c.b16 %v436, %v428
    %v653 = vpack.c.b16 %v437, %v429
    %v654 = vpack.c.b16 %v438, %v430
    %v655 = vpack.c.b16 %v439, %v431
    %v656 = vpack.c.b16 %v440, %v432
    %v657 = vpack.c.b16 %v449, %v441
    %v658 = vpack.c.b16 %v450, %v442
    %v659 = vpack.c.b16 %v451, %v443
    %v660 = vpack.c.b16 %v452, %v444
    %v661 = vpack.c.b16 %v453, %v445
    %v662 = vpack.c.b16 %v454, %v446
    %v663 = vpack.c.b16 %v455, %v447
    %v664 = vpack.c.b16 %v456, %v448
    %v665 = vpack.c.b16 %v465, %v457
    %v666 = vpack.c.b16 %v466, %v458
    %v667 = vpack.c.b16 %v467, %v459
    %v668 = vpack.c.b16 %v468, %v460
    %v669 = vpack.c.b16 %v469, %v461
    %v670 = vpack.c.b16 %v470, %v462
    %v671 = vpack.c.b16 %v471, %v463
    %v672 = vpack.c.b16 %v472, %v464
    %v673 = vpack.c.b16 %v481, %v473
    %v674 = vpack.c.b16 %v482, %v474
    %v675 = vpack.c.b16 %v483, %v475
    %v676 = vpack.c.b16 %v484, %v476
    %v677 = vpack.c.b16 %v485, %v477
    %v678 = vpack.c.b16 %v486, %v478
    %v679 = vpack.c.b16 %v487, %v479
    %v680 = vpack.c.b16 %v488, %v480
    %v681 = vpack.c.b16 %v497, %v489
    %v682 = vpack.c.b16 %v498, %v490
    %v683 = vpack.c.b16 %v499, %v491
    %v684 = vpack.c.b16 %v500, %v492
    %v685 = vpack.c.b16 %v501, %v493
    %v686 = vpack.c.b16 %v502, %v494
    %v687 = vpack.c.b16 %v503, %v495
    %v688 = vpack.c.b16 %v504, %v496
    %v689 = vpack.c.b16 %v513, %v505
    %v690 = vpack.c.b16 %v514, %v506
    %v691 = vpack.c.b16 %v515, %v507
    %v692 = vpack.c.b16 %v516, %v508
    %v693 = vpack.c.b16 %v517, %v509
    %v694 = vpack.c.b16 %v518, %v510
    %v695 = vpack.c.b16 %v519, %v511
    %v696 = vpack.c.b16 %v520, %v512
    %v697 = vpack.c.b16 %v529, %v521
    %v698 = vpack.c.b16 %v530, %v522
    %v699 = vpack.c.b16 %v531, %v523
    %v700 = vpack.c.b16 %v532, %v524
    %v701 = vpack.c.b16 %v533, %v525
    %v702 = vpack.c.b16 %v534, %v526
    %v703 = vpack.c.b16 %v535, %v527
    %v704 = vpack.c.b16 %v536, %v528
    %v705 = vpack.c.b16 %v545, %v537
    %v706 = vpack.c.b16 %v546, %v538
    %v707 = vpack.c.b16 %v547, %v539
    %v708 = vpack.c.b16 %v548, %v540
    %v709 = vpack.c.b16 %v549, %v541
    %v710 = vpack.c.b16 %v550, %v542
    %v711 = vpack.c.b16 %v551, %v543
    %v712 = vpack.c.b16 %v552, %v544
    %v713 = vpack.c.b16 %v561, %v553
    %v714 = vpack.c.b16 %v562, %v554
    %v715 = vpack.c.b16 %v563, %v555
    %v716 = vpack.c.b16 %v564, %v556
    %v717 = vpack.c.b16 %v565, %v557
    %v718 = vpack.c.b16 %v566, %v558
    %v719 = vpack.c.b16 %v567, %v559
    %v720 = vpack.c.b16 %v568, %v560
    %v721 = vpack.c.b16 %v577, %v569
    %v722 = vpack.c.b16 %v578, %v570
    %v723 = vpack.c.b16 %v579, %v571
    %v724 = vpack.c.b16 %v580, %v572
    %v725 = vpack.c.b16 %v581, %v573
    %v726 = vpack.c.b16 %v582, %v574
    %v727 = vpack.c.b16 %v583, %v575
    %v728 = vpack.c.b16 %v584, %v576
    %v729 = vpack.c.b16 %v593, %v585
    %v730 = vpack.c.b16 %v594, %v586
    %v731 = vpack.c.b16 %v595, %v587
    %v732 = vpack.c.b16 %v596, %v588
    %v733 = vpack.c.b16 %v597, %v589
    %v734 = vpack.c.b16 %v598, %v590
    %v735 = vpack.c.b16 %v599, %v591
    %v736 = vpack.c.b16 %v600, %v592
    %v737 = vpack.c.b16 %v609, %v601
    %v738 = vpack.c.b16 %v610, %v602
    %v739 = vpack.c.b16 %v611, %v603
    %v740 = vpack.c.b16 %v612, %v604
    %v741 = vpack.c.b16 %v613, %v605
    %v742 = vpack.c.b16 %v614, %v606
    %v743 = vpack.c.b16 %v615, %v607
    %v744 = vpack.c.b16 %v616, %v608
    %873 = vmatprep.subr.bf16.mxu0 %v618
    %874 = vmatpush1.bf16.msra.mxu0 %v617
    %875 = vmatprep.subr.bf16.mxu0 %v626
    %876 = vmatpush1.bf16.msra.mxu0 %v625
    %877 = vmatprep.subr.bf16.mxu0 %v634
    %878 = vmatpush1.bf16.msra.mxu0 %v633
    %879 = vmatprep.subr.bf16.mxu0 %v642
    %880 = vmatpush1.bf16.msra.mxu0 %v641
    %881 = vmatprep.subr.bf16.mxu0 %v650
    %882 = vmatpush1.bf16.msra.mxu0 %v649
    %883 = vmatprep.subr.bf16.mxu0 %v658
    %884 = vmatpush1.bf16.msra.mxu0 %v657
    %885 = vmatprep.subr.bf16.mxu0 %v666
    %886 = vmatpush1.bf16.msra.mxu0 %v665
    %887 = vmatprep.subr.bf16.mxu0 %v674
    %888 = vmatpush1.bf16.msra.mxu0 %v673
    %889 = vmatprep.subr.bf16.mxu0 %v682
    %890 = vmatpush1.bf16.msra.mxu0 %v681
    %891 = vmatprep.subr.bf16.mxu0 %v690
    %892 = vmatpush1.bf16.msra.mxu0 %v689
    %893 = vmatprep.subr.bf16.mxu0 %v698
    %894 = vmatpush1.bf16.msra.mxu0 %v697
    %895 = vmatprep.subr.bf16.mxu0 %v706
    %896 = vmatpush1.bf16.msra.mxu0 %v705
    %897 = vmatprep.subr.bf16.mxu0 %v714
    %898 = vmatpush1.bf16.msra.mxu0 %v713
    %899 = vmatprep.subr.bf16.mxu0 %v722
    %900 = vmatpush1.bf16.msra.mxu0 %v721
    %901 = vmatprep.subr.bf16.mxu0 %v730
    %902 = vmatpush1.bf16.msra.mxu0 %v729
    %903 = vmatprep.subr.bf16.mxu0 %v738
    %904 = vmatpush1.bf16.msra.mxu0 %v737
    %905 = vmatprep.mubr.bf16.mxu0 %v72
    %906 = vmatmul.mubr.bf16.gmra.mrb[0].mxu0 %v71
    %v907 = vpop.f32.mrb[0].mxu0
    %v908 = vadd.f32 %v206, %v907
    %v909 = vpop.f32.mrb[0].mxu0
    %v910 = vpop.f32.mrb[0].mxu0
    %v911 = vpop.f32.mrb[0].mxu0
    %912 = vdwg.mxu0
    %913 = vmatprep.subr.bf16.mxu0 %v620
    %914 = vmatpush1.bf16.msra.mxu0 %v619
    %915 = vmatprep.subr.bf16.mxu0 %v628
    %916 = vmatpush1.bf16.msra.mxu0 %v627
    %917 = vmatprep.subr.bf16.mxu0 %v636
    %918 = vmatpush1.bf16.msra.mxu0 %v635
    %919 = vmatprep.subr.bf16.mxu0 %v644
    %920 = vmatpush1.bf16.msra.mxu0 %v643
    %921 = vmatprep.subr.bf16.mxu0 %v652
    %922 = vmatpush1.bf16.msra.mxu0 %v651
    %923 = vmatprep.subr.bf16.mxu0 %v660
    %924 = vmatpush1.bf16.msra.mxu0 %v659
    %925 = vmatprep.subr.bf16.mxu0 %v668
    %926 = vmatpush1.bf16.msra.mxu0 %v667
    %927 = vmatprep.subr.bf16.mxu0 %v676
    %928 = vmatpush1.bf16.msra.mxu0 %v675
    %929 = vmatprep.subr.bf16.mxu0 %v684
    %930 = vmatpush1.bf16.msra.mxu0 %v683
    %931 = vmatprep.subr.bf16.mxu0 %v692
    %932 = vmatpush1.bf16.msra.mxu0 %v691
    %933 = vmatprep.subr.bf16.mxu0 %v700
    %934 = vmatpush1.bf16.msra.mxu0 %v699
    %935 = vmatprep.subr.bf16.mxu0 %v708
    %936 = vmatpush1.bf16.msra.mxu0 %v707
    %937 = vmatprep.subr.bf16.mxu0 %v716
    %938 = vmatpush1.bf16.msra.mxu0 %v715
    %939 = vmatprep.subr.bf16.mxu0 %v724
    %940 = vmatpush1.bf16.msra.mxu0 %v723
    %941 = vmatprep.subr.bf16.mxu0 %v732
    %942 = vmatpush1.bf16.msra.mxu0 %v731
    %943 = vmatprep.subr.bf16.mxu0 %v740
    %944 = vmatpush1.bf16.msra.mxu0 %v739
    %945 = vmatprep.mubr.bf16.mxu0 %v72
    %946 = vmatmul.mubr.bf16.gmra.mrb[0].mxu0 %v71
    %v947 = vpop.f32.mrb[0].mxu0
    %v948 = vadd.f32 %v210, %v947
    %v949 = vpop.f32.mrb[0].mxu0
    %v950 = vadd.f32 %v214, %v949
    %v951 = vpop.f32.mrb[0].mxu0
    %v952 = vpop.f32.mrb[0].mxu0
    %953 = vdwg.mxu0
    %954 = vmatprep.subr.bf16.mxu0 %v622
    %955 = vmatpush1.bf16.msra.mxu0 %v621
    %956 = vmatprep.subr.bf16.mxu0 %v630
    %957 = vmatpush1.bf16.msra.mxu0 %v629
    %958 = vmatprep.subr.bf16.mxu0 %v638
    %959 = vmatpush1.bf16.msra.mxu0 %v637
    %960 = vmatprep.subr.bf16.mxu0 %v646
    %961 = vmatpush1.bf16.msra.mxu0 %v645
    %962 = vmatprep.subr.bf16.mxu0 %v654
    %963 = vmatpush1.bf16.msra.mxu0 %v653
    %964 = vmatprep.subr.bf16.mxu0 %v662
    %965 = vmatpush1.bf16.msra.mxu0 %v661
    %966 = vmatprep.subr.bf16.mxu0 %v670
    %967 = vmatpush1.bf16.msra.mxu0 %v669
    %968 = vmatprep.subr.bf16.mxu0 %v678
    %969 = vmatpush1.bf16.msra.mxu0 %v677
    %970 = vmatprep.subr.bf16.mxu0 %v686
    %971 = vmatpush1.bf16.msra.mxu0 %v685
    %972 = vmatprep.subr.bf16.mxu0 %v694
    %973 = vmatpush1.bf16.msra.mxu0 %v693
    %974 = vmatprep.subr.bf16.mxu0 %v702
    %975 = vmatpush1.bf16.msra.mxu0 %v701
    %976 = vmatprep.subr.bf16.mxu0 %v710
    %977 = vmatpush1.bf16.msra.mxu0 %v709
    %978 = vmatprep.subr.bf16.mxu0 %v718
    %979 = vmatpush1.bf16.msra.mxu0 %v717
    %980 = vmatprep.subr.bf16.mxu0 %v726
    %981 = vmatpush1.bf16.msra.mxu0 %v725
    %982 = vmatprep.subr.bf16.mxu0 %v734
    %983 = vmatpush1.bf16.msra.mxu0 %v733
    %984 = vmatprep.subr.bf16.mxu0 %v742
    %985 = vmatpush1.bf16.msra.mxu0 %v741
    %986 = vmatprep.mubr.bf16.mxu0 %v72
    %987 = vmatmul.mubr.bf16.gmra.mrb[0].mxu0 %v71
    %v988 = vpop.f32.mrb[0].mxu0
    %v989 = vadd.f32 %v218, %v988
    %v990 = vpop.f32.mrb[0].mxu0
    %v991 = vpop.f32.mrb[0].mxu0
    %v992 = vpop.f32.mrb[0].mxu0
    %993 = vdwg.mxu0
    %994 = vmatprep.subr.bf16.mxu0 %v624
    %995 = vmatpush1.bf16.msra.mxu0 %v623
    %996 = vmatprep.subr.bf16.mxu0 %v632
    %997 = vmatpush1.bf16.msra.mxu0 %v631
    %998 = vmatprep.subr.bf16.mxu0 %v640
    %999 = vmatpush1.bf16.msra.mxu0 %v639
    %1000 = vmatprep.subr.bf16.mxu0 %v648
    %1001 = vmatpush1.bf16.msra.mxu0 %v647
    %1002 = vmatprep.subr.bf16.mxu0 %v656
    %1003 = vmatpush1.bf16.msra.mxu0 %v655
    %1004 = vmatprep.subr.bf16.mxu0 %v664
    %1005 = vmatpush1.bf16.msra.mxu0 %v663
    %1006 = vmatprep.subr.bf16.mxu0 %v672
    %1007 = vmatpush1.bf16.msra.mxu0 %v671
    %1008 = vmatprep.subr.bf16.mxu0 %v680
    %1009 = vmatpush1.bf16.msra.mxu0 %v679
    %1010 = vmatprep.subr.bf16.mxu0 %v688
    %1011 = vmatpush1.bf16.msra.mxu0 %v687
    %1012 = vmatprep.subr.bf16.mxu0 %v696
    %1013 = vmatpush1.bf16.msra.mxu0 %v695
    %1014 = vmatprep.subr.bf16.mxu0 %v704
    %1015 = vmatpush1.bf16.msra.mxu0 %v703
    %1016 = vmatprep.subr.bf16.mxu0 %v712
    %1017 = vmatpush1.bf16.msra.mxu0 %v711
    %1018 = vmatprep.subr.bf16.mxu0 %v720
    %1019 = vmatpush1.bf16.msra.mxu0 %v719
    %1020 = vmatprep.subr.bf16.mxu0 %v728
    %1021 = vmatpush1.bf16.msra.mxu0 %v727
    %1022 = vmatprep.subr.bf16.mxu0 %v736
    %1023 = vmatpush1.bf16.msra.mxu0 %v735
    %1024 = vmatprep.subr.bf16.mxu0 %v744
    %1025 = vmatpush1.bf16.msra.mxu0 %v743
    %1026 = vmatprep.mubr.bf16.mxu0 %v72
    %1027 = vmatmul.mubr.bf16.gmra.mrb[0].mxu0 %v71
    %v1028 = vpop.f32.mrb[0].mxu0
    %v1029 = vadd.f32 %v222, %v1028
    %v1030 = vpop.f32.mrb[0].mxu0
    %v1031 = vadd.f32 %v226, %v1030
    %v1032 = vpop.f32.mrb[0].mxu0
    %v1033 = vpop.f32.mrb[0].mxu0
    %1034 = vdwg.mxu0
    %v1035 = vxor.u32 %v908, 2147483648
    %v1036 = vmul.f32 %v1035, 1.442695
    %v1037 = vpow.pop %v1036
    %v1038 = vadd.f32 %v1037, 1.0
    %v1039 = vrcp.pop %v1038
    %v1040 = vmul.f32 1.0, %v1039
    %v1041 = vtanh.pop %v948
    %v1042 = vxor.u32 %v950, 2147483648
    %v1043 = vmul.f32 %v1042, 1.442695
    %v1044 = vpow.pop %v1043
    %v1045 = vadd.f32 %v1044, 1.0
    %v1046 = vrcp.pop %v1045
    %v1047 = vmul.f32 1.0, %v1046
    %v1048 = vmul.f32 %v1040, %v1041
    %v1049 = vtanh.pop %v1048
    %v1050 = vmul.f32 %v1047, %v1049
    %v1051 = vxor.u32 %v989, 2147483648
    %v1052 = vmul.f32 %v1051, 1.442695
    %v1053 = vpow.pop %v1052
    %v1054 = vadd.f32 %v1053, 1.0
    %v1055 = vrcp.pop %v1054
    %v1056 = vmul.f32 1.0, %v1055
    %v1057 = vtanh.pop %v1029
    %v1058 = vxor.u32 %v1031, 2147483648
    %v1059 = vmul.f32 %v1058, 1.442695
    %v1060 = vpow.pop %v1059
    %v1061 = vadd.f32 %v1060, 1.0
    %v1062 = vrcp.pop %v1061
    %v1063 = vmul.f32 1.0, %v1062
    %v1064 = vmul.f32 %v1056, %v1057
    %v1065 = vtanh.pop %v1064
    %v1066 = vmul.f32 %v1063, %v1065
    %v1067 = vld [vmem:[%s3] sm:$0xff]
    %v1068 = vld [vmem:[%s3 + $0x8] sm:$0xff]
    %v1069 = vld [vmem:[%s3 + $0x10] sm:$0xff]
    %v1070 = vld [vmem:[%s3 + $0x18] sm:$0xff]
    %v1071 = vld [vmem:[%s3 + $0x20] sm:$0xff]
    %v1072 = vld [vmem:[%s3 + $0x28] sm:$0xff]
    %v1073 = vld [vmem:[%s3 + $0x30] sm:$0xff]
    %v1074 = vld [vmem:[%s3 + $0x38] sm:$0xff]
    %v1075 = vld [vmem:[%s3 + $0x40] sm:$0xff]
    %v1076 = vld [vmem:[%s3 + $0x48] sm:$0xff]
    %v1077 = vld [vmem:[%s3 + $0x50] sm:$0xff]
    %v1078 = vld [vmem:[%s3 + $0x58] sm:$0xff]
    %v1079 = vld [vmem:[%s3 + $0x60] sm:$0xff]
    %v1080 = vld [vmem:[%s3 + $0x68] sm:$0xff]
    %v1081 = vld [vmem:[%s3 + $0x70] sm:$0xff]
    %v1082 = vld [vmem:[%s3 + $0x78] sm:$0xff]
    %v1083 = vld [vmem:[%s3 + $0x80] sm:$0xff]
    %v1084 = vld [vmem:[%s3 + $0x88] sm:$0xff]
    %v1085 = vld [vmem:[%s3 + $0x90] sm:$0xff]
    %v1086 = vld [vmem:[%s3 + $0x98] sm:$0xff]
    %v1087 = vld [vmem:[%s3 + $0xa0] sm:$0xff]
    %v1088 = vld [vmem:[%s3 + $0xa8] sm:$0xff]
    %v1089 = vld [vmem:[%s3 + $0xb0] sm:$0xff]
    %v1090 = vld [vmem:[%s3 + $0xb8] sm:$0xff]
    %v1091 = vld [vmem:[%s3 + $0xc0] sm:$0xff]
    %v1092 = vld [vmem:[%s3 + $0xc8] sm:$0xff]
    %v1093 = vld [vmem:[%s3 + $0xd0] sm:$0xff]
    %v1094 = vld [vmem:[%s3 + $0xd8] sm:$0xff]
    %v1095 = vld [vmem:[%s3 + $0xe0] sm:$0xff]
    %v1096 = vld [vmem:[%s3 + $0xe8] sm:$0xff]
    %v1097 = vld [vmem:[%s3 + $0xf0] sm:$0xff]
    %v1098 = vld [vmem:[%s3 + $0xf8] sm:$0xff]
    %v1099 = vld [vmem:[%s4] sm:$0x1]
    %v1101 = vlaneseq
    %v1102 = vshrl.u32 %v1101, 7
    %v1103 = vsub.s32 0, %v1102
    %v1104 = vrot.slane %v1099, %v1103
    %1106 = vmatprep.subr.mxu0 0.0
    %1107 = vmatpush1.msra.mxu0 %v1067
    %1108 = vmatprep.subr.mxu0 0.0
    %1109 = vmatpush1.msra.mxu0 %v1068
    %1110 = vmatprep.subr.mxu0 0.0
    %1111 = vmatpush1.msra.mxu0 %v1069
    %1112 = vmatprep.subr.mxu0 0.0
    %1113 = vmatpush1.msra.mxu0 %v1070
    %1114 = vmatprep.subr.mxu0 0.0
    %1115 = vmatpush1.msra.mxu0 %v1071
    %1116 = vmatprep.subr.mxu0 0.0
    %1117 = vmatpush1.msra.mxu0 %v1072
    %1118 = vmatprep.subr.mxu0 0.0
    %1119 = vmatpush1.msra.mxu0 %v1073
    %1120 = vmatprep.subr.mxu0 0.0
    %1121 = vmatpush1.msra.mxu0 %v1074
    %1122 = vmatprep.subr.mxu0 0.0
    %1123 = vmatpush1.msra.mxu0 %v1075
    %1124 = vmatprep.subr.mxu0 0.0
    %1125 = vmatpush1.msra.mxu0 %v1076
    %1126 = vmatprep.subr.mxu0 0.0
    %1127 = vmatpush1.msra.mxu0 %v1077
    %1128 = vmatprep.subr.mxu0 0.0
    %1129 = vmatpush1.msra.mxu0 %v1078
    %1130 = vmatprep.subr.mxu0 0.0
    %1131 = vmatpush1.msra.mxu0 %v1079
    %1132 = vmatprep.subr.mxu0 0.0
    %1133 = vmatpush1.msra.mxu0 %v1080
    %1134 = vmatprep.subr.mxu0 0.0
    %1135 = vmatpush1.msra.mxu0 %v1081
    %1136 = vmatprep.subr.mxu0 0.0
    %1137 = vmatpush1.msra.mxu0 %v1082
    %1138 = vmatprep.subr.mxu0 0.0
    %1139 = vmatpush1.msra.mxu0 %v1083
    %1140 = vmatprep.subr.mxu0 0.0
    %1141 = vmatpush1.msra.mxu0 %v1084
    %1142 = vmatprep.subr.mxu0 0.0
    %1143 = vmatpush1.msra.mxu0 %v1085
    %1144 = vmatprep.subr.mxu0 0.0
    %1145 = vmatpush1.msra.mxu0 %v1086
    %1146 = vmatprep.subr.mxu0 0.0
    %1147 = vmatpush1.msra.mxu0 %v1087
    %1148 = vmatprep.subr.mxu0 0.0
    %1149 = vmatpush1.msra.mxu0 %v1088
    %1150 = vmatprep.subr.mxu0 0.0
    %1151 = vmatpush1.msra.mxu0 %v1089
    %1152 = vmatprep.subr.mxu0 0.0
    %1153 = vmatpush1.msra.mxu0 %v1090
    %1154 = vmatprep.subr.mxu0 0.0
    %1155 = vmatpush1.msra.mxu0 %v1091
    %1156 = vmatprep.subr.mxu0 0.0
    %1157 = vmatpush1.msra.mxu0 %v1092
    %1158 = vmatprep.subr.mxu0 0.0
    %1159 = vmatpush1.msra.mxu0 %v1093
    %1160 = vmatprep.subr.mxu0 0.0
    %1161 = vmatpush1.msra.mxu0 %v1094
    %1162 = vmatprep.subr.mxu0 0.0
    %1163 = vmatpush1.msra.mxu0 %v1095
    %1164 = vmatprep.subr.mxu0 0.0
    %1165 = vmatpush1.msra.mxu0 %v1096
    %1166 = vmatprep.subr.mxu0 0.0
    %1167 = vmatpush1.msra.mxu0 %v1097
    %1168 = vmatprep.subr.mxu0 0.0
    %1169 = vmatpush1.msra.mxu0 %v1098
    %1170 = vmatprep.mubr.f32.mxu0 %v1066
    %1171 = vmatmul.mubr.f32.gmra.mrb[0].mxu0 %v1050
    %v1172 = vpop.f32.mrb[0].mxu0
    %v1173 = vadd.f32 %v1104, %v1172
    %v1174 = vpop.f32.mrb[0].mxu0
    %1175 = vdwg.mxu0
    %v1176 = vld [vmem:[%s5] sm:$0xff]
    %v1177 = vld [vmem:[%s5 + $0x8] sm:$0xff]
    %v1178 = vld [vmem:[%s5 + $0x10] sm:$0xff]
    %v1179 = vld [vmem:[%s5 + $0x18] sm:$0xff]
    %v1180 = vld [vmem:[%s5 + $0x20] sm:$0xff]
    %v1181 = vld [vmem:[%s5 + $0x28] sm:$0xff]
    %v1182 = vld [vmem:[%s5 + $0x30] sm:$0xff]
    %v1183 = vld [vmem:[%s5 + $0x38] sm:$0xff]
    %v1184 = vld [vmem:[%s6] sm:$0x1]
    %v1186 = vlaneseq
    %v1187 = vshrl.u32 %v1186, 7
    %v1188 = vsub.s32 0, %v1187
    %v1189 = vrot.slane %v1184, %v1188
    %vm1191 = vcmask 523264
    %v1193 = vsel %vm1191, %v1173, 0
    %1195 = vmatprep.subr.mxu0 0.0
    %1196 = vmatpush1.msra.mxu0 %v1176
    %1197 = vmatprep.subr.mxu0 0.0
    %1198 = vmatpush1.msra.mxu0 %v1177
    %1199 = vmatprep.subr.mxu0 0.0
    %1200 = vmatpush1.msra.mxu0 %v1178
    %1201 = vmatprep.subr.mxu0 0.0
    %1202 = vmatpush1.msra.mxu0 %v1179
    %1203 = vmatprep.subr.mxu0 0.0
    %1204 = vmatpush1.msra.mxu0 %v1180
    %1205 = vmatprep.subr.mxu0 0.0
    %1206 = vmatpush1.msra.mxu0 %v1181
    %1207 = vmatprep.subr.mxu0 0.0
    %1208 = vmatpush1.msra.mxu0 %v1182
    %1209 = vmatprep.subr.mxu0 0.0
    %1210 = vmatpush1.msra.mxu0 %v1183
    %1211 = vmatprep.subr.mxu0 0.0
    %1212 = vmatpush1.msra.mxu0 0.0
    %1213 = vmatprep.subr.mxu0 0.0
    %1214 = vmatpush1.msra.mxu0 0.0
    %1215 = vmatprep.subr.mxu0 0.0
    %1216 = vmatpush1.msra.mxu0 0.0
    %1217 = vmatprep.subr.mxu0 0.0
    %1218 = vmatpush1.msra.mxu0 0.0
    %1219 = vmatprep.subr.mxu0 0.0
    %1220 = vmatpush1.msra.mxu0 0.0
    %1221 = vmatprep.subr.mxu0 0.0
    %1222 = vmatpush1.msra.mxu0 0.0
    %1223 = vmatprep.subr.mxu0 0.0
    %1224 = vmatpush1.msra.mxu0 0.0
    %1225 = vmatprep.subr.mxu0 0.0
    %1226 = vmatpush1.msra.mxu0 0.0
    %1227 = vmatprep.subr.mxu0 0.0
    %1228 = vmatpush1.msra.mxu0 0.0
    %1229 = vmatprep.subr.mxu0 0.0
    %1230 = vmatpush1.msra.mxu0 0.0
    %1231 = vmatprep.subr.mxu0 0.0
    %1232 = vmatpush1.msra.mxu0 0.0
    %1233 = vmatprep.subr.mxu0 0.0
    %1234 = vmatpush1.msra.mxu0 0.0
    %1235 = vmatprep.subr.mxu0 0.0
    %1236 = vmatpush1.msra.mxu0 0.0
    %1237 = vmatprep.subr.mxu0 0.0
    %1238 = vmatpush1.msra.mxu0 0.0
    %1239 = vmatprep.subr.mxu0 0.0
    %1240 = vmatpush1.msra.mxu0 0.0
    %1241 = vmatprep.subr.mxu0 0.0
    %1242 = vmatpush1.msra.mxu0 0.0
    %1243 = vmatprep.subr.mxu0 0.0
    %1244 = vmatpush1.msra.mxu0 0.0
    %1245 = vmatprep.subr.mxu0 0.0
    %1246 = vmatpush1.msra.mxu0 0.0
    %1247 = vmatprep.subr.mxu0 0.0
    %1248 = vmatpush1.msra.mxu0 0.0
    %1249 = vmatprep.subr.mxu0 0.0
    %1250 = vmatpush1.msra.mxu0 0.0
    %1251 = vmatprep.subr.mxu0 0.0
    %1252 = vmatpush1.msra.mxu0 0.0
    %1253 = vmatprep.subr.mxu0 0.0
    %1254 = vmatpush1.msra.mxu0 0.0
    %1255 = vmatprep.subr.mxu0 0.0
    %1256 = vmatpush1.msra.mxu0 0.0
    %1257 = vmatprep.subr.mxu0 0.0
    %1258 = vmatpush1.msra.mxu0 0.0
    %1259 = vmatprep.mubr.f32.mxu0 0.0
    %1260 = vmatmul.mubr.f32.gmra.mrb[0].mxu0 %v1193
    %v1261 = vpop.f32.mrb[0].mxu0
    %v1262 = vadd.f32 %v1189, %v1261
    %v1263 = vpop.f32.mrb[0].mxu0
    %1264 = vdwg.mxu0
    %vm1265 = vcmask 41984
    %v1266 = vsel %vm1265, %v1262, -inf
    %1267 = vmax.xlane.f32.xlu0 %v1266
    %v1268 = vpop.xlane.xlu0 %1267
    %v1269 = vsub.f32 %v1262, %v1268
    %v1270 = vmul.f32 %v1269, 1.442695
    %v1271 = vpow.pop %v1270
    %v1272 = vsel %vm1265, %v1271, 0.0
    %1273 = vadd.xlane.f32.xlu0 %v1272
    %v1274 = vpop.xlane.xlu0 %1273
    %v1275 = vlog2.pop %v1274
    %v1276 = vmul.f32 %v1275, 0.6931472
    %v1277 = vadd.f32 %v1268, %v1276
    %v1278 = vsub.f32 %v1262, %v1277
    %1279 = vst.msk [vmem:[#allocation2] sm:$0x3] %vm1265, %v1278
    // Predicated region
    $region30: #{eeg_forward.5} parent=1 // pred_check
      _
    $region31: #{eeg_forward.5} parent=1 // pred_check_branch
      %1281 = sbr.rel (0) target = $region33
    $region32: #{eeg_forward.5} parent=1 // pred_region
      %s1283 = ssub.s32 32, 32
      %1284 = vsyncadd [#allocation3], %s1283
      %s1286 = sshll.u32 [#allocation2], 4
      %s1287 = int_to_ptr.vmem [resolvable:$true] %s1286
      %1289 = dma.vmem_to_hbm [thread:$0]  %s1287, 32, %s7, [#allocation3]
    $region33: #{eeg_forward.5} parent=1 // pred_fallthru
      _
    // Predicated region
    $region34: #{eeg_forward.5} parent=1 // pred_check
      _
    $region35: #{eeg_forward.5} parent=1 // pred_check_branch
      %1291 = sbr.rel (0) target = $region37
    $region36: #{eeg_forward.5} parent=1 // pred_region
      %1292 = dma.done [#allocation3], 32
    $region37: #{eeg_forward.5} parent=1 // pred_fallthru
      _
    %1293 = vsyncpa [#allocation3], 1

// kernel: eeg_forward.3
$region0: #{eeg_forward.3}
  #allocation0 [shape = 'u32[]', space=smem, size = 0x4, offset = 0x4, fixed_abs, tag = 'smem constant byte address 0x4 - core index']
  #allocation1 [shape = 'u32[144,128]{1,0:T(1,128)}', space=vmem, size = 0x12000, scoped, tag = 'internal scratch']
  #allocation2 [shape = 'bf16[80,128]{1,0:T(16,128)(2,1)}', space=vmem, size = 0x5000, scoped, tag = 'scratch operand']
  #allocation3 [shape = 'f32[64,128]{1,0:T(8,128)}', space=vmem, size = 0x8000, scoped, tag = 'scratch operand']
  #allocation4 [shape = 'bf16[576,128]{1,0:T(16,128)(2,1)}', space=vmem, size = 0x24000, scoped, tag = 'scratch operand']
  %s0 = inlined_call_operand.vmem [shape: f32[2,16,128], index: 0, kind: input, shape index: {}]
  %s1 = inlined_call_operand.vmem [shape: f32[4,128], index: 1, kind: input, shape index: {}]
  %s2 = inlined_call_operand.vmem [shape: bf16[256,80], index: 2, kind: input, shape index: {}]
  %s3 = inlined_call_operand.vmem [shape: f32[256,1], index: 3, kind: input, shape index: {}]
  %s4 = inlined_call_operand.vmem [shape: bf16[128,576], index: 4, kind: input, shape index: {}]
  %s5 = inlined_call_operand.vmem [shape: f32[128,1], index: 5, kind: input, shape index: {}]
  %s6 = inlined_call_operand.vmem [shape: bf16[2,32,128], index: 6, kind: output, shape index: {}]
  %s7 = sld [smem:[#allocation0]]
  $region57: #{eeg_forward.3} parent=0
    _
  %s9 = ssub.s32 1, %s7
  %s10 = scalar_select 0, %s9, %s7
  loop: start=0, step=1, limit=4
  $region2: #{eeg_forward.3} parent=0 // loop_pre_header
    _
  $region3: #{eeg_forward.3} parent=0 // loop_header
    %s12 = sphi 0, %s16
    %p13 = scmp.ge.s32.totalorder %s12, 4
    %s22 = sphi 0, %s24
    %s25 = sphi 0, %s22
    %s26 = sphi 0, %s25
    %s42 = sphi 0, %s26
    %s46 = sphi 0, %s46
    %s48 = sphi 0, %s46
    %s49 = sphi 0, %s48
    %s63 = sphi 0, %s49
    %s67 = sphi 0, %s67
    %s69 = sphi 0, %s67
    %s70 = sphi 0, %s69
    %s84 = sphi 0, %s70
    %s88 = sphi 0, %s88
    %s90 = sphi 0, %s88
    %s91 = sphi 0, %s90
    %s105 = sphi 0, %s91
    %s109 = sphi 0, %s109
    %s111 = sphi 0, %s109
    %s112 = sphi 0, %s111
    %s126 = sphi 0, %s112
    %s130 = sphi 0, %s130
    %s132 = sphi 0, %s130
    %s133 = sphi 0, %s132
    %s147 = sphi 0, %s133
    %s153 = sphi 0, %s155
    %s156 = sphi 0, %s153
    %s157 = sphi 0, %s156
    %s173 = sphi 0, %s157
  $region4: #{eeg_forward.3} parent=0 // loop_header_branch
    %15 = sbr.rel (%p13) target = $region8
  $region5: #{eeg_forward.3} parent=0 // loop_body
    %s17 = ssub.s32 %s12, 1
    %s18 = ssub.s32 %s12, 2
    %s19 = sadd.s32 %s12, 1
    %s20 = ssub.s32 %s12, %s19
    %p21 = scmp.eq.s32.totalorder %s20, 0
    %s23 = sadd.s32 %s22, 1
    %s24 = scalar_select %p21, %s22, %s23
    %p27 = pneg %p21
    %p28 = scmp.eq.s32.totalorder %s12, 1
    %p29 = por %p27, %p28
    %p30 = scmp.ne.s32.totalorder %s22, %s25
    %p31 = scmp.eq.s32.totalorder %s12, 0
    %p32 = por %p30, %p31
    %p33 = scmp.ne.s32.totalorder %s22, %s25
    %p34 = scmp.eq.s32.totalorder %s17, 1
    %p35 = por %p33, %p34
    %p36 = scmp.ne.s32.totalorder %s25, %s26
    %p37 = scmp.eq.s32.totalorder %s17, 0
    %p38 = por %p36, %p37
    %p39 = scmp.ne.s32.totalorder %s25, %s26
    %p40 = scmp.eq.s32.totalorder %s18, 1
    %p41 = por %p39, %p40
    %p43 = scmp.ne.s32.totalorder %s26, %s42
    %p44 = scmp.eq.s32.totalorder %s18, 0
    %p45 = por %p43, %p44
    %s47 = sadd.s32 %s46, 1
    %p50 = scmp.eq.s32.totalorder %s12, 1
    %p51 = scmp.ne.s32.totalorder %s46, %s48
    %p52 = scmp.eq.s32.totalorder %s12, 0
    %p53 = por %p51, %p52
    %p54 = scmp.ne.s32.totalorder %s46, %s48
    %p55 = scmp.eq.s32.totalorder %s17, 1
    %p56 = por %p54, %p55
    %p57 = scmp.ne.s32.totalorder %s48, %s49
    %p58 = scmp.eq.s32.totalorder %s17, 0
    %p59 = por %p57, %p58
    %p60 = scmp.ne.s32.totalorder %s48, %s49
    %p61 = scmp.eq.s32.totalorder %s18, 1
    %p62 = por %p60, %p61
    %p64 = scmp.ne.s32.totalorder %s49, %s63
    %p65 = scmp.eq.s32.totalorder %s18, 0
    %p66 = por %p64, %p65
    %s68 = sadd.s32 %s67, 1
    %p71 = scmp.eq.s32.totalorder %s12, 1
    %p72 = scmp.ne.s32.totalorder %s67, %s69
    %p73 = scmp.eq.s32.totalorder %s12, 0
    %p74 = por %p72, %p73
    %p75 = scmp.ne.s32.totalorder %s67, %s69
    %p76 = scmp.eq.s32.totalorder %s17, 1
    %p77 = por %p75, %p76
    %p78 = scmp.ne.s32.totalorder %s69, %s70
    %p79 = scmp.eq.s32.totalorder %s17, 0
    %p80 = por %p78, %p79
    %p81 = scmp.ne.s32.totalorder %s69, %s70
    %p82 = scmp.eq.s32.totalorder %s18, 1
    %p83 = por %p81, %p82
    %p85 = scmp.ne.s32.totalorder %s70, %s84
    %p86 = scmp.eq.s32.totalorder %s18, 0
    %p87 = por %p85, %p86
    %s89 = sadd.s32 %s88, 1
    %p92 = scmp.eq.s32.totalorder %s12, 1
    %p93 = scmp.ne.s32.totalorder %s88, %s90
    %p94 = scmp.eq.s32.totalorder %s12, 0
    %p95 = por %p93, %p94
    %p96 = scmp.ne.s32.totalorder %s88, %s90
    %p97 = scmp.eq.s32.totalorder %s17, 1
    %p98 = por %p96, %p97
    %p99 = scmp.ne.s32.totalorder %s90, %s91
    %p100 = scmp.eq.s32.totalorder %s17, 0
    %p101 = por %p99, %p100
    %p102 = scmp.ne.s32.totalorder %s90, %s91
    %p103 = scmp.eq.s32.totalorder %s18, 1
    %p104 = por %p102, %p103
    %p106 = scmp.ne.s32.totalorder %s91, %s105
    %p107 = scmp.eq.s32.totalorder %s18, 0
    %p108 = por %p106, %p107
    %s110 = sadd.s32 %s109, 1
    %p113 = scmp.eq.s32.totalorder %s12, 1
    %p114 = scmp.ne.s32.totalorder %s109, %s111
    %p115 = scmp.eq.s32.totalorder %s12, 0
    %p116 = por %p114, %p115
    %p117 = scmp.ne.s32.totalorder %s109, %s111
    %p118 = scmp.eq.s32.totalorder %s17, 1
    %p119 = por %p117, %p118
    %p120 = scmp.ne.s32.totalorder %s111, %s112
    %p121 = scmp.eq.s32.totalorder %s17, 0
    %p122 = por %p120, %p121
    %p123 = scmp.ne.s32.totalorder %s111, %s112
    %p124 = scmp.eq.s32.totalorder %s18, 1
    %p125 = por %p123, %p124
    %p127 = scmp.ne.s32.totalorder %s112, %s126
    %p128 = scmp.eq.s32.totalorder %s18, 0
    %p129 = por %p127, %p128
    %s131 = sadd.s32 %s130, 1
    %p134 = scmp.eq.s32.totalorder %s12, 1
    %p135 = scmp.ne.s32.totalorder %s130, %s132
    %p136 = scmp.eq.s32.totalorder %s12, 0
    %p137 = por %p135, %p136
    %p138 = scmp.ne.s32.totalorder %s130, %s132
    %p139 = scmp.eq.s32.totalorder %s17, 1
    %p140 = por %p138, %p139
    %p141 = scmp.ne.s32.totalorder %s132, %s133
    %p142 = scmp.eq.s32.totalorder %s17, 0
    %p143 = por %p141, %p142
    %p144 = scmp.ne.s32.totalorder %s132, %s133
    %p145 = scmp.eq.s32.totalorder %s18, 1
    %p146 = por %p144, %p145
    %p148 = scmp.ne.s32.totalorder %s133, %s147
    %p149 = scmp.eq.s32.totalorder %s18, 0
    %p150 = por %p148, %p149
    %s151 = ssub.s32 %s12, %s19
    %p152 = scmp.eq.s32.totalorder %s151, 0
    %s154 = sadd.s32 %s153, 1
    %s155 = scalar_select %p152, %s153, %s154
    %p158 = pneg %p152
    %p159 = scmp.eq.s32.totalorder %s12, 1
    %p160 = por %p158, %p159
    %p161 = scmp.ne.s32.totalorder %s153, %s156
    %p162 = scmp.eq.s32.totalorder %s12, 0
    %p163 = por %p161, %p162
    %p164 = scmp.ne.s32.totalorder %s153, %s156
    %p165 = scmp.eq.s32.totalorder %s17, 1
    %p166 = por %p164, %p165
    %p167 = scmp.ne.s32.totalorder %s156, %s157
    %p168 = scmp.eq.s32.totalorder %s17, 0
    %p169 = por %p167, %p168
    %p170 = scmp.ne.s32.totalorder %s156, %s157
    %p171 = scmp.eq.s32.totalorder %s18, 1
    %p172 = por %p170, %p171
    %p174 = scmp.ne.s32.totalorder %s157, %s173
    %p175 = scmp.eq.s32.totalorder %s18, 0
    %p176 = por %p174, %p175
    %p177 = scmp.le.s32.totalorder 1, %s12
    %p178 = scmp.lt.s32.totalorder %s12, 3
    %p179 = pnand %p177, %p178
    %p180 = pneg %p179
    // Predicated region
    $region9: #{eeg_forward.3} parent=5 // pred_check
      _
    $region10: #{eeg_forward.3} parent=5 // pred_check_branch
      %182 = sbr.rel (%p179) target = $region12
    $region11: #{eeg_forward.3} parent=5 // pred_region
      %s183 = ssub.s32 %s12, 1
      // Predicated region
      $region13: #{eeg_forward.3} parent=11 // pred_check
        %p184 = pneg %p59
      $region14: #{eeg_forward.3} parent=11 // pred_check_branch
        %186 = sbr.rel (%p184) target = $region16
      $region15: #{eeg_forward.3} parent=11 // pred_region
        _
      $region16: #{eeg_forward.3} parent=11 // pred_fallthru
        _
      // Predicated region
      $region17: #{eeg_forward.3} parent=11 // pred_check
        %p187 = pneg %p80
      $region18: #{eeg_forward.3} parent=11 // pred_check_branch
        %189 = sbr.rel (%p187) target = $region20
      $region19: #{eeg_forward.3} parent=11 // pred_region
        _
      $region20: #{eeg_forward.3} parent=11 // pred_fallthru
        _
      // Predicated region
      $region21: #{eeg_forward.3} parent=11 // pred_check
        %p190 = pneg %p101
      $region22: #{eeg_forward.3} parent=11 // pred_check_branch
        %192 = sbr.rel (%p190) target = $region24
      $region23: #{eeg_forward.3} parent=11 // pred_region
        _
      $region24: #{eeg_forward.3} parent=11 // pred_fallthru
        _
      // Predicated region
      $region25: #{eeg_forward.3} parent=11 // pred_check
        %p193 = pneg %p122
      $region26: #{eeg_forward.3} parent=11 // pred_check_branch
        %195 = sbr.rel (%p193) target = $region28
      $region27: #{eeg_forward.3} parent=11 // pred_region
        _
      $region28: #{eeg_forward.3} parent=11 // pred_fallthru
        _
      // Predicated region
      $region29: #{eeg_forward.3} parent=11 // pred_check
        %p196 = pneg %p143
      $region30: #{eeg_forward.3} parent=11 // pred_check_branch
        %198 = sbr.rel (%p196) target = $region32
      $region31: #{eeg_forward.3} parent=11 // pred_region
        _
      $region32: #{eeg_forward.3} parent=11 // pred_fallthru
        _
    $region12: #{eeg_forward.3} parent=5 // pred_fallthru
      _
    %p199 = scmp.lt.s32.totalorder %s12, 2
    // Predicated region
    $region33: #{eeg_forward.3} parent=5 // pred_check
      %p200 = pneg %p199
    $region34: #{eeg_forward.3} parent=5 // pred_check_branch
      %202 = sbr.rel (%p200) target = $region36
    $region35: #{eeg_forward.3} parent=5 // pred_region
      // Predicated region
      $region37: #{eeg_forward.3} parent=35 // pred_check
        %p203 = pneg %p32
      $region38: #{eeg_forward.3} parent=35 // pred_check_branch
        %205 = sbr.rel (%p203) target = $region40
      $region39: #{eeg_forward.3} parent=35 // pred_region
        %p206 = scmp.lt.s32.totalorder %s12, 1
        %s207 = scalar_select %p206, %s12, 1
        %s208 = smul.addr %s207, 2
        %s209 = smul.addr %s208, 8
        %s210 = scalar_lea.vmem %s0, %s209
      $region40: #{eeg_forward.3} parent=35 // pred_fallthru
        _
    $region36: #{eeg_forward.3} parent=5 // pred_fallthru
      _
    %p211 = scmp.le.s32.totalorder 1, %s12
    %p212 = scmp.lt.s32.totalorder %s12, 3
    %p213 = pnand %p211, %p212
    %p214 = pneg %p213
    // Predicated region
    $region41: #{eeg_forward.3} parent=5 // pred_check
      _
    $region42: #{eeg_forward.3} parent=5 // pred_check_branch
      %216 = sbr.rel (%p213) target = $region44
    $region43: #{eeg_forward.3} parent=5 // pred_region
      %s217 = ssub.s32 %s12, 1
      %p218 = scmp.lt.s32.totalorder %s17, 1
      %s219 = scalar_select %p218, %s17, 1
      %s220 = smul.addr %s219, 2
      %s221 = smul.addr %s220, 8
      %s222 = scalar_lea.vmem %s0, %s221
      %p223 = pneg %p38
      %p224 = pneg %p35
      %p225 = pneg %p59
      %p226 = pneg %p56
      %p227 = pneg %p80
      %p228 = pneg %p77
      %p229 = pneg %p101
      %p230 = pneg %p98
      %p231 = pneg %p122
      %p232 = pneg %p119
      %p233 = pneg %p143
      %p234 = pneg %p140
      %p235 = pneg %p169
      %p236 = pneg %p166
      %p237 = scmp.lt.s32.totalorder %s17, 1
      %s238 = scalar_select %p237, %s17, 1
      %s239 = smul.addr %s238, 4
      %s240 = smul.addr %s239, 4
      %s241 = scalar_lea.vmem %s6, %s240
      %p242 = scmp.lt.s32.totalorder %s17, 1
      %s243 = scalar_select %p242, %s17, 1
      %s244 = smul.addr %s243, 2
      %s245 = smul.addr %s244, 8
      %s246 = scalar_lea.vmem %s0, %s245
      %p247 = scmp.lt.s32.totalorder %s17, 1
      %s248 = scalar_select %p247, %s17, 1
      %s249 = smul.addr %s248, 4
      %s250 = smul.addr %s249, 4
      %s251 = scalar_lea.vmem %s6, %s250
      %v253 = vld [vmem:[%s246] sm:$0xff]
      %v254 = vld [vmem:[%s246 + $0x8] sm:$0xff]
      %v255 = vpack.c.bf16 %v254, %v253
      %256 = vst [vmem:[#allocation2] sm:$0xff] %v255
      %257 = vrot.lane.b32.xlu0 %v253, 127
      %v258 = vpop.permute.xlu0 %257
      %259 = vrot.lane.b32.xlu0 %v254, 127
      %v260 = vpop.permute.xlu0 %259
      %v261 = vpack.c.bf16 %v260, %v258
      %262 = vst [vmem:[#allocation2 + $0x8] sm:$0xff] %v261
      %263 = vrot.lane.b32.xlu0 %v253, 126
      %v264 = vpop.permute.xlu0 %263
      %265 = vrot.lane.b32.xlu0 %v254, 126
      %v266 = vpop.permute.xlu0 %265
      %v267 = vpack.c.bf16 %v266, %v264
      %268 = vst [vmem:[#allocation2 + $0x10] sm:$0xff] %v267
      %269 = vrot.lane.b32.xlu0 %v253, 125
      %v270 = vpop.permute.xlu0 %269
      %271 = vrot.lane.b32.xlu0 %v254, 125
      %v272 = vpop.permute.xlu0 %271
      %v273 = vpack.c.bf16 %v272, %v270
      %274 = vst [vmem:[#allocation2 + $0x18] sm:$0xff] %v273
      %275 = vrot.lane.b32.xlu0 %v253, 124
      %v276 = vpop.permute.xlu0 %275
      %277 = vrot.lane.b32.xlu0 %v254, 124
      %v278 = vpop.permute.xlu0 %277
      %v279 = vpack.c.bf16 %v278, %v276
      %280 = vst [vmem:[#allocation2 + $0x20] sm:$0xff] %v279
      %v281 = vld [vmem:[%s2] sm:$0xf]
      %v282 = vld [vmem:[%s2 + $0x4] sm:$0xf]
      %v283 = vld [vmem:[%s2 + $0x8] sm:$0xf]
      %v284 = vld [vmem:[%s2 + $0xc] sm:$0xf]
      %v285 = vld [vmem:[%s2 + $0x10] sm:$0xf]
      %v286 = vld [vmem:[%s2 + $0x14] sm:$0xf]
      %v287 = vld [vmem:[%s2 + $0x18] sm:$0xf]
      %v288 = vld [vmem:[%s2 + $0x1c] sm:$0xf]
      %v289 = vld [vmem:[%s2 + $0x20] sm:$0xf]
      %v290 = vld [vmem:[%s2 + $0x24] sm:$0xf]
      %v291 = vld [vmem:[%s2 + $0x28] sm:$0xf]
      %v292 = vld [vmem:[%s2 + $0x2c] sm:$0xf]
      %v293 = vld [vmem:[%s2 + $0x30] sm:$0xf]
      %v294 = vld [vmem:[%s2 + $0x34] sm:$0xf]
      %v295 = vld [vmem:[%s2 + $0x38] sm:$0xf]
      %v296 = vld [vmem:[%s2 + $0x3c] sm:$0xf]
      %v297 = vld [vmem:[%s2 + $0x40] sm:$0xf]
      %v298 = vld [vmem:[%s2 + $0x44] sm:$0xf]
      %v299 = vld [vmem:[%s2 + $0x48] sm:$0xf]
      %v300 = vld [vmem:[%s2 + $0x4c] sm:$0xf]
      %v301 = vld [vmem:[%s2 + $0x50] sm:$0xf]
      %v302 = vld [vmem:[%s2 + $0x54] sm:$0xf]
      %v303 = vld [vmem:[%s2 + $0x58] sm:$0xf]
      %v304 = vld [vmem:[%s2 + $0x5c] sm:$0xf]
      %v305 = vld [vmem:[%s2 + $0x60] sm:$0xf]
      %v306 = vld [vmem:[%s2 + $0x64] sm:$0xf]
      %v307 = vld [vmem:[%s2 + $0x68] sm:$0xf]
      %v308 = vld [vmem:[%s2 + $0x6c] sm:$0xf]
      %v309 = vld [vmem:[%s2 + $0x70] sm:$0xf]
      %v310 = vld [vmem:[%s2 + $0x74] sm:$0xf]
      %v311 = vld [vmem:[%s2 + $0x78] sm:$0xf]
      %v312 = vld [vmem:[%s2 + $0x7c] sm:$0xf]
      %v313 = vld [vmem:[%s3] sm:$0xff]
      %v314 = vld [vmem:[%s3 + $0x8] sm:$0xff]
      %v315 = vld [vmem:[%s3 + $0x10] sm:$0xff]
      %v316 = vld [vmem:[%s3 + $0x18] sm:$0xff]
      %v317 = vld [vmem:[%s3 + $0x20] sm:$0xff]
      %v318 = vld [vmem:[%s3 + $0x28] sm:$0xff]
      %v319 = vld [vmem:[%s3 + $0x30] sm:$0xff]
      %v320 = vld [vmem:[%s3 + $0x38] sm:$0xff]
      %v321 = vld [vmem:[%s3 + $0x40] sm:$0xff]
      %v322 = vld [vmem:[%s3 + $0x48] sm:$0xff]
      %v323 = vld [vmem:[%s3 + $0x50] sm:$0xff]
      %v324 = vld [vmem:[%s3 + $0x58] sm:$0xff]
      %v325 = vld [vmem:[%s3 + $0x60] sm:$0xff]
      %v326 = vld [vmem:[%s3 + $0x68] sm:$0xff]
      %v327 = vld [vmem:[%s3 + $0x70] sm:$0xff]
      %v328 = vld [vmem:[%s3 + $0x78] sm:$0xff]
      %v329 = vld [vmem:[%s3 + $0x80] sm:$0xff]
      %v330 = vld [vmem:[%s3 + $0x88] sm:$0xff]
      %v331 = vld [vmem:[%s3 + $0x90] sm:$0xff]
      %v332 = vld [vmem:[%s3 + $0x98] sm:$0xff]
      %v333 = vld [vmem:[%s3 + $0xa0] sm:$0xff]
      %v334 = vld [vmem:[%s3 + $0xa8] sm:$0xff]
      %v335 = vld [vmem:[%s3 + $0xb0] sm:$0xff]
      %v336 = vld [vmem:[%s3 + $0xb8] sm:$0xff]
      %v337 = vld [vmem:[%s3 + $0xc0] sm:$0xff]
      %v338 = vld [vmem:[%s3 + $0xc8] sm:$0xff]
      %v339 = vld [vmem:[%s3 + $0xd0] sm:$0xff]
      %v340 = vld [vmem:[%s3 + $0xd8] sm:$0xff]
      %v341 = vld [vmem:[%s3 + $0xe0] sm:$0xff]
      %v342 = vld [vmem:[%s3 + $0xe8] sm:$0xff]
      %v343 = vld [vmem:[%s3 + $0xf0] sm:$0xff]
      %v344 = vld [vmem:[%s3 + $0xf8] sm:$0xff]
      %v345 = vld [vmem:[%s1] sm:$0xf]
      %v346 = vld [vmem:[#allocation2] sm:$0xff]
      %v347 = vld [vmem:[#allocation2 + $0x8] sm:$0xff]
      %v348 = vld [vmem:[#allocation2 + $0x10] sm:$0xff]
      %v349 = vld [vmem:[#allocation2 + $0x18] sm:$0xff]
      %v350 = vld [vmem:[#allocation2 + $0x20] sm:$0xff]
      %352 = vset.pattern.permute.xlu0 0
      %353 = vperm.xlu0 %352, %v313
      %v354 = vpop.permute.xlu0 %353
      %357 = vset.pattern.permute.xlu0 0
      %358 = vperm.xlu0 %357, %v314
      %v359 = vpop.permute.xlu0 %358
      %362 = vset.pattern.permute.xlu0 0
      %363 = vperm.xlu0 %362, %v315
      %v364 = vpop.permute.xlu0 %363
      %367 = vset.pattern.permute.xlu0 0
      %368 = vperm.xlu0 %367, %v316
      %v369 = vpop.permute.xlu0 %368
      %372 = vset.pattern.permute.xlu0 0
      %373 = vperm.xlu0 %372, %v317
      %v374 = vpop.permute.xlu0 %373
      %377 = vset.pattern.permute.xlu0 0
      %378 = vperm.xlu0 %377, %v318
      %v379 = vpop.permute.xlu0 %378
      %382 = vset.pattern.permute.xlu0 0
      %383 = vperm.xlu0 %382, %v319
      %v384 = vpop.permute.xlu0 %383
      %387 = vset.pattern.permute.xlu0 0
      %388 = vperm.xlu0 %387, %v320
      %v389 = vpop.permute.xlu0 %388
      %392 = vset.pattern.permute.xlu0 0
      %393 = vperm.xlu0 %392, %v321
      %v394 = vpop.permute.xlu0 %393
      %397 = vset.pattern.permute.xlu0 0
      %398 = vperm.xlu0 %397, %v322
      %v399 = vpop.permute.xlu0 %398
      %402 = vset.pattern.permute.xlu0 0
      %403 = vperm.xlu0 %402, %v323
      %v404 = vpop.permute.xlu0 %403
      %407 = vset.pattern.permute.xlu0 0
      %408 = vperm.xlu0 %407, %v324
      %v409 = vpop.permute.xlu0 %408
      %412 = vset.pattern.permute.xlu0 0
      %413 = vperm.xlu0 %412, %v325
      %v414 = vpop.permute.xlu0 %413
      %417 = vset.pattern.permute.xlu0 0
      %418 = vperm.xlu0 %417, %v326
      %v419 = vpop.permute.xlu0 %418
      %422 = vset.pattern.permute.xlu0 0
      %423 = vperm.xlu0 %422, %v327
      %v424 = vpop.permute.xlu0 %423
      %427 = vset.pattern.permute.xlu0 0
      %428 = vperm.xlu0 %427, %v328
      %v429 = vpop.permute.xlu0 %428
      %432 = vset.pattern.permute.xlu0 0
      %433 = vperm.xlu0 %432, %v329
      %v434 = vpop.permute.xlu0 %433
      %437 = vset.pattern.permute.xlu0 0
      %438 = vperm.xlu0 %437, %v330
      %v439 = vpop.permute.xlu0 %438
      %442 = vset.pattern.permute.xlu0 0
      %443 = vperm.xlu0 %442, %v331
      %v444 = vpop.permute.xlu0 %443
      %447 = vset.pattern.permute.xlu0 0
      %448 = vperm.xlu0 %447, %v332
      %v449 = vpop.permute.xlu0 %448
      %452 = vset.pattern.permute.xlu0 0
      %453 = vperm.xlu0 %452, %v333
      %v454 = vpop.permute.xlu0 %453
      %457 = vset.pattern.permute.xlu0 0
      %458 = vperm.xlu0 %457, %v334
      %v459 = vpop.permute.xlu0 %458
      %462 = vset.pattern.permute.xlu0 0
      %463 = vperm.xlu0 %462, %v335
      %v464 = vpop.permute.xlu0 %463
      %467 = vset.pattern.permute.xlu0 0
      %468 = vperm.xlu0 %467, %v336
      %v469 = vpop.permute.xlu0 %468
      %472 = vset.pattern.permute.xlu0 0
      %473 = vperm.xlu0 %472, %v337
      %v474 = vpop.permute.xlu0 %473
      %477 = vset.pattern.permute.xlu0 0
      %478 = vperm.xlu0 %477, %v338
      %v479 = vpop.permute.xlu0 %478
      %482 = vset.pattern.permute.xlu0 0
      %483 = vperm.xlu0 %482, %v339
      %v484 = vpop.permute.xlu0 %483
      %487 = vset.pattern.permute.xlu0 0
      %488 = vperm.xlu0 %487, %v340
      %v489 = vpop.permute.xlu0 %488
      %492 = vset.pattern.permute.xlu0 0
      %493 = vperm.xlu0 %492, %v341
      %v494 = vpop.permute.xlu0 %493
      %497 = vset.pattern.permute.xlu0 0
      %498 = vperm.xlu0 %497, %v342
      %v499 = vpop.permute.xlu0 %498
      %502 = vset.pattern.permute.xlu0 0
      %503 = vperm.xlu0 %502, %v343
      %v504 = vpop.permute.xlu0 %503
      %507 = vset.pattern.permute.xlu0 0
      %508 = vperm.xlu0 %507, %v344
      %v509 = vpop.permute.xlu0 %508
      %v543 = vunpack.c.l.b16 %v281
      %v544 = vunpack.c.l.b16 %v282
      %v545 = vunpack.c.l.b16 %v283
      %v546 = vunpack.c.l.b16 %v284
      %v547 = vunpack.c.l.b16 %v285
      %v548 = vunpack.c.l.b16 %v286
      %v549 = vunpack.c.l.b16 %v287
      %v550 = vunpack.c.l.b16 %v288
      %v551 = vunpack.c.l.b16 %v289
      %v552 = vunpack.c.l.b16 %v290
      %v553 = vunpack.c.l.b16 %v291
      %v554 = vunpack.c.l.b16 %v292
      %v555 = vunpack.c.l.b16 %v293
      %v556 = vunpack.c.l.b16 %v294
      %v557 = vunpack.c.l.b16 %v295
      %v558 = vunpack.c.l.b16 %v296
      %v559 = vunpack.c.l.b16 %v297
      %v560 = vunpack.c.l.b16 %v298
      %v561 = vunpack.c.l.b16 %v299
      %v562 = vunpack.c.l.b16 %v300
      %v563 = vunpack.c.l.b16 %v301
      %v564 = vunpack.c.l.b16 %v302
      %v565 = vunpack.c.l.b16 %v303
      %v566 = vunpack.c.l.b16 %v304
      %v567 = vunpack.c.l.b16 %v305
      %v568 = vunpack.c.l.b16 %v306
      %v569 = vunpack.c.l.b16 %v307
      %v570 = vunpack.c.l.b16 %v308
      %v571 = vunpack.c.l.b16 %v309
      %v572 = vunpack.c.l.b16 %v310
      %v573 = vunpack.c.l.b16 %v311
      %v574 = vunpack.c.l.b16 %v312
      %v575 = vpack.c.b16 %v544, %v543
      %v576 = vpack.c.b16 %v546, %v545
      %v577 = vpack.c.b16 %v548, %v547
      %v578 = vpack.c.b16 %v550, %v549
      %v579 = vpack.c.b16 %v552, %v551
      %v580 = vpack.c.b16 %v554, %v553
      %v581 = vpack.c.b16 %v556, %v555
      %v582 = vpack.c.b16 %v558, %v557
      %v583 = vpack.c.b16 %v560, %v559
      %v584 = vpack.c.b16 %v562, %v561
      %v585 = vpack.c.b16 %v564, %v563
      %v586 = vpack.c.b16 %v566, %v565
      %v587 = vpack.c.b16 %v568, %v567
      %v588 = vpack.c.b16 %v570, %v569
      %v589 = vpack.c.b16 %v572, %v571
      %v590 = vpack.c.b16 %v574, %v573
      %vm591 = vcmask 654336
      %v593 = vsel %vm591, %v575, 0
      %v596 = vsel %vm591, %v576, 0
      %v599 = vsel %vm591, %v577, 0
      %v602 = vsel %vm591, %v578, 0
      %v605 = vsel %vm591, %v579, 0
      %v608 = vsel %vm591, %v580, 0
      %v611 = vsel %vm591, %v581, 0
      %v614 = vsel %vm591, %v582, 0
      %v617 = vsel %vm591, %v583, 0
      %v620 = vsel %vm591, %v584, 0
      %v623 = vsel %vm591, %v585, 0
      %v626 = vsel %vm591, %v586, 0
      %v629 = vsel %vm591, %v587, 0
      %v632 = vsel %vm591, %v588, 0
      %v635 = vsel %vm591, %v589, 0
      %v638 = vsel %vm591, %v590, 0
      %640 = vmatprep.subr.bf16.mxu0 0
      %641 = vmatpush1.bf16.msra.mxu0 %v346
      %642 = vmatprep.subr.bf16.mxu0 0
      %643 = vmatpush1.bf16.msra.mxu0 %v347
      %644 = vmatprep.subr.bf16.mxu0 0
      %645 = vmatpush1.bf16.msra.mxu0 %v348
      %646 = vmatprep.subr.bf16.mxu0 0
      %647 = vmatpush1.bf16.msra.mxu0 %v349
      %648 = vmatprep.subr.bf16.mxu0 0
      %649 = vmatpush1.bf16.msra.mxu0 %v350
      %650 = vmatprep.subr.bf16.mxu0 0
      %651 = vmatpush1.bf16.msra.mxu0 0
      %652 = vmatprep.subr.bf16.mxu0 0
      %653 = vmatpush1.bf16.msra.mxu0 0
      %654 = vmatprep.subr.bf16.mxu0 0
      %655 = vmatpush1.bf16.msra.mxu0 0
      %656 = vmatprep.subr.bf16.mxu0 0
      %657 = vmatpush1.bf16.msra.mxu0 0
      %658 = vmatprep.subr.bf16.mxu0 0
      %659 = vmatpush1.bf16.msra.mxu0 0
      %660 = vmatprep.subr.bf16.mxu0 0
      %661 = vmatpush1.bf16.msra.mxu0 0
      %662 = vmatprep.subr.bf16.mxu0 0
      %663 = vmatpush1.bf16.msra.mxu0 0
      %664 = vmatprep.subr.bf16.mxu0 0
      %665 = vmatpush1.bf16.msra.mxu0 0
      %666 = vmatprep.subr.bf16.mxu0 0
      %667 = vmatpush1.bf16.msra.mxu0 0
      %668 = vmatprep.subr.bf16.mxu0 0
      %669 = vmatpush1.bf16.msra.mxu0 0
      %670 = vmatprep.subr.bf16.mxu0 0
      %671 = vmatpush1.bf16.msra.mxu0 0
      %672 = vmatprep.mubr.bf16.mxu0 0
      %673 = vmatmul.mubr.bf16.gmra.mrb[0].mxu0 %v593
      %v674 = vpop.f32.mrb[0].mxu0
      %v675 = vadd.f32 %v354, %v674
      %v676 = vpop.f32.mrb[0].mxu0
      %v677 = vpop.f32.mrb[0].mxu0
      %v678 = vadd.f32 %v359, %v677
      %v679 = vpop.f32.mrb[0].mxu0
      %680 = vmatprep.mubr.bf16.mxu0 0
      %681 = vmatmul.mubr.bf16.gmra.mrb[0].mxu0 %v596
      %v682 = vpop.f32.mrb[0].mxu0
      %v683 = vadd.f32 %v364, %v682
      %v684 = vpop.f32.mrb[0].mxu0
      %v685 = vpop.f32.mrb[0].mxu0
      %v686 = vadd.f32 %v369, %v685
      %v687 = vpop.f32.mrb[0].mxu0
      %688 = vmatprep.mubr.bf16.mxu0 0
      %689 = vmatmul.mubr.bf16.gmra.mrb[0].mxu0 %v599
      %v690 = vpop.f32.mrb[0].mxu0
      %v691 = vadd.f32 %v374, %v690
      %v692 = vpop.f32.mrb[0].mxu0
      %v693 = vpop.f32.mrb[0].mxu0
      %v694 = vadd.f32 %v379, %v693
      %v695 = vpop.f32.mrb[0].mxu0
      %696 = vmatprep.mubr.bf16.mxu0 0
      %697 = vmatmul.mubr.bf16.gmra.mrb[0].mxu0 %v602
      %v698 = vpop.f32.mrb[0].mxu0
      %v699 = vadd.f32 %v384, %v698
      %v700 = vpop.f32.mrb[0].mxu0
      %v701 = vpop.f32.mrb[0].mxu0
      %v702 = vadd.f32 %v389, %v701
      %v703 = vpop.f32.mrb[0].mxu0
      %704 = vmatprep.mubr.bf16.mxu0 0
      %705 = vmatmul.mubr.bf16.gmra.mrb[0].mxu0 %v605
      %v706 = vpop.f32.mrb[0].mxu0
      %v707 = vadd.f32 %v394, %v706
      %v708 = vpop.f32.mrb[0].mxu0
      %v709 = vpop.f32.mrb[0].mxu0
      %v710 = vadd.f32 %v399, %v709
      %v711 = vpop.f32.mrb[0].mxu0
      %712 = vmatprep.mubr.bf16.mxu0 0
      %713 = vmatmul.mubr.bf16.gmra.mrb[0].mxu0 %v608
      %v714 = vpop.f32.mrb[0].mxu0
      %v715 = vadd.f32 %v404, %v714
      %v716 = vpop.f32.mrb[0].mxu0
      %v717 = vpop.f32.mrb[0].mxu0
      %v718 = vadd.f32 %v409, %v717
      %v719 = vpop.f32.mrb[0].mxu0
      %720 = vmatprep.mubr.bf16.mxu0 0
      %721 = vmatmul.mubr.bf16.gmra.mrb[0].mxu0 %v611
      %v722 = vpop.f32.mrb[0].mxu0
      %v723 = vadd.f32 %v414, %v722
      %v724 = vpop.f32.mrb[0].mxu0
      %v725 = vpop.f32.mrb[0].mxu0
      %v726 = vadd.f32 %v419, %v725
      %v727 = vpop.f32.mrb[0].mxu0
      %728 = vmatprep.mubr.bf16.mxu0 0
      %729 = vmatmul.mubr.bf16.gmra.mrb[0].mxu0 %v614
      %v730 = vpop.f32.mrb[0].mxu0
      %v731 = vadd.f32 %v424, %v730
      %v732 = vpop.f32.mrb[0].mxu0
      %v733 = vpop.f32.mrb[0].mxu0
      %v734 = vadd.f32 %v429, %v733
      %v735 = vpop.f32.mrb[0].mxu0
      %736 = vmatprep.mubr.bf16.mxu0 0
      %737 = vmatmul.mubr.bf16.gmra.mrb[0].mxu0 %v617
      %v738 = vpop.f32.mrb[0].mxu0
      %v739 = vadd.f32 %v434, %v738
      %v740 = vpop.f32.mrb[0].mxu0
      %v741 = vpop.f32.mrb[0].mxu0
      %v742 = vadd.f32 %v439, %v741
      %v743 = vpop.f32.mrb[0].mxu0
      %744 = vmatprep.mubr.bf16.mxu0 0
      %745 = vmatmul.mubr.bf16.gmra.mrb[0].mxu0 %v620
      %v746 = vpop.f32.mrb[0].mxu0
      %v747 = vadd.f32 %v444, %v746
      %v748 = vpop.f32.mrb[0].mxu0
      %v749 = vpop.f32.mrb[0].mxu0
      %v750 = vadd.f32 %v449, %v749
      %v751 = vpop.f32.mrb[0].mxu0
      %752 = vmatprep.mubr.bf16.mxu0 0
      %753 = vmatmul.mubr.bf16.gmra.mrb[0].mxu0 %v623
      %v754 = vpop.f32.mrb[0].mxu0
      %v755 = vadd.f32 %v454, %v754
      %v756 = vpop.f32.mrb[0].mxu0
      %v757 = vpop.f32.mrb[0].mxu0
      %v758 = vadd.f32 %v459, %v757
      %v759 = vpop.f32.mrb[0].mxu0
      %760 = vmatprep.mubr.bf16.mxu0 0
      %761 = vmatmul.mubr.bf16.gmra.mrb[0].mxu0 %v626
      %v762 = vpop.f32.mrb[0].mxu0
      %v763 = vadd.f32 %v464, %v762
      %v764 = vpop.f32.mrb[0].mxu0
      %v765 = vpop.f32.mrb[0].mxu0
      %v766 = vadd.f32 %v469, %v765
      %v767 = vpop.f32.mrb[0].mxu0
      %768 = vmatprep.mubr.bf16.mxu0 0
      %769 = vmatmul.mubr.bf16.gmra.mrb[0].mxu0 %v629
      %v770 = vpop.f32.mrb[0].mxu0
      %v771 = vadd.f32 %v474, %v770
      %v772 = vpop.f32.mrb[0].mxu0
      %v773 = vpop.f32.mrb[0].mxu0
      %v774 = vadd.f32 %v479, %v773
      %v775 = vpop.f32.mrb[0].mxu0
      %776 = vmatprep.mubr.bf16.mxu0 0
      %777 = vmatmul.mubr.bf16.gmra.mrb[0].mxu0 %v632
      %v778 = vpop.f32.mrb[0].mxu0
      %v779 = vadd.f32 %v484, %v778
      %v780 = vpop.f32.mrb[0].mxu0
      %v781 = vpop.f32.mrb[0].mxu0
      %v782 = vadd.f32 %v489, %v781
      %v783 = vpop.f32.mrb[0].mxu0
      %784 = vmatprep.mubr.bf16.mxu0 0
      %785 = vmatmul.mubr.bf16.gmra.mrb[0].mxu0 %v635
      %v786 = vpop.f32.mrb[0].mxu0
      %v787 = vadd.f32 %v494, %v786
      %v788 = vpop.f32.mrb[0].mxu0
      %v789 = vpop.f32.mrb[0].mxu0
      %v790 = vadd.f32 %v499, %v789
      %v791 = vpop.f32.mrb[0].mxu0
      %792 = vmatprep.mubr.bf16.mxu0 0
      %793 = vmatmul.mubr.bf16.gmra.mrb[0].mxu0 %v638
      %v794 = vpop.f32.mrb[0].mxu0
      %v795 = vadd.f32 %v504, %v794
      %v796 = vpop.f32.mrb[0].mxu0
      %v797 = vpop.f32.mrb[0].mxu0
      %v798 = vadd.f32 %v509, %v797
      %v799 = vpop.f32.mrb[0].mxu0
      %800 = vdwg.mxu0
      %vm801 = vcmp.gt.f32.partialorder %v675, 0.0
      %vm802 = vcmp.gt.f32.partialorder %v678, 0.0
      %vm803 = vcmp.gt.f32.partialorder %v683, 0.0
      %vm804 = vcmp.gt.f32.partialorder %v686, 0.0
      %vm805 = vcmp.gt.f32.partialorder %v691, 0.0
      %vm806 = vcmp.gt.f32.partialorder %v694, 0.0
      %vm807 = vcmp.gt.f32.partialorder %v699, 0.0
      %vm808 = vcmp.gt.f32.partialorder %v702, 0.0
      %vm809 = vcmp.gt.f32.partialorder %v707, 0.0
      %vm810 = vcmp.gt.f32.partialorder %v710, 0.0
      %vm811 = vcmp.gt.f32.partialorder %v715, 0.0
      %vm812 = vcmp.gt.f32.partialorder %v718, 0.0
      %vm813 = vcmp.gt.f32.partialorder %v723, 0.0
      %vm814 = vcmp.gt.f32.partialorder %v726, 0.0
      %vm815 = vcmp.gt.f32.partialorder %v731, 0.0
      %vm816 = vcmp.gt.f32.partialorder %v734, 0.0
      %vm817 = vcmp.gt.f32.partialorder %v739, 0.0
      %vm818 = vcmp.gt.f32.partialorder %v742, 0.0
      %vm819 = vcmp.gt.f32.partialorder %v747, 0.0
      %vm820 = vcmp.gt.f32.partialorder %v750, 0.0
      %vm821 = vcmp.gt.f32.partialorder %v755, 0.0
      %vm822 = vcmp.gt.f32.partialorder %v758, 0.0
      %vm823 = vcmp.gt.f32.partialorder %v763, 0.0
      %vm824 = vcmp.gt.f32.partialorder %v766, 0.0
      %vm825 = vcmp.gt.f32.partialorder %v771, 0.0
      %vm826 = vcmp.gt.f32.partialorder %v774, 0.0
      %vm827 = vcmp.gt.f32.partialorder %v779, 0.0
      %vm828 = vcmp.gt.f32.partialorder %v782, 0.0
      %vm829 = vcmp.gt.f32.partialorder %v787, 0.0
      %vm830 = vcmp.gt.f32.partialorder %v790, 0.0
      %vm831 = vcmp.gt.f32.partialorder %v795, 0.0
      %vm832 = vcmp.gt.f32.partialorder %v798, 0.0
      %v833 = vmin.f32 %v675, 0.0
      %v834 = vmin.f32 %v678, 0.0
      %v835 = vmin.f32 %v683, 0.0
      %v836 = vmin.f32 %v686, 0.0
      %v837 = vmin.f32 %v691, 0.0
      %v838 = vmin.f32 %v694, 0.0
      %v839 = vmin.f32 %v699, 0.0
      %v840 = vmin.f32 %v702, 0.0
      %v841 = vmin.f32 %v707, 0.0
      %v842 = vmin.f32 %v710, 0.0
      %v843 = vmin.f32 %v715, 0.0
      %v844 = vmin.f32 %v718, 0.0
      %v845 = vmin.f32 %v723, 0.0
      %v846 = vmin.f32 %v726, 0.0
      %v847 = vmin.f32 %v731, 0.0
      %v848 = vmin.f32 %v734, 0.0
      %v849 = vmin.f32 %v739, 0.0
      %v850 = vmin.f32 %v742, 0.0
      %v851 = vmin.f32 %v747, 0.0
      %v852 = vmin.f32 %v750, 0.0
      %v853 = vmin.f32 %v755, 0.0
      %v854 = vmin.f32 %v758, 0.0
      %v855 = vmin.f32 %v763, 0.0
      %v856 = vmin.f32 %v766, 0.0
      %v857 = vmin.f32 %v771, 0.0
      %v858 = vmin.f32 %v774, 0.0
      %v859 = vmin.f32 %v779, 0.0
      %v860 = vmin.f32 %v782, 0.0
      %v861 = vmin.f32 %v787, 0.0
      %v862 = vmin.f32 %v790, 0.0
      %v863 = vmin.f32 %v795, 0.0
      %v864 = vmin.f32 %v798, 0.0
      %v865 = vmul.f32 %v833, 1.442695
      %v866 = vpow.pop %v865
      %v867 = vmul.f32 %v834, 1.442695
      %v868 = vpow.pop %v867
      %v869 = vmul.f32 %v835, 1.442695
      %v870 = vpow.pop %v869
      %v871 = vmul.f32 %v836, 1.442695
      %v872 = vpow.pop %v871
      %v873 = vmul.f32 %v837, 1.442695
      %v874 = vpow.pop %v873
      %v875 = vmul.f32 %v838, 1.442695
      %v876 = vpow.pop %v875
      %v877 = vmul.f32 %v839, 1.442695
      %v878 = vpow.pop %v877
      %v879 = vmul.f32 %v840, 1.442695
      %v880 = vpow.pop %v879
      %v881 = vmul.f32 %v841, 1.442695
      %v882 = vpow.pop %v881
      %v883 = vmul.f32 %v842, 1.442695
      %v884 = vpow.pop %v883
      %v885 = vmul.f32 %v843, 1.442695
      %v886 = vpow.pop %v885
      %v887 = vmul.f32 %v844, 1.442695
      %v888 = vpow.pop %v887
      %v889 = vmul.f32 %v845, 1.442695
      %v890 = vpow.pop %v889
      %v891 = vmul.f32 %v846, 1.442695
      %v892 = vpow.pop %v891
      %v893 = vmul.f32 %v847, 1.442695
      %v894 = vpow.pop %v893
      %v895 = vmul.f32 %v848, 1.442695
      %v896 = vpow.pop %v895
      %v897 = vmul.f32 %v849, 1.442695
      %v898 = vpow.pop %v897
      %v899 = vmul.f32 %v850, 1.442695
      %v900 = vpow.pop %v899
      %v901 = vmul.f32 %v851, 1.442695
      %v902 = vpow.pop %v901
      %v903 = vmul.f32 %v852, 1.442695
      %v904 = vpow.pop %v903
      %v905 = vmul.f32 %v853, 1.442695
      %v906 = vpow.pop %v905
      %v907 = vmul.f32 %v854, 1.442695
      %v908 = vpow.pop %v907
      %v909 = vmul.f32 %v855, 1.442695
      %v910 = vpow.pop %v909
      %v911 = vmul.f32 %v856, 1.442695
      %v912 = vpow.pop %v911
      %v913 = vmul.f32 %v857, 1.442695
      %v914 = vpow.pop %v913
      %v915 = vmul.f32 %v858, 1.442695
      %v916 = vpow.pop %v915
      %v917 = vmul.f32 %v859, 1.442695
      %v918 = vpow.pop %v917
      %v919 = vmul.f32 %v860, 1.442695
      %v920 = vpow.pop %v919
      %v921 = vmul.f32 %v861, 1.442695
      %v922 = vpow.pop %v921
      %v923 = vmul.f32 %v862, 1.442695
      %v924 = vpow.pop %v923
      %v925 = vmul.f32 %v863, 1.442695
      %v926 = vpow.pop %v925
      %v927 = vmul.f32 %v864, 1.442695
      %v928 = vpow.pop %v927
      %v929 = vsub.f32 %v866, 1.0
      %v930 = vsub.f32 %v868, 1.0
      %v931 = vsub.f32 %v870, 1.0
      %v932 = vsub.f32 %v872, 1.0
      %v933 = vsub.f32 %v874, 1.0
      %v934 = vsub.f32 %v876, 1.0
      %v935 = vsub.f32 %v878, 1.0
      %v936 = vsub.f32 %v880, 1.0
      %v937 = vsub.f32 %v882, 1.0
      %v938 = vsub.f32 %v884, 1.0
      %v939 = vsub.f32 %v886, 1.0
      %v940 = vsub.f32 %v888, 1.0
      %v941 = vsub.f32 %v890, 1.0
      %v942 = vsub.f32 %v892, 1.0
      %v943 = vsub.f32 %v894, 1.0
      %v944 = vsub.f32 %v896, 1.0
      %v945 = vsub.f32 %v898, 1.0
      %v946 = vsub.f32 %v900, 1.0
      %v947 = vsub.f32 %v902, 1.0
      %v948 = vsub.f32 %v904, 1.0
      %v949 = vsub.f32 %v906, 1.0
      %v950 = vsub.f32 %v908, 1.0
      %v951 = vsub.f32 %v910, 1.0
      %v952 = vsub.f32 %v912, 1.0
      %v953 = vsub.f32 %v914, 1.0
      %v954 = vsub.f32 %v916, 1.0
      %v955 = vsub.f32 %v918, 1.0
      %v956 = vsub.f32 %v920, 1.0
      %v957 = vsub.f32 %v922, 1.0
      %v958 = vsub.f32 %v924, 1.0
      %v959 = vsub.f32 %v926, 1.0
      %v960 = vsub.f32 %v928, 1.0
      %v961 = vsel %vm801, %v675, %v929
      %v962 = vsel %vm802, %v678, %v930
      %v963 = vsel %vm803, %v683, %v931
      %v964 = vsel %vm804, %v686, %v932
      %v965 = vsel %vm805, %v691, %v933
      %v966 = vsel %vm806, %v694, %v934
      %v967 = vsel %vm807, %v699, %v935
      %v968 = vsel %vm808, %v702, %v936
      %v969 = vsel %vm809, %v707, %v937
      %v970 = vsel %vm810, %v710, %v938
      %v971 = vsel %vm811, %v715, %v939
      %v972 = vsel %vm812, %v718, %v940
      %v973 = vsel %vm813, %v723, %v941
      %v974 = vsel %vm814, %v726, %v942
      %v975 = vsel %vm815, %v731, %v943
      %v976 = vsel %vm816, %v734, %v944
      %v977 = vsel %vm817, %v739, %v945
      %v978 = vsel %vm818, %v742, %v946
      %v979 = vsel %vm819, %v747, %v947
      %v980 = vsel %vm820, %v750, %v948
      %v981 = vsel %vm821, %v755, %v949
      %v982 = vsel %vm822, %v758, %v950
      %v983 = vsel %vm823, %v763, %v951
      %v984 = vsel %vm824, %v766, %v952
      %v985 = vsel %vm825, %v771, %v953
      %v986 = vsel %vm826, %v774, %v954
      %v987 = vsel %vm827, %v779, %v955
      %v988 = vsel %vm828, %v782, %v956
      %v989 = vsel %vm829, %v787, %v957
      %v990 = vsel %vm830, %v790, %v958
      %v991 = vsel %vm831, %v795, %v959
      %v992 = vsel %vm832, %v798, %v960
      %v993 = vadd.f32 %v961, %v963
      %v994 = vadd.f32 %v962, %v964
      %v995 = vadd.f32 %v993, %v965
      %v996 = vadd.f32 %v994, %v966
      %v997 = vadd.f32 %v995, %v967
      %v998 = vadd.f32 %v996, %v968
      %v999 = vmul.f32 %v997, 0.25
      %v1000 = vmul.f32 %v998, 0.25
      %v1001 = vlaneseq
      %v1002 = vshrl.u32 %v1001, 7
      %v1003 = vsub.s32 0, %v1002
      %v1004 = vrot.slane %v345, %v1003
      %v1005 = vmul.f32 %v999, %v1004
      %v1006 = vmul.f32 %v1000, %v1004
      %1007 = vst [vmem:[#allocation3] sm:$0xff] %v1005
      %1008 = vst [vmem:[#allocation3 + $0x8] sm:$0xff] %v1006
      %v1009 = vadd.f32 %v969, %v971
      %v1010 = vadd.f32 %v970, %v972
      %v1011 = vadd.f32 %v1009, %v973
      %v1012 = vadd.f32 %v1010, %v974
      %v1013 = vadd.f32 %v1011, %v975
      %v1014 = vadd.f32 %v1012, %v976
      %v1015 = vmul.f32 %v1013, 0.25
      %v1016 = vmul.f32 %v1014, 0.25
      %v1017 = vlaneseq
      %v1018 = vshrl.u32 %v1017, 7
      %v1019 = vsub.s32 1, %v1018
      %v1020 = vrot.slane %v345, %v1019
      %v1021 = vmul.f32 %v1015, %v1020
      %v1022 = vmul.f32 %v1016, %v1020
      %1023 = vst [vmem:[#allocation3 + $0x10] sm:$0xff] %v1021
      %1024 = vst [vmem:[#allocation3 + $0x18] sm:$0xff] %v1022
      %v1025 = vadd.f32 %v977, %v979
      %v1026 = vadd.f32 %v978, %v980
      %v1027 = vadd.f32 %v1025, %v981
      %v1028 = vadd.f32 %v1026, %v982
      %v1029 = vadd.f32 %v1027, %v983
      %v1030 = vadd.f32 %v1028, %v984
      %v1031 = vmul.f32 %v1029, 0.25
      %v1032 = vmul.f32 %v1030, 0.25
      %v1033 = vlaneseq
      %v1034 = vshrl.u32 %v1033, 7
      %v1035 = vsub.s32 2, %v1034
      %v1036 = vrot.slane %v345, %v1035
      %v1037 = vmul.f32 %v1031, %v1036
      %v1038 = vmul.f32 %v1032, %v1036
      %1039 = vst [vmem:[#allocation3 + $0x20] sm:$0xff] %v1037
      %1040 = vst [vmem:[#allocation3 + $0x28] sm:$0xff] %v1038
      %v1041 = vadd.f32 %v985, %v987
      %v1042 = vadd.f32 %v986, %v988
      %v1043 = vadd.f32 %v1041, %v989
      %v1044 = vadd.f32 %v1042, %v990
      %v1045 = vadd.f32 %v1043, %v991
      %v1046 = vadd.f32 %v1044, %v992
      %v1047 = vmul.f32 %v1045, 0.25
      %v1048 = vmul.f32 %v1046, 0.25
      %v1049 = vlaneseq
      %v1050 = vshrl.u32 %v1049, 7
      %v1051 = vsub.s32 3, %v1050
      %v1052 = vrot.slane %v345, %v1051
      %v1053 = vmul.f32 %v1047, %v1052
      %v1054 = vmul.f32 %v1048, %v1052
      %1055 = vst [vmem:[#allocation3 + $0x30] sm:$0xff] %v1053
      %1056 = vst [vmem:[#allocation3 + $0x38] sm:$0xff] %v1054
      %v1057 = vld [vmem:[#allocation3] sm:$0xff]
      %v1058 = vld [vmem:[#allocation3 + $0x8] sm:$0xff]
      %v1059 = vld [vmem:[#allocation3 + $0x10] sm:$0xff]
      %v1060 = vld [vmem:[#allocation3 + $0x18] sm:$0xff]
      %v1061 = vld [vmem:[#allocation3 + $0x20] sm:$0xff]
      %v1062 = vld [vmem:[#allocation3 + $0x28] sm:$0xff]
      %v1063 = vld [vmem:[#allocation3 + $0x30] sm:$0xff]
      %v1064 = vld [vmem:[#allocation3 + $0x38] sm:$0xff]
      %1065 = vrot.lane.b32.xlu0 %v1057, 4
      %v1066 = vpop.permute.xlu0 %1065
      %1067 = vrot.lane.b32.xlu0 %v1058, 4
      %v1068 = vpop.permute.xlu0 %1067
      %1069 = vrot.lane.b32.xlu0 %v1059, 4
      %v1070 = vpop.permute.xlu0 %1069
      %1071 = vrot.lane.b32.xlu0 %v1060, 4
      %v1072 = vpop.permute.xlu0 %1071
      %1073 = vrot.lane.b32.xlu0 %v1061, 4
      %v1074 = vpop.permute.xlu0 %1073
      %1075 = vrot.lane.b32.xlu0 %v1062, 4
      %v1076 = vpop.permute.xlu0 %1075
      %1077 = vrot.lane.b32.xlu0 %v1063, 4
      %v1078 = vpop.permute.xlu0 %1077
      %1079 = vrot.lane.b32.xlu0 %v1064, 4
      %v1080 = vpop.permute.xlu0 %1079
      %v1081 = vpack.c.bf16 %v1068, %v1066
      %v1082 = vpack.c.bf16 %v1072, %v1070
      %v1083 = vpack.c.bf16 %v1076, %v1074
      %v1084 = vpack.c.bf16 %v1080, %v1078
      %1085 = vst [vmem:[#allocation4] sm:$0xff] %v1081
      %1086 = vst [vmem:[#allocation4 + $0x8] sm:$0xff] %v1082
      %1087 = vst [vmem:[#allocation4 + $0x10] sm:$0xff] %v1083
      %1088 = vst [vmem:[#allocation4 + $0x18] sm:$0xff] %v1084
      %1089 = vrot.lane.b32.xlu0 %v1057, 3
      %v1090 = vpop.permute.xlu0 %1089
      %1091 = vrot.lane.b32.xlu0 %v1058, 3
      %v1092 = vpop.permute.xlu0 %1091
      %1093 = vrot.lane.b32.xlu0 %v1059, 3
      %v1094 = vpop.permute.xlu0 %1093
      %1095 = vrot.lane.b32.xlu0 %v1060, 3
      %v1096 = vpop.permute.xlu0 %1095
      %1097 = vrot.lane.b32.xlu0 %v1061, 3
      %v1098 = vpop.permute.xlu0 %1097
      %1099 = vrot.lane.b32.xlu0 %v1062, 3
      %v1100 = vpop.permute.xlu0 %1099
      %1101 = vrot.lane.b32.xlu0 %v1063, 3
      %v1102 = vpop.permute.xlu0 %1101
      %1103 = vrot.lane.b32.xlu0 %v1064, 3
      %v1104 = vpop.permute.xlu0 %1103
      %v1105 = vpack.c.bf16 %v1092, %v1090
      %v1106 = vpack.c.bf16 %v1096, %v1094
      %v1107 = vpack.c.bf16 %v1100, %v1098
      %v1108 = vpack.c.bf16 %v1104, %v1102
      %1109 = vst [vmem:[#allocation4 + $0x20] sm:$0xff] %v1105
      %1110 = vst [vmem:[#allocation4 + $0x28] sm:$0xff] %v1106
      %1111 = vst [vmem:[#allocation4 + $0x30] sm:$0xff] %v1107
      %1112 = vst [vmem:[#allocation4 + $0x38] sm:$0xff] %v1108
      %1113 = vrot.lane.b32.xlu0 %v1057, 2
      %v1114 = vpop.permute.xlu0 %1113
      %1115 = vrot.lane.b32.xlu0 %v1058, 2
      %v1116 = vpop.permute.xlu0 %1115
      %1117 = vrot.lane.b32.xlu0 %v1059, 2
      %v1118 = vpop.permute.xlu0 %1117
      %1119 = vrot.lane.b32.xlu0 %v1060, 2
      %v1120 = vpop.permute.xlu0 %1119
      %1121 = vrot.lane.b32.xlu0 %v1061, 2
      %v1122 = vpop.permute.xlu0 %1121
      %1123 = vrot.lane.b32.xlu0 %v1062, 2
      %v1124 = vpop.permute.xlu0 %1123
      %1125 = vrot.lane.b32.xlu0 %v1063, 2
      %v1126 = vpop.permute.xlu0 %1125
      %1127 = vrot.lane.b32.xlu0 %v1064, 2
      %v1128 = vpop.permute.xlu0 %1127
      %v1129 = vpack.c.bf16 %v1116, %v1114
      %v1130 = vpack.c.bf16 %v1120, %v1118
      %v1131 = vpack.c.bf16 %v1124, %v1122
      %v1132 = vpack.c.bf16 %v1128, %v1126
      %1133 = vst [vmem:[#allocation4 + $0x40] sm:$0xff] %v1129
      %1134 = vst [vmem:[#allocation4 + $0x48] sm:$0xff] %v1130
      %1135 = vst [vmem:[#allocation4 + $0x50] sm:$0xff] %v1131
      %1136 = vst [vmem:[#allocation4 + $0x58] sm:$0xff] %v1132
      %1137 = vrot.lane.b32.xlu0 %v1057, 1
      %v1138 = vpop.permute.xlu0 %1137
      %1139 = vrot.lane.b32.xlu0 %v1058, 1
      %v1140 = vpop.permute.xlu0 %1139
      %1141 = vrot.lane.b32.xlu0 %v1059, 1
      %v1142 = vpop.permute.xlu0 %1141
      %1143 = vrot.lane.b32.xlu0 %v1060, 1
      %v1144 = vpop.permute.xlu0 %1143
      %1145 = vrot.lane.b32.xlu0 %v1061, 1
      %v1146 = vpop.permute.xlu0 %1145
      %1147 = vrot.lane.b32.xlu0 %v1062, 1
      %v1148 = vpop.permute.xlu0 %1147
      %1149 = vrot.lane.b32.xlu0 %v1063, 1
      %v1150 = vpop.permute.xlu0 %1149
      %1151 = vrot.lane.b32.xlu0 %v1064, 1
      %v1152 = vpop.permute.xlu0 %1151
      %v1153 = vpack.c.bf16 %v1140, %v1138
      %v1154 = vpack.c.bf16 %v1144, %v1142
      %v1155 = vpack.c.bf16 %v1148, %v1146
      %v1156 = vpack.c.bf16 %v1152, %v1150
      %1157 = vst [vmem:[#allocation4 + $0x60] sm:$0xff] %v1153
      %1158 = vst [vmem:[#allocation4 + $0x68] sm:$0xff] %v1154
      %1159 = vst [vmem:[#allocation4 + $0x70] sm:$0xff] %v1155
      %1160 = vst [vmem:[#allocation4 + $0x78] sm:$0xff] %v1156
      %v1161 = vpack.c.bf16 %v1058, %v1057
      %v1162 = vpack.c.bf16 %v1060, %v1059
      %v1163 = vpack.c.bf16 %v1062, %v1061
      %v1164 = vpack.c.bf16 %v1064, %v1063
      %1165 = vst [vmem:[#allocation4 + $0x80] sm:$0xff] %v1161
      %1166 = vst [vmem:[#allocation4 + $0x88] sm:$0xff] %v1162
      %1167 = vst [vmem:[#allocation4 + $0x90] sm:$0xff] %v1163
      %1168 = vst [vmem:[#allocation4 + $0x98] sm:$0xff] %v1164
      %1169 = vrot.lane.b32.xlu0 %v1057, 127
      %v1170 = vpop.permute.xlu0 %1169
      %1171 = vrot.lane.b32.xlu0 %v1058, 127
      %v1172 = vpop.permute.xlu0 %1171
      %1173 = vrot.lane.b32.xlu0 %v1059, 127
      %v1174 = vpop.permute.xlu0 %1173
      %1175 = vrot.lane.b32.xlu0 %v1060, 127
      %v1176 = vpop.permute.xlu0 %1175
      %1177 = vrot.lane.b32.xlu0 %v1061, 127
      %v1178 = vpop.permute.xlu0 %1177
      %1179 = vrot.lane.b32.xlu0 %v1062, 127
      %v1180 = vpop.permute.xlu0 %1179
      %1181 = vrot.lane.b32.xlu0 %v1063, 127
      %v1182 = vpop.permute.xlu0 %1181
      %1183 = vrot.lane.b32.xlu0 %v1064, 127
      %v1184 = vpop.permute.xlu0 %1183
      %v1185 = vpack.c.bf16 %v1172, %v1170
      %v1186 = vpack.c.bf16 %v1176, %v1174
      %v1187 = vpack.c.bf16 %v1180, %v1178
      %v1188 = vpack.c.bf16 %v1184, %v1182
      %1189 = vst [vmem:[#allocation4 + $0xa0] sm:$0xff] %v1185
      %1190 = vst [vmem:[#allocation4 + $0xa8] sm:$0xff] %v1186
      %1191 = vst [vmem:[#allocation4 + $0xb0] sm:$0xff] %v1187
      %1192 = vst [vmem:[#allocation4 + $0xb8] sm:$0xff] %v1188
      %1193 = vrot.lane.b32.xlu0 %v1057, 126
      %v1194 = vpop.permute.xlu0 %1193
      %1195 = vrot.lane.b32.xlu0 %v1058, 126
      %v1196 = vpop.permute.xlu0 %1195
      %1197 = vrot.lane.b32.xlu0 %v1059, 126
      %v1198 = vpop.permute.xlu0 %1197
      %1199 = vrot.lane.b32.xlu0 %v1060, 126
      %v1200 = vpop.permute.xlu0 %1199
      %1201 = vrot.lane.b32.xlu0 %v1061, 126
      %v1202 = vpop.permute.xlu0 %1201
      %1203 = vrot.lane.b32.xlu0 %v1062, 126
      %v1204 = vpop.permute.xlu0 %1203
      %1205 = vrot.lane.b32.xlu0 %v1063, 126
      %v1206 = vpop.permute.xlu0 %1205
      %1207 = vrot.lane.b32.xlu0 %v1064, 126
      %v1208 = vpop.permute.xlu0 %1207
      %v1209 = vpack.c.bf16 %v1196, %v1194
      %v1210 = vpack.c.bf16 %v1200, %v1198
      %v1211 = vpack.c.bf16 %v1204, %v1202
      %v1212 = vpack.c.bf16 %v1208, %v1206
      %1213 = vst [vmem:[#allocation4 + $0xc0] sm:$0xff] %v1209
      %1214 = vst [vmem:[#allocation4 + $0xc8] sm:$0xff] %v1210
      %1215 = vst [vmem:[#allocation4 + $0xd0] sm:$0xff] %v1211
      %1216 = vst [vmem:[#allocation4 + $0xd8] sm:$0xff] %v1212
      %1217 = vrot.lane.b32.xlu0 %v1057, 125
      %v1218 = vpop.permute.xlu0 %1217
      %1219 = vrot.lane.b32.xlu0 %v1058, 125
      %v1220 = vpop.permute.xlu0 %1219
      %1221 = vrot.lane.b32.xlu0 %v1059, 125
      %v1222 = vpop.permute.xlu0 %1221
      %1223 = vrot.lane.b32.xlu0 %v1060, 125
      %v1224 = vpop.permute.xlu0 %1223
      %1225 = vrot.lane.b32.xlu0 %v1061, 125
      %v1226 = vpop.permute.xlu0 %1225
      %1227 = vrot.lane.b32.xlu0 %v1062, 125
      %v1228 = vpop.permute.xlu0 %1227
      %1229 = vrot.lane.b32.xlu0 %v1063, 125
      %v1230 = vpop.permute.xlu0 %1229
      %1231 = vrot.lane.b32.xlu0 %v1064, 125
      %v1232 = vpop.permute.xlu0 %1231
      %v1233 = vpack.c.bf16 %v1220, %v1218
      %v1234 = vpack.c.bf16 %v1224, %v1222
      %v1235 = vpack.c.bf16 %v1228, %v1226
      %v1236 = vpack.c.bf16 %v1232, %v1230
      %1237 = vst [vmem:[#allocation4 + $0xe0] sm:$0xff] %v1233
      %1238 = vst [vmem:[#allocation4 + $0xe8] sm:$0xff] %v1234
      %1239 = vst [vmem:[#allocation4 + $0xf0] sm:$0xff] %v1235
      %1240 = vst [vmem:[#allocation4 + $0xf8] sm:$0xff] %v1236
      %1241 = vrot.lane.b32.xlu0 %v1057, 124
      %v1242 = vpop.permute.xlu0 %1241
      %1243 = vrot.lane.b32.xlu0 %v1058, 124
      %v1244 = vpop.permute.xlu0 %1243
      %1245 = vrot.lane.b32.xlu0 %v1059, 124
      %v1246 = vpop.permute.xlu0 %1245
      %1247 = vrot.lane.b32.xlu0 %v1060, 124
      %v1248 = vpop.permute.xlu0 %1247
      %1249 = vrot.lane.b32.xlu0 %v1061, 124
      %v1250 = vpop.permute.xlu0 %1249
      %1251 = vrot.lane.b32.xlu0 %v1062, 124
      %v1252 = vpop.permute.xlu0 %1251
      %1253 = vrot.lane.b32.xlu0 %v1063, 124
      %v1254 = vpop.permute.xlu0 %1253
      %1255 = vrot.lane.b32.xlu0 %v1064, 124
      %v1256 = vpop.permute.xlu0 %1255
      %v1257 = vpack.c.bf16 %v1244, %v1242
      %v1258 = vpack.c.bf16 %v1248, %v1246
      %v1259 = vpack.c.bf16 %v1252, %v1250
      %v1260 = vpack.c.bf16 %v1256, %v1254
      %1261 = vst [vmem:[#allocation4 + $0x100] sm:$0xff] %v1257
      %1262 = vst [vmem:[#allocation4 + $0x108] sm:$0xff] %v1258
      %1263 = vst [vmem:[#allocation4 + $0x110] sm:$0xff] %v1259
      %1264 = vst [vmem:[#allocation4 + $0x118] sm:$0xff] %v1260
      %v1265 = vld [vmem:[%s4] sm:$0xff]
      %v1266 = vld [vmem:[%s4 + $0x8] sm:$0xff]
      %v1267 = vld [vmem:[%s4 + $0x10] sm:$0xf]
      %v1268 = vld [vmem:[%s4 + $0x14] sm:$0xff]
      %v1269 = vld [vmem:[%s4 + $0x1c] sm:$0xff]
      %v1270 = vld [vmem:[%s4 + $0x24] sm:$0xf]
      %v1271 = vld [vmem:[%s4 + $0x28] sm:$0xff]
      %v1272 = vld [vmem:[%s4 + $0x30] sm:$0xff]
      %v1273 = vld [vmem:[%s4 + $0x38] sm:$0xf]
      %v1274 = vld [vmem:[%s4 + $0x3c] sm:$0xff]
      %v1275 = vld [vmem:[%s4 + $0x44] sm:$0xff]
      %v1276 = vld [vmem:[%s4 + $0x4c] sm:$0xf]
      %v1277 = vld [vmem:[%s4 + $0x50] sm:$0xff]
      %v1278 = vld [vmem:[%s4 + $0x58] sm:$0xff]
      %v1279 = vld [vmem:[%s4 + $0x60] sm:$0xf]
      %v1280 = vld [vmem:[%s4 + $0x64] sm:$0xff]
      %v1281 = vld [vmem:[%s4 + $0x6c] sm:$0xff]
      %v1282 = vld [vmem:[%s4 + $0x74] sm:$0xf]
      %v1283 = vld [vmem:[%s4 + $0x78] sm:$0xff]
      %v1284 = vld [vmem:[%s4 + $0x80] sm:$0xff]
      %v1285 = vld [vmem:[%s4 + $0x88] sm:$0xf]
      %v1286 = vld [vmem:[%s4 + $0x8c] sm:$0xff]
      %v1287 = vld [vmem:[%s4 + $0x94] sm:$0xff]
      %v1288 = vld [vmem:[%s4 + $0x9c] sm:$0xf]
      %v1289 = vld [vmem:[%s4 + $0xa0] sm:$0xff]
      %v1290 = vld [vmem:[%s4 + $0xa8] sm:$0xff]
      %v1291 = vld [vmem:[%s4 + $0xb0] sm:$0xf]
      %v1292 = vld [vmem:[%s4 + $0xb4] sm:$0xff]
      %v1293 = vld [vmem:[%s4 + $0xbc] sm:$0xff]
      %v1294 = vld [vmem:[%s4 + $0xc4] sm:$0xf]
      %v1295 = vld [vmem:[%s4 + $0xc8] sm:$0xff]
      %v1296 = vld [vmem:[%s4 + $0xd0] sm:$0xff]
      %v1297 = vld [vmem:[%s4 + $0xd8] sm:$0xf]
      %v1298 = vld [vmem:[%s4 + $0xdc] sm:$0xff]
      %v1299 = vld [vmem:[%s4 + $0xe4] sm:$0xff]
      %v1300 = vld [vmem:[%s4 + $0xec] sm:$0xf]
      %v1301 = vld [vmem:[%s4 + $0xf0] sm:$0xff]
      %v1302 = vld [vmem:[%s4 + $0xf8] sm:$0xff]
      %v1303 = vld [vmem:[%s4 + $0x100] sm:$0xf]
      %v1304 = vld [vmem:[%s4 + $0x104] sm:$0xff]
      %v1305 = vld [vmem:[%s4 + $0x10c] sm:$0xff]
      %v1306 = vld [vmem:[%s4 + $0x114] sm:$0xf]
      %v1307 = vld [vmem:[%s4 + $0x118] sm:$0xff]
      %v1308 = vld [vmem:[%s4 + $0x120] sm:$0xff]
      %v1309 = vld [vmem:[%s4 + $0x128] sm:$0xf]
      %v1310 = vld [vmem:[%s4 + $0x12c] sm:$0xff]
      %v1311 = vld [vmem:[%s4 + $0x134] sm:$0xff]
      %v1312 = vld [vmem:[%s4 + $0x13c] sm:$0xf]
      %v1313 = vld [vmem:[%s5] sm:$0xff]
      %v1314 = vld [vmem:[%s5 + $0x8] sm:$0xff]
      %v1315 = vld [vmem:[%s5 + $0x10] sm:$0xff]
      %v1316 = vld [vmem:[%s5 + $0x18] sm:$0xff]
      %v1317 = vld [vmem:[%s5 + $0x20] sm:$0xff]
      %v1318 = vld [vmem:[%s5 + $0x28] sm:$0xff]
      %v1319 = vld [vmem:[%s5 + $0x30] sm:$0xff]
      %v1320 = vld [vmem:[%s5 + $0x38] sm:$0xff]
      %v1321 = vld [vmem:[%s5 + $0x40] sm:$0xff]
      %v1322 = vld [vmem:[%s5 + $0x48] sm:$0xff]
      %v1323 = vld [vmem:[%s5 + $0x50] sm:$0xff]
      %v1324 = vld [vmem:[%s5 + $0x58] sm:$0xff]
      %v1325 = vld [vmem:[%s5 + $0x60] sm:$0xff]
      %v1326 = vld [vmem:[%s5 + $0x68] sm:$0xff]
      %v1327 = vld [vmem:[%s5 + $0x70] sm:$0xff]
      %v1328 = vld [vmem:[%s5 + $0x78] sm:$0xff]
      %v1329 = vld [vmem:[#allocation4] sm:$0xff]
      %v1330 = vld [vmem:[#allocation4 + $0x8] sm:$0xff]
      %v1331 = vld [vmem:[#allocation4 + $0x10] sm:$0xff]
      %v1332 = vld [vmem:[#allocation4 + $0x18] sm:$0xff]
      %v1333 = vld [vmem:[#allocation4 + $0x20] sm:$0xff]
      %v1334 = vld [vmem:[#allocation4 + $0x28] sm:$0xff]
      %v1335 = vld [vmem:[#allocation4 + $0x30] sm:$0xff]
      %v1336 = vld [vmem:[#allocation4 + $0x38] sm:$0xff]
      %v1337 = vld [vmem:[#allocation4 + $0x40] sm:$0xff]
      %v1338 = vld [vmem:[#allocation4 + $0x48] sm:$0xff]
      %v1339 = vld [vmem:[#allocation4 + $0x50] sm:$0xff]
      %v1340 = vld [vmem:[#allocation4 + $0x58] sm:$0xff]
      %v1341 = vld [vmem:[#allocation4 + $0x60] sm:$0xff]
      %v1342 = vld [vmem:[#allocation4 + $0x68] sm:$0xff]
      %v1343 = vld [vmem:[#allocation4 + $0x70] sm:$0xff]
      %v1344 = vld [vmem:[#allocation4 + $0x78] sm:$0xff]
      %v1345 = vld [vmem:[#allocation4 + $0x80] sm:$0xff]
      %v1346 = vld [vmem:[#allocation4 + $0x88] sm:$0xff]
      %v1347 = vld [vmem:[#allocation4 + $0x90] sm:$0xff]
      %v1348 = vld [vmem:[#allocation4 + $0x98] sm:$0xff]
      %v1349 = vld [vmem:[#allocation4 + $0xa0] sm:$0xff]
      %v1350 = vld [vmem:[#allocation4 + $0xa8] sm:$0xff]
      %v1351 = vld [vmem:[#allocation4 + $0xb0] sm:$0xff]
      %v1352 = vld [vmem:[#allocation4 + $0xb8] sm:$0xff]
      %v1353 = vld [vmem:[#allocation4 + $0xc0] sm:$0xff]
      %v1354 = vld [vmem:[#allocation4 + $0xc8] sm:$0xff]
      %v1355 = vld [vmem:[#allocation4 + $0xd0] sm:$0xff]
      %v1356 = vld [vmem:[#allocation4 + $0xd8] sm:$0xff]
      %v1357 = vld [vmem:[#allocation4 + $0xe0] sm:$0xff]
      %v1358 = vld [vmem:[#allocation4 + $0xe8] sm:$0xff]
      %v1359 = vld [vmem:[#allocation4 + $0xf0] sm:$0xff]
      %v1360 = vld [vmem:[#allocation4 + $0xf8] sm:$0xff]
      %v1361 = vld [vmem:[#allocation4 + $0x100] sm:$0xff]
      %v1362 = vld [vmem:[#allocation4 + $0x108] sm:$0xff]
      %v1363 = vld [vmem:[#allocation4 + $0x110] sm:$0xff]
      %v1364 = vld [vmem:[#allocation4 + $0x118] sm:$0xff]
      %1366 = vset.pattern.permute.xlu0 0
      %1367 = vperm.xlu0 %1366, %v1313
      %v1368 = vpop.permute.xlu0 %1367
      %1371 = vset.pattern.permute.xlu0 0
      %1372 = vperm.xlu0 %1371, %v1314
      %v1373 = vpop.permute.xlu0 %1372
      %1376 = vset.pattern.permute.xlu0 0
      %1377 = vperm.xlu0 %1376, %v1315
      %v1378 = vpop.permute.xlu0 %1377
      %1381 = vset.pattern.permute.xlu0 0
      %1382 = vperm.xlu0 %1381, %v1316
      %v1383 = vpop.permute.xlu0 %1382
      %1386 = vset.pattern.permute.xlu0 0
      %1387 = vperm.xlu0 %1386, %v1317
      %v1388 = vpop.permute.xlu0 %1387
      %1391 = vset.pattern.permute.xlu0 0
      %1392 = vperm.xlu0 %1391, %v1318
      %v1393 = vpop.permute.xlu0 %1392
      %1396 = vset.pattern.permute.xlu0 0
      %1397 = vperm.xlu0 %1396, %v1319
      %v1398 = vpop.permute.xlu0 %1397
      %1401 = vset.pattern.permute.xlu0 0
      %1402 = vperm.xlu0 %1401, %v1320
      %v1403 = vpop.permute.xlu0 %1402
      %1406 = vset.pattern.permute.xlu0 0
      %1407 = vperm.xlu0 %1406, %v1321
      %v1408 = vpop.permute.xlu0 %1407
      %1411 = vset.pattern.permute.xlu0 0
      %1412 = vperm.xlu0 %1411, %v1322
      %v1413 = vpop.permute.xlu0 %1412
      %1416 = vset.pattern.permute.xlu0 0
      %1417 = vperm.xlu0 %1416, %v1323
      %v1418 = vpop.permute.xlu0 %1417
      %1421 = vset.pattern.permute.xlu0 0
      %1422 = vperm.xlu0 %1421, %v1324
      %v1423 = vpop.permute.xlu0 %1422
      %1426 = vset.pattern.permute.xlu0 0
      %1427 = vperm.xlu0 %1426, %v1325
      %v1428 = vpop.permute.xlu0 %1427
      %1431 = vset.pattern.permute.xlu0 0
      %1432 = vperm.xlu0 %1431, %v1326
      %v1433 = vpop.permute.xlu0 %1432
      %1436 = vset.pattern.permute.xlu0 0
      %1437 = vperm.xlu0 %1436, %v1327
      %v1438 = vpop.permute.xlu0 %1437
      %1441 = vset.pattern.permute.xlu0 0
      %1442 = vperm.xlu0 %1441, %v1328
      %v1443 = vpop.permute.xlu0 %1442
      %v1493 = vunpack.c.l.b16 %v1265
      %v1494 = vunpack.c.h.b16 %v1265
      %v1495 = vunpack.c.l.b16 %v1266
      %v1496 = vunpack.c.h.b16 %v1266
      %v1497 = vunpack.c.l.b16 %v1267
      %v1498 = vunpack.c.l.b16 %v1268
      %v1499 = vunpack.c.h.b16 %v1268
      %v1500 = vunpack.c.l.b16 %v1269
      %v1501 = vunpack.c.h.b16 %v1269
      %v1502 = vunpack.c.l.b16 %v1270
      %v1503 = vunpack.c.l.b16 %v1271
      %v1504 = vunpack.c.h.b16 %v1271
      %v1505 = vunpack.c.l.b16 %v1272
      %v1506 = vunpack.c.h.b16 %v1272
      %v1507 = vunpack.c.l.b16 %v1273
      %v1508 = vunpack.c.l.b16 %v1274
      %v1509 = vunpack.c.h.b16 %v1274
      %v1510 = vunpack.c.l.b16 %v1275
      %v1511 = vunpack.c.h.b16 %v1275
      %v1512 = vunpack.c.l.b16 %v1276
      %v1513 = vunpack.c.l.b16 %v1277
      %v1514 = vunpack.c.h.b16 %v1277
      %v1515 = vunpack.c.l.b16 %v1278
      %v1516 = vunpack.c.h.b16 %v1278
      %v1517 = vunpack.c.l.b16 %v1279
      %v1518 = vunpack.c.l.b16 %v1280
      %v1519 = vunpack.c.h.b16 %v1280
      %v1520 = vunpack.c.l.b16 %v1281
      %v1521 = vunpack.c.h.b16 %v1281
      %v1522 = vunpack.c.l.b16 %v1282
      %v1523 = vunpack.c.l.b16 %v1283
      %v1524 = vunpack.c.h.b16 %v1283
      %v1525 = vunpack.c.l.b16 %v1284
      %v1526 = vunpack.c.h.b16 %v1284
      %v1527 = vunpack.c.l.b16 %v1285
      %v1528 = vunpack.c.l.b16 %v1286
      %v1529 = vunpack.c.h.b16 %v1286
      %v1530 = vunpack.c.l.b16 %v1287
      %v1531 = vunpack.c.h.b16 %v1287
      %v1532 = vunpack.c.l.b16 %v1288
      %v1533 = vunpack.c.l.b16 %v1289
      %v1534 = vunpack.c.h.b16 %v1289
      %v1535 = vunpack.c.l.b16 %v1290
      %v1536 = vunpack.c.h.b16 %v1290
      %v1537 = vunpack.c.l.b16 %v1291
      %v1538 = vunpack.c.l.b16 %v1292
      %v1539 = vunpack.c.h.b16 %v1292
      %v1540 = vunpack.c.l.b16 %v1293
      %v1541 = vunpack.c.h.b16 %v1293
      %v1542 = vunpack.c.l.b16 %v1294
      %v1543 = vunpack.c.l.b16 %v1295
      %v1544 = vunpack.c.h.b16 %v1295
      %v1545 = vunpack.c.l.b16 %v1296
      %v1546 = vunpack.c.h.b16 %v1296
      %v1547 = vunpack.c.l.b16 %v1297
      %v1548 = vunpack.c.l.b16 %v1298
      %v1549 = vunpack.c.h.b16 %v1298
      %v1550 = vunpack.c.l.b16 %v1299
      %v1551 = vunpack.c.h.b16 %v1299
      %v1552 = vunpack.c.l.b16 %v1300
      %v1553 = vunpack.c.l.b16 %v1301
      %v1554 = vunpack.c.h.b16 %v1301
      %v1555 = vunpack.c.l.b16 %v1302
      %v1556 = vunpack.c.h.b16 %v1302
      %v1557 = vunpack.c.l.b16 %v1303
      %v1558 = vunpack.c.l.b16 %v1304
      %v1559 = vunpack.c.h.b16 %v1304
      %v1560 = vunpack.c.l.b16 %v1305
      %v1561 = vunpack.c.h.b16 %v1305
      %v1562 = vunpack.c.l.b16 %v1306
      %v1563 = vunpack.c.l.b16 %v1307
      %v1564 = vunpack.c.h.b16 %v1307
      %v1565 = vunpack.c.l.b16 %v1308
      %v1566 = vunpack.c.h.b16 %v1308
      %v1567 = vunpack.c.l.b16 %v1309
      %v1568 = vunpack.c.l.b16 %v1310
      %v1569 = vunpack.c.h.b16 %v1310
      %v1570 = vunpack.c.l.b16 %v1311
      %v1571 = vunpack.c.h.b16 %v1311
      %v1572 = vunpack.c.l.b16 %v1312
      %v1573 = vpack.c.b16 %v1498, %v1493
      %v1574 = vpack.c.b16 %v1499, %v1494
      %v1575 = vpack.c.b16 %v1500, %v1495
      %v1576 = vpack.c.b16 %v1501, %v1496
      %v1577 = vpack.c.b16 %v1502, %v1497
      %v1578 = vpack.c.b16 %v1508, %v1503
      %v1579 = vpack.c.b16 %v1509, %v1504
      %v1580 = vpack.c.b16 %v1510, %v1505
      %v1581 = vpack.c.b16 %v1511, %v1506
      %v1582 = vpack.c.b16 %v1512, %v1507
      %v1583 = vpack.c.b16 %v1518, %v1513
      %v1584 = vpack.c.b16 %v1519, %v1514
      %v1585 = vpack.c.b16 %v1520, %v1515
      %v1586 = vpack.c.b16 %v1521, %v1516
      %v1587 = vpack.c.b16 %v1522, %v1517
      %v1588 = vpack.c.b16 %v1528, %v1523
      %v1589 = vpack.c.b16 %v1529, %v1524
      %v1590 = vpack.c.b16 %v1530, %v1525
      %v1591 = vpack.c.b16 %v1531, %v1526
      %v1592 = vpack.c.b16 %v1532, %v1527
      %v1593 = vpack.c.b16 %v1538, %v1533
      %v1594 = vpack.c.b16 %v1539, %v1534
      %v1595 = vpack.c.b16 %v1540, %v1535
      %v1596 = vpack.c.b16 %v1541, %v1536
      %v1597 = vpack.c.b16 %v1542, %v1537
      %v1598 = vpack.c.b16 %v1548, %v1543
      %v1599 = vpack.c.b16 %v1549, %v1544
      %v1600 = vpack.c.b16 %v1550, %v1545
      %v1601 = vpack.c.b16 %v1551, %v1546
      %v1602 = vpack.c.b16 %v1552, %v1547
      %v1603 = vpack.c.b16 %v1558, %v1553
      %v1604 = vpack.c.b16 %v1559, %v1554
      %v1605 = vpack.c.b16 %v1560, %v1555
      %v1606 = vpack.c.b16 %v1561, %v1556
      %v1607 = vpack.c.b16 %v1562, %v1557
      %v1608 = vpack.c.b16 %v1568, %v1563
      %v1609 = vpack.c.b16 %v1569, %v1564
      %v1610 = vpack.c.b16 %v1570, %v1565
      %v1611 = vpack.c.b16 %v1571, %v1566
      %v1612 = vpack.c.b16 %v1572, %v1567
      %vm1645 = vcmask 523264
      %v1647 = vsel %vm1645, %v1577, 0
      %v1650 = vsel %vm1645, %v1582, 0
      %v1653 = vsel %vm1645, %v1587, 0
      %v1656 = vsel %vm1645, %v1592, 0
      %v1659 = vsel %vm1645, %v1597, 0
      %v1662 = vsel %vm1645, %v1602, 0
      %v1665 = vsel %vm1645, %v1607, 0
      %v1668 = vsel %vm1645, %v1612, 0
      %1670 = vmatprep.subr.bf16.mxu0 0
      %1671 = vmatpush1.bf16.msra.mxu0 %v1329
      %1672 = vmatprep.subr.bf16.mxu0 0
      %1673 = vmatpush1.bf16.msra.mxu0 %v1330
      %1674 = vmatprep.subr.bf16.mxu0 0
      %1675 = vmatpush1.bf16.msra.mxu0 %v1331
      %1676 = vmatprep.subr.bf16.mxu0 0
      %1677 = vmatpush1.bf16.msra.mxu0 %v1332
      %1678 = vmatprep.subr.bf16.mxu0 0
      %1679 = vmatpush1.bf16.msra.mxu0 %v1333
      %1680 = vmatprep.subr.bf16.mxu0 0
      %1681 = vmatpush1.bf16.msra.mxu0 %v1334
      %1682 = vmatprep.subr.bf16.mxu0 0
      %1683 = vmatpush1.bf16.msra.mxu0 %v1335
      %1684 = vmatprep.subr.bf16.mxu0 0
      %1685 = vmatpush1.bf16.msra.mxu0 %v1336
      %1686 = vmatprep.subr.bf16.mxu0 0
      %1687 = vmatpush1.bf16.msra.mxu0 %v1337
      %1688 = vmatprep.subr.bf16.mxu0 0
      %1689 = vmatpush1.bf16.msra.mxu0 %v1338
      %1690 = vmatprep.subr.bf16.mxu0 0
      %1691 = vmatpush1.bf16.msra.mxu0 %v1339
      %1692 = vmatprep.subr.bf16.mxu0 0
      %1693 = vmatpush1.bf16.msra.mxu0 %v1340
      %1694 = vmatprep.subr.bf16.mxu0 0
      %1695 = vmatpush1.bf16.msra.mxu0 %v1341
      %1696 = vmatprep.subr.bf16.mxu0 0
      %1697 = vmatpush1.bf16.msra.mxu0 %v1342
      %1698 = vmatprep.subr.bf16.mxu0 0
      %1699 = vmatpush1.bf16.msra.mxu0 %v1343
      %1700 = vmatprep.subr.bf16.mxu0 0
      %1701 = vmatpush1.bf16.msra.mxu0 %v1344
      %1702 = vmatprep.mubr.bf16.mxu0 %v1574
      %1703 = vmatmul.mubr.bf16.gmra.mrb[0].mxu0 %v1573
      %v1704 = vpop.f32.mrb[0].mxu0
      %v1705 = vadd.f32 %v1368, %v1704
      %v1706 = vpop.f32.mrb[0].mxu0
      %v1707 = vpop.f32.mrb[0].mxu0
      %v1708 = vadd.f32 %v1373, %v1707
      %v1709 = vpop.f32.mrb[0].mxu0
      %1710 = vmatprep.mubr.bf16.mxu0 %v1579
      %1711 = vmatmul.mubr.bf16.gmra.mrb[0].mxu0 %v1578
      %v1712 = vpop.f32.mrb[0].mxu0
      %v1713 = vadd.f32 %v1378, %v1712
      %v1714 = vpop.f32.mrb[0].mxu0
      %v1715 = vpop.f32.mrb[0].mxu0
      %v1716 = vadd.f32 %v1383, %v1715
      %v1717 = vpop.f32.mrb[0].mxu0
      %1718 = vmatprep.mubr.bf16.mxu0 %v1584
      %1719 = vmatmul.mubr.bf16.gmra.mrb[0].mxu0 %v1583
      %v1720 = vpop.f32.mrb[0].mxu0
      %v1721 = vadd.f32 %v1388, %v1720
      %v1722 = vpop.f32.mrb[0].mxu0
      %v1723 = vpop.f32.mrb[0].mxu0
      %v1724 = vadd.f32 %v1393, %v1723
      %v1725 = vpop.f32.mrb[0].mxu0
      %1726 = vmatprep.mubr.bf16.mxu0 %v1589
      %1727 = vmatmul.mubr.bf16.gmra.mrb[0].mxu0 %v1588
      %v1728 = vpop.f32.mrb[0].mxu0
      %v1729 = vadd.f32 %v1398, %v1728
      %v1730 = vpop.f32.mrb[0].mxu0
      %v1731 = vpop.f32.mrb[0].mxu0
      %v1732 = vadd.f32 %v1403, %v1731
      %v1733 = vpop.f32.mrb[0].mxu0
      %1734 = vmatprep.mubr.bf16.mxu0 %v1594
      %1735 = vmatmul.mubr.bf16.gmra.mrb[0].mxu0 %v1593
      %v1736 = vpop.f32.mrb[0].mxu0
      %v1737 = vadd.f32 %v1408, %v1736
      %v1738 = vpop.f32.mrb[0].mxu0
      %v1739 = vpop.f32.mrb[0].mxu0
      %v1740 = vadd.f32 %v1413, %v1739
      %v1741 = vpop.f32.mrb[0].mxu0
      %1742 = vmatprep.mubr.bf16.mxu0 %v1599
      %1743 = vmatmul.mubr.bf16.gmra.mrb[0].mxu0 %v1598
      %v1744 = vpop.f32.mrb[0].mxu0
      %v1745 = vadd.f32 %v1418, %v1744
      %v1746 = vpop.f32.mrb[0].mxu0
      %v1747 = vpop.f32.mrb[0].mxu0
      %v1748 = vadd.f32 %v1423, %v1747
      %v1749 = vpop.f32.mrb[0].mxu0
      %1750 = vmatprep.mubr.bf16.mxu0 %v1604
      %1751 = vmatmul.mubr.bf16.gmra.mrb[0].mxu0 %v1603
      %v1752 = vpop.f32.mrb[0].mxu0
      %v1753 = vadd.f32 %v1428, %v1752
      %v1754 = vpop.f32.mrb[0].mxu0
      %v1755 = vpop.f32.mrb[0].mxu0
      %v1756 = vadd.f32 %v1433, %v1755
      %v1757 = vpop.f32.mrb[0].mxu0
      %1758 = vmatprep.mubr.bf16.mxu0 %v1609
      %1759 = vmatmul.mubr.bf16.gmra.mrb[0].mxu0 %v1608
      %v1760 = vpop.f32.mrb[0].mxu0
      %v1761 = vadd.f32 %v1438, %v1760
      %v1762 = vpop.f32.mrb[0].mxu0
      %v1763 = vpop.f32.mrb[0].mxu0
      %v1764 = vadd.f32 %v1443, %v1763
      %v1765 = vpop.f32.mrb[0].mxu0
      %1766 = vdwg.mxu0
      %1767 = vmatprep.subr.bf16.mxu0 0
      %1768 = vmatpush1.bf16.msra.mxu0 %v1345
      %1769 = vmatprep.subr.bf16.mxu0 0
      %1770 = vmatpush1.bf16.msra.mxu0 %v1346
      %1771 = vmatprep.subr.bf16.mxu0 0
      %1772 = vmatpush1.bf16.msra.mxu0 %v1347
      %1773 = vmatprep.subr.bf16.mxu0 0
      %1774 = vmatpush1.bf16.msra.mxu0 %v1348
      %1775 = vmatprep.subr.bf16.mxu0 0
      %1776 = vmatpush1.bf16.msra.mxu0 %v1349
      %1777 = vmatprep.subr.bf16.mxu0 0
      %1778 = vmatpush1.bf16.msra.mxu0 %v1350
      %1779 = vmatprep.subr.bf16.mxu0 0
      %1780 = vmatpush1.bf16.msra.mxu0 %v1351
      %1781 = vmatprep.subr.bf16.mxu0 0
      %1782 = vmatpush1.bf16.msra.mxu0 %v1352
      %1783 = vmatprep.subr.bf16.mxu0 0
      %1784 = vmatpush1.bf16.msra.mxu0 %v1353
      %1785 = vmatprep.subr.bf16.mxu0 0
      %1786 = vmatpush1.bf16.msra.mxu0 %v1354
      %1787 = vmatprep.subr.bf16.mxu0 0
      %1788 = vmatpush1.bf16.msra.mxu0 %v1355
      %1789 = vmatprep.subr.bf16.mxu0 0
      %1790 = vmatpush1.bf16.msra.mxu0 %v1356
      %1791 = vmatprep.subr.bf16.mxu0 0
      %1792 = vmatpush1.bf16.msra.mxu0 %v1357
      %1793 = vmatprep.subr.bf16.mxu0 0
      %1794 = vmatpush1.bf16.msra.mxu0 %v1358
      %1795 = vmatprep.subr.bf16.mxu0 0
      %1796 = vmatpush1.bf16.msra.mxu0 %v1359
      %1797 = vmatprep.subr.bf16.mxu0 0
      %1798 = vmatpush1.bf16.msra.mxu0 %v1360
      %1799 = vmatprep.mubr.bf16.mxu0 %v1576
      %1800 = vmatmul.mubr.bf16.gmra.mrb[0].mxu0 %v1575
      %v1801 = vpop.f32.mrb[0].mxu0
      %v1802 = vadd.f32 %v1705, %v1801
      %v1803 = vpop.f32.mrb[0].mxu0
      %v1804 = vpop.f32.mrb[0].mxu0
      %v1805 = vadd.f32 %v1708, %v1804
      %v1806 = vpop.f32.mrb[0].mxu0
      %1807 = vmatprep.mubr.bf16.mxu0 %v1581
      %1808 = vmatmul.mubr.bf16.gmra.mrb[0].mxu0 %v1580
      %v1809 = vpop.f32.mrb[0].mxu0
      %v1810 = vadd.f32 %v1713, %v1809
      %v1811 = vpop.f32.mrb[0].mxu0
      %v1812 = vpop.f32.mrb[0].mxu0
      %v1813 = vadd.f32 %v1716, %v1812
      %v1814 = vpop.f32.mrb[0].mxu0
      %1815 = vmatprep.mubr.bf16.mxu0 %v1586
      %1816 = vmatmul.mubr.bf16.gmra.mrb[0].mxu0 %v1585
      %v1817 = vpop.f32.mrb[0].mxu0
      %v1818 = vadd.f32 %v1721, %v1817
      %v1819 = vpop.f32.mrb[0].mxu0
      %v1820 = vpop.f32.mrb[0].mxu0
      %v1821 = vadd.f32 %v1724, %v1820
      %v1822 = vpop.f32.mrb[0].mxu0
      %1823 = vmatprep.mubr.bf16.mxu0 %v1591
      %1824 = vmatmul.mubr.bf16.gmra.mrb[0].mxu0 %v1590
      %v1825 = vpop.f32.mrb[0].mxu0
      %v1826 = vadd.f32 %v1729, %v1825
      %v1827 = vpop.f32.mrb[0].mxu0
      %v1828 = vpop.f32.mrb[0].mxu0
      %v1829 = vadd.f32 %v1732, %v1828
      %v1830 = vpop.f32.mrb[0].mxu0
      %1831 = vmatprep.mubr.bf16.mxu0 %v1596
      %1832 = vmatmul.mubr.bf16.gmra.mrb[0].mxu0 %v1595
      %v1833 = vpop.f32.mrb[0].mxu0
      %v1834 = vadd.f32 %v1737, %v1833
      %v1835 = vpop.f32.mrb[0].mxu0
      %v1836 = vpop.f32.mrb[0].mxu0
      %v1837 = vadd.f32 %v1740, %v1836
      %v1838 = vpop.f32.mrb[0].mxu0
      %1839 = vmatprep.mubr.bf16.mxu0 %v1601
      %1840 = vmatmul.mubr.bf16.gmra.mrb[0].mxu0 %v1600
      %v1841 = vpop.f32.mrb[0].mxu0
      %v1842 = vadd.f32 %v1745, %v1841
      %v1843 = vpop.f32.mrb[0].mxu0
      %v1844 = vpop.f32.mrb[0].mxu0
      %v1845 = vadd.f32 %v1748, %v1844
      %v1846 = vpop.f32.mrb[0].mxu0
      %1847 = vmatprep.mubr.bf16.mxu0 %v1606
      %1848 = vmatmul.mubr.bf16.gmra.mrb[0].mxu0 %v1605
      %v1849 = vpop.f32.mrb[0].mxu0
      %v1850 = vadd.f32 %v1753, %v1849
      %v1851 = vpop.f32.mrb[0].mxu0
      %v1852 = vpop.f32.mrb[0].mxu0
      %v1853 = vadd.f32 %v1756, %v1852
      %v1854 = vpop.f32.mrb[0].mxu0
      %1855 = vmatprep.mubr.bf16.mxu0 %v1611
      %1856 = vmatmul.mubr.bf16.gmra.mrb[0].mxu0 %v1610
      %v1857 = vpop.f32.mrb[0].mxu0
      %v1858 = vadd.f32 %v1761, %v1857
      %v1859 = vpop.f32.mrb[0].mxu0
      %v1860 = vpop.f32.mrb[0].mxu0
      %v1861 = vadd.f32 %v1764, %v1860
      %v1862 = vpop.f32.mrb[0].mxu0
      %1863 = vdwg.mxu0
      %1864 = vmatprep.subr.bf16.mxu0 0
      %1865 = vmatpush1.bf16.msra.mxu0 %v1361
      %1866 = vmatprep.subr.bf16.mxu0 0
      %1867 = vmatpush1.bf16.msra.mxu0 %v1362
      %1868 = vmatprep.subr.bf16.mxu0 0
      %1869 = vmatpush1.bf16.msra.mxu0 %v1363
      %1870 = vmatprep.subr.bf16.mxu0 0
      %1871 = vmatpush1.bf16.msra.mxu0 %v1364
      %1872 = vmatprep.subr.bf16.mxu0 0
      %1873 = vmatpush1.bf16.msra.mxu0 0
      %1874 = vmatprep.subr.bf16.mxu0 0
      %1875 = vmatpush1.bf16.msra.mxu0 0
      %1876 = vmatprep.subr.bf16.mxu0 0
      %1877 = vmatpush1.bf16.msra.mxu0 0
      %1878 = vmatprep.subr.bf16.mxu0 0
      %1879 = vmatpush1.bf16.msra.mxu0 0
      %1880 = vmatprep.subr.bf16.mxu0 0
      %1881 = vmatpush1.bf16.msra.mxu0 0
      %1882 = vmatprep.subr.bf16.mxu0 0
      %1883 = vmatpush1.bf16.msra.mxu0 0
      %1884 = vmatprep.subr.bf16.mxu0 0
      %1885 = vmatpush1.bf16.msra.mxu0 0
      %1886 = vmatprep.subr.bf16.mxu0 0
      %1887 = vmatpush1.bf16.msra.mxu0 0
      %1888 = vmatprep.subr.bf16.mxu0 0
      %1889 = vmatpush1.bf16.msra.mxu0 0
      %1890 = vmatprep.subr.bf16.mxu0 0
      %1891 = vmatpush1.bf16.msra.mxu0 0
      %1892 = vmatprep.subr.bf16.mxu0 0
      %1893 = vmatpush1.bf16.msra.mxu0 0
      %1894 = vmatprep.subr.bf16.mxu0 0
      %1895 = vmatpush1.bf16.msra.mxu0 0
      %1896 = vmatprep.mubr.bf16.mxu0 0
      %1897 = vmatmul.mubr.bf16.gmra.mrb[0].mxu0 %v1647
      %v1898 = vpop.f32.mrb[0].mxu0
      %v1899 = vadd.f32 %v1802, %v1898
      %v1900 = vpop.f32.mrb[0].mxu0
      %v1901 = vpop.f32.mrb[0].mxu0
      %v1902 = vadd.f32 %v1805, %v1901
      %v1903 = vpop.f32.mrb[0].mxu0
      %1904 = vmatprep.mubr.bf16.mxu0 0
      %1905 = vmatmul.mubr.bf16.gmra.mrb[0].mxu0 %v1650
      %v1906 = vpop.f32.mrb[0].mxu0
      %v1907 = vadd.f32 %v1810, %v1906
      %v1908 = vpop.f32.mrb[0].mxu0
      %v1909 = vpop.f32.mrb[0].mxu0
      %v1910 = vadd.f32 %v1813, %v1909
      %v1911 = vpop.f32.mrb[0].mxu0
      %1912 = vmatprep.mubr.bf16.mxu0 0
      %1913 = vmatmul.mubr.bf16.gmra.mrb[0].mxu0 %v1653
      %v1914 = vpop.f32.mrb[0].mxu0
      %v1915 = vadd.f32 %v1818, %v1914
      %v1916 = vpop.f32.mrb[0].mxu0
      %v1917 = vpop.f32.mrb[0].mxu0
      %v1918 = vadd.f32 %v1821, %v1917
      %v1919 = vpop.f32.mrb[0].mxu0
      %1920 = vmatprep.mubr.bf16.mxu0 0
      %1921 = vmatmul.mubr.bf16.gmra.mrb[0].mxu0 %v1656
      %v1922 = vpop.f32.mrb[0].mxu0
      %v1923 = vadd.f32 %v1826, %v1922
      %v1924 = vpop.f32.mrb[0].mxu0
      %v1925 = vpop.f32.mrb[0].mxu0
      %v1926 = vadd.f32 %v1829, %v1925
      %v1927 = vpop.f32.mrb[0].mxu0
      %1928 = vmatprep.mubr.bf16.mxu0 0
      %1929 = vmatmul.mubr.bf16.gmra.mrb[0].mxu0 %v1659
      %v1930 = vpop.f32.mrb[0].mxu0
      %v1931 = vadd.f32 %v1834, %v1930
      %v1932 = vpop.f32.mrb[0].mxu0
      %v1933 = vpop.f32.mrb[0].mxu0
      %v1934 = vadd.f32 %v1837, %v1933
      %v1935 = vpop.f32.mrb[0].mxu0
      %1936 = vmatprep.mubr.bf16.mxu0 0
      %1937 = vmatmul.mubr.bf16.gmra.mrb[0].mxu0 %v1662
      %v1938 = vpop.f32.mrb[0].mxu0
      %v1939 = vadd.f32 %v1842, %v1938
      %v1940 = vpop.f32.mrb[0].mxu0
      %v1941 = vpop.f32.mrb[0].mxu0
      %v1942 = vadd.f32 %v1845, %v1941
      %v1943 = vpop.f32.mrb[0].mxu0
      %1944 = vmatprep.mubr.bf16.mxu0 0
      %1945 = vmatmul.mubr.bf16.gmra.mrb[0].mxu0 %v1665
      %v1946 = vpop.f32.mrb[0].mxu0
      %v1947 = vadd.f32 %v1850, %v1946
      %v1948 = vpop.f32.mrb[0].mxu0
      %v1949 = vpop.f32.mrb[0].mxu0
      %v1950 = vadd.f32 %v1853, %v1949
      %v1951 = vpop.f32.mrb[0].mxu0
      %1952 = vmatprep.mubr.bf16.mxu0 0
      %1953 = vmatmul.mubr.bf16.gmra.mrb[0].mxu0 %v1668
      %v1954 = vpop.f32.mrb[0].mxu0
      %v1955 = vadd.f32 %v1858, %v1954
      %v1956 = vpop.f32.mrb[0].mxu0
      %v1957 = vpop.f32.mrb[0].mxu0
      %v1958 = vadd.f32 %v1861, %v1957
      %v1959 = vpop.f32.mrb[0].mxu0
      %1960 = vdwg.mxu0
      %vm1961 = vcmp.gt.f32.partialorder %v1899, 0.0
      %vm1962 = vcmp.gt.f32.partialorder %v1902, 0.0
      %vm1963 = vcmp.gt.f32.partialorder %v1907, 0.0
      %vm1964 = vcmp.gt.f32.partialorder %v1910, 0.0
      %vm1965 = vcmp.gt.f32.partialorder %v1915, 0.0
      %vm1966 = vcmp.gt.f32.partialorder %v1918, 0.0
      %vm1967 = vcmp.gt.f32.partialorder %v1923, 0.0
      %vm1968 = vcmp.gt.f32.partialorder %v1926, 0.0
      %vm1969 = vcmp.gt.f32.partialorder %v1931, 0.0
      %vm1970 = vcmp.gt.f32.partialorder %v1934, 0.0
      %vm1971 = vcmp.gt.f32.partialorder %v1939, 0.0
      %vm1972 = vcmp.gt.f32.partialorder %v1942, 0.0
      %vm1973 = vcmp.gt.f32.partialorder %v1947, 0.0
      %vm1974 = vcmp.gt.f32.partialorder %v1950, 0.0
      %vm1975 = vcmp.gt.f32.partialorder %v1955, 0.0
      %vm1976 = vcmp.gt.f32.partialorder %v1958, 0.0
      %v1977 = vmin.f32 %v1899, 0.0
      %v1978 = vmin.f32 %v1902, 0.0
      %v1979 = vmin.f32 %v1907, 0.0
      %v1980 = vmin.f32 %v1910, 0.0
      %v1981 = vmin.f32 %v1915, 0.0
      %v1982 = vmin.f32 %v1918, 0.0
      %v1983 = vmin.f32 %v1923, 0.0
      %v1984 = vmin.f32 %v1926, 0.0
      %v1985 = vmin.f32 %v1931, 0.0
      %v1986 = vmin.f32 %v1934, 0.0
      %v1987 = vmin.f32 %v1939, 0.0
      %v1988 = vmin.f32 %v1942, 0.0
      %v1989 = vmin.f32 %v1947, 0.0
      %v1990 = vmin.f32 %v1950, 0.0
      %v1991 = vmin.f32 %v1955, 0.0
      %v1992 = vmin.f32 %v1958, 0.0
      %v1993 = vmul.f32 %v1977, 1.442695
      %v1994 = vpow.pop %v1993
      %v1995 = vmul.f32 %v1978, 1.442695
      %v1996 = vpow.pop %v1995
      %v1997 = vmul.f32 %v1979, 1.442695
      %v1998 = vpow.pop %v1997
      %v1999 = vmul.f32 %v1980, 1.442695
      %v2000 = vpow.pop %v1999
      %v2001 = vmul.f32 %v1981, 1.442695
      %v2002 = vpow.pop %v2001
      %v2003 = vmul.f32 %v1982, 1.442695
      %v2004 = vpow.pop %v2003
      %v2005 = vmul.f32 %v1983, 1.442695
      %v2006 = vpow.pop %v2005
      %v2007 = vmul.f32 %v1984, 1.442695
      %v2008 = vpow.pop %v2007
      %v2009 = vmul.f32 %v1985, 1.442695
      %v2010 = vpow.pop %v2009
      %v2011 = vmul.f32 %v1986, 1.442695
      %v2012 = vpow.pop %v2011
      %v2013 = vmul.f32 %v1987, 1.442695
      %v2014 = vpow.pop %v2013
      %v2015 = vmul.f32 %v1988, 1.442695
      %v2016 = vpow.pop %v2015
      %v2017 = vmul.f32 %v1989, 1.442695
      %v2018 = vpow.pop %v2017
      %v2019 = vmul.f32 %v1990, 1.442695
      %v2020 = vpow.pop %v2019
      %v2021 = vmul.f32 %v1991, 1.442695
      %v2022 = vpow.pop %v2021
      %v2023 = vmul.f32 %v1992, 1.442695
      %v2024 = vpow.pop %v2023
      %v2025 = vsub.f32 %v1994, 1.0
      %v2026 = vsub.f32 %v1996, 1.0
      %v2027 = vsub.f32 %v1998, 1.0
      %v2028 = vsub.f32 %v2000, 1.0
      %v2029 = vsub.f32 %v2002, 1.0
      %v2030 = vsub.f32 %v2004, 1.0
      %v2031 = vsub.f32 %v2006, 1.0
      %v2032 = vsub.f32 %v2008, 1.0
      %v2033 = vsub.f32 %v2010, 1.0
      %v2034 = vsub.f32 %v2012, 1.0
      %v2035 = vsub.f32 %v2014, 1.0
      %v2036 = vsub.f32 %v2016, 1.0
      %v2037 = vsub.f32 %v2018, 1.0
      %v2038 = vsub.f32 %v2020, 1.0
      %v2039 = vsub.f32 %v2022, 1.0
      %v2040 = vsub.f32 %v2024, 1.0
      %v2041 = vsel %vm1961, %v1899, %v2025
      %v2042 = vsel %vm1962, %v1902, %v2026
      %v2043 = vsel %vm1963, %v1907, %v2027
      %v2044 = vsel %vm1964, %v1910, %v2028
      %v2045 = vsel %vm1965, %v1915, %v2029
      %v2046 = vsel %vm1966, %v1918, %v2030
      %v2047 = vsel %vm1967, %v1923, %v2031
      %v2048 = vsel %vm1968, %v1926, %v2032
      %v2049 = vsel %vm1969, %v1931, %v2033
      %v2050 = vsel %vm1970, %v1934, %v2034
      %v2051 = vsel %vm1971, %v1939, %v2035
      %v2052 = vsel %vm1972, %v1942, %v2036
      %v2053 = vsel %vm1973, %v1947, %v2037
      %v2054 = vsel %vm1974, %v1950, %v2038
      %v2055 = vsel %vm1975, %v1955, %v2039
      %v2056 = vsel %vm1976, %v1958, %v2040
      %v2057 = vadd.f32 %v2041, %v2045
      %v2058 = vadd.f32 %v2042, %v2046
      %v2059 = vadd.f32 %v2043, %v2047
      %v2060 = vadd.f32 %v2044, %v2048
      %v2061 = vadd.f32 %v2057, %v2049
      %v2062 = vadd.f32 %v2058, %v2050
      %v2063 = vadd.f32 %v2059, %v2051
      %v2064 = vadd.f32 %v2060, %v2052
      %v2065 = vadd.f32 %v2061, %v2053
      %v2066 = vadd.f32 %v2062, %v2054
      %v2067 = vadd.f32 %v2063, %v2055
      %v2068 = vadd.f32 %v2064, %v2056
      %v2069 = vmul.f32 %v2065, 0.25
      %v2070 = vmul.f32 %v2066, 0.25
      %v2071 = vmul.f32 %v2067, 0.25
      %v2072 = vmul.f32 %v2068, 0.25
      %v2073 = vpack.c.bf16 %v2070, %v2069
      %v2074 = vpack.c.bf16 %v2072, %v2071
      %v2077 = vunpack.c.l.b16 %v2073
      %v2078 = vunpack.c.h.b16 %v2073
      %v2079 = vunpack.c.l.b16 %v2074
      %v2080 = vunpack.c.h.b16 %v2074
      %v2081 = vpack.c.b16 %v2077, %v2077
      %v2082 = vpack.c.b16 %v2078, %v2078
      %v2083 = vpack.c.b16 %v2079, %v2079
      %v2084 = vpack.c.b16 %v2080, %v2080
      %2089 = vst [vmem:[%s251] sm:$0xf] %v2081
      %2090 = vst [vmem:[%s251 + $0x4] sm:$0xf] %v2082
      %2091 = vst [vmem:[%s251 + $0x8] sm:$0xf] %v2083
      %2092 = vst [vmem:[%s251 + $0xc] sm:$0xf] %v2084
      %p2093 = scmp.lt.s32.totalorder %s17, 1
      %s2094 = scalar_select %p2093, %s17, 1
      %s2095 = smul.addr %s2094, 4
      %s2096 = smul.addr %s2095, 4
      %s2097 = scalar_lea.vmem %s6, %s2096
      // Predicated region
      $region45: #{eeg_forward.3} parent=43 // pred_check
        %p2098 = pneg %p166
      $region46: #{eeg_forward.3} parent=43 // pred_check_branch
        %2100 = sbr.rel (%p2098) target = $region48
      $region47: #{eeg_forward.3} parent=43 // pred_region
        _
      $region48: #{eeg_forward.3} parent=43 // pred_fallthru
        _
    $region44: #{eeg_forward.3} parent=5 // pred_fallthru
      _
    %p2101 = scmp.le.s32.totalorder 2, %s12
    // Predicated region
    $region49: #{eeg_forward.3} parent=5 // pred_check
      %p2102 = pneg %p2101
    $region50: #{eeg_forward.3} parent=5 // pred_check_branch
      %2104 = sbr.rel (%p2102) target = $region52
    $region51: #{eeg_forward.3} parent=5 // pred_region
      %s2105 = ssub.s32 %s12, 2
      // Predicated region
      $region53: #{eeg_forward.3} parent=51 // pred_check
        %p2106 = pneg %p172
      $region54: #{eeg_forward.3} parent=51 // pred_check_branch
        %2108 = sbr.rel (%p2106) target = $region56
      $region55: #{eeg_forward.3} parent=51 // pred_region
        %p2109 = scmp.lt.s32.totalorder %s18, 1
        %s2110 = scalar_select %p2109, %s18, 1
        %s2111 = smul.addr %s2110, 4
        %s2112 = smul.addr %s2111, 4
        %s2113 = scalar_lea.vmem %s6, %s2112
      $region56: #{eeg_forward.3} parent=51 // pred_fallthru
        _
    $region52: #{eeg_forward.3} parent=5 // pred_fallthru
      _
  $region6: #{eeg_forward.3} parent=0 // loop_footer
    %s16 = sadd.s32 1, %s12
  $region7: #{eeg_forward.3} parent=0 // loop_footer_branch
    %11 = sbr.rel target = $region3
  $region8: #{eeg_forward.3} parent=0 // loop_exit
    _

// kernel: eeg_forward.4
$region0: #{eeg_forward.4}
  #allocation0 [shape = 'u32[]', space=smem, size = 0x4, offset = 0x4, fixed_abs, tag = 'smem constant byte address 0x4 - core index']
  #allocation1 [shape = 'u32[144,128]{1,0:T(1,128)}', space=vmem, size = 0x12000, scoped, tag = 'internal scratch']
  #allocation2 [shape = 'f32[2,512]{1,0:T(2,128)}', space=vmem, size = 0x1000, scoped, tag = 'scratch operand']
  %s0 = inlined_call_operand.vmem [shape: bf16[2,2048], index: 0, kind: input, shape index: {}]
  %s1 = inlined_call_operand.hbm [shape: bf16[2048,1024], index: 1, kind: input, shape index: {}]
  %s2 = inlined_call_operand.hbm [shape: f32[1,1024], index: 2, kind: input, shape index: {}]
  %s3 = inlined_call_operand.vmem [shape: f32[2,1024], index: 3, kind: output, shape index: {}]
  %s4 = sld [smem:[#allocation0]]
  $region61: #{eeg_forward.4} parent=0
    _
  %s6 = ssub.s32 1, %s4
  %s7 = scalar_select 0, %s6, %s4
  $region1: #{eeg_forward.4} parent=0
    #allocation3 [shape = 'u8[4194304]{0}', space=vmem, size = 0x400000, scoped, tag = 'input window, operand 1']
    #allocation4 [shape = 's32[2]{0}', space=sflag, size = 0x8, scoped, tag = 'scoped memory for eeg_forward.4']
    #allocation5 [shape = 'u8[4096]{0}', space=vmem, size = 0x1000, scoped, tag = 'input window, operand 2']
    #allocation6 [shape = 's32[2]{0}', space=sflag, size = 0x8, scoped, tag = 'scoped memory for eeg_forward.4']
    %8 = vsyncpa [#allocation4], 0
    %s9 = scalar_lea.sflag [#allocation4], 1
    %10 = vsyncpa %s9, 0
    %11 = vsyncpa [#allocation6], 0
    %s12 = scalar_lea.sflag [#allocation6], 1
    %13 = vsyncpa %s12, 0
    loop: start=0, step=1, limit=4
    $region2: #{eeg_forward.4} parent=1 // loop_pre_header
      _
    $region3: #{eeg_forward.4} parent=1 // loop_header
      %s15 = sphi 0, %s19
      %p16 = scmp.ge.s32.totalorder %s15, 4
      %s22 = sphi 0, %s34
      %s23 = sphi 0, %s30
      %s24 = sphi 0, %s22
      %s25 = sphi 0, %s23
      %s26 = sphi 0, %s24
      %s27 = sphi 0, %s25
      %s37 = sphi 0, %s39
      %s40 = sphi 0, %s37
      %s41 = sphi 0, %s40
      %s57 = sphi 0, %s41
      %s65 = sphi 0, %s67
      %s68 = sphi 0, %s65
      %s69 = sphi 0, %s68
      %s85 = sphi 0, %s69
      %s91 = sphi 0, %s93
      %s94 = sphi 0, %s91
      %s95 = sphi 0, %s94
      %s111 = sphi 0, %s95
      %s117 = sphi 0, %s119
      %s120 = sphi 0, %s117
      %s121 = sphi 0, %s120
      %s137 = sphi 0, %s121
    $region4: #{eeg_forward.4} parent=1 // loop_header_branch
      %18 = sbr.rel (%p16) target = $region8
    $region5: #{eeg_forward.4} parent=1 // loop_body
      %s20 = ssub.s32 %s15, 1
      %s21 = ssub.s32 %s15, 2
      %s28 = sadd.s32 1, %s23
      %p29 = scmp.ge.s32.totalorder %s28, 1
      %s30 = scalar_select %p29, 0, %s28
      %s31 = sadd.s32 1, %s22
      %s32 = scalar_select %p29, %s31, %s22
      %p33 = scmp.ge.s32.totalorder %s32, 2
      %s34 = scalar_select %p33, 0, %s32
      %s35 = ssub.s32 %s23, %s30
      %p36 = scmp.eq.s32.totalorder %s35, 0
      %s38 = sadd.s32 %s37, 1
      %s39 = scalar_select %p36, %s37, %s38
      %p42 = pneg %p36
      %p43 = scmp.eq.s32.totalorder %s15, 1
      %p44 = por %p42, %p43
      %p45 = scmp.ne.s32.totalorder %s37, %s40
      %p46 = scmp.eq.s32.totalorder %s15, 0
      %p47 = por %p45, %p46
      %p48 = scmp.ne.s32.totalorder %s37, %s40
      %p49 = scmp.eq.s32.totalorder %s20, 1
      %p50 = por %p48, %p49
      %p51 = scmp.ne.s32.totalorder %s40, %s41
      %p52 = scmp.eq.s32.totalorder %s20, 0
      %p53 = por %p51, %p52
      %p54 = scmp.ne.s32.totalorder %s40, %s41
      %p55 = scmp.eq.s32.totalorder %s21, 1
      %p56 = por %p54, %p55
      %p58 = scmp.ne.s32.totalorder %s41, %s57
      %p59 = scmp.eq.s32.totalorder %s21, 0
      %p60 = por %p58, %p59
      %s61 = ssub.s32 %s23, %s30
      %s62 = ssub.s32 %s22, %s34
      %s63 = sor.u32 %s61, %s62
      %p64 = scmp.eq.s32.totalorder %s63, 0
      %s66 = sadd.s32 %s65, 1
      %s67 = scalar_select %p64, %s65, %s66
      %p70 = pneg %p64
      %p71 = scmp.eq.s32.totalorder %s15, 1
      %p72 = por %p70, %p71
      %p73 = scmp.ne.s32.totalorder %s65, %s68
      %p74 = scmp.eq.s32.totalorder %s15, 0
      %p75 = por %p73, %p74
      %p76 = scmp.ne.s32.totalorder %s65, %s68
      %p77 = scmp.eq.s32.totalorder %s20, 1
      %p78 = por %p76, %p77
      %p79 = scmp.ne.s32.totalorder %s68, %s69
      %p80 = scmp.eq.s32.totalorder %s20, 0
      %p81 = por %p79, %p80
      %p82 = scmp.ne.s32.totalorder %s68, %s69
      %p83 = scmp.eq.s32.totalorder %s21, 1
      %p84 = por %p82, %p83
      %p86 = scmp.ne.s32.totalorder %s69, %s85
      %p87 = scmp.eq.s32.totalorder %s21, 0
      %p88 = por %p86, %p87
      %s89 = ssub.s32 %s22, %s34
      %p90 = scmp.eq.s32.totalorder %s89, 0
      %s92 = sadd.s32 %s91, 1
      %s93 = scalar_select %p90, %s91, %s92
      %p96 = pneg %p90
      %p97 = scmp.eq.s32.totalorder %s15, 1
      %p98 = por %p96, %p97
      %p99 = scmp.ne.s32.totalorder %s91, %s94
      %p100 = scmp.eq.s32.totalorder %s15, 0
      %p101 = por %p99, %p100
      %p102 = scmp.ne.s32.totalorder %s91, %s94
      %p103 = scmp.eq.s32.totalorder %s20, 1
      %p104 = por %p102, %p103
      %p105 = scmp.ne.s32.totalorder %s94, %s95
      %p106 = scmp.eq.s32.totalorder %s20, 0
      %p107 = por %p105, %p106
      %p108 = scmp.ne.s32.totalorder %s94, %s95
      %p109 = scmp.eq.s32.totalorder %s21, 1
      %p110 = por %p108, %p109
      %p112 = scmp.ne.s32.totalorder %s95, %s111
      %p113 = scmp.eq.s32.totalorder %s21, 0
      %p114 = por %p112, %p113
      %s115 = ssub.s32 %s22, %s34
      %p116 = scmp.eq.s32.totalorder %s115, 0
      %s118 = sadd.s32 %s117, 1
      %s119 = scalar_select %p116, %s117, %s118
      %p122 = pneg %p116
      %p123 = scmp.eq.s32.totalorder %s15, 1
      %p124 = por %p122, %p123
      %p125 = scmp.ne.s32.totalorder %s117, %s120
      %p126 = scmp.eq.s32.totalorder %s15, 0
      %p127 = por %p125, %p126
      %p128 = scmp.ne.s32.totalorder %s117, %s120
      %p129 = scmp.eq.s32.totalorder %s20, 1
      %p130 = por %p128, %p129
      %p131 = scmp.ne.s32.totalorder %s120, %s121
      %p132 = scmp.eq.s32.totalorder %s20, 0
      %p133 = por %p131, %p132
      %p134 = scmp.ne.s32.totalorder %s120, %s121
      %p135 = scmp.eq.s32.totalorder %s21, 1
      %p136 = por %p134, %p135
      %p138 = scmp.ne.s32.totalorder %s121, %s137
      %p139 = scmp.eq.s32.totalorder %s21, 0
      %p140 = por %p138, %p139
      %p141 = scmp.le.s32.totalorder 1, %s15
      %p142 = scmp.lt.s32.totalorder %s15, 3
      %p143 = pnand %p141, %p142
      %p144 = pneg %p143
      // Predicated region
      $region9: #{eeg_forward.4} parent=5 // pred_check
        _
      $region10: #{eeg_forward.4} parent=5 // pred_check_branch
        %146 = sbr.rel (%p143) target = $region12
      $region11: #{eeg_forward.4} parent=5 // pred_region
        %s147 = ssub.s32 %s15, 1
        // Predicated region
        $region13: #{eeg_forward.4} parent=11 // pred_check
          %p148 = pneg %p53
        $region14: #{eeg_forward.4} parent=11 // pred_check_branch
          %150 = sbr.rel (%p148) target = $region16
        $region15: #{eeg_forward.4} parent=11 // pred_region
          %s151 = smul.u32 16, %s25
          %p152 = scmp.lt.s32.totalorder %s151, 15
          %s153 = scalar_select %p152, %s151, 15
          %s154 = scalar_lea.vmem %s0, %s153
          %s155 = smul.u32 16, %s25
        $region16: #{eeg_forward.4} parent=11 // pred_fallthru
          _
      $region12: #{eeg_forward.4} parent=5 // pred_fallthru
        _
      %p156 = scmp.lt.s32.totalorder %s15, 2
      // Predicated region
      $region17: #{eeg_forward.4} parent=5 // pred_check
        %p157 = pneg %p156
      $region18: #{eeg_forward.4} parent=5 // pred_check_branch
        %159 = sbr.rel (%p157) target = $region20
      $region19: #{eeg_forward.4} parent=5 // pred_region
        // Predicated region
        $region21: #{eeg_forward.4} parent=19 // pred_check
          %p160 = pneg %p75
        $region22: #{eeg_forward.4} parent=19 // pred_check_branch
          %162 = sbr.rel (%p160) target = $region24
        $region23: #{eeg_forward.4} parent=19 // pred_region
          %s163 = sand.u32 %s65, 1
          %s164 = scalar_lea.sflag [#allocation4], %s163
          %s165 = sand.u32 %s65, 1
          %s166 = smul.addr %s165, 4096
          %s167 = scalar_lea.vmem [#allocation3], %s166
          %s168 = smul.u32 256, %s23
          %s169 = smul.u32 4, %s22
          %s171 = ssub.s32 65536, 65536
          %172 = vsyncadd %s164, %s171
          %s173 = smul.addr %s168, 8
          %s174 = sadd.s32 %s169, %s173
          %s175 = smul.addr %s174, 64
          %s176 = scalar_lea.hbm %s1, %s175
          %s177 = sshll.u32 %s167, 4
          %s178 = int_to_ptr.vmem [resolvable:$true] %s177
          %183 = dma.hbm_to_vmem [thread:$0]  %s176, 65536, %s178, %s164, 512, 256, 16
        $region24: #{eeg_forward.4} parent=19 // pred_fallthru
          _
        // Predicated region
        $region25: #{eeg_forward.4} parent=19 // pred_check
          %p184 = pneg %p101
        $region26: #{eeg_forward.4} parent=19 // pred_check_branch
          %186 = sbr.rel (%p184) target = $region28
        $region27: #{eeg_forward.4} parent=19 // pred_region
          %s187 = sand.u32 %s91, 1
          %s188 = scalar_lea.sflag [#allocation6], %s187
          %s189 = sand.u32 %s91, 1
          %s190 = smul.addr %s189, 4
          %s191 = scalar_lea.vmem [#allocation5], %s190
          %s192 = smul.u32 4, %s22
          %s194 = ssub.s32 64, 64
          %195 = vsyncadd %s188, %s194
          %s196 = smul.addr %s192, 16
          %s197 = scalar_lea.hbm %s2, %s196
          %s199 = sshll.u32 %s191, 4
          %s200 = int_to_ptr.vmem [resolvable:$true] %s199
          %202 = dma.hbm_to_vmem [thread:$0]  %s197, 64, %s200, %s188
        $region28: #{eeg_forward.4} parent=19 // pred_fallthru
          _
      $region20: #{eeg_forward.4} parent=5 // pred_fallthru
        _
      %p203 = scmp.le.s32.totalorder 1, %s15
      %p204 = scmp.lt.s32.totalorder %s15, 3
      %p205 = pnand %p203, %p204
      %p206 = pneg %p205
      // Predicated region
      $region29: #{eeg_forward.4} parent=5 // pred_check
        _
      $region30: #{eeg_forward.4} parent=5 // pred_check_branch
        %208 = sbr.rel (%p205) target = $region32
      $region31: #{eeg_forward.4} parent=5 // pred_region
        %s209 = ssub.s32 %s15, 1
        %s210 = sand.u32 %s68, 1
        %s211 = scalar_lea.sflag [#allocation4], %s210
        %s212 = sand.u32 %s68, 1
        %s213 = smul.addr %s212, 4096
        %s214 = scalar_lea.vmem [#allocation3], %s213
        // Predicated region
        $region33: #{eeg_forward.4} parent=31 // pred_check
          %p215 = pneg %p81
        $region34: #{eeg_forward.4} parent=31 // pred_check_branch
          %217 = sbr.rel (%p215) target = $region36
        $region35: #{eeg_forward.4} parent=31 // pred_region
          %218 = dma.done %s211, 65536
        $region36: #{eeg_forward.4} parent=31 // pred_fallthru
          _
        %s219 = sand.u32 %s94, 1
        %s220 = scalar_lea.sflag [#allocation6], %s219
        %s221 = sand.u32 %s94, 1
        %s222 = smul.addr %s221, 4
        %s223 = scalar_lea.vmem [#allocation5], %s222
        // Predicated region
        $region37: #{eeg_forward.4} parent=31 // pred_check
          %p224 = pneg %p107
        $region38: #{eeg_forward.4} parent=31 // pred_check_branch
          %226 = sbr.rel (%p224) target = $region40
        $region39: #{eeg_forward.4} parent=31 // pred_region
          %227 = dma.done %s220, 64
        $region40: #{eeg_forward.4} parent=31 // pred_fallthru
          _
        %s228 = smul.u32 16, %s25
        %p229 = scmp.lt.s32.totalorder %s228, 15
        %s230 = scalar_select %p229, %s228, 15
        %s231 = scalar_lea.vmem %s0, %s230
        %p232 = pneg %p53
        %p233 = pneg %p50
        %s234 = sand.u32 %s68, 1
        %s235 = scalar_lea.sflag [#allocation4], %s234
        %s236 = sand.u32 %s68, 1
        %s237 = smul.addr %s236, 4096
        %s238 = scalar_lea.vmem [#allocation3], %s237
        %p239 = pneg %p81
        %p240 = pneg %p78
        %s241 = sand.u32 %s94, 1
        %s242 = scalar_lea.sflag [#allocation6], %s241
        %s243 = sand.u32 %s94, 1
        %s244 = smul.addr %s243, 4
        %s245 = scalar_lea.vmem [#allocation5], %s244
        %p246 = pneg %p107
        %p247 = pneg %p104
        %p248 = pneg %p133
        %p249 = pneg %p130
        %s250 = smul.u32 4, %s24
        %p251 = scmp.lt.s32.totalorder %s250, 7
        %s252 = scalar_select %p251, %s250, 7
        %s253 = smul.addr %s252, 2
        %s254 = scalar_lea.vmem %s3, %s253
        %s255 = smul.u32 16, %s25
        %p256 = scmp.lt.s32.totalorder %s255, 15
        %s257 = scalar_select %p256, %s255, 15
        %s258 = scalar_lea.vmem %s0, %s257
        %s259 = smul.u32 16, %s25
        %s260 = smul.u32 256, %s25
        %s261 = smul.u32 4, %s24
        %s262 = smul.u32 4, %s24
        %s263 = smul.u32 4, %s24
        %p264 = scmp.lt.s32.totalorder %s263, 7
        %s265 = scalar_select %p264, %s263, 7
        %s266 = smul.addr %s265, 2
        %s267 = scalar_lea.vmem %s3, %s266
        %s268 = smul.u32 4, %s24
        %p269 = scmp.eq.s32.totalorder %s25, 0
        // Predicated region
        $region41: #{eeg_forward.4} parent=31 // pred_check
          %p270 = pneg %p269
        $region42: #{eeg_forward.4} parent=31 // pred_check_branch
          %272 = sbr.rel (%p270) target = $region44
        $region43: #{eeg_forward.4} parent=31 // pred_region
          %273 = vst [vmem:[#allocation2] sm:$0xff] 0.0
        $region44: #{eeg_forward.4} parent=31 // pred_fallthru
          _
        %v274 = vld [vmem:[#allocation2] sm:$0xff]
        %v275 = vld [vmem:[%s258] sm:$0xff]
        %v276 = vld [vmem:[%s258 + $0x8] sm:$0xff]
        %v277 = vld [vmem:[%s214] sm:$0xff]
        %v278 = vld [vmem:[%s214 + $0x8] sm:$0xff]
        %v279 = vld [vmem:[%s214 + $0x10] sm:$0xff]
        %v280 = vld [vmem:[%s214 + $0x18] sm:$0xff]
        %v281 = vld [vmem:[%s214 + $0x20] sm:$0xff]
        %v282 = vld [vmem:[%s214 + $0x28] sm:$0xff]
        %v283 = vld [vmem:[%s214 + $0x30] sm:$0xff]
        %v284 = vld [vmem:[%s214 + $0x38] sm:$0xff]
        %v285 = vld [vmem:[%s214 + $0x40] sm:$0xff]
        %v286 = vld [vmem:[%s214 + $0x48] sm:$0xff]
        %v287 = vld [vmem:[%s214 + $0x50] sm:$0xff]
        %v288 = vld [vmem:[%s214 + $0x58] sm:$0xff]
        %v289 = vld [vmem:[%s214 + $0x60] sm:$0xff]
        %v290 = vld [vmem:[%s214 + $0x68] sm:$0xff]
        %v291 = vld [vmem:[%s214 + $0x70] sm:$0xff]
        %v292 = vld [vmem:[%s214 + $0x78] sm:$0xff]
        %v293 = vld [vmem:[%s214 + $0x80] sm:$0xff]
        %v294 = vld [vmem:[%s214 + $0x88] sm:$0xff]
        %v295 = vld [vmem:[%s214 + $0x90] sm:$0xff]
        %v296 = vld [vmem:[%s214 + $0x98] sm:$0xff]
        %v297 = vld [vmem:[%s214 + $0xa0] sm:$0xff]
        %v298 = vld [vmem:[%s214 + $0xa8] sm:$0xff]
        %v299 = vld [vmem:[%s214 + $0xb0] sm:$0xff]
        %v300 = vld [vmem:[%s214 + $0xb8] sm:$0xff]
        %v301 = vld [vmem:[%s214 + $0xc0] sm:$0xff]
        %v302 = vld [vmem:[%s214 + $0xc8] sm:$0xff]
        %v303 = vld [vmem:[%s214 + $0xd0] sm:$0xff]
        %v304 = vld [vmem:[%s214 + $0xd8] sm:$0xff]
        %v305 = vld [vmem:[%s214 + $0xe0] sm:$0xff]
        %v306 = vld [vmem:[%s214 + $0xe8] sm:$0xff]
        %v307 = vld [vmem:[%s214 + $0xf0] sm:$0xff]
        %v308 = vld [vmem:[%s214 + $0xf8] sm:$0xff]
        %v309 = vld [vmem:[%s214 + $0x100] sm:$0xff]
        %v310 = vld [vmem:[%s214 + $0x108] sm:$0xff]
        %v311 = vld [vmem:[%s214 + $0x110] sm:$0xff]
        %v312 = vld [vmem:[%s214 + $0x118] sm:$0xff]
        %v313 = vld [vmem:[%s214 + $0x120] sm:$0xff]
        %v314 = vld [vmem:[%s214 + $0x128] sm:$0xff]
        %v315 = vld [vmem:[%s214 + $0x130] sm:$0xff]
        %v316 = vld [vmem:[%s214 + $0x138] sm:$0xff]
        %v317 = vld [vmem:[%s214 + $0x140] sm:$0xff]
        %v318 = vld [vmem:[%s214 + $0x148] sm:$0xff]
        %v319 = vld [vmem:[%s214 + $0x150] sm:$0xff]
        %v320 = vld [vmem:[%s214 + $0x158] sm:$0xff]
        %v321 = vld [vmem:[%s214 + $0x160] sm:$0xff]
        %v322 = vld [vmem:[%s214 + $0x168] sm:$0xff]
        %v323 = vld [vmem:[%s214 + $0x170] sm:$0xff]
        %v324 = vld [vmem:[%s214 + $0x178] sm:$0xff]
        %v325 = vld [vmem:[%s214 + $0x180] sm:$0xff]
        %v326 = vld [vmem:[%s214 + $0x188] sm:$0xff]
        %v327 = vld [vmem:[%s214 + $0x190] sm:$0xff]
        %v328 = vld [vmem:[%s214 + $0x198] sm:$0xff]
        %v329 = vld [vmem:[%s214 + $0x1a0] sm:$0xff]
        %v330 = vld [vmem:[%s214 + $0x1a8] sm:$0xff]
        %v331 = vld [vmem:[%s214 + $0x1b0] sm:$0xff]
        %v332 = vld [vmem:[%s214 + $0x1b8] sm:$0xff]
        %v333 = vld [vmem:[%s214 + $0x1c0] sm:$0xff]
        %v334 = vld [vmem:[%s214 + $0x1c8] sm:$0xff]
        %v335 = vld [vmem:[%s214 + $0x1d0] sm:$0xff]
        %v336 = vld [vmem:[%s214 + $0x1d8] sm:$0xff]
        %v337 = vld [vmem:[%s214 + $0x1e0] sm:$0xff]
        %v338 = vld [vmem:[%s214 + $0x1e8] sm:$0xff]
        %v339 = vld [vmem:[%s214 + $0x1f0] sm:$0xff]
        %v340 = vld [vmem:[%s214 + $0x1f8] sm:$0xff]
        %v341 = vld [vmem:[%s214 + $0x200] sm:$0xff]
        %v342 = vld [vmem:[%s214 + $0x208] sm:$0xff]
        %v343 = vld [vmem:[%s214 + $0x210] sm:$0xff]
        %v344 = vld [vmem:[%s214 + $0x218] sm:$0xff]
        %v345 = vld [vmem:[%s214 + $0x220] sm:$0xff]
        %v346 = vld [vmem:[%s214 + $0x228] sm:$0xff]
        %v347 = vld [vmem:[%s214 + $0x230] sm:$0xff]
        %v348 = vld [vmem:[%s214 + $0x238] sm:$0xff]
        %v349 = vld [vmem:[%s214 + $0x240] sm:$0xff]
        %v350 = vld [vmem:[%s214 + $0x248] sm:$0xff]
        %v351 = vld [vmem:[%s214 + $0x250] sm:$0xff]
        %v352 = vld [vmem:[%s214 + $0x258] sm:$0xff]
        %v353 = vld [vmem:[%s214 + $0x260] sm:$0xff]
        %v354 = vld [vmem:[%s214 + $0x268] sm:$0xff]
        %v355 = vld [vmem:[%s214 + $0x270] sm:$0xff]
        %v356 = vld [vmem:[%s214 + $0x278] sm:$0xff]
        %v357 = vld [vmem:[%s214 + $0x280] sm:$0xff]
        %v358 = vld [vmem:[%s214 + $0x288] sm:$0xff]
        %v359 = vld [vmem:[%s214 + $0x290] sm:$0xff]
        %v360 = vld [vmem:[%s214 + $0x298] sm:$0xff]
        %v361 = vld [vmem:[%s214 + $0x2a0] sm:$0xff]
        %v362 = vld [vmem:[%s214 + $0x2a8] sm:$0xff]
        %v363 = vld [vmem:[%s214 + $0x2b0] sm:$0xff]
        %v364 = vld [vmem:[%s214 + $0x2b8] sm:$0xff]
        %v365 = vld [vmem:[%s214 + $0x2c0] sm:$0xff]
        %v366 = vld [vmem:[%s214 + $0x2c8] sm:$0xff]
        %v367 = vld [vmem:[%s214 + $0x2d0] sm:$0xff]
        %v368 = vld [vmem:[%s214 + $0x2d8] sm:$0xff]
        %v369 = vld [vmem:[%s214 + $0x2e0] sm:$0xff]
        %v370 = vld [vmem:[%s214 + $0x2e8] sm:$0xff]
        %v371 = vld [vmem:[%s214 + $0x2f0] sm:$0xff]
        %v372 = vld [vmem:[%s214 + $0x2f8] sm:$0xff]
        %v373 = vld [vmem:[%s214 + $0x300] sm:$0xff]
        %v374 = vld [vmem:[%s214 + $0x308] sm:$0xff]
        %v375 = vld [vmem:[%s214 + $0x310] sm:$0xff]
        %v376 = vld [vmem:[%s214 + $0x318] sm:$0xff]
        %v377 = vld [vmem:[%s214 + $0x320] sm:$0xff]
        %v378 = vld [vmem:[%s214 + $0x328] sm:$0xff]
        %v379 = vld [vmem:[%s214 + $0x330] sm:$0xff]
        %v380 = vld [vmem:[%s214 + $0x338] sm:$0xff]
        %v381 = vld [vmem:[%s214 + $0x340] sm:$0xff]
        %v382 = vld [vmem:[%s214 + $0x348] sm:$0xff]
        %v383 = vld [vmem:[%s214 + $0x350] sm:$0xff]
        %v384 = vld [vmem:[%s214 + $0x358] sm:$0xff]
        %v385 = vld [vmem:[%s214 + $0x360] sm:$0xff]
        %v386 = vld [vmem:[%s214 + $0x368] sm:$0xff]
        %v387 = vld [vmem:[%s214 + $0x370] sm:$0xff]
        %v388 = vld [vmem:[%s214 + $0x378] sm:$0xff]
        %v389 = vld [vmem:[%s214 + $0x380] sm:$0xff]
        %v390 = vld [vmem:[%s214 + $0x388] sm:$0xff]
        %v391 = vld [vmem:[%s214 + $0x390] sm:$0xff]
        %v392 = vld [vmem:[%s214 + $0x398] sm:$0xff]
        %v393 = vld [vmem:[%s214 + $0x3a0] sm:$0xff]
        %v394 = vld [vmem:[%s214 + $0x3a8] sm:$0xff]
        %v395 = vld [vmem:[%s214 + $0x3b0] sm:$0xff]
        %v396 = vld [vmem:[%s214 + $0x3b8] sm:$0xff]
        %v397 = vld [vmem:[%s214 + $0x3c0] sm:$0xff]
        %v398 = vld [vmem:[%s214 + $0x3c8] sm:$0xff]
        %v399 = vld [vmem:[%s214 + $0x3d0] sm:$0xff]
        %v400 = vld [vmem:[%s214 + $0x3d8] sm:$0xff]
        %v401 = vld [vmem:[%s214 + $0x3e0] sm:$0xff]
        %v402 = vld [vmem:[%s214 + $0x3e8] sm:$0xff]
        %v403 = vld [vmem:[%s214 + $0x3f0] sm:$0xff]
        %v404 = vld [vmem:[%s214 + $0x3f8] sm:$0xff]
        %v405 = vld [vmem:[%s214 + $0x400] sm:$0xff]
        %v406 = vld [vmem:[%s214 + $0x408] sm:$0xff]
        %v407 = vld [vmem:[%s214 + $0x410] sm:$0xff]
        %v408 = vld [vmem:[%s214 + $0x418] sm:$0xff]
        %v409 = vld [vmem:[%s214 + $0x420] sm:$0xff]
        %v410 = vld [vmem:[%s214 + $0x428] sm:$0xff]
        %v411 = vld [vmem:[%s214 + $0x430] sm:$0xff]
        %v412 = vld [vmem:[%s214 + $0x438] sm:$0xff]
        %v413 = vld [vmem:[%s214 + $0x440] sm:$0xff]
        %v414 = vld [vmem:[%s214 + $0x448] sm:$0xff]
        %v415 = vld [vmem:[%s214 + $0x450] sm:$0xff]
        %v416 = vld [vmem:[%s214 + $0x458] sm:$0xff]
        %v417 = vld [vmem:[%s214 + $0x460] sm:$0xff]
        %v418 = vld [vmem:[%s214 + $0x468] sm:$0xff]
        %v419 = vld [vmem:[%s214 + $0x470] sm:$0xff]
        %v420 = vld [vmem:[%s214 + $0x478] sm:$0xff]
        %v421 = vld [vmem:[%s214 + $0x480] sm:$0xff]
        %v422 = vld [vmem:[%s214 + $0x488] sm:$0xff]
        %v423 = vld [vmem:[%s214 + $0x490] sm:$0xff]
        %v424 = vld [vmem:[%s214 + $0x498] sm:$0xff]
        %v425 = vld [vmem:[%s214 + $0x4a0] sm:$0xff]
        %v426 = vld [vmem:[%s214 + $0x4a8] sm:$0xff]
        %v427 = vld [vmem:[%s214 + $0x4b0] sm:$0xff]
        %v428 = vld [vmem:[%s214 + $0x4b8] sm:$0xff]
        %v429 = vld [vmem:[%s214 + $0x4c0] sm:$0xff]
        %v430 = vld [vmem:[%s214 + $0x4c8] sm:$0xff]
        %v431 = vld [vmem:[%s214 + $0x4d0] sm:$0xff]
        %v432 = vld [vmem:[%s214 + $0x4d8] sm:$0xff]
        %v433 = vld [vmem:[%s214 + $0x4e0] sm:$0xff]
        %v434 = vld [vmem:[%s214 + $0x4e8] sm:$0xff]
        %v435 = vld [vmem:[%s214 + $0x4f0] sm:$0xff]
        %v436 = vld [vmem:[%s214 + $0x4f8] sm:$0xff]
        %v437 = vld [vmem:[%s214 + $0x500] sm:$0xff]
        %v438 = vld [vmem:[%s214 + $0x508] sm:$0xff]
        %v439 = vld [vmem:[%s214 + $0x510] sm:$0xff]
        %v440 = vld [vmem:[%s214 + $0x518] sm:$0xff]
        %v441 = vld [vmem:[%s214 + $0x520] sm:$0xff]
        %v442 = vld [vmem:[%s214 + $0x528] sm:$0xff]
        %v443 = vld [vmem:[%s214 + $0x530] sm:$0xff]
        %v444 = vld [vmem:[%s214 + $0x538] sm:$0xff]
        %v445 = vld [vmem:[%s214 + $0x540] sm:$0xff]
        %v446 = vld [vmem:[%s214 + $0x548] sm:$0xff]
        %v447 = vld [vmem:[%s214 + $0x550] sm:$0xff]
        %v448 = vld [vmem:[%s214 + $0x558] sm:$0xff]
        %v449 = vld [vmem:[%s214 + $0x560] sm:$0xff]
        %v450 = vld [vmem:[%s214 + $0x568] sm:$0xff]
        %v451 = vld [vmem:[%s214 + $0x570] sm:$0xff]
        %v452 = vld [vmem:[%s214 + $0x578] sm:$0xff]
        %v453 = vld [vmem:[%s214 + $0x580] sm:$0xff]
        %v454 = vld [vmem:[%s214 + $0x588] sm:$0xff]
        %v455 = vld [vmem:[%s214 + $0x590] sm:$0xff]
        %v456 = vld [vmem:[%s214 + $0x598] sm:$0xff]
        %v457 = vld [vmem:[%s214 + $0x5a0] sm:$0xff]
        %v458 = vld [vmem:[%s214 + $0x5a8] sm:$0xff]
        %v459 = vld [vmem:[%s214 + $0x5b0] sm:$0xff]
        %v460 = vld [vmem:[%s214 + $0x5b8] sm:$0xff]
        %v461 = vld [vmem:[%s214 + $0x5c0] sm:$0xff]
        %v462 = vld [vmem:[%s214 + $0x5c8] sm:$0xff]
        %v463 = vld [vmem:[%s214 + $0x5d0] sm:$0xff]
        %v464 = vld [vmem:[%s214 + $0x5d8] sm:$0xff]
        %v465 = vld [vmem:[%s214 + $0x5e0] sm:$0xff]
        %v466 = vld [vmem:[%s214 + $0x5e8] sm:$0xff]
        %v467 = vld [vmem:[%s214 + $0x5f0] sm:$0xff]
        %v468 = vld [vmem:[%s214 + $0x5f8] sm:$0xff]
        %v469 = vld [vmem:[%s214 + $0x600] sm:$0xff]
        %v470 = vld [vmem:[%s214 + $0x608] sm:$0xff]
        %v471 = vld [vmem:[%s214 + $0x610] sm:$0xff]
        %v472 = vld [vmem:[%s214 + $0x618] sm:$0xff]
        %v473 = vld [vmem:[%s214 + $0x620] sm:$0xff]
        %v474 = vld [vmem:[%s214 + $0x628] sm:$0xff]
        %v475 = vld [vmem:[%s214 + $0x630] sm:$0xff]
        %v476 = vld [vmem:[%s214 + $0x638] sm:$0xff]
        %v477 = vld [vmem:[%s214 + $0x640] sm:$0xff]
        %v478 = vld [vmem:[%s214 + $0x648] sm:$0xff]
        %v479 = vld [vmem:[%s214 + $0x650] sm:$0xff]
        %v480 = vld [vmem:[%s214 + $0x658] sm:$0xff]
        %v481 = vld [vmem:[%s214 + $0x660] sm:$0xff]
        %v482 = vld [vmem:[%s214 + $0x668] sm:$0xff]
        %v483 = vld [vmem:[%s214 + $0x670] sm:$0xff]
        %v484 = vld [vmem:[%s214 + $0x678] sm:$0xff]
        %v485 = vld [vmem:[%s214 + $0x680] sm:$0xff]
        %v486 = vld [vmem:[%s214 + $0x688] sm:$0xff]
        %v487 = vld [vmem:[%s214 + $0x690] sm:$0xff]
        %v488 = vld [vmem:[%s214 + $0x698] sm:$0xff]
        %v489 = vld [vmem:[%s214 + $0x6a0] sm:$0xff]
        %v490 = vld [vmem:[%s214 + $0x6a8] sm:$0xff]
        %v491 = vld [vmem:[%s214 + $0x6b0] sm:$0xff]
        %v492 = vld [vmem:[%s214 + $0x6b8] sm:$0xff]
        %v493 = vld [vmem:[%s214 + $0x6c0] sm:$0xff]
        %v494 = vld [vmem:[%s214 + $0x6c8] sm:$0xff]
        %v495 = vld [vmem:[%s214 + $0x6d0] sm:$0xff]
        %v496 = vld [vmem:[%s214 + $0x6d8] sm:$0xff]
        %v497 = vld [vmem:[%s214 + $0x6e0] sm:$0xff]
        %v498 = vld [vmem:[%s214 + $0x6e8] sm:$0xff]
        %v499 = vld [vmem:[%s214 + $0x6f0] sm:$0xff]
        %v500 = vld [vmem:[%s214 + $0x6f8] sm:$0xff]
        %v501 = vld [vmem:[%s214 + $0x700] sm:$0xff]
        %v502 = vld [vmem:[%s214 + $0x708] sm:$0xff]
        %v503 = vld [vmem:[%s214 + $0x710] sm:$0xff]
        %v504 = vld [vmem:[%s214 + $0x718] sm:$0xff]
        %v505 = vld [vmem:[%s214 + $0x720] sm:$0xff]
        %v506 = vld [vmem:[%s214 + $0x728] sm:$0xff]
        %v507 = vld [vmem:[%s214 + $0x730] sm:$0xff]
        %v508 = vld [vmem:[%s214 + $0x738] sm:$0xff]
        %v509 = vld [vmem:[%s214 + $0x740] sm:$0xff]
        %v510 = vld [vmem:[%s214 + $0x748] sm:$0xff]
        %v511 = vld [vmem:[%s214 + $0x750] sm:$0xff]
        %v512 = vld [vmem:[%s214 + $0x758] sm:$0xff]
        %v513 = vld [vmem:[%s214 + $0x760] sm:$0xff]
        %v514 = vld [vmem:[%s214 + $0x768] sm:$0xff]
        %v515 = vld [vmem:[%s214 + $0x770] sm:$0xff]
        %v516 = vld [vmem:[%s214 + $0x778] sm:$0xff]
        %v517 = vld [vmem:[%s214 + $0x780] sm:$0xff]
        %v518 = vld [vmem:[%s214 + $0x788] sm:$0xff]
        %v519 = vld [vmem:[%s214 + $0x790] sm:$0xff]
        %v520 = vld [vmem:[%s214 + $0x798] sm:$0xff]
        %v521 = vld [vmem:[%s214 + $0x7a0] sm:$0xff]
        %v522 = vld [vmem:[%s214 + $0x7a8] sm:$0xff]
        %v523 = vld [vmem:[%s214 + $0x7b0] sm:$0xff]
        %v524 = vld [vmem:[%s214 + $0x7b8] sm:$0xff]
        %v525 = vld [vmem:[%s214 + $0x7c0] sm:$0xff]
        %v526 = vld [vmem:[%s214 + $0x7c8] sm:$0xff]
        %v527 = vld [vmem:[%s214 + $0x7d0] sm:$0xff]
        %v528 = vld [vmem:[%s214 + $0x7d8] sm:$0xff]
        %v529 = vld [vmem:[%s214 + $0x7e0] sm:$0xff]
        %v530 = vld [vmem:[%s214 + $0x7e8] sm:$0xff]
        %v531 = vld [vmem:[%s214 + $0x7f0] sm:$0xff]
        %v532 = vld [vmem:[%s214 + $0x7f8] sm:$0xff]
        %v533 = vld [vmem:[%s214 + $0x800] sm:$0xff]
        %v534 = vld [vmem:[%s214 + $0x808] sm:$0xff]
        %v535 = vld [vmem:[%s214 + $0x810] sm:$0xff]
        %v536 = vld [vmem:[%s214 + $0x818] sm:$0xff]
        %v537 = vld [vmem:[%s214 + $0x820] sm:$0xff]
        %v538 = vld [vmem:[%s214 + $0x828] sm:$0xff]
        %v539 = vld [vmem:[%s214 + $0x830] sm:$0xff]
        %v540 = vld [vmem:[%s214 + $0x838] sm:$0xff]
        %v541 = vld [vmem:[%s214 + $0x840] sm:$0xff]
        %v542 = vld [vmem:[%s214 + $0x848] sm:$0xff]
        %v543 = vld [vmem:[%s214 + $0x850] sm:$0xff]
        %v544 = vld [vmem:[%s214 + $0x858] sm:$0xff]
        %v545 = vld [vmem:[%s214 + $0x860] sm:$0xff]
        %v546 = vld [vmem:[%s214 + $0x868] sm:$0xff]
        %v547 = vld [vmem:[%s214 + $0x870] sm:$0xff]
        %v548 = vld [vmem:[%s214 + $0x878] sm:$0xff]
        %v549 = vld [vmem:[%s214 + $0x880] sm:$0xff]
        %v550 = vld [vmem:[%s214 + $0x888] sm:$0xff]
        %v551 = vld [vmem:[%s214 + $0x890] sm:$0xff]
        %v552 = vld [vmem:[%s214 + $0x898] sm:$0xff]
        %v553 = vld [vmem:[%s214 + $0x8a0] sm:$0xff]
        %v554 = vld [vmem:[%s214 + $0x8a8] sm:$0xff]
        %v555 = vld [vmem:[%s214 + $0x8b0] sm:$0xff]
        %v556 = vld [vmem:[%s214 + $0x8b8] sm:$0xff]
        %v557 = vld [vmem:[%s214 + $0x8c0] sm:$0xff]
        %v558 = vld [vmem:[%s214 + $0x8c8] sm:$0xff]
        %v559 = vld [vmem:[%s214 + $0x8d0] sm:$0xff]
        %v560 = vld [vmem:[%s214 + $0x8d8] sm:$0xff]
        %v561 = vld [vmem:[%s214 + $0x8e0] sm:$0xff]
        %v562 = vld [vmem:[%s214 + $0x8e8] sm:$0xff]
        %v563 = vld [vmem:[%s214 + $0x8f0] sm:$0xff]
        %v564 = vld [vmem:[%s214 + $0x8f8] sm:$0xff]
        %v565 = vld [vmem:[%s214 + $0x900] sm:$0xff]
        %v566 = vld [vmem:[%s214 + $0x908] sm:$0xff]
        %v567 = vld [vmem:[%s214 + $0x910] sm:$0xff]
        %v568 = vld [vmem:[%s214 + $0x918] sm:$0xff]
        %v569 = vld [vmem:[%s214 + $0x920] sm:$0xff]
        %v570 = vld [vmem:[%s214 + $0x928] sm:$0xff]
        %v571 = vld [vmem:[%s214 + $0x930] sm:$0xff]
        %v572 = vld [vmem:[%s214 + $0x938] sm:$0xff]
        %v573 = vld [vmem:[%s214 + $0x940] sm:$0xff]
        %v574 = vld [vmem:[%s214 + $0x948] sm:$0xff]
        %v575 = vld [vmem:[%s214 + $0x950] sm:$0xff]
        %v576 = vld [vmem:[%s214 + $0x958] sm:$0xff]
        %v577 = vld [vmem:[%s214 + $0x960] sm:$0xff]
        %v578 = vld [vmem:[%s214 + $0x968] sm:$0xff]
        %v579 = vld [vmem:[%s214 + $0x970] sm:$0xff]
        %v580 = vld [vmem:[%s214 + $0x978] sm:$0xff]
        %v581 = vld [vmem:[%s214 + $0x980] sm:$0xff]
        %v582 = vld [vmem:[%s214 + $0x988] sm:$0xff]
        %v583 = vld [vmem:[%s214 + $0x990] sm:$0xff]
        %v584 = vld [vmem:[%s214 + $0x998] sm:$0xff]
        %v585 = vld [vmem:[%s214 + $0x9a0] sm:$0xff]
        %v586 = vld [vmem:[%s214 + $0x9a8] sm:$0xff]
        %v587 = vld [vmem:[%s214 + $0x9b0] sm:$0xff]
        %v588 = vld [vmem:[%s214 + $0x9b8] sm:$0xff]
        %v589 = vld [vmem:[%s214 + $0x9c0] sm:$0xff]
        %v590 = vld [vmem:[%s214 + $0x9c8] sm:$0xff]
        %v591 = vld [vmem:[%s214 + $0x9d0] sm:$0xff]
        %v592 = vld [vmem:[%s214 + $0x9d8] sm:$0xff]
        %v593 = vld [vmem:[%s214 + $0x9e0] sm:$0xff]
        %v594 = vld [vmem:[%s214 + $0x9e8] sm:$0xff]
        %v595 = vld [vmem:[%s214 + $0x9f0] sm:$0xff]
        %v596 = vld [vmem:[%s214 + $0x9f8] sm:$0xff]
        %v597 = vld [vmem:[%s214 + $0xa00] sm:$0xff]
        %v598 = vld [vmem:[%s214 + $0xa08] sm:$0xff]
        %v599 = vld [vmem:[%s214 + $0xa10] sm:$0xff]
        %v600 = vld [vmem:[%s214 + $0xa18] sm:$0xff]
        %v601 = vld [vmem:[%s214 + $0xa20] sm:$0xff]
        %v602 = vld [vmem:[%s214 + $0xa28] sm:$0xff]
        %v603 = vld [vmem:[%s214 + $0xa30] sm:$0xff]
        %v604 = vld [vmem:[%s214 + $0xa38] sm:$0xff]
        %v605 = vld [vmem:[%s214 + $0xa40] sm:$0xff]
        %v606 = vld [vmem:[%s214 + $0xa48] sm:$0xff]
        %v607 = vld [vmem:[%s214 + $0xa50] sm:$0xff]
        %v608 = vld [vmem:[%s214 + $0xa58] sm:$0xff]
        %v609 = vld [vmem:[%s214 + $0xa60] sm:$0xff]
        %v610 = vld [vmem:[%s214 + $0xa68] sm:$0xff]
        %v611 = vld [vmem:[%s214 + $0xa70] sm:$0xff]
        %v612 = vld [vmem:[%s214 + $0xa78] sm:$0xff]
        %v613 = vld [vmem:[%s214 + $0xa80] sm:$0xff]
        %v614 = vld [vmem:[%s214 + $0xa88] sm:$0xff]
        %v615 = vld [vmem:[%s214 + $0xa90] sm:$0xff]
        %v616 = vld [vmem:[%s214 + $0xa98] sm:$0xff]
        %v617 = vld [vmem:[%s214 + $0xaa0] sm:$0xff]
        %v618 = vld [vmem:[%s214 + $0xaa8] sm:$0xff]
        %v619 = vld [vmem:[%s214 + $0xab0] sm:$0xff]
        %v620 = vld [vmem:[%s214 + $0xab8] sm:$0xff]
        %v621 = vld [vmem:[%s214 + $0xac0] sm:$0xff]
        %v622 = vld [vmem:[%s214 + $0xac8] sm:$0xff]
        %v623 = vld [vmem:[%s214 + $0xad0] sm:$0xff]
        %v624 = vld [vmem:[%s214 + $0xad8] sm:$0xff]
        %v625 = vld [vmem:[%s214 + $0xae0] sm:$0xff]
        %v626 = vld [vmem:[%s214 + $0xae8] sm:$0xff]
        %v627 = vld [vmem:[%s214 + $0xaf0] sm:$0xff]
        %v628 = vld [vmem:[%s214 + $0xaf8] sm:$0xff]
        %v629 = vld [vmem:[%s214 + $0xb00] sm:$0xff]
        %v630 = vld [vmem:[%s214 + $0xb08] sm:$0xff]
        %v631 = vld [vmem:[%s214 + $0xb10] sm:$0xff]
        %v632 = vld [vmem:[%s214 + $0xb18] sm:$0xff]
        %v633 = vld [vmem:[%s214 + $0xb20] sm:$0xff]
        %v634 = vld [vmem:[%s214 + $0xb28] sm:$0xff]
        %v635 = vld [vmem:[%s214 + $0xb30] sm:$0xff]
        %v636 = vld [vmem:[%s214 + $0xb38] sm:$0xff]
        %v637 = vld [vmem:[%s214 + $0xb40] sm:$0xff]
        %v638 = vld [vmem:[%s214 + $0xb48] sm:$0xff]
        %v639 = vld [vmem:[%s214 + $0xb50] sm:$0xff]
        %v640 = vld [vmem:[%s214 + $0xb58] sm:$0xff]
        %v641 = vld [vmem:[%s214 + $0xb60] sm:$0xff]
        %v642 = vld [vmem:[%s214 + $0xb68] sm:$0xff]
        %v643 = vld [vmem:[%s214 + $0xb70] sm:$0xff]
        %v644 = vld [vmem:[%s214 + $0xb78] sm:$0xff]
        %v645 = vld [vmem:[%s214 + $0xb80] sm:$0xff]
        %v646 = vld [vmem:[%s214 + $0xb88] sm:$0xff]
        %v647 = vld [vmem:[%s214 + $0xb90] sm:$0xff]
        %v648 = vld [vmem:[%s214 + $0xb98] sm:$0xff]
        %v649 = vld [vmem:[%s214 + $0xba0] sm:$0xff]
        %v650 = vld [vmem:[%s214 + $0xba8] sm:$0xff]
        %v651 = vld [vmem:[%s214 + $0xbb0] sm:$0xff]
        %v652 = vld [vmem:[%s214 + $0xbb8] sm:$0xff]
        %v653 = vld [vmem:[%s214 + $0xbc0] sm:$0xff]
        %v654 = vld [vmem:[%s214 + $0xbc8] sm:$0xff]
        %v655 = vld [vmem:[%s214 + $0xbd0] sm:$0xff]
        %v656 = vld [vmem:[%s214 + $0xbd8] sm:$0xff]
        %v657 = vld [vmem:[%s214 + $0xbe0] sm:$0xff]
        %v658 = vld [vmem:[%s214 + $0xbe8] sm:$0xff]
        %v659 = vld [vmem:[%s214 + $0xbf0] sm:$0xff]
        %v660 = vld [vmem:[%s214 + $0xbf8] sm:$0xff]
        %v661 = vld [vmem:[%s214 + $0xc00] sm:$0xff]
        %v662 = vld [vmem:[%s214 + $0xc08] sm:$0xff]
        %v663 = vld [vmem:[%s214 + $0xc10] sm:$0xff]
        %v664 = vld [vmem:[%s214 + $0xc18] sm:$0xff]
        %v665 = vld [vmem:[%s214 + $0xc20] sm:$0xff]
        %v666 = vld [vmem:[%s214 + $0xc28] sm:$0xff]
        %v667 = vld [vmem:[%s214 + $0xc30] sm:$0xff]
        %v668 = vld [vmem:[%s214 + $0xc38] sm:$0xff]
        %v669 = vld [vmem:[%s214 + $0xc40] sm:$0xff]
        %v670 = vld [vmem:[%s214 + $0xc48] sm:$0xff]
        %v671 = vld [vmem:[%s214 + $0xc50] sm:$0xff]
        %v672 = vld [vmem:[%s214 + $0xc58] sm:$0xff]
        %v673 = vld [vmem:[%s214 + $0xc60] sm:$0xff]
        %v674 = vld [vmem:[%s214 + $0xc68] sm:$0xff]
        %v675 = vld [vmem:[%s214 + $0xc70] sm:$0xff]
        %v676 = vld [vmem:[%s214 + $0xc78] sm:$0xff]
        %v677 = vld [vmem:[%s214 + $0xc80] sm:$0xff]
        %v678 = vld [vmem:[%s214 + $0xc88] sm:$0xff]
        %v679 = vld [vmem:[%s214 + $0xc90] sm:$0xff]
        %v680 = vld [vmem:[%s214 + $0xc98] sm:$0xff]
        %v681 = vld [vmem:[%s214 + $0xca0] sm:$0xff]
        %v682 = vld [vmem:[%s214 + $0xca8] sm:$0xff]
        %v683 = vld [vmem:[%s214 + $0xcb0] sm:$0xff]
        %v684 = vld [vmem:[%s214 + $0xcb8] sm:$0xff]
        %v685 = vld [vmem:[%s214 + $0xcc0] sm:$0xff]
        %v686 = vld [vmem:[%s214 + $0xcc8] sm:$0xff]
        %v687 = vld [vmem:[%s214 + $0xcd0] sm:$0xff]
        %v688 = vld [vmem:[%s214 + $0xcd8] sm:$0xff]
        %v689 = vld [vmem:[%s214 + $0xce0] sm:$0xff]
        %v690 = vld [vmem:[%s214 + $0xce8] sm:$0xff]
        %v691 = vld [vmem:[%s214 + $0xcf0] sm:$0xff]
        %v692 = vld [vmem:[%s214 + $0xcf8] sm:$0xff]
        %v693 = vld [vmem:[%s214 + $0xd00] sm:$0xff]
        %v694 = vld [vmem:[%s214 + $0xd08] sm:$0xff]
        %v695 = vld [vmem:[%s214 + $0xd10] sm:$0xff]
        %v696 = vld [vmem:[%s214 + $0xd18] sm:$0xff]
        %v697 = vld [vmem:[%s214 + $0xd20] sm:$0xff]
        %v698 = vld [vmem:[%s214 + $0xd28] sm:$0xff]
        %v699 = vld [vmem:[%s214 + $0xd30] sm:$0xff]
        %v700 = vld [vmem:[%s214 + $0xd38] sm:$0xff]
        %v701 = vld [vmem:[%s214 + $0xd40] sm:$0xff]
        %v702 = vld [vmem:[%s214 + $0xd48] sm:$0xff]
        %v703 = vld [vmem:[%s214 + $0xd50] sm:$0xff]
        %v704 = vld [vmem:[%s214 + $0xd58] sm:$0xff]
        %v705 = vld [vmem:[%s214 + $0xd60] sm:$0xff]
        %v706 = vld [vmem:[%s214 + $0xd68] sm:$0xff]
        %v707 = vld [vmem:[%s214 + $0xd70] sm:$0xff]
        %v708 = vld [vmem:[%s214 + $0xd78] sm:$0xff]
        %v709 = vld [vmem:[%s214 + $0xd80] sm:$0xff]
        %v710 = vld [vmem:[%s214 + $0xd88] sm:$0xff]
        %v711 = vld [vmem:[%s214 + $0xd90] sm:$0xff]
        %v712 = vld [vmem:[%s214 + $0xd98] sm:$0xff]
        %v713 = vld [vmem:[%s214 + $0xda0] sm:$0xff]
        %v714 = vld [vmem:[%s214 + $0xda8] sm:$0xff]
        %v715 = vld [vmem:[%s214 + $0xdb0] sm:$0xff]
        %v716 = vld [vmem:[%s214 + $0xdb8] sm:$0xff]
        %v717 = vld [vmem:[%s214 + $0xdc0] sm:$0xff]
        %v718 = vld [vmem:[%s214 + $0xdc8] sm:$0xff]
        %v719 = vld [vmem:[%s214 + $0xdd0] sm:$0xff]
        %v720 = vld [vmem:[%s214 + $0xdd8] sm:$0xff]
        %v721 = vld [vmem:[%s214 + $0xde0] sm:$0xff]
        %v722 = vld [vmem:[%s214 + $0xde8] sm:$0xff]
        %v723 = vld [vmem:[%s214 + $0xdf0] sm:$0xff]
        %v724 = vld [vmem:[%s214 + $0xdf8] sm:$0xff]
        %v725 = vld [vmem:[%s214 + $0xe00] sm:$0xff]
        %v726 = vld [vmem:[%s214 + $0xe08] sm:$0xff]
        %v727 = vld [vmem:[%s214 + $0xe10] sm:$0xff]
        %v728 = vld [vmem:[%s214 + $0xe18] sm:$0xff]
        %v729 = vld [vmem:[%s214 + $0xe20] sm:$0xff]
        %v730 = vld [vmem:[%s214 + $0xe28] sm:$0xff]
        %v731 = vld [vmem:[%s214 + $0xe30] sm:$0xff]
        %v732 = vld [vmem:[%s214 + $0xe38] sm:$0xff]
        %v733 = vld [vmem:[%s214 + $0xe40] sm:$0xff]
        %v734 = vld [vmem:[%s214 + $0xe48] sm:$0xff]
        %v735 = vld [vmem:[%s214 + $0xe50] sm:$0xff]
        %v736 = vld [vmem:[%s214 + $0xe58] sm:$0xff]
        %v737 = vld [vmem:[%s214 + $0xe60] sm:$0xff]
        %v738 = vld [vmem:[%s214 + $0xe68] sm:$0xff]
        %v739 = vld [vmem:[%s214 + $0xe70] sm:$0xff]
        %v740 = vld [vmem:[%s214 + $0xe78] sm:$0xff]
        %v741 = vld [vmem:[%s214 + $0xe80] sm:$0xff]
        %v742 = vld [vmem:[%s214 + $0xe88] sm:$0xff]
        %v743 = vld [vmem:[%s214 + $0xe90] sm:$0xff]
        %v744 = vld [vmem:[%s214 + $0xe98] sm:$0xff]
        %v745 = vld [vmem:[%s214 + $0xea0] sm:$0xff]
        %v746 = vld [vmem:[%s214 + $0xea8] sm:$0xff]
        %v747 = vld [vmem:[%s214 + $0xeb0] sm:$0xff]
        %v748 = vld [vmem:[%s214 + $0xeb8] sm:$0xff]
        %v749 = vld [vmem:[%s214 + $0xec0] sm:$0xff]
        %v750 = vld [vmem:[%s214 + $0xec8] sm:$0xff]
        %v751 = vld [vmem:[%s214 + $0xed0] sm:$0xff]
        %v752 = vld [vmem:[%s214 + $0xed8] sm:$0xff]
        %v753 = vld [vmem:[%s214 + $0xee0] sm:$0xff]
        %v754 = vld [vmem:[%s214 + $0xee8] sm:$0xff]
        %v755 = vld [vmem:[%s214 + $0xef0] sm:$0xff]
        %v756 = vld [vmem:[%s214 + $0xef8] sm:$0xff]
        %v757 = vld [vmem:[%s214 + $0xf00] sm:$0xff]
        %v758 = vld [vmem:[%s214 + $0xf08] sm:$0xff]
        %v759 = vld [vmem:[%s214 + $0xf10] sm:$0xff]
        %v760 = vld [vmem:[%s214 + $0xf18] sm:$0xff]
        %v761 = vld [vmem:[%s214 + $0xf20] sm:$0xff]
        %v762 = vld [vmem:[%s214 + $0xf28] sm:$0xff]
        %v763 = vld [vmem:[%s214 + $0xf30] sm:$0xff]
        %v764 = vld [vmem:[%s214 + $0xf38] sm:$0xff]
        %v765 = vld [vmem:[%s214 + $0xf40] sm:$0xff]
        %v766 = vld [vmem:[%s214 + $0xf48] sm:$0xff]
        %v767 = vld [vmem:[%s214 + $0xf50] sm:$0xff]
        %v768 = vld [vmem:[%s214 + $0xf58] sm:$0xff]
        %v769 = vld [vmem:[%s214 + $0xf60] sm:$0xff]
        %v770 = vld [vmem:[%s214 + $0xf68] sm:$0xff]
        %v771 = vld [vmem:[%s214 + $0xf70] sm:$0xff]
        %v772 = vld [vmem:[%s214 + $0xf78] sm:$0xff]
        %v773 = vld [vmem:[%s214 + $0xf80] sm:$0xff]
        %v774 = vld [vmem:[%s214 + $0xf88] sm:$0xff]
        %v775 = vld [vmem:[%s214 + $0xf90] sm:$0xff]
        %v776 = vld [vmem:[%s214 + $0xf98] sm:$0xff]
        %v777 = vld [vmem:[%s214 + $0xfa0] sm:$0xff]
        %v778 = vld [vmem:[%s214 + $0xfa8] sm:$0xff]
        %v779 = vld [vmem:[%s214 + $0xfb0] sm:$0xff]
        %v780 = vld [vmem:[%s214 + $0xfb8] sm:$0xff]
        %v781 = vld [vmem:[%s214 + $0xfc0] sm:$0xff]
        %v782 = vld [vmem:[%s214 + $0xfc8] sm:$0xff]
        %v783 = vld [vmem:[%s214 + $0xfd0] sm:$0xff]
        %v784 = vld [vmem:[%s214 + $0xfd8] sm:$0xff]
        %v785 = vld [vmem:[%s214 + $0xfe0] sm:$0xff]
        %v786 = vld [vmem:[%s214 + $0xfe8] sm:$0xff]
        %v787 = vld [vmem:[%s214 + $0xff0] sm:$0xff]
        %v788 = vld [vmem:[%s214 + $0xff8] sm:$0xff]
        %v791 = vcombine.high %v275, %v275
        %v793 = vunpack.c.l.s4 1966171168
        %v794 = vunpack.c.0.s8 %v793
        %v795 = vlaneseq
        %v796 = vshrl.u32 %v795, 7
        %v797 = vsub.s32 %v794, %v796
        %v798 = vrot.slane %v275, %v797
        %v800 = vunpack.c.l.s4 1966171168
        %v801 = vunpack.c.0.s8 %v800
        %v802 = vlaneseq
        %v803 = vshrl.u32 %v802, 7
        %v804 = vsub.s32 %v801, %v803
        %v805 = vrot.slane %v791, %v804
        %v806 = vcombine.high %v798, %v798
        %v807 = vcombine.high %v805, %v805
        %v809 = vunpack.c.l.s4 1966171168
        %v810 = vunpack.c.0.s8 %v809
        %v811 = vlaneseq
        %v812 = vshrl.u32 %v811, 7
        %v813 = vsub.s32 %v810, %v812
        %v814 = vrot.slane %v798, %v813
        %v816 = vunpack.c.l.s4 1966171168
        %v817 = vunpack.c.0.s8 %v816
        %v818 = vlaneseq
        %v819 = vshrl.u32 %v818, 7
        %v820 = vsub.s32 %v817, %v819
        %v821 = vrot.slane %v805, %v820
        %v823 = vunpack.c.l.s4 1966171168
        %v824 = vunpack.c.0.s8 %v823
        %v825 = vlaneseq
        %v826 = vshrl.u32 %v825, 7
        %v827 = vsub.s32 %v824, %v826
        %v828 = vrot.slane %v806, %v827
        %v830 = vunpack.c.l.s4 1966171168
        %v831 = vunpack.c.0.s8 %v830
        %v832 = vlaneseq
        %v833 = vshrl.u32 %v832, 7
        %v834 = vsub.s32 %v831, %v833
        %v835 = vrot.slane %v807, %v834
        %v836 = vcombine.high %v814, %v814
        %v837 = vcombine.high %v821, %v821
        %v838 = vcombine.high %v828, %v828
        %v839 = vcombine.high %v835, %v835
        %v840 = vcombine.high %v276, %v276
        %v842 = vunpack.c.l.s4 1966171168
        %v843 = vunpack.c.0.s8 %v842
        %v844 = vlaneseq
        %v845 = vshrl.u32 %v844, 7
        %v846 = vsub.s32 %v843, %v845
        %v847 = vrot.slane %v276, %v846
        %v849 = vunpack.c.l.s4 1966171168
        %v850 = vunpack.c.0.s8 %v849
        %v851 = vlaneseq
        %v852 = vshrl.u32 %v851, 7
        %v853 = vsub.s32 %v850, %v852
        %v854 = vrot.slane %v840, %v853
        %v855 = vcombine.high %v847, %v847
        %v856 = vcombine.high %v854, %v854
        %v858 = vunpack.c.l.s4 1966171168
        %v859 = vunpack.c.0.s8 %v858
        %v860 = vlaneseq
        %v861 = vshrl.u32 %v860, 7
        %v862 = vsub.s32 %v859, %v861
        %v863 = vrot.slane %v847, %v862
        %v865 = vunpack.c.l.s4 1966171168
        %v866 = vunpack.c.0.s8 %v865
        %v867 = vlaneseq
        %v868 = vshrl.u32 %v867, 7
        %v869 = vsub.s32 %v866, %v868
        %v870 = vrot.slane %v854, %v869
        %v872 = vunpack.c.l.s4 1966171168
        %v873 = vunpack.c.0.s8 %v872
        %v874 = vlaneseq
        %v875 = vshrl.u32 %v874, 7
        %v876 = vsub.s32 %v873, %v875
        %v877 = vrot.slane %v855, %v876
        %v879 = vunpack.c.l.s4 1966171168
        %v880 = vunpack.c.0.s8 %v879
        %v881 = vlaneseq
        %v882 = vshrl.u32 %v881, 7
        %v883 = vsub.s32 %v880, %v882
        %v884 = vrot.slane %v856, %v883
        %v885 = vcombine.high %v863, %v863
        %v886 = vcombine.high %v870, %v870
        %v887 = vcombine.high %v877, %v877
        %v888 = vcombine.high %v884, %v884
        %v1417 = vunpack.c.l.b16 %v277
        %v1418 = vunpack.c.h.b16 %v277
        %v1419 = vunpack.c.l.b16 %v278
        %v1420 = vunpack.c.h.b16 %v278
        %v1421 = vunpack.c.l.b16 %v279
        %v1422 = vunpack.c.h.b16 %v279
        %v1423 = vunpack.c.l.b16 %v280
        %v1424 = vunpack.c.h.b16 %v280
        %v1425 = vunpack.c.l.b16 %v281
        %v1426 = vunpack.c.h.b16 %v281
        %v1427 = vunpack.c.l.b16 %v282
        %v1428 = vunpack.c.h.b16 %v282
        %v1429 = vunpack.c.l.b16 %v283
        %v1430 = vunpack.c.h.b16 %v283
        %v1431 = vunpack.c.l.b16 %v284
        %v1432 = vunpack.c.h.b16 %v284
        %v1433 = vunpack.c.l.b16 %v285
        %v1434 = vunpack.c.h.b16 %v285
        %v1435 = vunpack.c.l.b16 %v286
        %v1436 = vunpack.c.h.b16 %v286
        %v1437 = vunpack.c.l.b16 %v287
        %v1438 = vunpack.c.h.b16 %v287
        %v1439 = vunpack.c.l.b16 %v288
        %v1440 = vunpack.c.h.b16 %v288
        %v1441 = vunpack.c.l.b16 %v289
        %v1442 = vunpack.c.h.b16 %v289
        %v1443 = vunpack.c.l.b16 %v290
        %v1444 = vunpack.c.h.b16 %v290
        %v1445 = vunpack.c.l.b16 %v291
        %v1446 = vunpack.c.h.b16 %v291
        %v1447 = vunpack.c.l.b16 %v292
        %v1448 = vunpack.c.h.b16 %v292
        %v1449 = vunpack.c.l.b16 %v293
        %v1450 = vunpack.c.h.b16 %v293
        %v1451 = vunpack.c.l.b16 %v294
        %v1452 = vunpack.c.h.b16 %v294
        %v1453 = vunpack.c.l.b16 %v295
        %v1454 = vunpack.c.h.b16 %v295
        %v1455 = vunpack.c.l.b16 %v296
        %v1456 = vunpack.c.h.b16 %v296
        %v1457 = vunpack.c.l.b16 %v297
        %v1458 = vunpack.c.h.b16 %v297
        %v1459 = vunpack.c.l.b16 %v298
        %v1460 = vunpack.c.h.b16 %v298
        %v1461 = vunpack.c.l.b16 %v299
        %v1462 = vunpack.c.h.b16 %v299
        %v1463 = vunpack.c.l.b16 %v300
        %v1464 = vunpack.c.h.b16 %v300
        %v1465 = vunpack.c.l.b16 %v301
        %v1466 = vunpack.c.h.b16 %v301
        %v1467 = vunpack.c.l.b16 %v302
        %v1468 = vunpack.c.h.b16 %v302
        %v1469 = vunpack.c.l.b16 %v303
        %v1470 = vunpack.c.h.b16 %v303
        %v1471 = vunpack.c.l.b16 %v304
        %v1472 = vunpack.c.h.b16 %v304
        %v1473 = vunpack.c.l.b16 %v305
        %v1474 = vunpack.c.h.b16 %v305
        %v1475 = vunpack.c.l.b16 %v306
        %v1476 = vunpack.c.h.b16 %v306
        %v1477 = vunpack.c.l.b16 %v307
        %v1478 = vunpack.c.h.b16 %v307
        %v1479 = vunpack.c.l.b16 %v308
        %v1480 = vunpack.c.h.b16 %v308
        %v1481 = vunpack.c.l.b16 %v309
        %v1482 = vunpack.c.h.b16 %v309
        %v1483 = vunpack.c.l.b16 %v310
        %v1484 = vunpack.c.h.b16 %v310
        %v1485 = vunpack.c.l.b16 %v311
        %v1486 = vunpack.c.h.b16 %v311
        %v1487 = vunpack.c.l.b16 %v312
        %v1488 = vunpack.c.h.b16 %v312
        %v1489 = vunpack.c.l.b16 %v313
        %v1490 = vunpack.c.h.b16 %v313
        %v1491 = vunpack.c.l.b16 %v314
        %v1492 = vunpack.c.h.b16 %v314
        %v1493 = vunpack.c.l.b16 %v315
        %v1494 = vunpack.c.h.b16 %v315
        %v1495 = vunpack.c.l.b16 %v316
        %v1496 = vunpack.c.h.b16 %v316
        %v1497 = vunpack.c.l.b16 %v317
        %v1498 = vunpack.c.h.b16 %v317
        %v1499 = vunpack.c.l.b16 %v318
        %v1500 = vunpack.c.h.b16 %v318
        %v1501 = vunpack.c.l.b16 %v319
        %v1502 = vunpack.c.h.b16 %v319
        %v1503 = vunpack.c.l.b16 %v320
        %v1504 = vunpack.c.h.b16 %v320
        %v1505 = vunpack.c.l.b16 %v321
        %v1506 = vunpack.c.h.b16 %v321
        %v1507 = vunpack.c.l.b16 %v322
        %v1508 = vunpack.c.h.b16 %v322
        %v1509 = vunpack.c.l.b16 %v323
        %v1510 = vunpack.c.h.b16 %v323
        %v1511 = vunpack.c.l.b16 %v324
        %v1512 = vunpack.c.h.b16 %v324
        %v1513 = vunpack.c.l.b16 %v325
        %v1514 = vunpack.c.h.b16 %v325
        %v1515 = vunpack.c.l.b16 %v326
        %v1516 = vunpack.c.h.b16 %v326
        %v1517 = vunpack.c.l.b16 %v327
        %v1518 = vunpack.c.h.b16 %v327
        %v1519 = vunpack.c.l.b16 %v328
        %v1520 = vunpack.c.h.b16 %v328
        %v1521 = vunpack.c.l.b16 %v329
        %v1522 = vunpack.c.h.b16 %v329
        %v1523 = vunpack.c.l.b16 %v330
        %v1524 = vunpack.c.h.b16 %v330
        %v1525 = vunpack.c.l.b16 %v331
        %v1526 = vunpack.c.h.b16 %v331
        %v1527 = vunpack.c.l.b16 %v332
        %v1528 = vunpack.c.h.b16 %v332
        %v1529 = vunpack.c.l.b16 %v333
        %v1530 = vunpack.c.h.b16 %v333
        %v1531 = vunpack.c.l.b16 %v334
        %v1532 = vunpack.c.h.b16 %v334
        %v1533 = vunpack.c.l.b16 %v335
        %v1534 = vunpack.c.h.b16 %v335
        %v1535 = vunpack.c.l.b16 %v336
        %v1536 = vunpack.c.h.b16 %v336
        %v1537 = vunpack.c.l.b16 %v337
        %v1538 = vunpack.c.h.b16 %v337
        %v1539 = vunpack.c.l.b16 %v338
        %v1540 = vunpack.c.h.b16 %v338
        %v1541 = vunpack.c.l.b16 %v339
        %v1542 = vunpack.c.h.b16 %v339
        %v1543 = vunpack.c.l.b16 %v340
        %v1544 = vunpack.c.h.b16 %v340
        %v1545 = vunpack.c.l.b16 %v341
        %v1546 = vunpack.c.h.b16 %v341
        %v1547 = vunpack.c.l.b16 %v342
        %v1548 = vunpack.c.h.b16 %v342
        %v1549 = vunpack.c.l.b16 %v343
        %v1550 = vunpack.c.h.b16 %v343
        %v1551 = vunpack.c.l.b16 %v344
        %v1552 = vunpack.c.h.b16 %v344
        %v1553 = vunpack.c.l.b16 %v345
        %v1554 = vunpack.c.h.b16 %v345
        %v1555 = vunpack.c.l.b16 %v346
        %v1556 = vunpack.c.h.b16 %v346
        %v1557 = vunpack.c.l.b16 %v347
        %v1558 = vunpack.c.h.b16 %v347
        %v1559 = vunpack.c.l.b16 %v348
        %v1560 = vunpack.c.h.b16 %v348
        %v1561 = vunpack.c.l.b16 %v349
        %v1562 = vunpack.c.h.b16 %v349
        %v1563 = vunpack.c.l.b16 %v350
        %v1564 = vunpack.c.h.b16 %v350
        %v1565 = vunpack.c.l.b16 %v351
        %v1566 = vunpack.c.h.b16 %v351
        %v1567 = vunpack.c.l.b16 %v352
        %v1568 = vunpack.c.h.b16 %v352
        %v1569 = vunpack.c.l.b16 %v353
        %v1570 = vunpack.c.h.b16 %v353
        %v1571 = vunpack.c.l.b16 %v354
        %v1572 = vunpack.c.h.b16 %v354
        %v1573 = vunpack.c.l.b16 %v355
        %v1574 = vunpack.c.h.b16 %v355
        %v1575 = vunpack.c.l.b16 %v356
        %v1576 = vunpack.c.h.b16 %v356
        %v1577 = vunpack.c.l.b16 %v357
        %v1578 = vunpack.c.h.b16 %v357
        %v1579 = vunpack.c.l.b16 %v358
        %v1580 = vunpack.c.h.b16 %v358
        %v1581 = vunpack.c.l.b16 %v359
        %v1582 = vunpack.c.h.b16 %v359
        %v1583 = vunpack.c.l.b16 %v360
        %v1584 = vunpack.c.h.b16 %v360
        %v1585 = vunpack.c.l.b16 %v361
        %v1586 = vunpack.c.h.b16 %v361
        %v1587 = vunpack.c.l.b16 %v362
        %v1588 = vunpack.c.h.b16 %v362
        %v1589 = vunpack.c.l.b16 %v363
        %v1590 = vunpack.c.h.b16 %v363
        %v1591 = vunpack.c.l.b16 %v364
        %v1592 = vunpack.c.h.b16 %v364
        %v1593 = vunpack.c.l.b16 %v365
        %v1594 = vunpack.c.h.b16 %v365
        %v1595 = vunpack.c.l.b16 %v366
        %v1596 = vunpack.c.h.b16 %v366
        %v1597 = vunpack.c.l.b16 %v367
        %v1598 = vunpack.c.h.b16 %v367
        %v1599 = vunpack.c.l.b16 %v368
        %v1600 = vunpack.c.h.b16 %v368
        %v1601 = vunpack.c.l.b16 %v369
        %v1602 = vunpack.c.h.b16 %v369
        %v1603 = vunpack.c.l.b16 %v370
        %v1604 = vunpack.c.h.b16 %v370
        %v1605 = vunpack.c.l.b16 %v371
        %v1606 = vunpack.c.h.b16 %v371
        %v1607 = vunpack.c.l.b16 %v372
        %v1608 = vunpack.c.h.b16 %v372
        %v1609 = vunpack.c.l.b16 %v373
        %v1610 = vunpack.c.h.b16 %v373
        %v1611 = vunpack.c.l.b16 %v374
        %v1612 = vunpack.c.h.b16 %v374
        %v1613 = vunpack.c.l.b16 %v375
        %v1614 = vunpack.c.h.b16 %v375
        %v1615 = vunpack.c.l.b16 %v376
        %v1616 = vunpack.c.h.b16 %v376
        %v1617 = vunpack.c.l.b16 %v377
        %v1618 = vunpack.c.h.b16 %v377
        %v1619 = vunpack.c.l.b16 %v378
        %v1620 = vunpack.c.h.b16 %v378
        %v1621 = vunpack.c.l.b16 %v379
        %v1622 = vunpack.c.h.b16 %v379
        %v1623 = vunpack.c.l.b16 %v380
        %v1624 = vunpack.c.h.b16 %v380
        %v1625 = vunpack.c.l.b16 %v381
        %v1626 = vunpack.c.h.b16 %v381
        %v1627 = vunpack.c.l.b16 %v382
        %v1628 = vunpack.c.h.b16 %v382
        %v1629 = vunpack.c.l.b16 %v383
        %v1630 = vunpack.c.h.b16 %v383
        %v1631 = vunpack.c.l.b16 %v384
        %v1632 = vunpack.c.h.b16 %v384
        %v1633 = vunpack.c.l.b16 %v385
        %v1634 = vunpack.c.h.b16 %v385
        %v1635 = vunpack.c.l.b16 %v386
        %v1636 = vunpack.c.h.b16 %v386
        %v1637 = vunpack.c.l.b16 %v387
        %v1638 = vunpack.c.h.b16 %v387
        %v1639 = vunpack.c.l.b16 %v388
        %v1640 = vunpack.c.h.b16 %v388
        %v1641 = vunpack.c.l.b16 %v389
        %v1642 = vunpack.c.h.b16 %v389
        %v1643 = vunpack.c.l.b16 %v390
        %v1644 = vunpack.c.h.b16 %v390
        %v1645 = vunpack.c.l.b16 %v391
        %v1646 = vunpack.c.h.b16 %v391
        %v1647 = vunpack.c.l.b16 %v392
        %v1648 = vunpack.c.h.b16 %v392
        %v1649 = vunpack.c.l.b16 %v393
        %v1650 = vunpack.c.h.b16 %v393
        %v1651 = vunpack.c.l.b16 %v394
        %v1652 = vunpack.c.h.b16 %v394
        %v1653 = vunpack.c.l.b16 %v395
        %v1654 = vunpack.c.h.b16 %v395
        %v1655 = vunpack.c.l.b16 %v396
        %v1656 = vunpack.c.h.b16 %v396
        %v1657 = vunpack.c.l.b16 %v397
        %v1658 = vunpack.c.h.b16 %v397
        %v1659 = vunpack.c.l.b16 %v398
        %v1660 = vunpack.c.h.b16 %v398
        %v1661 = vunpack.c.l.b16 %v399
        %v1662 = vunpack.c.h.b16 %v399
        %v1663 = vunpack.c.l.b16 %v400
        %v1664 = vunpack.c.h.b16 %v400
        %v1665 = vunpack.c.l.b16 %v401
        %v1666 = vunpack.c.h.b16 %v401
        %v1667 = vunpack.c.l.b16 %v402
        %v1668 = vunpack.c.h.b16 %v402
        %v1669 = vunpack.c.l.b16 %v403
        %v1670 = vunpack.c.h.b16 %v403
        %v1671 = vunpack.c.l.b16 %v404
        %v1672 = vunpack.c.h.b16 %v404
        %v1673 = vunpack.c.l.b16 %v405
        %v1674 = vunpack.c.h.b16 %v405
        %v1675 = vunpack.c.l.b16 %v406
        %v1676 = vunpack.c.h.b16 %v406
        %v1677 = vunpack.c.l.b16 %v407
        %v1678 = vunpack.c.h.b16 %v407
        %v1679 = vunpack.c.l.b16 %v408
        %v1680 = vunpack.c.h.b16 %v408
        %v1681 = vunpack.c.l.b16 %v409
        %v1682 = vunpack.c.h.b16 %v409
        %v1683 = vunpack.c.l.b16 %v410
        %v1684 = vunpack.c.h.b16 %v410
        %v1685 = vunpack.c.l.b16 %v411
        %v1686 = vunpack.c.h.b16 %v411
        %v1687 = vunpack.c.l.b16 %v412
        %v1688 = vunpack.c.h.b16 %v412
        %v1689 = vunpack.c.l.b16 %v413
        %v1690 = vunpack.c.h.b16 %v413
        %v1691 = vunpack.c.l.b16 %v414
        %v1692 = vunpack.c.h.b16 %v414
        %v1693 = vunpack.c.l.b16 %v415
        %v1694 = vunpack.c.h.b16 %v415
        %v1695 = vunpack.c.l.b16 %v416
        %v1696 = vunpack.c.h.b16 %v416
        %v1697 = vunpack.c.l.b16 %v417
        %v1698 = vunpack.c.h.b16 %v417
        %v1699 = vunpack.c.l.b16 %v418
        %v1700 = vunpack.c.h.b16 %v418
        %v1701 = vunpack.c.l.b16 %v419
        %v1702 = vunpack.c.h.b16 %v419
        %v1703 = vunpack.c.l.b16 %v420
        %v1704 = vunpack.c.h.b16 %v420
        %v1705 = vunpack.c.l.b16 %v421
        %v1706 = vunpack.c.h.b16 %v421
        %v1707 = vunpack.c.l.b16 %v422
        %v1708 = vunpack.c.h.b16 %v422
        %v1709 = vunpack.c.l.b16 %v423
        %v1710 = vunpack.c.h.b16 %v423
        %v1711 = vunpack.c.l.b16 %v424
        %v1712 = vunpack.c.h.b16 %v424
        %v1713 = vunpack.c.l.b16 %v425
        %v1714 = vunpack.c.h.b16 %v425
        %v1715 = vunpack.c.l.b16 %v426
        %v1716 = vunpack.c.h.b16 %v426
        %v1717 = vunpack.c.l.b16 %v427
        %v1718 = vunpack.c.h.b16 %v427
        %v1719 = vunpack.c.l.b16 %v428
        %v1720 = vunpack.c.h.b16 %v428
        %v1721 = vunpack.c.l.b16 %v429
        %v1722 = vunpack.c.h.b16 %v429
        %v1723 = vunpack.c.l.b16 %v430
        %v1724 = vunpack.c.h.b16 %v430
        %v1725 = vunpack.c.l.b16 %v431
        %v1726 = vunpack.c.h.b16 %v431
        %v1727 = vunpack.c.l.b16 %v432
        %v1728 = vunpack.c.h.b16 %v432
        %v1729 = vunpack.c.l.b16 %v433
        %v1730 = vunpack.c.h.b16 %v433
        %v1731 = vunpack.c.l.b16 %v434
        %v1732 = vunpack.c.h.b16 %v434
        %v1733 = vunpack.c.l.b16 %v435
        %v1734 = vunpack.c.h.b16 %v435
        %v1735 = vunpack.c.l.b16 %v436
        %v1736 = vunpack.c.h.b16 %v436
        %v1737 = vunpack.c.l.b16 %v437
        %v1738 = vunpack.c.h.b16 %v437
        %v1739 = vunpack.c.l.b16 %v438
        %v1740 = vunpack.c.h.b16 %v438
        %v1741 = vunpack.c.l.b16 %v439
        %v1742 = vunpack.c.h.b16 %v439
        %v1743 = vunpack.c.l.b16 %v440
        %v1744 = vunpack.c.h.b16 %v440
        %v1745 = vunpack.c.l.b16 %v441
        %v1746 = vunpack.c.h.b16 %v441
        %v1747 = vunpack.c.l.b16 %v442
        %v1748 = vunpack.c.h.b16 %v442
        %v1749 = vunpack.c.l.b16 %v443
        %v1750 = vunpack.c.h.b16 %v443
        %v1751 = vunpack.c.l.b16 %v444
        %v1752 = vunpack.c.h.b16 %v444
        %v1753 = vunpack.c.l.b16 %v445
        %v1754 = vunpack.c.h.b16 %v445
        %v1755 = vunpack.c.l.b16 %v446
        %v1756 = vunpack.c.h.b16 %v446
        %v1757 = vunpack.c.l.b16 %v447
        %v1758 = vunpack.c.h.b16 %v447
        %v1759 = vunpack.c.l.b16 %v448
        %v1760 = vunpack.c.h.b16 %v448
        %v1761 = vunpack.c.l.b16 %v449
        %v1762 = vunpack.c.h.b16 %v449
        %v1763 = vunpack.c.l.b16 %v450
        %v1764 = vunpack.c.h.b16 %v450
        %v1765 = vunpack.c.l.b16 %v451
        %v1766 = vunpack.c.h.b16 %v451
        %v1767 = vunpack.c.l.b16 %v452
        %v1768 = vunpack.c.h.b16 %v452
        %v1769 = vunpack.c.l.b16 %v453
        %v1770 = vunpack.c.h.b16 %v453
        %v1771 = vunpack.c.l.b16 %v454
        %v1772 = vunpack.c.h.b16 %v454
        %v1773 = vunpack.c.l.b16 %v455
        %v1774 = vunpack.c.h.b16 %v455
        %v1775 = vunpack.c.l.b16 %v456
        %v1776 = vunpack.c.h.b16 %v456
        %v1777 = vunpack.c.l.b16 %v457
        %v1778 = vunpack.c.h.b16 %v457
        %v1779 = vunpack.c.l.b16 %v458
        %v1780 = vunpack.c.h.b16 %v458
        %v1781 = vunpack.c.l.b16 %v459
        %v1782 = vunpack.c.h.b16 %v459
        %v1783 = vunpack.c.l.b16 %v460
        %v1784 = vunpack.c.h.b16 %v460
        %v1785 = vunpack.c.l.b16 %v461
        %v1786 = vunpack.c.h.b16 %v461
        %v1787 = vunpack.c.l.b16 %v462
        %v1788 = vunpack.c.h.b16 %v462
        %v1789 = vunpack.c.l.b16 %v463
        %v1790 = vunpack.c.h.b16 %v463
        %v1791 = vunpack.c.l.b16 %v464
        %v1792 = vunpack.c.h.b16 %v464
        %v1793 = vunpack.c.l.b16 %v465
        %v1794 = vunpack.c.h.b16 %v465
        %v1795 = vunpack.c.l.b16 %v466
        %v1796 = vunpack.c.h.b16 %v466
        %v1797 = vunpack.c.l.b16 %v467
        %v1798 = vunpack.c.h.b16 %v467
        %v1799 = vunpack.c.l.b16 %v468
        %v1800 = vunpack.c.h.b16 %v468
        %v1801 = vunpack.c.l.b16 %v469
        %v1802 = vunpack.c.h.b16 %v469
        %v1803 = vunpack.c.l.b16 %v470
        %v1804 = vunpack.c.h.b16 %v470
        %v1805 = vunpack.c.l.b16 %v471
        %v1806 = vunpack.c.h.b16 %v471
        %v1807 = vunpack.c.l.b16 %v472
        %v1808 = vunpack.c.h.b16 %v472
        %v1809 = vunpack.c.l.b16 %v473
        %v1810 = vunpack.c.h.b16 %v473
        %v1811 = vunpack.c.l.b16 %v474
        %v1812 = vunpack.c.h.b16 %v474
        %v1813 = vunpack.c.l.b16 %v475
        %v1814 = vunpack.c.h.b16 %v475
        %v1815 = vunpack.c.l.b16 %v476
        %v1816 = vunpack.c.h.b16 %v476
        %v1817 = vunpack.c.l.b16 %v477
        %v1818 = vunpack.c.h.b16 %v477
        %v1819 = vunpack.c.l.b16 %v478
        %v1820 = vunpack.c.h.b16 %v478
        %v1821 = vunpack.c.l.b16 %v479
        %v1822 = vunpack.c.h.b16 %v479
        %v1823 = vunpack.c.l.b16 %v480
        %v1824 = vunpack.c.h.b16 %v480
        %v1825 = vunpack.c.l.b16 %v481
        %v1826 = vunpack.c.h.b16 %v481
        %v1827 = vunpack.c.l.b16 %v482
        %v1828 = vunpack.c.h.b16 %v482
        %v1829 = vunpack.c.l.b16 %v483
        %v1830 = vunpack.c.h.b16 %v483
        %v1831 = vunpack.c.l.b16 %v484
        %v1832 = vunpack.c.h.b16 %v484
        %v1833 = vunpack.c.l.b16 %v485
        %v1834 = vunpack.c.h.b16 %v485
        %v1835 = vunpack.c.l.b16 %v486
        %v1836 = vunpack.c.h.b16 %v486
        %v1837 = vunpack.c.l.b16 %v487
        %v1838 = vunpack.c.h.b16 %v487
        %v1839 = vunpack.c.l.b16 %v488
        %v1840 = vunpack.c.h.b16 %v488
        %v1841 = vunpack.c.l.b16 %v489
        %v1842 = vunpack.c.h.b16 %v489
        %v1843 = vunpack.c.l.b16 %v490
        %v1844 = vunpack.c.h.b16 %v490
        %v1845 = vunpack.c.l.b16 %v491
        %v1846 = vunpack.c.h.b16 %v491
        %v1847 = vunpack.c.l.b16 %v492
        %v1848 = vunpack.c.h.b16 %v492
        %v1849 = vunpack.c.l.b16 %v493
        %v1850 = vunpack.c.h.b16 %v493
        %v1851 = vunpack.c.l.b16 %v494
        %v1852 = vunpack.c.h.b16 %v494
        %v1853 = vunpack.c.l.b16 %v495
        %v1854 = vunpack.c.h.b16 %v495
        %v1855 = vunpack.c.l.b16 %v496
        %v1856 = vunpack.c.h.b16 %v496
        %v1857 = vunpack.c.l.b16 %v497
        %v1858 = vunpack.c.h.b16 %v497
        %v1859 = vunpack.c.l.b16 %v498
        %v1860 = vunpack.c.h.b16 %v498
        %v1861 = vunpack.c.l.b16 %v499
        %v1862 = vunpack.c.h.b16 %v499
        %v1863 = vunpack.c.l.b16 %v500
        %v1864 = vunpack.c.h.b16 %v500
        %v1865 = vunpack.c.l.b16 %v501
        %v1866 = vunpack.c.h.b16 %v501
        %v1867 = vunpack.c.l.b16 %v502
        %v1868 = vunpack.c.h.b16 %v502
        %v1869 = vunpack.c.l.b16 %v503
        %v1870 = vunpack.c.h.b16 %v503
        %v1871 = vunpack.c.l.b16 %v504
        %v1872 = vunpack.c.h.b16 %v504
        %v1873 = vunpack.c.l.b16 %v505
        %v1874 = vunpack.c.h.b16 %v505
        %v1875 = vunpack.c.l.b16 %v506
        %v1876 = vunpack.c.h.b16 %v506
        %v1877 = vunpack.c.l.b16 %v507
        %v1878 = vunpack.c.h.b16 %v507
        %v1879 = vunpack.c.l.b16 %v508
        %v1880 = vunpack.c.h.b16 %v508
        %v1881 = vunpack.c.l.b16 %v509
        %v1882 = vunpack.c.h.b16 %v509
        %v1883 = vunpack.c.l.b16 %v510
        %v1884 = vunpack.c.h.b16 %v510
        %v1885 = vunpack.c.l.b16 %v511
        %v1886 = vunpack.c.h.b16 %v511
        %v1887 = vunpack.c.l.b16 %v512
        %v1888 = vunpack.c.h.b16 %v512
        %v1889 = vunpack.c.l.b16 %v513
        %v1890 = vunpack.c.h.b16 %v513
        %v1891 = vunpack.c.l.b16 %v514
        %v1892 = vunpack.c.h.b16 %v514
        %v1893 = vunpack.c.l.b16 %v515
        %v1894 = vunpack.c.h.b16 %v515
        %v1895 = vunpack.c.l.b16 %v516
        %v1896 = vunpack.c.h.b16 %v516
        %v1897 = vunpack.c.l.b16 %v517
        %v1898 = vunpack.c.h.b16 %v517
        %v1899 = vunpack.c.l.b16 %v518
        %v1900 = vunpack.c.h.b16 %v518
        %v1901 = vunpack.c.l.b16 %v519
        %v1902 = vunpack.c.h.b16 %v519
        %v1903 = vunpack.c.l.b16 %v520
        %v1904 = vunpack.c.h.b16 %v520
        %v1905 = vunpack.c.l.b16 %v521
        %v1906 = vunpack.c.h.b16 %v521
        %v1907 = vunpack.c.l.b16 %v522
        %v1908 = vunpack.c.h.b16 %v522
        %v1909 = vunpack.c.l.b16 %v523
        %v1910 = vunpack.c.h.b16 %v523
        %v1911 = vunpack.c.l.b16 %v524
        %v1912 = vunpack.c.h.b16 %v524
        %v1913 = vunpack.c.l.b16 %v525
        %v1914 = vunpack.c.h.b16 %v525
        %v1915 = vunpack.c.l.b16 %v526
        %v1916 = vunpack.c.h.b16 %v526
        %v1917 = vunpack.c.l.b16 %v527
        %v1918 = vunpack.c.h.b16 %v527
        %v1919 = vunpack.c.l.b16 %v528
        %v1920 = vunpack.c.h.b16 %v528
        %v1921 = vunpack.c.l.b16 %v529
        %v1922 = vunpack.c.h.b16 %v529
        %v1923 = vunpack.c.l.b16 %v530
        %v1924 = vunpack.c.h.b16 %v530
        %v1925 = vunpack.c.l.b16 %v531
        %v1926 = vunpack.c.h.b16 %v531
        %v1927 = vunpack.c.l.b16 %v532
        %v1928 = vunpack.c.h.b16 %v532
        %v1929 = vunpack.c.l.b16 %v533
        %v1930 = vunpack.c.h.b16 %v533
        %v1931 = vunpack.c.l.b16 %v534
        %v1932 = vunpack.c.h.b16 %v534
        %v1933 = vunpack.c.l.b16 %v535
        %v1934 = vunpack.c.h.b16 %v535
        %v1935 = vunpack.c.l.b16 %v536
        %v1936 = vunpack.c.h.b16 %v536
        %v1937 = vunpack.c.l.b16 %v537
        %v1938 = vunpack.c.h.b16 %v537
        %v1939 = vunpack.c.l.b16 %v538
        %v1940 = vunpack.c.h.b16 %v538
        %v1941 = vunpack.c.l.b16 %v539
        %v1942 = vunpack.c.h.b16 %v539
        %v1943 = vunpack.c.l.b16 %v540
        %v1944 = vunpack.c.h.b16 %v540
        %v1945 = vunpack.c.l.b16 %v541
        %v1946 = vunpack.c.h.b16 %v541
        %v1947 = vunpack.c.l.b16 %v542
        %v1948 = vunpack.c.h.b16 %v542
        %v1949 = vunpack.c.l.b16 %v543
        %v1950 = vunpack.c.h.b16 %v543
        %v1951 = vunpack.c.l.b16 %v544
        %v1952 = vunpack.c.h.b16 %v544
        %v1953 = vunpack.c.l.b16 %v545
        %v1954 = vunpack.c.h.b16 %v545
        %v1955 = vunpack.c.l.b16 %v546
        %v1956 = vunpack.c.h.b16 %v546
        %v1957 = vunpack.c.l.b16 %v547
        %v1958 = vunpack.c.h.b16 %v547
        %v1959 = vunpack.c.l.b16 %v548
        %v1960 = vunpack.c.h.b16 %v548
        %v1961 = vunpack.c.l.b16 %v549
        %v1962 = vunpack.c.h.b16 %v549
        %v1963 = vunpack.c.l.b16 %v550
        %v1964 = vunpack.c.h.b16 %v550
        %v1965 = vunpack.c.l.b16 %v551
        %v1966 = vunpack.c.h.b16 %v551
        %v1967 = vunpack.c.l.b16 %v552
        %v1968 = vunpack.c.h.b16 %v552
        %v1969 = vunpack.c.l.b16 %v553
        %v1970 = vunpack.c.h.b16 %v553
        %v1971 = vunpack.c.l.b16 %v554
        %v1972 = vunpack.c.h.b16 %v554
        %v1973 = vunpack.c.l.b16 %v555
        %v1974 = vunpack.c.h.b16 %v555
        %v1975 = vunpack.c.l.b16 %v556
        %v1976 = vunpack.c.h.b16 %v556
        %v1977 = vunpack.c.l.b16 %v557
        %v1978 = vunpack.c.h.b16 %v557
        %v1979 = vunpack.c.l.b16 %v558
        %v1980 = vunpack.c.h.b16 %v558
        %v1981 = vunpack.c.l.b16 %v559
        %v1982 = vunpack.c.h.b16 %v559
        %v1983 = vunpack.c.l.b16 %v560
        %v1984 = vunpack.c.h.b16 %v560
        %v1985 = vunpack.c.l.b16 %v561
        %v1986 = vunpack.c.h.b16 %v561
        %v1987 = vunpack.c.l.b16 %v562
        %v1988 = vunpack.c.h.b16 %v562
        %v1989 = vunpack.c.l.b16 %v563
        %v1990 = vunpack.c.h.b16 %v563
        %v1991 = vunpack.c.l.b16 %v564
        %v1992 = vunpack.c.h.b16 %v564
        %v1993 = vunpack.c.l.b16 %v565
        %v1994 = vunpack.c.h.b16 %v565
        %v1995 = vunpack.c.l.b16 %v566
        %v1996 = vunpack.c.h.b16 %v566
        %v1997 = vunpack.c.l.b16 %v567
        %v1998 = vunpack.c.h.b16 %v567
        %v1999 = vunpack.c.l.b16 %v568
        %v2000 = vunpack.c.h.b16 %v568
        %v2001 = vunpack.c.l.b16 %v569
        %v2002 = vunpack.c.h.b16 %v569
        %v2003 = vunpack.c.l.b16 %v570
        %v2004 = vunpack.c.h.b16 %v570
        %v2005 = vunpack.c.l.b16 %v571
        %v2006 = vunpack.c.h.b16 %v571
        %v2007 = vunpack.c.l.b16 %v572
        %v2008 = vunpack.c.h.b16 %v572
        %v2009 = vunpack.c.l.b16 %v573
        %v2010 = vunpack.c.h.b16 %v573
        %v2011 = vunpack.c.l.b16 %v574
        %v2012 = vunpack.c.h.b16 %v574
        %v2013 = vunpack.c.l.b16 %v575
        %v2014 = vunpack.c.h.b16 %v575
        %v2015 = vunpack.c.l.b16 %v576
        %v2016 = vunpack.c.h.b16 %v576
        %v2017 = vunpack.c.l.b16 %v577
        %v2018 = vunpack.c.h.b16 %v577
        %v2019 = vunpack.c.l.b16 %v578
        %v2020 = vunpack.c.h.b16 %v578
        %v2021 = vunpack.c.l.b16 %v579
        %v2022 = vunpack.c.h.b16 %v579
        %v2023 = vunpack.c.l.b16 %v580
        %v2024 = vunpack.c.h.b16 %v580
        %v2025 = vunpack.c.l.b16 %v581
        %v2026 = vunpack.c.h.b16 %v581
        %v2027 = vunpack.c.l.b16 %v582
        %v2028 = vunpack.c.h.b16 %v582
        %v2029 = vunpack.c.l.b16 %v583
        %v2030 = vunpack.c.h.b16 %v583
        %v2031 = vunpack.c.l.b16 %v584
        %v2032 = vunpack.c.h.b16 %v584
        %v2033 = vunpack.c.l.b16 %v585
        %v2034 = vunpack.c.h.b16 %v585
        %v2035 = vunpack.c.l.b16 %v586
        %v2036 = vunpack.c.h.b16 %v586
        %v2037 = vunpack.c.l.b16 %v587
        %v2038 = vunpack.c.h.b16 %v587
        %v2039 = vunpack.c.l.b16 %v588
        %v2040 = vunpack.c.h.b16 %v588
        %v2041 = vunpack.c.l.b16 %v589
        %v2042 = vunpack.c.h.b16 %v589
        %v2043 = vunpack.c.l.b16 %v590
        %v2044 = vunpack.c.h.b16 %v590
        %v2045 = vunpack.c.l.b16 %v591
        %v2046 = vunpack.c.h.b16 %v591
        %v2047 = vunpack.c.l.b16 %v592
        %v2048 = vunpack.c.h.b16 %v592
        %v2049 = vunpack.c.l.b16 %v593
        %v2050 = vunpack.c.h.b16 %v593
        %v2051 = vunpack.c.l.b16 %v594
        %v2052 = vunpack.c.h.b16 %v594
        %v2053 = vunpack.c.l.b16 %v595
        %v2054 = vunpack.c.h.b16 %v595
        %v2055 = vunpack.c.l.b16 %v596
        %v2056 = vunpack.c.h.b16 %v596
        %v2057 = vunpack.c.l.b16 %v597
        %v2058 = vunpack.c.h.b16 %v597
        %v2059 = vunpack.c.l.b16 %v598
        %v2060 = vunpack.c.h.b16 %v598
        %v2061 = vunpack.c.l.b16 %v599
        %v2062 = vunpack.c.h.b16 %v599
        %v2063 = vunpack.c.l.b16 %v600
        %v2064 = vunpack.c.h.b16 %v600
        %v2065 = vunpack.c.l.b16 %v601
        %v2066 = vunpack.c.h.b16 %v601
        %v2067 = vunpack.c.l.b16 %v602
        %v2068 = vunpack.c.h.b16 %v602
        %v2069 = vunpack.c.l.b16 %v603
        %v2070 = vunpack.c.h.b16 %v603
        %v2071 = vunpack.c.l.b16 %v604
        %v2072 = vunpack.c.h.b16 %v604
        %v2073 = vunpack.c.l.b16 %v605
        %v2074 = vunpack.c.h.b16 %v605
        %v2075 = vunpack.c.l.b16 %v606
        %v2076 = vunpack.c.h.b16 %v606
        %v2077 = vunpack.c.l.b16 %v607
        %v2078 = vunpack.c.h.b16 %v607
        %v2079 = vunpack.c.l.b16 %v608
        %v2080 = vunpack.c.h.b16 %v608
        %v2081 = vunpack.c.l.b16 %v609
        %v2082 = vunpack.c.h.b16 %v609
        %v2083 = vunpack.c.l.b16 %v610
        %v2084 = vunpack.c.h.b16 %v610
        %v2085 = vunpack.c.l.b16 %v611
        %v2086 = vunpack.c.h.b16 %v611
        %v2087 = vunpack.c.l.b16 %v612
        %v2088 = vunpack.c.h.b16 %v612
        %v2089 = vunpack.c.l.b16 %v613
        %v2090 = vunpack.c.h.b16 %v613
        %v2091 = vunpack.c.l.b16 %v614
        %v2092 = vunpack.c.h.b16 %v614
        %v2093 = vunpack.c.l.b16 %v615
        %v2094 = vunpack.c.h.b16 %v615
        %v2095 = vunpack.c.l.b16 %v616
        %v2096 = vunpack.c.h.b16 %v616
        %v2097 = vunpack.c.l.b16 %v617
        %v2098 = vunpack.c.h.b16 %v617
        %v2099 = vunpack.c.l.b16 %v618
        %v2100 = vunpack.c.h.b16 %v618
        %v2101 = vunpack.c.l.b16 %v619
        %v2102 = vunpack.c.h.b16 %v619
        %v2103 = vunpack.c.l.b16 %v620
        %v2104 = vunpack.c.h.b16 %v620
        %v2105 = vunpack.c.l.b16 %v621
        %v2106 = vunpack.c.h.b16 %v621
        %v2107 = vunpack.c.l.b16 %v622
        %v2108 = vunpack.c.h.b16 %v622
        %v2109 = vunpack.c.l.b16 %v623
        %v2110 = vunpack.c.h.b16 %v623
        %v2111 = vunpack.c.l.b16 %v624
        %v2112 = vunpack.c.h.b16 %v624
        %v2113 = vunpack.c.l.b16 %v625
        %v2114 = vunpack.c.h.b16 %v625
        %v2115 = vunpack.c.l.b16 %v626
        %v2116 = vunpack.c.h.b16 %v626
        %v2117 = vunpack.c.l.b16 %v627
        %v2118 = vunpack.c.h.b16 %v627
        %v2119 = vunpack.c.l.b16 %v628
        %v2120 = vunpack.c.h.b16 %v628
        %v2121 = vunpack.c.l.b16 %v629
        %v2122 = vunpack.c.h.b16 %v629
        %v2123 = vunpack.c.l.b16 %v630
        %v2124 = vunpack.c.h.b16 %v630
        %v2125 = vunpack.c.l.b16 %v631
        %v2126 = vunpack.c.h.b16 %v631
        %v2127 = vunpack.c.l.b16 %v632
        %v2128 = vunpack.c.h.b16 %v632
        %v2129 = vunpack.c.l.b16 %v633
        %v2130 = vunpack.c.h.b16 %v633
        %v2131 = vunpack.c.l.b16 %v634
        %v2132 = vunpack.c.h.b16 %v634
        %v2133 = vunpack.c.l.b16 %v635
        %v2134 = vunpack.c.h.b16 %v635
        %v2135 = vunpack.c.l.b16 %v636
        %v2136 = vunpack.c.h.b16 %v636
        %v2137 = vunpack.c.l.b16 %v637
        %v2138 = vunpack.c.h.b16 %v637
        %v2139 = vunpack.c.l.b16 %v638
        %v2140 = vunpack.c.h.b16 %v638
        %v2141 = vunpack.c.l.b16 %v639
        %v2142 = vunpack.c.h.b16 %v639
        %v2143 = vunpack.c.l.b16 %v640
        %v2144 = vunpack.c.h.b16 %v640
        %v2145 = vunpack.c.l.b16 %v641
        %v2146 = vunpack.c.h.b16 %v641
        %v2147 = vunpack.c.l.b16 %v642
        %v2148 = vunpack.c.h.b16 %v642
        %v2149 = vunpack.c.l.b16 %v643
        %v2150 = vunpack.c.h.b16 %v643
        %v2151 = vunpack.c.l.b16 %v644
        %v2152 = vunpack.c.h.b16 %v644
        %v2153 = vunpack.c.l.b16 %v645
        %v2154 = vunpack.c.h.b16 %v645
        %v2155 = vunpack.c.l.b16 %v646
        %v2156 = vunpack.c.h.b16 %v646
        %v2157 = vunpack.c.l.b16 %v647
        %v2158 = vunpack.c.h.b16 %v647
        %v2159 = vunpack.c.l.b16 %v648
        %v2160 = vunpack.c.h.b16 %v648
        %v2161 = vunpack.c.l.b16 %v649
        %v2162 = vunpack.c.h.b16 %v649
        %v2163 = vunpack.c.l.b16 %v650
        %v2164 = vunpack.c.h.b16 %v650
        %v2165 = vunpack.c.l.b16 %v651
        %v2166 = vunpack.c.h.b16 %v651
        %v2167 = vunpack.c.l.b16 %v652
        %v2168 = vunpack.c.h.b16 %v652
        %v2169 = vunpack.c.l.b16 %v653
        %v2170 = vunpack.c.h.b16 %v653
        %v2171 = vunpack.c.l.b16 %v654
        %v2172 = vunpack.c.h.b16 %v654
        %v2173 = vunpack.c.l.b16 %v655
        %v2174 = vunpack.c.h.b16 %v655
        %v2175 = vunpack.c.l.b16 %v656
        %v2176 = vunpack.c.h.b16 %v656
        %v2177 = vunpack.c.l.b16 %v657
        %v2178 = vunpack.c.h.b16 %v657
        %v2179 = vunpack.c.l.b16 %v658
        %v2180 = vunpack.c.h.b16 %v658
        %v2181 = vunpack.c.l.b16 %v659
        %v2182 = vunpack.c.h.b16 %v659
        %v2183 = vunpack.c.l.b16 %v660
        %v2184 = vunpack.c.h.b16 %v660
        %v2185 = vunpack.c.l.b16 %v661
        %v2186 = vunpack.c.h.b16 %v661
        %v2187 = vunpack.c.l.b16 %v662
        %v2188 = vunpack.c.h.b16 %v662
        %v2189 = vunpack.c.l.b16 %v663
        %v2190 = vunpack.c.h.b16 %v663
        %v2191 = vunpack.c.l.b16 %v664
        %v2192 = vunpack.c.h.b16 %v664
        %v2193 = vunpack.c.l.b16 %v665
        %v2194 = vunpack.c.h.b16 %v665
        %v2195 = vunpack.c.l.b16 %v666
        %v2196 = vunpack.c.h.b16 %v666
        %v2197 = vunpack.c.l.b16 %v667
        %v2198 = vunpack.c.h.b16 %v667
        %v2199 = vunpack.c.l.b16 %v668
        %v2200 = vunpack.c.h.b16 %v668
        %v2201 = vunpack.c.l.b16 %v669
        %v2202 = vunpack.c.h.b16 %v669
        %v2203 = vunpack.c.l.b16 %v670
        %v2204 = vunpack.c.h.b16 %v670
        %v2205 = vunpack.c.l.b16 %v671
        %v2206 = vunpack.c.h.b16 %v671
        %v2207 = vunpack.c.l.b16 %v672
        %v2208 = vunpack.c.h.b16 %v672
        %v2209 = vunpack.c.l.b16 %v673
        %v2210 = vunpack.c.h.b16 %v673
        %v2211 = vunpack.c.l.b16 %v674
        %v2212 = vunpack.c.h.b16 %v674
        %v2213 = vunpack.c.l.b16 %v675
        %v2214 = vunpack.c.h.b16 %v675
        %v2215 = vunpack.c.l.b16 %v676
        %v2216 = vunpack.c.h.b16 %v676
        %v2217 = vunpack.c.l.b16 %v677
        %v2218 = vunpack.c.h.b16 %v677
        %v2219 = vunpack.c.l.b16 %v678
        %v2220 = vunpack.c.h.b16 %v678
        %v2221 = vunpack.c.l.b16 %v679
        %v2222 = vunpack.c.h.b16 %v679
        %v2223 = vunpack.c.l.b16 %v680
        %v2224 = vunpack.c.h.b16 %v680
        %v2225 = vunpack.c.l.b16 %v681
        %v2226 = vunpack.c.h.b16 %v681
        %v2227 = vunpack.c.l.b16 %v682
        %v2228 = vunpack.c.h.b16 %v682
        %v2229 = vunpack.c.l.b16 %v683
        %v2230 = vunpack.c.h.b16 %v683
        %v2231 = vunpack.c.l.b16 %v684
        %v2232 = vunpack.c.h.b16 %v684
        %v2233 = vunpack.c.l.b16 %v685
        %v2234 = vunpack.c.h.b16 %v685
        %v2235 = vunpack.c.l.b16 %v686
        %v2236 = vunpack.c.h.b16 %v686
        %v2237 = vunpack.c.l.b16 %v687
        %v2238 = vunpack.c.h.b16 %v687
        %v2239 = vunpack.c.l.b16 %v688
        %v2240 = vunpack.c.h.b16 %v688
        %v2241 = vunpack.c.l.b16 %v689
        %v2242 = vunpack.c.h.b16 %v689
        %v2243 = vunpack.c.l.b16 %v690
        %v2244 = vunpack.c.h.b16 %v690
        %v2245 = vunpack.c.l.b16 %v691
        %v2246 = vunpack.c.h.b16 %v691
        %v2247 = vunpack.c.l.b16 %v692
        %v2248 = vunpack.c.h.b16 %v692
        %v2249 = vunpack.c.l.b16 %v693
        %v2250 = vunpack.c.h.b16 %v693
        %v2251 = vunpack.c.l.b16 %v694
        %v2252 = vunpack.c.h.b16 %v694
        %v2253 = vunpack.c.l.b16 %v695
        %v2254 = vunpack.c.h.b16 %v695
        %v2255 = vunpack.c.l.b16 %v696
        %v2256 = vunpack.c.h.b16 %v696
        %v2257 = vunpack.c.l.b16 %v697
        %v2258 = vunpack.c.h.b16 %v697
        %v2259 = vunpack.c.l.b16 %v698
        %v2260 = vunpack.c.h.b16 %v698
        %v2261 = vunpack.c.l.b16 %v699
        %v2262 = vunpack.c.h.b16 %v699
        %v2263 = vunpack.c.l.b16 %v700
        %v2264 = vunpack.c.h.b16 %v700
        %v2265 = vunpack.c.l.b16 %v701
        %v2266 = vunpack.c.h.b16 %v701
        %v2267 = vunpack.c.l.b16 %v702
        %v2268 = vunpack.c.h.b16 %v702
        %v2269 = vunpack.c.l.b16 %v703
        %v2270 = vunpack.c.h.b16 %v703
        %v2271 = vunpack.c.l.b16 %v704
        %v2272 = vunpack.c.h.b16 %v704
        %v2273 = vunpack.c.l.b16 %v705
        %v2274 = vunpack.c.h.b16 %v705
        %v2275 = vunpack.c.l.b16 %v706
        %v2276 = vunpack.c.h.b16 %v706
        %v2277 = vunpack.c.l.b16 %v707
        %v2278 = vunpack.c.h.b16 %v707
        %v2279 = vunpack.c.l.b16 %v708
        %v2280 = vunpack.c.h.b16 %v708
        %v2281 = vunpack.c.l.b16 %v709
        %v2282 = vunpack.c.h.b16 %v709
        %v2283 = vunpack.c.l.b16 %v710
        %v2284 = vunpack.c.h.b16 %v710
        %v2285 = vunpack.c.l.b16 %v711
        %v2286 = vunpack.c.h.b16 %v711
        %v2287 = vunpack.c.l.b16 %v712
        %v2288 = vunpack.c.h.b16 %v712
        %v2289 = vunpack.c.l.b16 %v713
        %v2290 = vunpack.c.h.b16 %v713
        %v2291 = vunpack.c.l.b16 %v714
        %v2292 = vunpack.c.h.b16 %v714
        %v2293 = vunpack.c.l.b16 %v715
        %v2294 = vunpack.c.h.b16 %v715
        %v2295 = vunpack.c.l.b16 %v716
        %v2296 = vunpack.c.h.b16 %v716
        %v2297 = vunpack.c.l.b16 %v717
        %v2298 = vunpack.c.h.b16 %v717
        %v2299 = vunpack.c.l.b16 %v718
        %v2300 = vunpack.c.h.b16 %v718
        %v2301 = vunpack.c.l.b16 %v719
        %v2302 = vunpack.c.h.b16 %v719
        %v2303 = vunpack.c.l.b16 %v720
        %v2304 = vunpack.c.h.b16 %v720
        %v2305 = vunpack.c.l.b16 %v721
        %v2306 = vunpack.c.h.b16 %v721
        %v2307 = vunpack.c.l.b16 %v722
        %v2308 = vunpack.c.h.b16 %v722
        %v2309 = vunpack.c.l.b16 %v723
        %v2310 = vunpack.c.h.b16 %v723
        %v2311 = vunpack.c.l.b16 %v724
        %v2312 = vunpack.c.h.b16 %v724
        %v2313 = vunpack.c.l.b16 %v725
        %v2314 = vunpack.c.h.b16 %v725
        %v2315 = vunpack.c.l.b16 %v726
        %v2316 = vunpack.c.h.b16 %v726
        %v2317 = vunpack.c.l.b16 %v727
        %v2318 = vunpack.c.h.b16 %v727
        %v2319 = vunpack.c.l.b16 %v728
        %v2320 = vunpack.c.h.b16 %v728
        %v2321 = vunpack.c.l.b16 %v729
        %v2322 = vunpack.c.h.b16 %v729
        %v2323 = vunpack.c.l.b16 %v730
        %v2324 = vunpack.c.h.b16 %v730
        %v2325 = vunpack.c.l.b16 %v731
        %v2326 = vunpack.c.h.b16 %v731
        %v2327 = vunpack.c.l.b16 %v732
        %v2328 = vunpack.c.h.b16 %v732
        %v2329 = vunpack.c.l.b16 %v733
        %v2330 = vunpack.c.h.b16 %v733
        %v2331 = vunpack.c.l.b16 %v734
        %v2332 = vunpack.c.h.b16 %v734
        %v2333 = vunpack.c.l.b16 %v735
        %v2334 = vunpack.c.h.b16 %v735
        %v2335 = vunpack.c.l.b16 %v736
        %v2336 = vunpack.c.h.b16 %v736
        %v2337 = vunpack.c.l.b16 %v737
        %v2338 = vunpack.c.h.b16 %v737
        %v2339 = vunpack.c.l.b16 %v738
        %v2340 = vunpack.c.h.b16 %v738
        %v2341 = vunpack.c.l.b16 %v739
        %v2342 = vunpack.c.h.b16 %v739
        %v2343 = vunpack.c.l.b16 %v740
        %v2344 = vunpack.c.h.b16 %v740
        %v2345 = vunpack.c.l.b16 %v741
        %v2346 = vunpack.c.h.b16 %v741
        %v2347 = vunpack.c.l.b16 %v742
        %v2348 = vunpack.c.h.b16 %v742
        %v2349 = vunpack.c.l.b16 %v743
        %v2350 = vunpack.c.h.b16 %v743
        %v2351 = vunpack.c.l.b16 %v744
        %v2352 = vunpack.c.h.b16 %v744
        %v2353 = vunpack.c.l.b16 %v745
        %v2354 = vunpack.c.h.b16 %v745
        %v2355 = vunpack.c.l.b16 %v746
        %v2356 = vunpack.c.h.b16 %v746
        %v2357 = vunpack.c.l.b16 %v747
        %v2358 = vunpack.c.h.b16 %v747
        %v2359 = vunpack.c.l.b16 %v748
        %v2360 = vunpack.c.h.b16 %v748
        %v2361 = vunpack.c.l.b16 %v749
        %v2362 = vunpack.c.h.b16 %v749
        %v2363 = vunpack.c.l.b16 %v750
        %v2364 = vunpack.c.h.b16 %v750
        %v2365 = vunpack.c.l.b16 %v751
        %v2366 = vunpack.c.h.b16 %v751
        %v2367 = vunpack.c.l.b16 %v752
        %v2368 = vunpack.c.h.b16 %v752
        %v2369 = vunpack.c.l.b16 %v753
        %v2370 = vunpack.c.h.b16 %v753
        %v2371 = vunpack.c.l.b16 %v754
        %v2372 = vunpack.c.h.b16 %v754
        %v2373 = vunpack.c.l.b16 %v755
        %v2374 = vunpack.c.h.b16 %v755
        %v2375 = vunpack.c.l.b16 %v756
        %v2376 = vunpack.c.h.b16 %v756
        %v2377 = vunpack.c.l.b16 %v757
        %v2378 = vunpack.c.h.b16 %v757
        %v2379 = vunpack.c.l.b16 %v758
        %v2380 = vunpack.c.h.b16 %v758
        %v2381 = vunpack.c.l.b16 %v759
        %v2382 = vunpack.c.h.b16 %v759
        %v2383 = vunpack.c.l.b16 %v760
        %v2384 = vunpack.c.h.b16 %v760
        %v2385 = vunpack.c.l.b16 %v761
        %v2386 = vunpack.c.h.b16 %v761
        %v2387 = vunpack.c.l.b16 %v762
        %v2388 = vunpack.c.h.b16 %v762
        %v2389 = vunpack.c.l.b16 %v763
        %v2390 = vunpack.c.h.b16 %v763
        %v2391 = vunpack.c.l.b16 %v764
        %v2392 = vunpack.c.h.b16 %v764
        %v2393 = vunpack.c.l.b16 %v765
        %v2394 = vunpack.c.h.b16 %v765
        %v2395 = vunpack.c.l.b16 %v766
        %v2396 = vunpack.c.h.b16 %v766
        %v2397 = vunpack.c.l.b16 %v767
        %v2398 = vunpack.c.h.b16 %v767
        %v2399 = vunpack.c.l.b16 %v768
        %v2400 = vunpack.c.h.b16 %v768
        %v2401 = vunpack.c.l.b16 %v769
        %v2402 = vunpack.c.h.b16 %v769
        %v2403 = vunpack.c.l.b16 %v770
        %v2404 = vunpack.c.h.b16 %v770
        %v2405 = vunpack.c.l.b16 %v771
        %v2406 = vunpack.c.h.b16 %v771
        %v2407 = vunpack.c.l.b16 %v772
        %v2408 = vunpack.c.h.b16 %v772
        %v2409 = vunpack.c.l.b16 %v773
        %v2410 = vunpack.c.h.b16 %v773
        %v2411 = vunpack.c.l.b16 %v774
        %v2412 = vunpack.c.h.b16 %v774
        %v2413 = vunpack.c.l.b16 %v775
        %v2414 = vunpack.c.h.b16 %v775
        %v2415 = vunpack.c.l.b16 %v776
        %v2416 = vunpack.c.h.b16 %v776
        %v2417 = vunpack.c.l.b16 %v777
        %v2418 = vunpack.c.h.b16 %v777
        %v2419 = vunpack.c.l.b16 %v778
        %v2420 = vunpack.c.h.b16 %v778
        %v2421 = vunpack.c.l.b16 %v779
        %v2422 = vunpack.c.h.b16 %v779
        %v2423 = vunpack.c.l.b16 %v780
        %v2424 = vunpack.c.h.b16 %v780
        %v2425 = vunpack.c.l.b16 %v781
        %v2426 = vunpack.c.h.b16 %v781
        %v2427 = vunpack.c.l.b16 %v782
        %v2428 = vunpack.c.h.b16 %v782
        %v2429 = vunpack.c.l.b16 %v783
        %v2430 = vunpack.c.h.b16 %v783
        %v2431 = vunpack.c.l.b16 %v784
        %v2432 = vunpack.c.h.b16 %v784
        %v2433 = vunpack.c.l.b16 %v785
        %v2434 = vunpack.c.h.b16 %v785
        %v2435 = vunpack.c.l.b16 %v786
        %v2436 = vunpack.c.h.b16 %v786
        %v2437 = vunpack.c.l.b16 %v787
        %v2438 = vunpack.c.h.b16 %v787
        %v2439 = vunpack.c.l.b16 %v788
        %v2440 = vunpack.c.h.b16 %v788
        %v2441 = vpack.c.b16 %v1421, %v1417
        %v2442 = vpack.c.b16 %v1422, %v1418
        %v2443 = vpack.c.b16 %v1423, %v1419
        %v2444 = vpack.c.b16 %v1424, %v1420
        %v2445 = vpack.c.b16 %v1429, %v1425
        %v2446 = vpack.c.b16 %v1430, %v1426
        %v2447 = vpack.c.b16 %v1431, %v1427
        %v2448 = vpack.c.b16 %v1432, %v1428
        %v2449 = vpack.c.b16 %v1437, %v1433
        %v2450 = vpack.c.b16 %v1438, %v1434
        %v2451 = vpack.c.b16 %v1439, %v1435
        %v2452 = vpack.c.b16 %v1440, %v1436
        %v2453 = vpack.c.b16 %v1445, %v1441
        %v2454 = vpack.c.b16 %v1446, %v1442
        %v2455 = vpack.c.b16 %v1447, %v1443
        %v2456 = vpack.c.b16 %v1448, %v1444
        %v2457 = vpack.c.b16 %v1453, %v1449
        %v2458 = vpack.c.b16 %v1454, %v1450
        %v2459 = vpack.c.b16 %v1455, %v1451
        %v2460 = vpack.c.b16 %v1456, %v1452
        %v2461 = vpack.c.b16 %v1461, %v1457
        %v2462 = vpack.c.b16 %v1462, %v1458
        %v2463 = vpack.c.b16 %v1463, %v1459
        %v2464 = vpack.c.b16 %v1464, %v1460
        %v2465 = vpack.c.b16 %v1469, %v1465
        %v2466 = vpack.c.b16 %v1470, %v1466
        %v2467 = vpack.c.b16 %v1471, %v1467
        %v2468 = vpack.c.b16 %v1472, %v1468
        %v2469 = vpack.c.b16 %v1477, %v1473
        %v2470 = vpack.c.b16 %v1478, %v1474
        %v2471 = vpack.c.b16 %v1479, %v1475
        %v2472 = vpack.c.b16 %v1480, %v1476
        %v2473 = vpack.c.b16 %v1485, %v1481
        %v2474 = vpack.c.b16 %v1486, %v1482
        %v2475 = vpack.c.b16 %v1487, %v1483
        %v2476 = vpack.c.b16 %v1488, %v1484
        %v2477 = vpack.c.b16 %v1493, %v1489
        %v2478 = vpack.c.b16 %v1494, %v1490
        %v2479 = vpack.c.b16 %v1495, %v1491
        %v2480 = vpack.c.b16 %v1496, %v1492
        %v2481 = vpack.c.b16 %v1501, %v1497
        %v2482 = vpack.c.b16 %v1502, %v1498
        %v2483 = vpack.c.b16 %v1503, %v1499
        %v2484 = vpack.c.b16 %v1504, %v1500
        %v2485 = vpack.c.b16 %v1509, %v1505
        %v2486 = vpack.c.b16 %v1510, %v1506
        %v2487 = vpack.c.b16 %v1511, %v1507
        %v2488 = vpack.c.b16 %v1512, %v1508
        %v2489 = vpack.c.b16 %v1517, %v1513
        %v2490 = vpack.c.b16 %v1518, %v1514
        %v2491 = vpack.c.b16 %v1519, %v1515
        %v2492 = vpack.c.b16 %v1520, %v1516
        %v2493 = vpack.c.b16 %v1525, %v1521
        %v2494 = vpack.c.b16 %v1526, %v1522
        %v2495 = vpack.c.b16 %v1527, %v1523
        %v2496 = vpack.c.b16 %v1528, %v1524
        %v2497 = vpack.c.b16 %v1533, %v1529
        %v2498 = vpack.c.b16 %v1534, %v1530
        %v2499 = vpack.c.b16 %v1535, %v1531
        %v2500 = vpack.c.b16 %v1536, %v1532
        %v2501 = vpack.c.b16 %v1541, %v1537
        %v2502 = vpack.c.b16 %v1542, %v1538
        %v2503 = vpack.c.b16 %v1543, %v1539
        %v2504 = vpack.c.b16 %v1544, %v1540
        %v2505 = vpack.c.b16 %v1549, %v1545
        %v2506 = vpack.c.b16 %v1550, %v1546
        %v2507 = vpack.c.b16 %v1551, %v1547
        %v2508 = vpack.c.b16 %v1552, %v1548
        %v2509 = vpack.c.b16 %v1557, %v1553
        %v2510 = vpack.c.b16 %v1558, %v1554
        %v2511 = vpack.c.b16 %v1559, %v1555
        %v2512 = vpack.c.b16 %v1560, %v1556
        %v2513 = vpack.c.b16 %v1565, %v1561
        %v2514 = vpack.c.b16 %v1566, %v1562
        %v2515 = vpack.c.b16 %v1567, %v1563
        %v2516 = vpack.c.b16 %v1568, %v1564
        %v2517 = vpack.c.b16 %v1573, %v1569
        %v2518 = vpack.c.b16 %v1574, %v1570
        %v2519 = vpack.c.b16 %v1575, %v1571
        %v2520 = vpack.c.b16 %v1576, %v1572
        %v2521 = vpack.c.b16 %v1581, %v1577
        %v2522 = vpack.c.b16 %v1582, %v1578
        %v2523 = vpack.c.b16 %v1583, %v1579
        %v2524 = vpack.c.b16 %v1584, %v1580
        %v2525 = vpack.c.b16 %v1589, %v1585
        %v2526 = vpack.c.b16 %v1590, %v1586
        %v2527 = vpack.c.b16 %v1591, %v1587
        %v2528 = vpack.c.b16 %v1592, %v1588
        %v2529 = vpack.c.b16 %v1597, %v1593
        %v2530 = vpack.c.b16 %v1598, %v1594
        %v2531 = vpack.c.b16 %v1599, %v1595
        %v2532 = vpack.c.b16 %v1600, %v1596
        %v2533 = vpack.c.b16 %v1605, %v1601
        %v2534 = vpack.c.b16 %v1606, %v1602
        %v2535 = vpack.c.b16 %v1607, %v1603
        %v2536 = vpack.c.b16 %v1608, %v1604
        %v2537 = vpack.c.b16 %v1613, %v1609
        %v2538 = vpack.c.b16 %v1614, %v1610
        %v2539 = vpack.c.b16 %v1615, %v1611
        %v2540 = vpack.c.b16 %v1616, %v1612
        %v2541 = vpack.c.b16 %v1621, %v1617
        %v2542 = vpack.c.b16 %v1622, %v1618
        %v2543 = vpack.c.b16 %v1623, %v1619
        %v2544 = vpack.c.b16 %v1624, %v1620
        %v2545 = vpack.c.b16 %v1629, %v1625
        %v2546 = vpack.c.b16 %v1630, %v1626
        %v2547 = vpack.c.b16 %v1631, %v1627
        %v2548 = vpack.c.b16 %v1632, %v1628
        %v2549 = vpack.c.b16 %v1637, %v1633
        %v2550 = vpack.c.b16 %v1638, %v1634
        %v2551 = vpack.c.b16 %v1639, %v1635
        %v2552 = vpack.c.b16 %v1640, %v1636
        %v2553 = vpack.c.b16 %v1645, %v1641
        %v2554 = vpack.c.b16 %v1646, %v1642
        %v2555 = vpack.c.b16 %v1647, %v1643
        %v2556 = vpack.c.b16 %v1648, %v1644
        %v2557 = vpack.c.b16 %v1653, %v1649
        %v2558 = vpack.c.b16 %v1654, %v1650
        %v2559 = vpack.c.b16 %v1655, %v1651
        %v2560 = vpack.c.b16 %v1656, %v1652
        %v2561 = vpack.c.b16 %v1661, %v1657
        %v2562 = vpack.c.b16 %v1662, %v1658
        %v2563 = vpack.c.b16 %v1663, %v1659
        %v2564 = vpack.c.b16 %v1664, %v1660
        %v2565 = vpack.c.b16 %v1669, %v1665
        %v2566 = vpack.c.b16 %v1670, %v1666
        %v2567 = vpack.c.b16 %v1671, %v1667
        %v2568 = vpack.c.b16 %v1672, %v1668
        %v2569 = vpack.c.b16 %v1677, %v1673
        %v2570 = vpack.c.b16 %v1678, %v1674
        %v2571 = vpack.c.b16 %v1679, %v1675
        %v2572 = vpack.c.b16 %v1680, %v1676
        %v2573 = vpack.c.b16 %v1685, %v1681
        %v2574 = vpack.c.b16 %v1686, %v1682
        %v2575 = vpack.c.b16 %v1687, %v1683
        %v2576 = vpack.c.b16 %v1688, %v1684
        %v2577 = vpack.c.b16 %v1693, %v1689
        %v2578 = vpack.c.b16 %v1694, %v1690
        %v2579 = vpack.c.b16 %v1695, %v1691
        %v2580 = vpack.c.b16 %v1696, %v1692
        %v2581 = vpack.c.b16 %v1701, %v1697
        %v2582 = vpack.c.b16 %v1702, %v1698
        %v2583 = vpack.c.b16 %v1703, %v1699
        %v2584 = vpack.c.b16 %v1704, %v1700
        %v2585 = vpack.c.b16 %v1709, %v1705
        %v2586 = vpack.c.b16 %v1710, %v1706
        %v2587 = vpack.c.b16 %v1711, %v1707
        %v2588 = vpack.c.b16 %v1712, %v1708
        %v2589 = vpack.c.b16 %v1717, %v1713
        %v2590 = vpack.c.b16 %v1718, %v1714
        %v2591 = vpack.c.b16 %v1719, %v1715
        %v2592 = vpack.c.b16 %v1720, %v1716
        %v2593 = vpack.c.b16 %v1725, %v1721
        %v2594 = vpack.c.b16 %v1726, %v1722
        %v2595 = vpack.c.b16 %v1727, %v1723
        %v2596 = vpack.c.b16 %v1728, %v1724
        %v2597 = vpack.c.b16 %v1733, %v1729
        %v2598 = vpack.c.b16 %v1734, %v1730
        %v2599 = vpack.c.b16 %v1735, %v1731
        %v2600 = vpack.c.b16 %v1736, %v1732
        %v2601 = vpack.c.b16 %v1741, %v1737
        %v2602 = vpack.c.b16 %v1742, %v1738
        %v2603 = vpack.c.b16 %v1743, %v1739
        %v2604 = vpack.c.b16 %v1744, %v1740
        %v2605 = vpack.c.b16 %v1749, %v1745
        %v2606 = vpack.c.b16 %v1750, %v1746
        %v2607 = vpack.c.b16 %v1751, %v1747
        %v2608 = vpack.c.b16 %v1752, %v1748
        %v2609 = vpack.c.b16 %v1757, %v1753
        %v2610 = vpack.c.b16 %v1758, %v1754
        %v2611 = vpack.c.b16 %v1759, %v1755
        %v2612 = vpack.c.b16 %v1760, %v1756
        %v2613 = vpack.c.b16 %v1765, %v1761
        %v2614 = vpack.c.b16 %v1766, %v1762
        %v2615 = vpack.c.b16 %v1767, %v1763
        %v2616 = vpack.c.b16 %v1768, %v1764
        %v2617 = vpack.c.b16 %v1773, %v1769
        %v2618 = vpack.c.b16 %v1774, %v1770
        %v2619 = vpack.c.b16 %v1775, %v1771
        %v2620 = vpack.c.b16 %v1776, %v1772
        %v2621 = vpack.c.b16 %v1781, %v1777
        %v2622 = vpack.c.b16 %v1782, %v1778
        %v2623 = vpack.c.b16 %v1783, %v1779
        %v2624 = vpack.c.b16 %v1784, %v1780
        %v2625 = vpack.c.b16 %v1789, %v1785
        %v2626 = vpack.c.b16 %v1790, %v1786
        %v2627 = vpack.c.b16 %v1791, %v1787
        %v2628 = vpack.c.b16 %v1792, %v1788
        %v2629 = vpack.c.b16 %v1797, %v1793
        %v2630 = vpack.c.b16 %v1798, %v1794
        %v2631 = vpack.c.b16 %v1799, %v1795
        %v2632 = vpack.c.b16 %v1800, %v1796
        %v2633 = vpack.c.b16 %v1805, %v1801
        %v2634 = vpack.c.b16 %v1806, %v1802
        %v2635 = vpack.c.b16 %v1807, %v1803
        %v2636 = vpack.c.b16 %v1808, %v1804
        %v2637 = vpack.c.b16 %v1813, %v1809
        %v2638 = vpack.c.b16 %v1814, %v1810
        %v2639 = vpack.c.b16 %v1815, %v1811
        %v2640 = vpack.c.b16 %v1816, %v1812
        %v2641 = vpack.c.b16 %v1821, %v1817
        %v2642 = vpack.c.b16 %v1822, %v1818
        %v2643 = vpack.c.b16 %v1823, %v1819
        %v2644 = vpack.c.b16 %v1824, %v1820
        %v2645 = vpack.c.b16 %v1829, %v1825
        %v2646 = vpack.c.b16 %v1830, %v1826
        %v2647 = vpack.c.b16 %v1831, %v1827
        %v2648 = vpack.c.b16 %v1832, %v1828
        %v2649 = vpack.c.b16 %v1837, %v1833
        %v2650 = vpack.c.b16 %v1838, %v1834
        %v2651 = vpack.c.b16 %v1839, %v1835
        %v2652 = vpack.c.b16 %v1840, %v1836
        %v2653 = vpack.c.b16 %v1845, %v1841
        %v2654 = vpack.c.b16 %v1846, %v1842
        %v2655 = vpack.c.b16 %v1847, %v1843
        %v2656 = vpack.c.b16 %v1848, %v1844
        %v2657 = vpack.c.b16 %v1853, %v1849
        %v2658 = vpack.c.b16 %v1854, %v1850
        %v2659 = vpack.c.b16 %v1855, %v1851
        %v2660 = vpack.c.b16 %v1856, %v1852
        %v2661 = vpack.c.b16 %v1861, %v1857
        %v2662 = vpack.c.b16 %v1862, %v1858
        %v2663 = vpack.c.b16 %v1863, %v1859
        %v2664 = vpack.c.b16 %v1864, %v1860
        %v2665 = vpack.c.b16 %v1869, %v1865
        %v2666 = vpack.c.b16 %v1870, %v1866
        %v2667 = vpack.c.b16 %v1871, %v1867
        %v2668 = vpack.c.b16 %v1872, %v1868
        %v2669 = vpack.c.b16 %v1877, %v1873
        %v2670 = vpack.c.b16 %v1878, %v1874
        %v2671 = vpack.c.b16 %v1879, %v1875
        %v2672 = vpack.c.b16 %v1880, %v1876
        %v2673 = vpack.c.b16 %v1885, %v1881
        %v2674 = vpack.c.b16 %v1886, %v1882
        %v2675 = vpack.c.b16 %v1887, %v1883
        %v2676 = vpack.c.b16 %v1888, %v1884
        %v2677 = vpack.c.b16 %v1893, %v1889
        %v2678 = vpack.c.b16 %v1894, %v1890
        %v2679 = vpack.c.b16 %v1895, %v1891
        %v2680 = vpack.c.b16 %v1896, %v1892
        %v2681 = vpack.c.b16 %v1901, %v1897
        %v2682 = vpack.c.b16 %v1902, %v1898
        %v2683 = vpack.c.b16 %v1903, %v1899
        %v2684 = vpack.c.b16 %v1904, %v1900
        %v2685 = vpack.c.b16 %v1909, %v1905
        %v2686 = vpack.c.b16 %v1910, %v1906
        %v2687 = vpack.c.b16 %v1911, %v1907
        %v2688 = vpack.c.b16 %v1912, %v1908
        %v2689 = vpack.c.b16 %v1917, %v1913
        %v2690 = vpack.c.b16 %v1918, %v1914
        %v2691 = vpack.c.b16 %v1919, %v1915
        %v2692 = vpack.c.b16 %v1920, %v1916
        %v2693 = vpack.c.b16 %v1925, %v1921
        %v2694 = vpack.c.b16 %v1926, %v1922
        %v2695 = vpack.c.b16 %v1927, %v1923
        %v2696 = vpack.c.b16 %v1928, %v1924
        %v2697 = vpack.c.b16 %v1933, %v1929
        %v2698 = vpack.c.b16 %v1934, %v1930
        %v2699 = vpack.c.b16 %v1935, %v1931
        %v2700 = vpack.c.b16 %v1936, %v1932
        %v2701 = vpack.c.b16 %v1941, %v1937
        %v2702 = vpack.c.b16 %v1942, %v1938
        %v2703 = vpack.c.b16 %v1943, %v1939
        %v2704 = vpack.c.b16 %v1944, %v1940
        %v2705 = vpack.c.b16 %v1949, %v1945
        %v2706 = vpack.c.b16 %v1950, %v1946
        %v2707 = vpack.c.b16 %v1951, %v1947
        %v2708 = vpack.c.b16 %v1952, %v1948
        %v2709 = vpack.c.b16 %v1957, %v1953
        %v2710 = vpack.c.b16 %v1958, %v1954
        %v2711 = vpack.c.b16 %v1959, %v1955
        %v2712 = vpack.c.b16 %v1960, %v1956
        %v2713 = vpack.c.b16 %v1965, %v1961
        %v2714 = vpack.c.b16 %v1966, %v1962
        %v2715 = vpack.c.b16 %v1967, %v1963
        %v2716 = vpack.c.b16 %v1968, %v1964
        %v2717 = vpack.c.b16 %v1973, %v1969
        %v2718 = vpack.c.b16 %v1974, %v1970
        %v2719 = vpack.c.b16 %v1975, %v1971
        %v2720 = vpack.c.b16 %v1976, %v1972
        %v2721 = vpack.c.b16 %v1981, %v1977
        %v2722 = vpack.c.b16 %v1982, %v1978
        %v2723 = vpack.c.b16 %v1983, %v1979
        %v2724 = vpack.c.b16 %v1984, %v1980
        %v2725 = vpack.c.b16 %v1989, %v1985
        %v2726 = vpack.c.b16 %v1990, %v1986
        %v2727 = vpack.c.b16 %v1991, %v1987
        %v2728 = vpack.c.b16 %v1992, %v1988
        %v2729 = vpack.c.b16 %v1997, %v1993
        %v2730 = vpack.c.b16 %v1998, %v1994
        %v2731 = vpack.c.b16 %v1999, %v1995
        %v2732 = vpack.c.b16 %v2000, %v1996
        %v2733 = vpack.c.b16 %v2005, %v2001
        %v2734 = vpack.c.b16 %v2006, %v2002
        %v2735 = vpack.c.b16 %v2007, %v2003
        %v2736 = vpack.c.b16 %v2008, %v2004
        %v2737 = vpack.c.b16 %v2013, %v2009
        %v2738 = vpack.c.b16 %v2014, %v2010
        %v2739 = vpack.c.b16 %v2015, %v2011
        %v2740 = vpack.c.b16 %v2016, %v2012
        %v2741 = vpack.c.b16 %v2021, %v2017
        %v2742 = vpack.c.b16 %v2022, %v2018
        %v2743 = vpack.c.b16 %v2023, %v2019
        %v2744 = vpack.c.b16 %v2024, %v2020
        %v2745 = vpack.c.b16 %v2029, %v2025
        %v2746 = vpack.c.b16 %v2030, %v2026
        %v2747 = vpack.c.b16 %v2031, %v2027
        %v2748 = vpack.c.b16 %v2032, %v2028
        %v2749 = vpack.c.b16 %v2037, %v2033
        %v2750 = vpack.c.b16 %v2038, %v2034
        %v2751 = vpack.c.b16 %v2039, %v2035
        %v2752 = vpack.c.b16 %v2040, %v2036
        %v2753 = vpack.c.b16 %v2045, %v2041
        %v2754 = vpack.c.b16 %v2046, %v2042
        %v2755 = vpack.c.b16 %v2047, %v2043
        %v2756 = vpack.c.b16 %v2048, %v2044
        %v2757 = vpack.c.b16 %v2053, %v2049
        %v2758 = vpack.c.b16 %v2054, %v2050
        %v2759 = vpack.c.b16 %v2055, %v2051
        %v2760 = vpack.c.b16 %v2056, %v2052
        %v2761 = vpack.c.b16 %v2061, %v2057
        %v2762 = vpack.c.b16 %v2062, %v2058
        %v2763 = vpack.c.b16 %v2063, %v2059
        %v2764 = vpack.c.b16 %v2064, %v2060
        %v2765 = vpack.c.b16 %v2069, %v2065
        %v2766 = vpack.c.b16 %v2070, %v2066
        %v2767 = vpack.c.b16 %v2071, %v2067
        %v2768 = vpack.c.b16 %v2072, %v2068
        %v2769 = vpack.c.b16 %v2077, %v2073
        %v2770 = vpack.c.b16 %v2078, %v2074
        %v2771 = vpack.c.b16 %v2079, %v2075
        %v2772 = vpack.c.b16 %v2080, %v2076
        %v2773 = vpack.c.b16 %v2085, %v2081
        %v2774 = vpack.c.b16 %v2086, %v2082
        %v2775 = vpack.c.b16 %v2087, %v2083
        %v2776 = vpack.c.b16 %v2088, %v2084
        %v2777 = vpack.c.b16 %v2093, %v2089
        %v2778 = vpack.c.b16 %v2094, %v2090
        %v2779 = vpack.c.b16 %v2095, %v2091
        %v2780 = vpack.c.b16 %v2096, %v2092
        %v2781 = vpack.c.b16 %v2101, %v2097
        %v2782 = vpack.c.b16 %v2102, %v2098
        %v2783 = vpack.c.b16 %v2103, %v2099
        %v2784 = vpack.c.b16 %v2104, %v2100
        %v2785 = vpack.c.b16 %v2109, %v2105
        %v2786 = vpack.c.b16 %v2110, %v2106
        %v2787 = vpack.c.b16 %v2111, %v2107
        %v2788 = vpack.c.b16 %v2112, %v2108
        %v2789 = vpack.c.b16 %v2117, %v2113
        %v2790 = vpack.c.b16 %v2118, %v2114
        %v2791 = vpack.c.b16 %v2119, %v2115
        %v2792 = vpack.c.b16 %v2120, %v2116
        %v2793 = vpack.c.b16 %v2125, %v2121
        %v2794 = vpack.c.b16 %v2126, %v2122
        %v2795 = vpack.c.b16 %v2127, %v2123
        %v2796 = vpack.c.b16 %v2128, %v2124
        %v2797 = vpack.c.b16 %v2133, %v2129
        %v2798 = vpack.c.b16 %v2134, %v2130
        %v2799 = vpack.c.b16 %v2135, %v2131
        %v2800 = vpack.c.b16 %v2136, %v2132
        %v2801 = vpack.c.b16 %v2141, %v2137
        %v2802 = vpack.c.b16 %v2142, %v2138
        %v2803 = vpack.c.b16 %v2143, %v2139
        %v2804 = vpack.c.b16 %v2144, %v2140
        %v2805 = vpack.c.b16 %v2149, %v2145
        %v2806 = vpack.c.b16 %v2150, %v2146
        %v2807 = vpack.c.b16 %v2151, %v2147
        %v2808 = vpack.c.b16 %v2152, %v2148
        %v2809 = vpack.c.b16 %v2157, %v2153
        %v2810 = vpack.c.b16 %v2158, %v2154
        %v2811 = vpack.c.b16 %v2159, %v2155
        %v2812 = vpack.c.b16 %v2160, %v2156
        %v2813 = vpack.c.b16 %v2165, %v2161
        %v2814 = vpack.c.b16 %v2166, %v2162
        %v2815 = vpack.c.b16 %v2167, %v2163
        %v2816 = vpack.c.b16 %v2168, %v2164
        %v2817 = vpack.c.b16 %v2173, %v2169
        %v2818 = vpack.c.b16 %v2174, %v2170
        %v2819 = vpack.c.b16 %v2175, %v2171
        %v2820 = vpack.c.b16 %v2176, %v2172
        %v2821 = vpack.c.b16 %v2181, %v2177
        %v2822 = vpack.c.b16 %v2182, %v2178
        %v2823 = vpack.c.b16 %v2183, %v2179
        %v2824 = vpack.c.b16 %v2184, %v2180
        %v2825 = vpack.c.b16 %v2189, %v2185
        %v2826 = vpack.c.b16 %v2190, %v2186
        %v2827 = vpack.c.b16 %v2191, %v2187
        %v2828 = vpack.c.b16 %v2192, %v2188
        %v2829 = vpack.c.b16 %v2197, %v2193
        %v2830 = vpack.c.b16 %v2198, %v2194
        %v2831 = vpack.c.b16 %v2199, %v2195
        %v2832 = vpack.c.b16 %v2200, %v2196
        %v2833 = vpack.c.b16 %v2205, %v2201
        %v2834 = vpack.c.b16 %v2206, %v2202
        %v2835 = vpack.c.b16 %v2207, %v2203
        %v2836 = vpack.c.b16 %v2208, %v2204
        %v2837 = vpack.c.b16 %v2213, %v2209
        %v2838 = vpack.c.b16 %v2214, %v2210
        %v2839 = vpack.c.b16 %v2215, %v2211
        %v2840 = vpack.c.b16 %v2216, %v2212
        %v2841 = vpack.c.b16 %v2221, %v2217
        %v2842 = vpack.c.b16 %v2222, %v2218
        %v2843 = vpack.c.b16 %v2223, %v2219
        %v2844 = vpack.c.b16 %v2224, %v2220
        %v2845 = vpack.c.b16 %v2229, %v2225
        %v2846 = vpack.c.b16 %v2230, %v2226
        %v2847 = vpack.c.b16 %v2231, %v2227
        %v2848 = vpack.c.b16 %v2232, %v2228
        %v2849 = vpack.c.b16 %v2237, %v2233
        %v2850 = vpack.c.b16 %v2238, %v2234
        %v2851 = vpack.c.b16 %v2239, %v2235
        %v2852 = vpack.c.b16 %v2240, %v2236
        %v2853 = vpack.c.b16 %v2245, %v2241
        %v2854 = vpack.c.b16 %v2246, %v2242
        %v2855 = vpack.c.b16 %v2247, %v2243
        %v2856 = vpack.c.b16 %v2248, %v2244
        %v2857 = vpack.c.b16 %v2253, %v2249
        %v2858 = vpack.c.b16 %v2254, %v2250
        %v2859 = vpack.c.b16 %v2255, %v2251
        %v2860 = vpack.c.b16 %v2256, %v2252
        %v2861 = vpack.c.b16 %v2261, %v2257
        %v2862 = vpack.c.b16 %v2262, %v2258
        %v2863 = vpack.c.b16 %v2263, %v2259
        %v2864 = vpack.c.b16 %v2264, %v2260
        %v2865 = vpack.c.b16 %v2269, %v2265
        %v2866 = vpack.c.b16 %v2270, %v2266
        %v2867 = vpack.c.b16 %v2271, %v2267
        %v2868 = vpack.c.b16 %v2272, %v2268
        %v2869 = vpack.c.b16 %v2277, %v2273
        %v2870 = vpack.c.b16 %v2278, %v2274
        %v2871 = vpack.c.b16 %v2279, %v2275
        %v2872 = vpack.c.b16 %v2280, %v2276
        %v2873 = vpack.c.b16 %v2285, %v2281
        %v2874 = vpack.c.b16 %v2286, %v2282
        %v2875 = vpack.c.b16 %v2287, %v2283
        %v2876 = vpack.c.b16 %v2288, %v2284
        %v2877 = vpack.c.b16 %v2293, %v2289
        %v2878 = vpack.c.b16 %v2294, %v2290
        %v2879 = vpack.c.b16 %v2295, %v2291
        %v2880 = vpack.c.b16 %v2296, %v2292
        %v2881 = vpack.c.b16 %v2301, %v2297
        %v2882 = vpack.c.b16 %v2302, %v2298
        %v2883 = vpack.c.b16 %v2303, %v2299
        %v2884 = vpack.c.b16 %v2304, %v2300
        %v2885 = vpack.c.b16 %v2309, %v2305
        %v2886 = vpack.c.b16 %v2310, %v2306
        %v2887 = vpack.c.b16 %v2311, %v2307
        %v2888 = vpack.c.b16 %v2312, %v2308
        %v2889 = vpack.c.b16 %v2317, %v2313
        %v2890 = vpack.c.b16 %v2318, %v2314
        %v2891 = vpack.c.b16 %v2319, %v2315
        %v2892 = vpack.c.b16 %v2320, %v2316
        %v2893 = vpack.c.b16 %v2325, %v2321
        %v2894 = vpack.c.b16 %v2326, %v2322
        %v2895 = vpack.c.b16 %v2327, %v2323
        %v2896 = vpack.c.b16 %v2328, %v2324
        %v2897 = vpack.c.b16 %v2333, %v2329
        %v2898 = vpack.c.b16 %v2334, %v2330
        %v2899 = vpack.c.b16 %v2335, %v2331
        %v2900 = vpack.c.b16 %v2336, %v2332
        %v2901 = vpack.c.b16 %v2341, %v2337
        %v2902 = vpack.c.b16 %v2342, %v2338
        %v2903 = vpack.c.b16 %v2343, %v2339
        %v2904 = vpack.c.b16 %v2344, %v2340
        %v2905 = vpack.c.b16 %v2349, %v2345
        %v2906 = vpack.c.b16 %v2350, %v2346
        %v2907 = vpack.c.b16 %v2351, %v2347
        %v2908 = vpack.c.b16 %v2352, %v2348
        %v2909 = vpack.c.b16 %v2357, %v2353
        %v2910 = vpack.c.b16 %v2358, %v2354
        %v2911 = vpack.c.b16 %v2359, %v2355
        %v2912 = vpack.c.b16 %v2360, %v2356
        %v2913 = vpack.c.b16 %v2365, %v2361
        %v2914 = vpack.c.b16 %v2366, %v2362
        %v2915 = vpack.c.b16 %v2367, %v2363
        %v2916 = vpack.c.b16 %v2368, %v2364
        %v2917 = vpack.c.b16 %v2373, %v2369
        %v2918 = vpack.c.b16 %v2374, %v2370
        %v2919 = vpack.c.b16 %v2375, %v2371
        %v2920 = vpack.c.b16 %v2376, %v2372
        %v2921 = vpack.c.b16 %v2381, %v2377
        %v2922 = vpack.c.b16 %v2382, %v2378
        %v2923 = vpack.c.b16 %v2383, %v2379
        %v2924 = vpack.c.b16 %v2384, %v2380
        %v2925 = vpack.c.b16 %v2389, %v2385
        %v2926 = vpack.c.b16 %v2390, %v2386
        %v2927 = vpack.c.b16 %v2391, %v2387
        %v2928 = vpack.c.b16 %v2392, %v2388
        %v2929 = vpack.c.b16 %v2397, %v2393
        %v2930 = vpack.c.b16 %v2398, %v2394
        %v2931 = vpack.c.b16 %v2399, %v2395
        %v2932 = vpack.c.b16 %v2400, %v2396
        %v2933 = vpack.c.b16 %v2405, %v2401
        %v2934 = vpack.c.b16 %v2406, %v2402
        %v2935 = vpack.c.b16 %v2407, %v2403
        %v2936 = vpack.c.b16 %v2408, %v2404
        %v2937 = vpack.c.b16 %v2413, %v2409
        %v2938 = vpack.c.b16 %v2414, %v2410
        %v2939 = vpack.c.b16 %v2415, %v2411
        %v2940 = vpack.c.b16 %v2416, %v2412
        %v2941 = vpack.c.b16 %v2421, %v2417
        %v2942 = vpack.c.b16 %v2422, %v2418
        %v2943 = vpack.c.b16 %v2423, %v2419
        %v2944 = vpack.c.b16 %v2424, %v2420
        %v2945 = vpack.c.b16 %v2429, %v2425
        %v2946 = vpack.c.b16 %v2430, %v2426
        %v2947 = vpack.c.b16 %v2431, %v2427
        %v2948 = vpack.c.b16 %v2432, %v2428
        %v2949 = vpack.c.b16 %v2437, %v2433
        %v2950 = vpack.c.b16 %v2438, %v2434
        %v2951 = vpack.c.b16 %v2439, %v2435
        %v2952 = vpack.c.b16 %v2440, %v2436
        %3465 = vmatprep.subr.bf16.mxu0 %v2442
        %3466 = vmatpush1.bf16.msra.mxu0 %v2441
        %3467 = vmatprep.subr.bf16.mxu0 %v2446
        %3468 = vmatpush1.bf16.msra.mxu0 %v2445
        %3469 = vmatprep.subr.bf16.mxu0 %v2450
        %3470 = vmatpush1.bf16.msra.mxu0 %v2449
        %3471 = vmatprep.subr.bf16.mxu0 %v2454
        %3472 = vmatpush1.bf16.msra.mxu0 %v2453
        %3473 = vmatprep.subr.bf16.mxu0 %v2458
        %3474 = vmatpush1.bf16.msra.mxu0 %v2457
        %3475 = vmatprep.subr.bf16.mxu0 %v2462
        %3476 = vmatpush1.bf16.msra.mxu0 %v2461
        %3477 = vmatprep.subr.bf16.mxu0 %v2466
        %3478 = vmatpush1.bf16.msra.mxu0 %v2465
        %3479 = vmatprep.subr.bf16.mxu0 %v2470
        %3480 = vmatpush1.bf16.msra.mxu0 %v2469
        %3481 = vmatprep.subr.bf16.mxu0 %v2474
        %3482 = vmatpush1.bf16.msra.mxu0 %v2473
        %3483 = vmatprep.subr.bf16.mxu0 %v2478
        %3484 = vmatpush1.bf16.msra.mxu0 %v2477
        %3485 = vmatprep.subr.bf16.mxu0 %v2482
        %3486 = vmatpush1.bf16.msra.mxu0 %v2481
        %3487 = vmatprep.subr.bf16.mxu0 %v2486
        %3488 = vmatpush1.bf16.msra.mxu0 %v2485
        %3489 = vmatprep.subr.bf16.mxu0 %v2490
        %3490 = vmatpush1.bf16.msra.mxu0 %v2489
        %3491 = vmatprep.subr.bf16.mxu0 %v2494
        %3492 = vmatpush1.bf16.msra.mxu0 %v2493
        %3493 = vmatprep.subr.bf16.mxu0 %v2498
        %3494 = vmatpush1.bf16.msra.mxu0 %v2497
        %3495 = vmatprep.subr.bf16.mxu0 %v2502
        %3496 = vmatpush1.bf16.msra.mxu0 %v2501
        %3497 = vmatprep.mubr.bf16.mxu0 %v828
        %3498 = vmatmul.mubr.bf16.gmra.mrb[0].mxu0 %v814
        %v3499 = vpop.f32.mrb[0].mxu0
        %v3500 = vadd.f32 0.0, %v3499
        %v3501 = vpop.f32.mrb[0].mxu0
        %v3502 = vadd.f32 0.0, %v3501
        %v3503 = vpop.f32.mrb[0].mxu0
        %v3504 = vpop.f32.mrb[0].mxu0
        %3505 = vdwg.mxu0
        %3506 = vmatprep.subr.bf16.mxu0 %v2506
        %3507 = vmatpush1.bf16.msra.mxu0 %v2505
        %3508 = vmatprep.subr.bf16.mxu0 %v2510
        %3509 = vmatpush1.bf16.msra.mxu0 %v2509
        %3510 = vmatprep.subr.bf16.mxu0 %v2514
        %3511 = vmatpush1.bf16.msra.mxu0 %v2513
        %3512 = vmatprep.subr.bf16.mxu0 %v2518
        %3513 = vmatpush1.bf16.msra.mxu0 %v2517
        %3514 = vmatprep.subr.bf16.mxu0 %v2522
        %3515 = vmatpush1.bf16.msra.mxu0 %v2521
        %3516 = vmatprep.subr.bf16.mxu0 %v2526
        %3517 = vmatpush1.bf16.msra.mxu0 %v2525
        %3518 = vmatprep.subr.bf16.mxu0 %v2530
        %3519 = vmatpush1.bf16.msra.mxu0 %v2529
        %3520 = vmatprep.subr.bf16.mxu0 %v2534
        %3521 = vmatpush1.bf16.msra.mxu0 %v2533
        %3522 = vmatprep.subr.bf16.mxu0 %v2538
        %3523 = vmatpush1.bf16.msra.mxu0 %v2537
        %3524 = vmatprep.subr.bf16.mxu0 %v2542
        %3525 = vmatpush1.bf16.msra.mxu0 %v2541
        %3526 = vmatprep.subr.bf16.mxu0 %v2546
        %3527 = vmatpush1.bf16.msra.mxu0 %v2545
        %3528 = vmatprep.subr.bf16.mxu0 %v2550
        %3529 = vmatpush1.bf16.msra.mxu0 %v2549
        %3530 = vmatprep.subr.bf16.mxu0 %v2554
        %3531 = vmatpush1.bf16.msra.mxu0 %v2553
        %3532 = vmatprep.subr.bf16.mxu0 %v2558
        %3533 = vmatpush1.bf16.msra.mxu0 %v2557
        %3534 = vmatprep.subr.bf16.mxu0 %v2562
        %3535 = vmatpush1.bf16.msra.mxu0 %v2561
        %3536 = vmatprep.subr.bf16.mxu0 %v2566
        %3537 = vmatpush1.bf16.msra.mxu0 %v2565
        %3538 = vmatprep.mubr.bf16.mxu0 %v838
        %3539 = vmatmul.mubr.bf16.gmra.mrb[0].mxu0 %v836
        %v3540 = vpop.f32.mrb[0].mxu0
        %v3541 = vadd.f32 %v3500, %v3540
        %v3542 = vpop.f32.mrb[0].mxu0
        %v3543 = vadd.f32 %v3502, %v3542
        %v3544 = vpop.f32.mrb[0].mxu0
        %v3545 = vpop.f32.mrb[0].mxu0
        %3546 = vdwg.mxu0
        %3547 = vmatprep.subr.bf16.mxu0 %v2570
        %3548 = vmatpush1.bf16.msra.mxu0 %v2569
        %3549 = vmatprep.subr.bf16.mxu0 %v2574
        %3550 = vmatpush1.bf16.msra.mxu0 %v2573
        %3551 = vmatprep.subr.bf16.mxu0 %v2578
        %3552 = vmatpush1.bf16.msra.mxu0 %v2577
        %3553 = vmatprep.subr.bf16.mxu0 %v2582
        %3554 = vmatpush1.bf16.msra.mxu0 %v2581
        %3555 = vmatprep.subr.bf16.mxu0 %v2586
        %3556 = vmatpush1.bf16.msra.mxu0 %v2585
        %3557 = vmatprep.subr.bf16.mxu0 %v2590
        %3558 = vmatpush1.bf16.msra.mxu0 %v2589
        %3559 = vmatprep.subr.bf16.mxu0 %v2594
        %3560 = vmatpush1.bf16.msra.mxu0 %v2593
        %3561 = vmatprep.subr.bf16.mxu0 %v2598
        %3562 = vmatpush1.bf16.msra.mxu0 %v2597
        %3563 = vmatprep.subr.bf16.mxu0 %v2602
        %3564 = vmatpush1.bf16.msra.mxu0 %v2601
        %3565 = vmatprep.subr.bf16.mxu0 %v2606
        %3566 = vmatpush1.bf16.msra.mxu0 %v2605
        %3567 = vmatprep.subr.bf16.mxu0 %v2610
        %3568 = vmatpush1.bf16.msra.mxu0 %v2609
        %3569 = vmatprep.subr.bf16.mxu0 %v2614
        %3570 = vmatpush1.bf16.msra.mxu0 %v2613
        %3571 = vmatprep.subr.bf16.mxu0 %v2618
        %3572 = vmatpush1.bf16.msra.mxu0 %v2617
        %3573 = vmatprep.subr.bf16.mxu0 %v2622
        %3574 = vmatpush1.bf16.msra.mxu0 %v2621
        %3575 = vmatprep.subr.bf16.mxu0 %v2626
        %3576 = vmatpush1.bf16.msra.mxu0 %v2625
        %3577 = vmatprep.subr.bf16.mxu0 %v2630
        %3578 = vmatpush1.bf16.msra.mxu0 %v2629
        %3579 = vmatprep.mubr.bf16.mxu0 %v835
        %3580 = vmatmul.mubr.bf16.gmra.mrb[0].mxu0 %v821
        %v3581 = vpop.f32.mrb[0].mxu0
        %v3582 = vadd.f32 %v3541, %v3581
        %v3583 = vpop.f32.mrb[0].mxu0
        %v3584 = vadd.f32 %v3543, %v3583
        %v3585 = vpop.f32.mrb[0].mxu0
        %v3586 = vpop.f32.mrb[0].mxu0
        %3587 = vdwg.mxu0
        %3588 = vmatprep.subr.bf16.mxu0 %v2634
        %3589 = vmatpush1.bf16.msra.mxu0 %v2633
        %3590 = vmatprep.subr.bf16.mxu0 %v2638
        %3591 = vmatpush1.bf16.msra.mxu0 %v2637
        %3592 = vmatprep.subr.bf16.mxu0 %v2642
        %3593 = vmatpush1.bf16.msra.mxu0 %v2641
        %3594 = vmatprep.subr.bf16.mxu0 %v2646
        %3595 = vmatpush1.bf16.msra.mxu0 %v2645
        %3596 = vmatprep.subr.bf16.mxu0 %v2650
        %3597 = vmatpush1.bf16.msra.mxu0 %v2649
        %3598 = vmatprep.subr.bf16.mxu0 %v2654
        %3599 = vmatpush1.bf16.msra.mxu0 %v2653
        %3600 = vmatprep.subr.bf16.mxu0 %v2658
        %3601 = vmatpush1.bf16.msra.mxu0 %v2657
        %3602 = vmatprep.subr.bf16.mxu0 %v2662
        %3603 = vmatpush1.bf16.msra.mxu0 %v2661
        %3604 = vmatprep.subr.bf16.mxu0 %v2666
        %3605 = vmatpush1.bf16.msra.mxu0 %v2665
        %3606 = vmatprep.subr.bf16.mxu0 %v2670
        %3607 = vmatpush1.bf16.msra.mxu0 %v2669
        %3608 = vmatprep.subr.bf16.mxu0 %v2674
        %3609 = vmatpush1.bf16.msra.mxu0 %v2673
        %3610 = vmatprep.subr.bf16.mxu0 %v2678
        %3611 = vmatpush1.bf16.msra.mxu0 %v2677
        %3612 = vmatprep.subr.bf16.mxu0 %v2682
        %3613 = vmatpush1.bf16.msra.mxu0 %v2681
        %3614 = vmatprep.subr.bf16.mxu0 %v2686
        %3615 = vmatpush1.bf16.msra.mxu0 %v2685
        %3616 = vmatprep.subr.bf16.mxu0 %v2690
        %3617 = vmatpush1.bf16.msra.mxu0 %v2689
        %3618 = vmatprep.subr.bf16.mxu0 %v2694
        %3619 = vmatpush1.bf16.msra.mxu0 %v2693
        %3620 = vmatprep.mubr.bf16.mxu0 %v839
        %3621 = vmatmul.mubr.bf16.gmra.mrb[0].mxu0 %v837
        %v3622 = vpop.f32.mrb[0].mxu0
        %v3623 = vadd.f32 %v3582, %v3622
        %v3624 = vpop.f32.mrb[0].mxu0
        %v3625 = vadd.f32 %v3584, %v3624
        %v3626 = vpop.f32.mrb[0].mxu0
        %v3627 = vpop.f32.mrb[0].mxu0
        %3628 = vdwg.mxu0
        %3629 = vmatprep.subr.bf16.mxu0 %v2698
        %3630 = vmatpush1.bf16.msra.mxu0 %v2697
        %3631 = vmatprep.subr.bf16.mxu0 %v2702
        %3632 = vmatpush1.bf16.msra.mxu0 %v2701
        %3633 = vmatprep.subr.bf16.mxu0 %v2706
        %3634 = vmatpush1.bf16.msra.mxu0 %v2705
        %3635 = vmatprep.subr.bf16.mxu0 %v2710
        %3636 = vmatpush1.bf16.msra.mxu0 %v2709
        %3637 = vmatprep.subr.bf16.mxu0 %v2714
        %3638 = vmatpush1.bf16.msra.mxu0 %v2713
        %3639 = vmatprep.subr.bf16.mxu0 %v2718
        %3640 = vmatpush1.bf16.msra.mxu0 %v2717
        %3641 = vmatprep.subr.bf16.mxu0 %v2722
        %3642 = vmatpush1.bf16.msra.mxu0 %v2721
        %3643 = vmatprep.subr.bf16.mxu0 %v2726
        %3644 = vmatpush1.bf16.msra.mxu0 %v2725
        %3645 = vmatprep.subr.bf16.mxu0 %v2730
        %3646 = vmatpush1.bf16.msra.mxu0 %v2729
        %3647 = vmatprep.subr.bf16.mxu0 %v2734
        %3648 = vmatpush1.bf16.msra.mxu0 %v2733
        %3649 = vmatprep.subr.bf16.mxu0 %v2738
        %3650 = vmatpush1.bf16.msra.mxu0 %v2737
        %3651 = vmatprep.subr.bf16.mxu0 %v2742
        %3652 = vmatpush1.bf16.msra.mxu0 %v2741
        %3653 = vmatprep.subr.bf16.mxu0 %v2746
        %3654 = vmatpush1.bf16.msra.mxu0 %v2745
        %3655 = vmatprep.subr.bf16.mxu0 %v2750
        %3656 = vmatpush1.bf16.msra.mxu0 %v2749
        %3657 = vmatprep.subr.bf16.mxu0 %v2754
        %3658 = vmatpush1.bf16.msra.mxu0 %v2753
        %3659 = vmatprep.subr.bf16.mxu0 %v2758
        %3660 = vmatpush1.bf16.msra.mxu0 %v2757
        %3661 = vmatprep.mubr.bf16.mxu0 %v877
        %3662 = vmatmul.mubr.bf16.gmra.mrb[0].mxu0 %v863
        %v3663 = vpop.f32.mrb[0].mxu0
        %v3664 = vadd.f32 %v3623, %v3663
        %v3665 = vpop.f32.mrb[0].mxu0
        %v3666 = vadd.f32 %v3625, %v3665
        %v3667 = vpop.f32.mrb[0].mxu0
        %v3668 = vpop.f32.mrb[0].mxu0
        %3669 = vdwg.mxu0
        %3670 = vmatprep.subr.bf16.mxu0 %v2762
        %3671 = vmatpush1.bf16.msra.mxu0 %v2761
        %3672 = vmatprep.subr.bf16.mxu0 %v2766
        %3673 = vmatpush1.bf16.msra.mxu0 %v2765
        %3674 = vmatprep.subr.bf16.mxu0 %v2770
        %3675 = vmatpush1.bf16.msra.mxu0 %v2769
        %3676 = vmatprep.subr.bf16.mxu0 %v2774
        %3677 = vmatpush1.bf16.msra.mxu0 %v2773
        %3678 = vmatprep.subr.bf16.mxu0 %v2778
        %3679 = vmatpush1.bf16.msra.mxu0 %v2777
        %3680 = vmatprep.subr.bf16.mxu0 %v2782
        %3681 = vmatpush1.bf16.msra.mxu0 %v2781
        %3682 = vmatprep.subr.bf16.mxu0 %v2786
        %3683 = vmatpush1.bf16.msra.mxu0 %v2785
        %3684 = vmatprep.subr.bf16.mxu0 %v2790
        %3685 = vmatpush1.bf16.msra.mxu0 %v2789
        %3686 = vmatprep.subr.bf16.mxu0 %v2794
        %3687 = vmatpush1.bf16.msra.mxu0 %v2793
        %3688 = vmatprep.subr.bf16.mxu0 %v2798
        %3689 = vmatpush1.bf16.msra.mxu0 %v2797
        %3690 = vmatprep.subr.bf16.mxu0 %v2802
        %3691 = vmatpush1.bf16.msra.mxu0 %v2801
        %3692 = vmatprep.subr.bf16.mxu0 %v2806
        %3693 = vmatpush1.bf16.msra.mxu0 %v2805
        %3694 = vmatprep.subr.bf16.mxu0 %v2810
        %3695 = vmatpush1.bf16.msra.mxu0 %v2809
        %3696 = vmatprep.subr.bf16.mxu0 %v2814
        %3697 = vmatpush1.bf16.msra.mxu0 %v2813
        %3698 = vmatprep.subr.bf16.mxu0 %v2818
        %3699 = vmatpush1.bf16.msra.mxu0 %v2817
        %3700 = vmatprep.subr.bf16.mxu0 %v2822
        %3701 = vmatpush1.bf16.msra.mxu0 %v2821
        %3702 = vmatprep.mubr.bf16.mxu0 %v887
        %3703 = vmatmul.mubr.bf16.gmra.mrb[0].mxu0 %v885
        %v3704 = vpop.f32.mrb[0].mxu0
        %v3705 = vadd.f32 %v3664, %v3704
        %v3706 = vpop.f32.mrb[0].mxu0
        %v3707 = vadd.f32 %v3666, %v3706
        %v3708 = vpop.f32.mrb[0].mxu0
        %v3709 = vpop.f32.mrb[0].mxu0
        %3710 = vdwg.mxu0
        %3711 = vmatprep.subr.bf16.mxu0 %v2826
        %3712 = vmatpush1.bf16.msra.mxu0 %v2825
        %3713 = vmatprep.subr.bf16.mxu0 %v2830
        %3714 = vmatpush1.bf16.msra.mxu0 %v2829
        %3715 = vmatprep.subr.bf16.mxu0 %v2834
        %3716 = vmatpush1.bf16.msra.mxu0 %v2833
        %3717 = vmatprep.subr.bf16.mxu0 %v2838
        %3718 = vmatpush1.bf16.msra.mxu0 %v2837
        %3719 = vmatprep.subr.bf16.mxu0 %v2842
        %3720 = vmatpush1.bf16.msra.mxu0 %v2841
        %3721 = vmatprep.subr.bf16.mxu0 %v2846
        %3722 = vmatpush1.bf16.msra.mxu0 %v2845
        %3723 = vmatprep.subr.bf16.mxu0 %v2850
        %3724 = vmatpush1.bf16.msra.mxu0 %v2849
        %3725 = vmatprep.subr.bf16.mxu0 %v2854
        %3726 = vmatpush1.bf16.msra.mxu0 %v2853
        %3727 = vmatprep.subr.bf16.mxu0 %v2858
        %3728 = vmatpush1.bf16.msra.mxu0 %v2857
        %3729 = vmatprep.subr.bf16.mxu0 %v2862
        %3730 = vmatpush1.bf16.msra.mxu0 %v2861
        %3731 = vmatprep.subr.bf16.mxu0 %v2866
        %3732 = vmatpush1.bf16.msra.mxu0 %v2865
        %3733 = vmatprep.subr.bf16.mxu0 %v2870
        %3734 = vmatpush1.bf16.msra.mxu0 %v2869
        %3735 = vmatprep.subr.bf16.mxu0 %v2874
        %3736 = vmatpush1.bf16.msra.mxu0 %v2873
        %3737 = vmatprep.subr.bf16.mxu0 %v2878
        %3738 = vmatpush1.bf16.msra.mxu0 %v2877
        %3739 = vmatprep.subr.bf16.mxu0 %v2882
        %3740 = vmatpush1.bf16.msra.mxu0 %v2881
        %3741 = vmatprep.subr.bf16.mxu0 %v2886
        %3742 = vmatpush1.bf16.msra.mxu0 %v2885
        %3743 = vmatprep.mubr.bf16.mxu0 %v884
        %3744 = vmatmul.mubr.bf16.gmra.mrb[0].mxu0 %v870
        %v3745 = vpop.f32.mrb[0].mxu0
        %v3746 = vadd.f32 %v3705, %v3745
        %v3747 = vpop.f32.mrb[0].mxu0
        %v3748 = vadd.f32 %v3707, %v3747
        %v3749 = vpop.f32.mrb[0].mxu0
        %v3750 = vpop.f32.mrb[0].mxu0
        %3751 = vdwg.mxu0
        %3752 = vmatprep.subr.bf16.mxu0 %v2890
        %3753 = vmatpush1.bf16.msra.mxu0 %v2889
        %3754 = vmatprep.subr.bf16.mxu0 %v2894
        %3755 = vmatpush1.bf16.msra.mxu0 %v2893
        %3756 = vmatprep.subr.bf16.mxu0 %v2898
        %3757 = vmatpush1.bf16.msra.mxu0 %v2897
        %3758 = vmatprep.subr.bf16.mxu0 %v2902
        %3759 = vmatpush1.bf16.msra.mxu0 %v2901
        %3760 = vmatprep.subr.bf16.mxu0 %v2906
        %3761 = vmatpush1.bf16.msra.mxu0 %v2905
        %3762 = vmatprep.subr.bf16.mxu0 %v2910
        %3763 = vmatpush1.bf16.msra.mxu0 %v2909
        %3764 = vmatprep.subr.bf16.mxu0 %v2914
        %3765 = vmatpush1.bf16.msra.mxu0 %v2913
        %3766 = vmatprep.subr.bf16.mxu0 %v2918
        %3767 = vmatpush1.bf16.msra.mxu0 %v2917
        %3768 = vmatprep.subr.bf16.mxu0 %v2922
        %3769 = vmatpush1.bf16.msra.mxu0 %v2921
        %3770 = vmatprep.subr.bf16.mxu0 %v2926
        %3771 = vmatpush1.bf16.msra.mxu0 %v2925
        %3772 = vmatprep.subr.bf16.mxu0 %v2930
        %3773 = vmatpush1.bf16.msra.mxu0 %v2929
        %3774 = vmatprep.subr.bf16.mxu0 %v2934
        %3775 = vmatpush1.bf16.msra.mxu0 %v2933
        %3776 = vmatprep.subr.bf16.mxu0 %v2938
        %3777 = vmatpush1.bf16.msra.mxu0 %v2937
        %3778 = vmatprep.subr.bf16.mxu0 %v2942
        %3779 = vmatpush1.bf16.msra.mxu0 %v2941
        %3780 = vmatprep.subr.bf16.mxu0 %v2946
        %3781 = vmatpush1.bf16.msra.mxu0 %v2945
        %3782 = vmatprep.subr.bf16.mxu0 %v2950
        %3783 = vmatpush1.bf16.msra.mxu0 %v2949
        %3784 = vmatprep.mubr.bf16.mxu0 %v888
        %3785 = vmatmul.mubr.bf16.gmra.mrb[0].mxu0 %v886
        %v3786 = vpop.f32.mrb[0].mxu0
        %v3787 = vadd.f32 %v3746, %v3786
        %v3788 = vpop.f32.mrb[0].mxu0
        %v3789 = vadd.f32 %v3748, %v3788
        %v3790 = vpop.f32.mrb[0].mxu0
        %v3791 = vpop.f32.mrb[0].mxu0
        %3792 = vdwg.mxu0
        %3793 = vmatprep.subr.bf16.mxu0 %v2444
        %3794 = vmatpush1.bf16.msra.mxu0 %v2443
        %3795 = vmatprep.subr.bf16.mxu0 %v2448
        %3796 = vmatpush1.bf16.msra.mxu0 %v2447
        %3797 = vmatprep.subr.bf16.mxu0 %v2452
        %3798 = vmatpush1.bf16.msra.mxu0 %v2451
        %3799 = vmatprep.subr.bf16.mxu0 %v2456
        %3800 = vmatpush1.bf16.msra.mxu0 %v2455
        %3801 = vmatprep.subr.bf16.mxu0 %v2460
        %3802 = vmatpush1.bf16.msra.mxu0 %v2459
        %3803 = vmatprep.subr.bf16.mxu0 %v2464
        %3804 = vmatpush1.bf16.msra.mxu0 %v2463
        %3805 = vmatprep.subr.bf16.mxu0 %v2468
        %3806 = vmatpush1.bf16.msra.mxu0 %v2467
        %3807 = vmatprep.subr.bf16.mxu0 %v2472
        %3808 = vmatpush1.bf16.msra.mxu0 %v2471
        %3809 = vmatprep.subr.bf16.mxu0 %v2476
        %3810 = vmatpush1.bf16.msra.mxu0 %v2475
        %3811 = vmatprep.subr.bf16.mxu0 %v2480
        %3812 = vmatpush1.bf16.msra.mxu0 %v2479
        %3813 = vmatprep.subr.bf16.mxu0 %v2484
        %3814 = vmatpush1.bf16.msra.mxu0 %v2483
        %3815 = vmatprep.subr.bf16.mxu0 %v2488
        %3816 = vmatpush1.bf16.msra.mxu0 %v2487
        %3817 = vmatprep.subr.bf16.mxu0 %v2492
        %3818 = vmatpush1.bf16.msra.mxu0 %v2491
        %3819 = vmatprep.subr.bf16.mxu0 %v2496
        %3820 = vmatpush1.bf16.msra.mxu0 %v2495
        %3821 = vmatprep.subr.bf16.mxu0 %v2500
        %3822 = vmatpush1.bf16.msra.mxu0 %v2499
        %3823 = vmatprep.subr.bf16.mxu0 %v2504
        %3824 = vmatpush1.bf16.msra.mxu0 %v2503
        %3825 = vmatprep.mubr.bf16.mxu0 %v828
        %3826 = vmatmul.mubr.bf16.gmra.mrb[0].mxu0 %v814
        %v3827 = vpop.f32.mrb[0].mxu0
        %v3828 = vadd.f32 0.0, %v3827
        %v3829 = vpop.f32.mrb[0].mxu0
        %v3830 = vadd.f32 0.0, %v3829
        %v3831 = vpop.f32.mrb[0].mxu0
        %v3832 = vpop.f32.mrb[0].mxu0
        %3833 = vdwg.mxu0
        %3834 = vmatprep.subr.bf16.mxu0 %v2508
        %3835 = vmatpush1.bf16.msra.mxu0 %v2507
        %3836 = vmatprep.subr.bf16.mxu0 %v2512
        %3837 = vmatpush1.bf16.msra.mxu0 %v2511
        %3838 = vmatprep.subr.bf16.mxu0 %v2516
        %3839 = vmatpush1.bf16.msra.mxu0 %v2515
        %3840 = vmatprep.subr.bf16.mxu0 %v2520
        %3841 = vmatpush1.bf16.msra.mxu0 %v2519
        %3842 = vmatprep.subr.bf16.mxu0 %v2524
        %3843 = vmatpush1.bf16.msra.mxu0 %v2523
        %3844 = vmatprep.subr.bf16.mxu0 %v2528
        %3845 = vmatpush1.bf16.msra.mxu0 %v2527
        %3846 = vmatprep.subr.bf16.mxu0 %v2532
        %3847 = vmatpush1.bf16.msra.mxu0 %v2531
        %3848 = vmatprep.subr.bf16.mxu0 %v2536
        %3849 = vmatpush1.bf16.msra.mxu0 %v2535
        %3850 = vmatprep.subr.bf16.mxu0 %v2540
        %3851 = vmatpush1.bf16.msra.mxu0 %v2539
        %3852 = vmatprep.subr.bf16.mxu0 %v2544
        %3853 = vmatpush1.bf16.msra.mxu0 %v2543
        %3854 = vmatprep.subr.bf16.mxu0 %v2548
        %3855 = vmatpush1.bf16.msra.mxu0 %v2547
        %3856 = vmatprep.subr.bf16.mxu0 %v2552
        %3857 = vmatpush1.bf16.msra.mxu0 %v2551
        %3858 = vmatprep.subr.bf16.mxu0 %v2556
        %3859 = vmatpush1.bf16.msra.mxu0 %v2555
        %3860 = vmatprep.subr.bf16.mxu0 %v2560
        %3861 = vmatpush1.bf16.msra.mxu0 %v2559
        %3862 = vmatprep.subr.bf16.mxu0 %v2564
        %3863 = vmatpush1.bf16.msra.mxu0 %v2563
        %3864 = vmatprep.subr.bf16.mxu0 %v2568
        %3865 = vmatpush1.bf16.msra.mxu0 %v2567
        %3866 = vmatprep.mubr.bf16.mxu0 %v838
        %3867 = vmatmul.mubr.bf16.gmra.mrb[0].mxu0 %v836
        %v3868 = vpop.f32.mrb[0].mxu0
        %v3869 = vadd.f32 %v3828, %v3868
        %v3870 = vpop.f32.mrb[0].mxu0
        %v3871 = vadd.f32 %v3830, %v3870
        %v3872 = vpop.f32.mrb[0].mxu0
        %v3873 = vpop.f32.mrb[0].mxu0
        %3874 = vdwg.mxu0
        %3875 = vmatprep.subr.bf16.mxu0 %v2572
        %3876 = vmatpush1.bf16.msra.mxu0 %v2571
        %3877 = vmatprep.subr.bf16.mxu0 %v2576
        %3878 = vmatpush1.bf16.msra.mxu0 %v2575
        %3879 = vmatprep.subr.bf16.mxu0 %v2580
        %3880 = vmatpush1.bf16.msra.mxu0 %v2579
        %3881 = vmatprep.subr.bf16.mxu0 %v2584
        %3882 = vmatpush1.bf16.msra.mxu0 %v2583
        %3883 = vmatprep.subr.bf16.mxu0 %v2588
        %3884 = vmatpush1.bf16.msra.mxu0 %v2587
        %3885 = vmatprep.subr.bf16.mxu0 %v2592
        %3886 = vmatpush1.bf16.msra.mxu0 %v2591
        %3887 = vmatprep.subr.bf16.mxu0 %v2596
        %3888 = vmatpush1.bf16.msra.mxu0 %v2595
        %3889 = vmatprep.subr.bf16.mxu0 %v2600
        %3890 = vmatpush1.bf16.msra.mxu0 %v2599
        %3891 = vmatprep.subr.bf16.mxu0 %v2604
        %3892 = vmatpush1.bf16.msra.mxu0 %v2603
        %3893 = vmatprep.subr.bf16.mxu0 %v2608
        %3894 = vmatpush1.bf16.msra.mxu0 %v2607
        %3895 = vmatprep.subr.bf16.mxu0 %v2612
        %3896 = vmatpush1.bf16.msra.mxu0 %v2611
        %3897 = vmatprep.subr.bf16.mxu0 %v2616
        %3898 = vmatpush1.bf16.msra.mxu0 %v2615
        %3899 = vmatprep.subr.bf16.mxu0 %v2620
        %3900 = vmatpush1.bf16.msra.mxu0 %v2619
        %3901 = vmatprep.subr.bf16.mxu0 %v2624
        %3902 = vmatpush1.bf16.msra.mxu0 %v2623
        %3903 = vmatprep.subr.bf16.mxu0 %v2628
        %3904 = vmatpush1.bf16.msra.mxu0 %v2627
        %3905 = vmatprep.subr.bf16.mxu0 %v2632
        %3906 = vmatpush1.bf16.msra.mxu0 %v2631
        %3907 = vmatprep.mubr.bf16.mxu0 %v835
        %3908 = vmatmul.mubr.bf16.gmra.mrb[0].mxu0 %v821
        %v3909 = vpop.f32.mrb[0].mxu0
        %v3910 = vadd.f32 %v3869, %v3909
        %v3911 = vpop.f32.mrb[0].mxu0
        %v3912 = vadd.f32 %v3871, %v3911
        %v3913 = vpop.f32.mrb[0].mxu0
        %v3914 = vpop.f32.mrb[0].mxu0
        %3915 = vdwg.mxu0
        %3916 = vmatprep.subr.bf16.mxu0 %v2636
        %3917 = vmatpush1.bf16.msra.mxu0 %v2635
        %3918 = vmatprep.subr.bf16.mxu0 %v2640
        %3919 = vmatpush1.bf16.msra.mxu0 %v2639
        %3920 = vmatprep.subr.bf16.mxu0 %v2644
        %3921 = vmatpush1.bf16.msra.mxu0 %v2643
        %3922 = vmatprep.subr.bf16.mxu0 %v2648
        %3923 = vmatpush1.bf16.msra.mxu0 %v2647
        %3924 = vmatprep.subr.bf16.mxu0 %v2652
        %3925 = vmatpush1.bf16.msra.mxu0 %v2651
        %3926 = vmatprep.subr.bf16.mxu0 %v2656
        %3927 = vmatpush1.bf16.msra.mxu0 %v2655
        %3928 = vmatprep.subr.bf16.mxu0 %v2660
        %3929 = vmatpush1.bf16.msra.mxu0 %v2659
        %3930 = vmatprep.subr.bf16.mxu0 %v2664
        %3931 = vmatpush1.bf16.msra.mxu0 %v2663
        %3932 = vmatprep.subr.bf16.mxu0 %v2668
        %3933 = vmatpush1.bf16.msra.mxu0 %v2667
        %3934 = vmatprep.subr.bf16.mxu0 %v2672
        %3935 = vmatpush1.bf16.msra.mxu0 %v2671
        %3936 = vmatprep.subr.bf16.mxu0 %v2676
        %3937 = vmatpush1.bf16.msra.mxu0 %v2675
        %3938 = vmatprep.subr.bf16.mxu0 %v2680
        %3939 = vmatpush1.bf16.msra.mxu0 %v2679
        %3940 = vmatprep.subr.bf16.mxu0 %v2684
        %3941 = vmatpush1.bf16.msra.mxu0 %v2683
        %3942 = vmatprep.subr.bf16.mxu0 %v2688
        %3943 = vmatpush1.bf16.msra.mxu0 %v2687
        %3944 = vmatprep.subr.bf16.mxu0 %v2692
        %3945 = vmatpush1.bf16.msra.mxu0 %v2691
        %3946 = vmatprep.subr.bf16.mxu0 %v2696
        %3947 = vmatpush1.bf16.msra.mxu0 %v2695
        %3948 = vmatprep.mubr.bf16.mxu0 %v839
        %3949 = vmatmul.mubr.bf16.gmra.mrb[0].mxu0 %v837
        %v3950 = vpop.f32.mrb[0].mxu0
        %v3951 = vadd.f32 %v3910, %v3950
        %v3952 = vpop.f32.mrb[0].mxu0
        %v3953 = vadd.f32 %v3912, %v3952
        %v3954 = vpop.f32.mrb[0].mxu0
        %v3955 = vpop.f32.mrb[0].mxu0
        %3956 = vdwg.mxu0
        %3957 = vmatprep.subr.bf16.mxu0 %v2700
        %3958 = vmatpush1.bf16.msra.mxu0 %v2699
        %3959 = vmatprep.subr.bf16.mxu0 %v2704
        %3960 = vmatpush1.bf16.msra.mxu0 %v2703
        %3961 = vmatprep.subr.bf16.mxu0 %v2708
        %3962 = vmatpush1.bf16.msra.mxu0 %v2707
        %3963 = vmatprep.subr.bf16.mxu0 %v2712
        %3964 = vmatpush1.bf16.msra.mxu0 %v2711
        %3965 = vmatprep.subr.bf16.mxu0 %v2716
        %3966 = vmatpush1.bf16.msra.mxu0 %v2715
        %3967 = vmatprep.subr.bf16.mxu0 %v2720
        %3968 = vmatpush1.bf16.msra.mxu0 %v2719
        %3969 = vmatprep.subr.bf16.mxu0 %v2724
        %3970 = vmatpush1.bf16.msra.mxu0 %v2723
        %3971 = vmatprep.subr.bf16.mxu0 %v2728
        %3972 = vmatpush1.bf16.msra.mxu0 %v2727
        %3973 = vmatprep.subr.bf16.mxu0 %v2732
        %3974 = vmatpush1.bf16.msra.mxu0 %v2731
        %3975 = vmatprep.subr.bf16.mxu0 %v2736
        %3976 = vmatpush1.bf16.msra.mxu0 %v2735
        %3977 = vmatprep.subr.bf16.mxu0 %v2740
        %3978 = vmatpush1.bf16.msra.mxu0 %v2739
        %3979 = vmatprep.subr.bf16.mxu0 %v2744
        %3980 = vmatpush1.bf16.msra.mxu0 %v2743
        %3981 = vmatprep.subr.bf16.mxu0 %v2748
        %3982 = vmatpush1.bf16.msra.mxu0 %v2747
        %3983 = vmatprep.subr.bf16.mxu0 %v2752
        %3984 = vmatpush1.bf16.msra.mxu0 %v2751
        %3985 = vmatprep.subr.bf16.mxu0 %v2756
        %3986 = vmatpush1.bf16.msra.mxu0 %v2755
        %3987 = vmatprep.subr.bf16.mxu0 %v2760
        %3988 = vmatpush1.bf16.msra.mxu0 %v2759
        %3989 = vmatprep.mubr.bf16.mxu0 %v877
        %3990 = vmatmul.mubr.bf16.gmra.mrb[0].mxu0 %v863
        %v3991 = vpop.f32.mrb[0].mxu0
        %v3992 = vadd.f32 %v3951, %v3991
        %v3993 = vpop.f32.mrb[0].mxu0
        %v3994 = vadd.f32 %v3953, %v3993
        %v3995 = vpop.f32.mrb[0].mxu0
        %v3996 = vpop.f32.mrb[0].mxu0
        %3997 = vdwg.mxu0
        %3998 = vmatprep.subr.bf16.mxu0 %v2764
        %3999 = vmatpush1.bf16.msra.mxu0 %v2763
        %4000 = vmatprep.subr.bf16.mxu0 %v2768
        %4001 = vmatpush1.bf16.msra.mxu0 %v2767
        %4002 = vmatprep.subr.bf16.mxu0 %v2772
        %4003 = vmatpush1.bf16.msra.mxu0 %v2771
        %4004 = vmatprep.subr.bf16.mxu0 %v2776
        %4005 = vmatpush1.bf16.msra.mxu0 %v2775
        %4006 = vmatprep.subr.bf16.mxu0 %v2780
        %4007 = vmatpush1.bf16.msra.mxu0 %v2779
        %4008 = vmatprep.subr.bf16.mxu0 %v2784
        %4009 = vmatpush1.bf16.msra.mxu0 %v2783
        %4010 = vmatprep.subr.bf16.mxu0 %v2788
        %4011 = vmatpush1.bf16.msra.mxu0 %v2787
        %4012 = vmatprep.subr.bf16.mxu0 %v2792
        %4013 = vmatpush1.bf16.msra.mxu0 %v2791
        %4014 = vmatprep.subr.bf16.mxu0 %v2796
        %4015 = vmatpush1.bf16.msra.mxu0 %v2795
        %4016 = vmatprep.subr.bf16.mxu0 %v2800
        %4017 = vmatpush1.bf16.msra.mxu0 %v2799
        %4018 = vmatprep.subr.bf16.mxu0 %v2804
        %4019 = vmatpush1.bf16.msra.mxu0 %v2803
        %4020 = vmatprep.subr.bf16.mxu0 %v2808
        %4021 = vmatpush1.bf16.msra.mxu0 %v2807
        %4022 = vmatprep.subr.bf16.mxu0 %v2812
        %4023 = vmatpush1.bf16.msra.mxu0 %v2811
        %4024 = vmatprep.subr.bf16.mxu0 %v2816
        %4025 = vmatpush1.bf16.msra.mxu0 %v2815
        %4026 = vmatprep.subr.bf16.mxu0 %v2820
        %4027 = vmatpush1.bf16.msra.mxu0 %v2819
        %4028 = vmatprep.subr.bf16.mxu0 %v2824
        %4029 = vmatpush1.bf16.msra.mxu0 %v2823
        %4030 = vmatprep.mubr.bf16.mxu0 %v887
        %4031 = vmatmul.mubr.bf16.gmra.mrb[0].mxu0 %v885
        %v4032 = vpop.f32.mrb[0].mxu0
        %v4033 = vadd.f32 %v3992, %v4032
        %v4034 = vpop.f32.mrb[0].mxu0
        %v4035 = vadd.f32 %v3994, %v4034
        %v4036 = vpop.f32.mrb[0].mxu0
        %v4037 = vpop.f32.mrb[0].mxu0
        %4038 = vdwg.mxu0
        %4039 = vmatprep.subr.bf16.mxu0 %v2828
        %4040 = vmatpush1.bf16.msra.mxu0 %v2827
        %4041 = vmatprep.subr.bf16.mxu0 %v2832
        %4042 = vmatpush1.bf16.msra.mxu0 %v2831
        %4043 = vmatprep.subr.bf16.mxu0 %v2836
        %4044 = vmatpush1.bf16.msra.mxu0 %v2835
        %4045 = vmatprep.subr.bf16.mxu0 %v2840
        %4046 = vmatpush1.bf16.msra.mxu0 %v2839
        %4047 = vmatprep.subr.bf16.mxu0 %v2844
        %4048 = vmatpush1.bf16.msra.mxu0 %v2843
        %4049 = vmatprep.subr.bf16.mxu0 %v2848
        %4050 = vmatpush1.bf16.msra.mxu0 %v2847
        %4051 = vmatprep.subr.bf16.mxu0 %v2852
        %4052 = vmatpush1.bf16.msra.mxu0 %v2851
        %4053 = vmatprep.subr.bf16.mxu0 %v2856
        %4054 = vmatpush1.bf16.msra.mxu0 %v2855
        %4055 = vmatprep.subr.bf16.mxu0 %v2860
        %4056 = vmatpush1.bf16.msra.mxu0 %v2859
        %4057 = vmatprep.subr.bf16.mxu0 %v2864
        %4058 = vmatpush1.bf16.msra.mxu0 %v2863
        %4059 = vmatprep.subr.bf16.mxu0 %v2868
        %4060 = vmatpush1.bf16.msra.mxu0 %v2867
        %4061 = vmatprep.subr.bf16.mxu0 %v2872
        %4062 = vmatpush1.bf16.msra.mxu0 %v2871
        %4063 = vmatprep.subr.bf16.mxu0 %v2876
        %4064 = vmatpush1.bf16.msra.mxu0 %v2875
        %4065 = vmatprep.subr.bf16.mxu0 %v2880
        %4066 = vmatpush1.bf16.msra.mxu0 %v2879
        %4067 = vmatprep.subr.bf16.mxu0 %v2884
        %4068 = vmatpush1.bf16.msra.mxu0 %v2883
        %4069 = vmatprep.subr.bf16.mxu0 %v2888
        %4070 = vmatpush1.bf16.msra.mxu0 %v2887
        %4071 = vmatprep.mubr.bf16.mxu0 %v884
        %4072 = vmatmul.mubr.bf16.gmra.mrb[0].mxu0 %v870
        %v4073 = vpop.f32.mrb[0].mxu0
        %v4074 = vadd.f32 %v4033, %v4073
        %v4075 = vpop.f32.mrb[0].mxu0
        %v4076 = vadd.f32 %v4035, %v4075
        %v4077 = vpop.f32.mrb[0].mxu0
        %v4078 = vpop.f32.mrb[0].mxu0
        %4079 = vdwg.mxu0
        %4080 = vmatprep.subr.bf16.mxu0 %v2892
        %4081 = vmatpush1.bf16.msra.mxu0 %v2891
        %4082 = vmatprep.subr.bf16.mxu0 %v2896
        %4083 = vmatpush1.bf16.msra.mxu0 %v2895
        %4084 = vmatprep.subr.bf16.mxu0 %v2900
        %4085 = vmatpush1.bf16.msra.mxu0 %v2899
        %4086 = vmatprep.subr.bf16.mxu0 %v2904
        %4087 = vmatpush1.bf16.msra.mxu0 %v2903
        %4088 = vmatprep.subr.bf16.mxu0 %v2908
        %4089 = vmatpush1.bf16.msra.mxu0 %v2907
        %4090 = vmatprep.subr.bf16.mxu0 %v2912
        %4091 = vmatpush1.bf16.msra.mxu0 %v2911
        %4092 = vmatprep.subr.bf16.mxu0 %v2916
        %4093 = vmatpush1.bf16.msra.mxu0 %v2915
        %4094 = vmatprep.subr.bf16.mxu0 %v2920
        %4095 = vmatpush1.bf16.msra.mxu0 %v2919
        %4096 = vmatprep.subr.bf16.mxu0 %v2924
        %4097 = vmatpush1.bf16.msra.mxu0 %v2923
        %4098 = vmatprep.subr.bf16.mxu0 %v2928
        %4099 = vmatpush1.bf16.msra.mxu0 %v2927
        %4100 = vmatprep.subr.bf16.mxu0 %v2932
        %4101 = vmatpush1.bf16.msra.mxu0 %v2931
        %4102 = vmatprep.subr.bf16.mxu0 %v2936
        %4103 = vmatpush1.bf16.msra.mxu0 %v2935
        %4104 = vmatprep.subr.bf16.mxu0 %v2940
        %4105 = vmatpush1.bf16.msra.mxu0 %v2939
        %4106 = vmatprep.subr.bf16.mxu0 %v2944
        %4107 = vmatpush1.bf16.msra.mxu0 %v2943
        %4108 = vmatprep.subr.bf16.mxu0 %v2948
        %4109 = vmatpush1.bf16.msra.mxu0 %v2947
        %4110 = vmatprep.subr.bf16.mxu0 %v2952
        %4111 = vmatpush1.bf16.msra.mxu0 %v2951
        %4112 = vmatprep.mubr.bf16.mxu0 %v888
        %4113 = vmatmul.mubr.bf16.gmra.mrb[0].mxu0 %v886
        %v4114 = vpop.f32.mrb[0].mxu0
        %v4115 = vadd.f32 %v4074, %v4114
        %v4116 = vpop.f32.mrb[0].mxu0
        %v4117 = vadd.f32 %v4076, %v4116
        %v4118 = vpop.f32.mrb[0].mxu0
        %v4119 = vpop.f32.mrb[0].mxu0
        %4120 = vdwg.mxu0
        %v4125 = vcombine.low %v3787, %v3789
        %v4126 = vcombine.low %v4115, %v4117
        %v4128 = vunpack.c.l.s4 1983009808
        %v4129 = vunpack.c.0.s8 %v4128
        %v4130 = vlaneseq
        %v4131 = vshrl.u32 %v4130, 7
        %v4132 = vsub.s32 %v4129, %v4131
        %v4133 = vrot.slane %v4125, %v4132
        %v4135 = vunpack.c.l.s4 1983009808
        %v4136 = vunpack.c.0.s8 %v4135
        %v4137 = vlaneseq
        %v4138 = vshrl.u32 %v4137, 7
        %v4139 = vsub.s32 %v4136, %v4138
        %v4140 = vrot.slane %v4126, %v4139
        %v4141 = vcombine.low %v4133, %v4140
        %v4143 = vadd.f32 %v274, %v4141
        %4144 = vst [vmem:[#allocation2] sm:$0xff] %v4143
        // Predicated region
        $region45: #{eeg_forward.4} parent=31 // pred_check
          %p4145 = pneg %p269
        $region46: #{eeg_forward.4} parent=31 // pred_check_branch
          %4147 = sbr.rel (%p4145) target = $region48
        $region47: #{eeg_forward.4} parent=31 // pred_region
          %v4148 = vld [vmem:[#allocation2] sm:$0xff]
          %v4149 = vld [vmem:[%s223] sm:$0xf]
          %v4151 = vlaneseq
          %v4152 = vshrl.u32 %v4151, 7
          %v4153 = vsub.s32 0, %v4152
          %v4154 = vrot.slane %v4149, %v4153
          %v4155 = vlaneseq
          %v4156 = vshrl.u32 %v4155, 7
          %v4157 = vsub.s32 1, %v4156
          %v4158 = vrot.slane %v4149, %v4157
          %v4159 = vlaneseq
          %v4160 = vshrl.u32 %v4159, 7
          %v4161 = vsub.s32 2, %v4160
          %v4162 = vrot.slane %v4149, %v4161
          %v4163 = vlaneseq
          %v4164 = vshrl.u32 %v4163, 7
          %v4165 = vsub.s32 3, %v4164
          %v4166 = vrot.slane %v4149, %v4165
          %v4167 = vcombine.low %v4154, %v4158
          %v4168 = vcombine.low %v4162, %v4166
          %v4170 = vunpack.c.l.s4 1983009808
          %v4171 = vunpack.c.0.s8 %v4170
          %v4172 = vlaneseq
          %v4173 = vshrl.u32 %v4172, 7
          %v4174 = vsub.s32 %v4171, %v4173
          %v4175 = vrot.slane %v4167, %v4174
          %v4177 = vunpack.c.l.s4 1983009808
          %v4178 = vunpack.c.0.s8 %v4177
          %v4179 = vlaneseq
          %v4180 = vshrl.u32 %v4179, 7
          %v4181 = vsub.s32 %v4178, %v4180
          %v4182 = vrot.slane %v4168, %v4181
          %v4183 = vcombine.low %v4175, %v4182
          %v4185 = vadd.f32 %v4148, %v4183
          %4186 = vst [vmem:[%s267] sm:$0xff] %v4185
        $region48: #{eeg_forward.4} parent=31 // pred_fallthru
          _
        %s4187 = smul.u32 4, %s24
        %p4188 = scmp.lt.s32.totalorder %s4187, 7
        %s4189 = scalar_select %p4188, %s4187, 7
        %s4190 = smul.addr %s4189, 2
        %s4191 = scalar_lea.vmem %s3, %s4190
        // Predicated region
        $region49: #{eeg_forward.4} parent=31 // pred_check
          %p4192 = pneg %p130
        $region50: #{eeg_forward.4} parent=31 // pred_check_branch
          %4194 = sbr.rel (%p4192) target = $region52
        $region51: #{eeg_forward.4} parent=31 // pred_region
          %s4195 = smul.u32 4, %s24
        $region52: #{eeg_forward.4} parent=31 // pred_fallthru
          _
      $region32: #{eeg_forward.4} parent=5 // pred_fallthru
        _
      %p4196 = scmp.le.s32.totalorder 2, %s15
      // Predicated region
      $region53: #{eeg_forward.4} parent=5 // pred_check
        %p4197 = pneg %p4196
      $region54: #{eeg_forward.4} parent=5 // pred_check_branch
        %4199 = sbr.rel (%p4197) target = $region56
      $region55: #{eeg_forward.4} parent=5 // pred_region
        %s4200 = ssub.s32 %s15, 2
        // Predicated region
        $region57: #{eeg_forward.4} parent=55 // pred_check
          %p4201 = pneg %p136
        $region58: #{eeg_forward.4} parent=55 // pred_check_branch
          %4203 = sbr.rel (%p4201) target = $region60
        $region59: #{eeg_forward.4} parent=55 // pred_region
          %s4204 = smul.u32 4, %s26
          %p4205 = scmp.lt.s32.totalorder %s4204, 7
          %s4206 = scalar_select %p4205, %s4204, 7
          %s4207 = smul.addr %s4206, 2
          %s4208 = scalar_lea.vmem %s3, %s4207
        $region60: #{eeg_forward.4} parent=55 // pred_fallthru
          _
      $region56: #{eeg_forward.4} parent=5 // pred_fallthru
        _
    $region6: #{eeg_forward.4} parent=1 // loop_footer
      %s19 = sadd.s32 1, %s15
    $region7: #{eeg_forward.4} parent=1 // loop_footer_branch
      %14 = sbr.rel target = $region3
    $region8: #{eeg_forward.4} parent=1 // loop_exit
      _
    %4209 = vsyncpa [#allocation4], 1
    %s4210 = scalar_lea.sflag [#allocation4], 1
    %4211 = vsyncpa %s4210, 1
    %4212 = vsyncpa [#allocation6], 1
    %s4213 = scalar_lea.sflag [#allocation6], 1
    %4214 = vsyncpa %s4213, 1

</llo_original>
